<compile_context>
chip_gen: v6e
topology: v6e:2x2x1
jax: 0.10.0
libtpu: 0.0.40
codegen_flags: <defaults>
</compile_context>

<pallas_src>
import jax
import jax.numpy as jnp
from jax.experimental import pallas as pl
from jax.experimental.pallas import tpu as pltpu


# ---------------------------------------------------------------------------
# Fused forward kernel.
# ---------------------------------------------------------------------------
def _fused_forward_kernel(
        tids_ref, cids_ref, emb_ref,
        t0_wx_ref, t0_wh_ref, t0_b_ref,
        t1_wx_ref, t1_wh_ref, t1_b_ref,
        c0_wx_ref, c0_wh_ref, c0_b_ref,
        c1_wx_ref, c1_wh_ref, c1_b_ref,
        fc_wt_ref, fc_wc_ref, fc_b_ref,
        out_ref):
    B, Tt = tids_ref.shape
    _, Tc = cids_ref.shape
    V, _E = emb_ref.shape
    H = t0_wh_ref.shape[0]

    # Hoisted once (broadcasts are not CSE'd inside loops).
    lane_iota = jax.lax.broadcasted_iota(jnp.int32, (B, V), 1)

    def embed(ids_col):                                   # ids_col: (B, 1) int32
        onehot = (ids_col == lane_iota).astype(jnp.float32)          # (B, V)
        return jnp.dot(onehot, emb_ref[...],
                       preferred_element_type=jnp.float32)            # (B, E)

    def gru_cell(x, h, wx_ref, wh_ref, b_ref):
        # g = x@Wx + h@Wh + b, laid out as [r | z | n_x | n_h]  -> (B, 4H)
        g = (jnp.dot(x, wx_ref[...], preferred_element_type=jnp.float32)
             + jnp.dot(h, wh_ref[...], preferred_element_type=jnp.float32)
             + b_ref[...])
        r = jax.nn.sigmoid(g[:, 0:H])
        z = jax.nn.sigmoid(g[:, H:2 * H])
        n = jnp.tanh(g[:, 2 * H:3 * H] + r * g[:, 3 * H:4 * H])
        return (1.0 - z) * n + z * h

    ht0 = jnp.zeros((B, H), jnp.float32)
    ht1 = jnp.zeros((B, H), jnp.float32)
    hc0 = jnp.zeros((B, H), jnp.float32)
    hc1 = jnp.zeros((B, H), jnp.float32)

    # TODO(synk): dropout omitted (eval/inference semantics -> identity).
    # Static wavefront over time: both stacks, both layers per timestep.
    for t in range(max(Tt, Tc)):
        if t < Tt:
            xt = embed(tids_ref[:, t:t + 1])
            ht0 = gru_cell(xt, ht0, t0_wx_ref, t0_wh_ref, t0_b_ref)
            ht1 = gru_cell(ht0, ht1, t1_wx_ref, t1_wh_ref, t1_b_ref)
        if t < Tc:
            xc = embed(cids_ref[:, t:t + 1])
            hc0 = gru_cell(xc, hc0, c0_wx_ref, c0_wh_ref, c0_b_ref)
            hc1 = gru_cell(hc0, hc1, c1_wx_ref, c1_wh_ref, c1_b_ref)

    # fc + sigmoid epilogue (fc weight pre-split per stack -> no concat).
    y = (jnp.dot(ht1, fc_wt_ref[...], preferred_element_type=jnp.float32)
         + jnp.dot(hc1, fc_wc_ref[...], preferred_element_type=jnp.float32)
         + fc_b_ref[...])
    out_ref[...] = jax.nn.sigmoid(y).astype(out_ref.dtype)


def fused_forward(title_ids, content_ids, kp):
    """Single pallas_call for the entire forward pass. Returns (B, 1) f32."""
    B = title_ids.shape[0]
    args = (title_ids, content_ids, kp["emb"],
            *kp["title"][0], *kp["title"][1],
            *kp["content"][0], *kp["content"][1],
            kp["fc_wt"], kp["fc_wc"], kp["fc_b"])

    def full(a):  # whole-array VMEM block
        return pl.BlockSpec(a.shape, lambda i: (0, 0))

    return pl.pallas_call(
        _fused_forward_kernel,
        out_shape=jax.ShapeDtypeStruct((B, 1), jnp.float32),
        grid_spec=pltpu.PrefetchScalarGridSpec(
            num_scalar_prefetch=0,
            grid=(1,),
            in_specs=[full(a) for a in args],
            out_specs=pl.BlockSpec((B, 1), lambda i: (0, 0)),
        ),
        compiler_params=pltpu.CompilerParams(
            dimension_semantics=("arbitrary",)),
    )(*args)


# ---------------------------------------------------------------------------
# PyTorch-shaped parameter construction and packing for the kernel layout.
# ---------------------------------------------------------------------------
def init_torch_params(key, vocab, emb_dim, hidden, layers):
    keys = jax.random.split(key, 32)
    it = iter(keys)

    emb = jax.random.normal(next(it), (vocab, emb_dim), jnp.float32)
    emb = emb.at[0].set(0.0)                      # padding_idx=0
    bound = 1.0 / (hidden ** 0.5)

    def stack():
        cells = []
        for layer in range(layers):
            din = emb_dim if layer == 0 else hidden
            w_ih = jax.random.uniform(next(it), (3 * hidden, din),
                                      jnp.float32, -bound, bound)
            w_hh = jax.random.uniform(next(it), (3 * hidden, hidden),
                                      jnp.float32, -bound, bound)
            b_ih = jax.random.uniform(next(it), (3 * hidden,),
                                      jnp.float32, -bound, bound)
            b_hh = jax.random.uniform(next(it), (3 * hidden,),
                                      jnp.float32, -bound, bound)
            cells.append((w_ih, w_hh, b_ih, b_hh))
        return cells

    title = stack()
    content = stack()

    fc_bound = 1.0 / ((2 * hidden) ** 0.5)
    fc_w = jax.random.uniform(next(it), (1, 2 * hidden),
                              jnp.float32, -fc_bound, fc_bound)
    fc_b = jax.random.uniform(next(it), (1,), jnp.float32, -fc_bound, fc_bound)
    return dict(emb=emb, title=title, content=content, fc_w=fc_w, fc_b=fc_b)


def _pack_gru_cell(w_ih, w_hh, b_ih, b_hh):
    """PyTorch (3H,*) gate order (r,z,n) -> kernel layout [r | z | n_x | n_h]."""
    H = w_hh.shape[1]
    din = w_ih.shape[1]
    wir, wiz, win = w_ih[:H], w_ih[H:2 * H], w_ih[2 * H:]
    whr, whz, whn = w_hh[:H], w_hh[H:2 * H], w_hh[2 * H:]
    bir, biz, bin_ = b_ih[:H], b_ih[H:2 * H], b_ih[2 * H:]
    bhr, bhz, bhn = b_hh[:H], b_hh[H:2 * H], b_hh[2 * H:]

    wx = jnp.concatenate(
        [wir.T, wiz.T, win.T, jnp.zeros((din, H), jnp.float32)], axis=1)
    wh = jnp.concatenate(
        [whr.T, whz.T, jnp.zeros((H, H), jnp.float32), whn.T], axis=1)
    b = jnp.concatenate([bir + bhr, biz + bhz, bin_, bhn])[None, :]
    return wx, wh, b


def pack_params(p):
    H = p["fc_w"].shape[1] // 2
    return dict(
        emb=p["emb"],
        title=[_pack_gru_cell(*c) for c in p["title"]],
        content=[_pack_gru_cell(*c) for c in p["content"]],
        fc_wt=p["fc_w"][:, :H].T,          # (H, 1)
        fc_wc=p["fc_w"][:, H:].T,          # (H, 1)
        fc_b=p["fc_b"].reshape(1, 1),      # (1, 1)
    )


# ---------------------------------------------------------------------------
# Pure-JAX reference (mirrors PyTorch nn.GRU / nn.Linear semantics).
# ---------------------------------------------------------------------------
def reference_forward(p, title_ids, content_ids):
    emb = p["emb"]

    def run_stack(ids, cells):
        out = emb[ids]                                    # (B, T, E)
        for (w_ih, w_hh, b_ih, b_hh) in cells:
            B, T, _ = out.shape
            H = w_hh.shape[1]
            h = jnp.zeros((B, H), jnp.float32)
            ys = []
            for t in range(T):
                gi = out[:, t] @ w_ih.T + b_ih
                gh = h @ w_hh.T + b_hh
                i_r, i_z, i_n = jnp.split(gi, 3, axis=1)
                h_r, h_z, h_n = jnp.split(gh, 3, axis=1)
                r = jax.nn.sigmoid(i_r + h_r)
                z = jax.nn.sigmoid(i_z + h_z)
                n = jnp.tanh(i_n + r * h_n)
                h = (1.0 - z) * n + z * h
                ys.append(h)
            out = jnp.stack(ys, axis=1)
        return out[:, -1]

    t_last = run_stack(title_ids, p["title"])
    c_last = run_stack(content_ids, p["content"])
    feats = jnp.concatenate([t_last, c_last], axis=1)
    return jax.nn.sigmoid(feats @ p["fc_w"].T + p["fc_b"])


if __name__ == "__main__":
    VOCAB, EMB, HID, LAYERS = 50, 32, 32, 2
    B, T_TITLE, T_CONTENT = 2, 8, 12

    key = jax.random.PRNGKey(0)
    k_params, k_t, k_c = jax.random.split(key, 3)

    torch_params = init_torch_params(k_params, VOCAB, EMB, HID, LAYERS)
    kparams = pack_params(torch_params)

    title_ids = jax.random.randint(k_t, (B, T_TITLE), 0, VOCAB, jnp.int32)
    content_ids = jax.random.randint(k_c, (B, T_CONTENT), 0, VOCAB, jnp.int32)
    # include some padding tokens (id 0), as padding_idx=0 in the embedding
    title_ids = title_ids.at[:, -2:].set(0)
    content_ids = content_ids.at[:, -3:].set(0)

    out = jax.jit(fused_forward)(title_ids, content_ids, kparams)
    out = jax.block_until_ready(out)

    ref = jax.block_until_ready(
        reference_forward(torch_params, title_ids, content_ids))

    assert out.shape == (B, 1) and out.dtype == jnp.float32
    assert bool(jnp.all(jnp.isfinite(out)))
    assert bool(jnp.all((out >= 0.0) & (out <= 1.0)))
    assert bool(jnp.max(jnp.abs(out - ref)) < 5e-2)
    print("KERNEL_OK")
</pallas_src>

<mosaic_0001>
module attributes {stable_mosaic.version = 11 : i64} {
  func.func @_fused_forward_kernel(%arg0: i32, %arg1: memref<2x8xi32, #tpu.memory_space<vmem>>, %arg2: memref<2x12xi32, #tpu.memory_space<vmem>>, %arg3: memref<50x32xf32, #tpu.memory_space<vmem>>, %arg4: memref<32x128xf32, #tpu.memory_space<vmem>>, %arg5: memref<32x128xf32, #tpu.memory_space<vmem>>, %arg6: memref<1x128xf32, #tpu.memory_space<vmem>>, %arg7: memref<32x128xf32, #tpu.memory_space<vmem>>, %arg8: memref<32x128xf32, #tpu.memory_space<vmem>>, %arg9: memref<1x128xf32, #tpu.memory_space<vmem>>, %arg10: memref<32x128xf32, #tpu.memory_space<vmem>>, %arg11: memref<32x128xf32, #tpu.memory_space<vmem>>, %arg12: memref<1x128xf32, #tpu.memory_space<vmem>>, %arg13: memref<32x128xf32, #tpu.memory_space<vmem>>, %arg14: memref<32x128xf32, #tpu.memory_space<vmem>>, %arg15: memref<1x128xf32, #tpu.memory_space<vmem>>, %arg16: memref<32x1xf32, #tpu.memory_space<vmem>>, %arg17: memref<32x1xf32, #tpu.memory_space<vmem>>, %arg18: memref<1x1xf32, #tpu.memory_space<vmem>>, %arg19: memref<2x1xf32, #tpu.memory_space<vmem>>) attributes {dimension_semantics = [#tpu.dimension_semantics<arbitrary>], iteration_bounds = array<i64: 1>, scalar_prefetch = 0 : i64, scratch_operands = 0 : i64, tpu.core_type = #tpu.core_type<tc>, window_params = [{pipeline_mode = #tpu.pipeline_mode<synchronous>, transform_indices = @transform_0, window_bounds = array<i64: 2, 8>}, {pipeline_mode = #tpu.pipeline_mode<synchronous>, transform_indices = @transform_1, window_bounds = array<i64: 2, 12>}, {pipeline_mode = #tpu.pipeline_mode<synchronous>, transform_indices = @transform_2, window_bounds = array<i64: 50, 32>}, {pipeline_mode = #tpu.pipeline_mode<synchronous>, transform_indices = @transform_3, window_bounds = array<i64: 32, 128>}, {pipeline_mode = #tpu.pipeline_mode<synchronous>, transform_indices = @transform_4, window_bounds = array<i64: 32, 128>}, {pipeline_mode = #tpu.pipeline_mode<synchronous>, transform_indices = @transform_5, window_bounds = array<i64: 1, 128>}, {pipeline_mode = #tpu.pipeline_mode<synchronous>, transform_indices = @transform_6, window_bounds = array<i64: 32, 128>}, {pipeline_mode = #tpu.pipeline_mode<synchronous>, transform_indices = @transform_7, window_bounds = array<i64: 32, 128>}, {pipeline_mode = #tpu.pipeline_mode<synchronous>, transform_indices = @transform_8, window_bounds = array<i64: 1, 128>}, {pipeline_mode = #tpu.pipeline_mode<synchronous>, transform_indices = @transform_9, window_bounds = array<i64: 32, 128>}, {pipeline_mode = #tpu.pipeline_mode<synchronous>, transform_indices = @transform_10, window_bounds = array<i64: 32, 128>}, {pipeline_mode = #tpu.pipeline_mode<synchronous>, transform_indices = @transform_11, window_bounds = array<i64: 1, 128>}, {pipeline_mode = #tpu.pipeline_mode<synchronous>, transform_indices = @transform_12, window_bounds = array<i64: 32, 128>}, {pipeline_mode = #tpu.pipeline_mode<synchronous>, transform_indices = @transform_13, window_bounds = array<i64: 32, 128>}, {pipeline_mode = #tpu.pipeline_mode<synchronous>, transform_indices = @transform_14, window_bounds = array<i64: 1, 128>}, {pipeline_mode = #tpu.pipeline_mode<synchronous>, transform_indices = @transform_15, window_bounds = array<i64: 32, 1>}, {pipeline_mode = #tpu.pipeline_mode<synchronous>, transform_indices = @transform_16, window_bounds = array<i64: 32, 1>}, {pipeline_mode = #tpu.pipeline_mode<synchronous>, transform_indices = @transform_17, window_bounds = array<i64: 1, 1>}, {pipeline_mode = #tpu.pipeline_mode<synchronous>, transform_indices = @transform_18, window_bounds = array<i64: 2, 1>}]} {
    %0 = tpu.iota {dimensions = array<i32: 1>} : vector<2x50xi32>
    %cst = arith.constant 0.000000e+00 : f32
    %1 = vector.broadcast %cst : f32 to vector<2x32xf32>
    %cst_0 = arith.constant 0.000000e+00 : f32
    %2 = vector.broadcast %cst_0 : f32 to vector<2x32xf32>
    %cst_1 = arith.constant 0.000000e+00 : f32
    %3 = vector.broadcast %cst_1 : f32 to vector<2x32xf32>
    %cst_2 = arith.constant 0.000000e+00 : f32
    %4 = vector.broadcast %cst_2 : f32 to vector<2x32xf32>
    %c0 = arith.constant 0 : index
    %c0_3 = arith.constant 0 : index
    %5 = vector.load %arg1[%c0, %c0_3] : memref<2x8xi32, #tpu.memory_space<vmem>>, vector<2x1xi32>
    %6 = vector.broadcast %5 : vector<2x1xi32> to vector<2x50xi32>
    %7 = arith.cmpi eq, %6, %0 : vector<2x50xi32>
    %8 = arith.extui %7 : vector<2x50xi1> to vector<2x50xi32>
    %9 = arith.sitofp %8 : vector<2x50xi32> to vector<2x50xf32>
    %c0_4 = arith.constant 0 : index
    %c0_5 = arith.constant 0 : index
    %10 = vector.load %arg3[%c0_4, %c0_5] : memref<50x32xf32, #tpu.memory_space<vmem>>, vector<50x32xf32>
    %cst_6 = arith.constant dense<0.000000e+00> : vector<2x32xf32>
    %11 = tpu.matmul %9, %10, %cst_6 {dimension_numbers = #tpu.dot_dimension_numbers<[1], [0], [0], [1], [0, 0, 1, 1], [], []>} : vector<2x50xf32>, vector<50x32xf32>, vector<2x32xf32> -> vector<2x32xf32>
    %c0_7 = arith.constant 0 : index
    %c0_8 = arith.constant 0 : index
    %12 = vector.load %arg4[%c0_7, %c0_8] : memref<32x128xf32, #tpu.memory_space<vmem>>, vector<32x128xf32>
    %cst_9 = arith.constant dense<0.000000e+00> : vector<2x128xf32>
    %13 = tpu.matmul %11, %12, %cst_9 {dimension_numbers = #tpu.dot_dimension_numbers<[1], [0], [0], [1], [0, 0, 1, 1], [], []>} : vector<2x32xf32>, vector<32x128xf32>, vector<2x128xf32> -> vector<2x128xf32>
    %c0_10 = arith.constant 0 : index
    %c0_11 = arith.constant 0 : index
    %14 = vector.load %arg5[%c0_10, %c0_11] : memref<32x128xf32, #tpu.memory_space<vmem>>, vector<32x128xf32>
    %cst_12 = arith.constant dense<0.000000e+00> : vector<2x128xf32>
    %15 = tpu.matmul %1, %14, %cst_12 {dimension_numbers = #tpu.dot_dimension_numbers<[1], [0], [0], [1], [0, 0, 1, 1], [], []>} : vector<2x32xf32>, vector<32x128xf32>, vector<2x128xf32> -> vector<2x128xf32>
    %16 = arith.addf %13, %15 : vector<2x128xf32>
    %c0_13 = arith.constant 0 : index
    %c0_14 = arith.constant 0 : index
    %17 = vector.load %arg6[%c0_13, %c0_14] : memref<1x128xf32, #tpu.memory_space<vmem>>, vector<1x128xf32>
    %18 = vector.broadcast %17 : vector<1x128xf32> to vector<2x128xf32>
    %19 = arith.addf %16, %18 : vector<2x128xf32>
    %20 = vector.extract_strided_slice %19 {offsets = [0, 0], sizes = [2, 32], strides = [1, 1]} : vector<2x128xf32> to vector<2x32xf32>
    %21 = arith.negf %20 : vector<2x32xf32>
    %22 = math.exp %21 : vector<2x32xf32>
    %cst_15 = arith.constant 1.000000e+00 : f32
    %23 = vector.broadcast %cst_15 : f32 to vector<2x32xf32>
    %24 = arith.addf %23, %22 : vector<2x32xf32>
    %25 = arith.divf %23, %24 : vector<2x32xf32>
    %26 = vector.extract_strided_slice %19 {offsets = [0, 32], sizes = [2, 32], strides = [1, 1]} : vector<2x128xf32> to vector<2x32xf32>
    %27 = arith.negf %26 : vector<2x32xf32>
    %28 = math.exp %27 : vector<2x32xf32>
    %cst_16 = arith.constant 1.000000e+00 : f32
    %29 = vector.broadcast %cst_16 : f32 to vector<2x32xf32>
    %30 = arith.addf %29, %28 : vector<2x32xf32>
    %31 = arith.divf %29, %30 : vector<2x32xf32>
    %32 = vector.extract_strided_slice %19 {offsets = [0, 64], sizes = [2, 32], strides = [1, 1]} : vector<2x128xf32> to vector<2x32xf32>
    %33 = vector.extract_strided_slice %19 {offsets = [0, 96], sizes = [2, 32], strides = [1, 1]} : vector<2x128xf32> to vector<2x32xf32>
    %34 = arith.mulf %25, %33 : vector<2x32xf32>
    %35 = arith.addf %32, %34 : vector<2x32xf32>
    %36 = math.tanh %35 : vector<2x32xf32>
    %cst_17 = arith.constant 1.000000e+00 : f32
    %37 = vector.broadcast %cst_17 : f32 to vector<2x32xf32>
    %38 = arith.subf %37, %31 : vector<2x32xf32>
    %39 = arith.mulf %38, %36 : vector<2x32xf32>
    %40 = arith.mulf %31, %1 : vector<2x32xf32>
    %41 = arith.addf %39, %40 : vector<2x32xf32>
    %c0_18 = arith.constant 0 : index
    %c0_19 = arith.constant 0 : index
    %42 = vector.load %arg7[%c0_18, %c0_19] : memref<32x128xf32, #tpu.memory_space<vmem>>, vector<32x128xf32>
    %cst_20 = arith.constant dense<0.000000e+00> : vector<2x128xf32>
    %43 = tpu.matmul %41, %42, %cst_20 {dimension_numbers = #tpu.dot_dimension_numbers<[1], [0], [0], [1], [0, 0, 1, 1], [], []>} : vector<2x32xf32>, vector<32x128xf32>, vector<2x128xf32> -> vector<2x128xf32>
    %c0_21 = arith.constant 0 : index
    %c0_22 = arith.constant 0 : index
    %44 = vector.load %arg8[%c0_21, %c0_22] : memref<32x128xf32, #tpu.memory_space<vmem>>, vector<32x128xf32>
    %cst_23 = arith.constant dense<0.000000e+00> : vector<2x128xf32>
    %45 = tpu.matmul %2, %44, %cst_23 {dimension_numbers = #tpu.dot_dimension_numbers<[1], [0], [0], [1], [0, 0, 1, 1], [], []>} : vector<2x32xf32>, vector<32x128xf32>, vector<2x128xf32> -> vector<2x128xf32>
    %46 = arith.addf %43, %45 : vector<2x128xf32>
    %c0_24 = arith.constant 0 : index
    %c0_25 = arith.constant 0 : index
    %47 = vector.load %arg9[%c0_24, %c0_25] : memref<1x128xf32, #tpu.memory_space<vmem>>, vector<1x128xf32>
    %48 = vector.broadcast %47 : vector<1x128xf32> to vector<2x128xf32>
    %49 = arith.addf %46, %48 : vector<2x128xf32>
    %50 = vector.extract_strided_slice %49 {offsets = [0, 0], sizes = [2, 32], strides = [1, 1]} : vector<2x128xf32> to vector<2x32xf32>
    %51 = arith.negf %50 : vector<2x32xf32>
    %52 = math.exp %51 : vector<2x32xf32>
    %cst_26 = arith.constant 1.000000e+00 : f32
    %53 = vector.broadcast %cst_26 : f32 to vector<2x32xf32>
    %54 = arith.addf %53, %52 : vector<2x32xf32>
    %55 = arith.divf %53, %54 : vector<2x32xf32>
    %56 = vector.extract_strided_slice %49 {offsets = [0, 32], sizes = [2, 32], strides = [1, 1]} : vector<2x128xf32> to vector<2x32xf32>
    %57 = arith.negf %56 : vector<2x32xf32>
    %58 = math.exp %57 : vector<2x32xf32>
    %cst_27 = arith.constant 1.000000e+00 : f32
    %59 = vector.broadcast %cst_27 : f32 to vector<2x32xf32>
    %60 = arith.addf %59, %58 : vector<2x32xf32>
    %61 = arith.divf %59, %60 : vector<2x32xf32>
    %62 = vector.extract_strided_slice %49 {offsets = [0, 64], sizes = [2, 32], strides = [1, 1]} : vector<2x128xf32> to vector<2x32xf32>
    %63 = vector.extract_strided_slice %49 {offsets = [0, 96], sizes = [2, 32], strides = [1, 1]} : vector<2x128xf32> to vector<2x32xf32>
    %64 = arith.mulf %55, %63 : vector<2x32xf32>
    %65 = arith.addf %62, %64 : vector<2x32xf32>
    %66 = math.tanh %65 : vector<2x32xf32>
    %cst_28 = arith.constant 1.000000e+00 : f32
    %67 = vector.broadcast %cst_28 : f32 to vector<2x32xf32>
    %68 = arith.subf %67, %61 : vector<2x32xf32>
    %69 = arith.mulf %68, %66 : vector<2x32xf32>
    %70 = arith.mulf %61, %2 : vector<2x32xf32>
    %71 = arith.addf %69, %70 : vector<2x32xf32>
    %c0_29 = arith.constant 0 : index
    %c0_30 = arith.constant 0 : index
    %72 = vector.load %arg2[%c0_29, %c0_30] : memref<2x12xi32, #tpu.memory_space<vmem>>, vector<2x1xi32>
    %73 = vector.broadcast %72 : vector<2x1xi32> to vector<2x50xi32>
    %74 = arith.cmpi eq, %73, %0 : vector<2x50xi32>
    %75 = arith.extui %74 : vector<2x50xi1> to vector<2x50xi32>
    %76 = arith.sitofp %75 : vector<2x50xi32> to vector<2x50xf32>
    %c0_31 = arith.constant 0 : index
    %c0_32 = arith.constant 0 : index
    %77 = vector.load %arg3[%c0_31, %c0_32] : memref<50x32xf32, #tpu.memory_space<vmem>>, vector<50x32xf32>
    %cst_33 = arith.constant dense<0.000000e+00> : vector<2x32xf32>
    %78 = tpu.matmul %76, %77, %cst_33 {dimension_numbers = #tpu.dot_dimension_numbers<[1], [0], [0], [1], [0, 0, 1, 1], [], []>} : vector<2x50xf32>, vector<50x32xf32>, vector<2x32xf32> -> vector<2x32xf32>
    %c0_34 = arith.constant 0 : index
    %c0_35 = arith.constant 0 : index
    %79 = vector.load %arg10[%c0_34, %c0_35] : memref<32x128xf32, #tpu.memory_space<vmem>>, vector<32x128xf32>
    %cst_36 = arith.constant dense<0.000000e+00> : vector<2x128xf32>
    %80 = tpu.matmul %78, %79, %cst_36 {dimension_numbers = #tpu.dot_dimension_numbers<[1], [0], [0], [1], [0, 0, 1, 1], [], []>} : vector<2x32xf32>, vector<32x128xf32>, vector<2x128xf32> -> vector<2x128xf32>
    %c0_37 = arith.constant 0 : index
    %c0_38 = arith.constant 0 : index
    %81 = vector.load %arg11[%c0_37, %c0_38] : memref<32x128xf32, #tpu.memory_space<vmem>>, vector<32x128xf32>
    %cst_39 = arith.constant dense<0.000000e+00> : vector<2x128xf32>
    %82 = tpu.matmul %3, %81, %cst_39 {dimension_numbers = #tpu.dot_dimension_numbers<[1], [0], [0], [1], [0, 0, 1, 1], [], []>} : vector<2x32xf32>, vector<32x128xf32>, vector<2x128xf32> -> vector<2x128xf32>
    %83 = arith.addf %80, %82 : vector<2x128xf32>
    %c0_40 = arith.constant 0 : index
    %c0_41 = arith.constant 0 : index
    %84 = vector.load %arg12[%c0_40, %c0_41] : memref<1x128xf32, #tpu.memory_space<vmem>>, vector<1x128xf32>
    %85 = vector.broadcast %84 : vector<1x128xf32> to vector<2x128xf32>
    %86 = arith.addf %83, %85 : vector<2x128xf32>
    %87 = vector.extract_strided_slice %86 {offsets = [0, 0], sizes = [2, 32], strides = [1, 1]} : vector<2x128xf32> to vector<2x32xf32>
    %88 = arith.negf %87 : vector<2x32xf32>
    %89 = math.exp %88 : vector<2x32xf32>
    %cst_42 = arith.constant 1.000000e+00 : f32
    %90 = vector.broadcast %cst_42 : f32 to vector<2x32xf32>
    %91 = arith.addf %90, %89 : vector<2x32xf32>
    %92 = arith.divf %90, %91 : vector<2x32xf32>
    %93 = vector.extract_strided_slice %86 {offsets = [0, 32], sizes = [2, 32], strides = [1, 1]} : vector<2x128xf32> to vector<2x32xf32>
    %94 = arith.negf %93 : vector<2x32xf32>
    %95 = math.exp %94 : vector<2x32xf32>
    %cst_43 = arith.constant 1.000000e+00 : f32
    %96 = vector.broadcast %cst_43 : f32 to vector<2x32xf32>
    %97 = arith.addf %96, %95 : vector<2x32xf32>
    %98 = arith.divf %96, %97 : vector<2x32xf32>
    %99 = vector.extract_strided_slice %86 {offsets = [0, 64], sizes = [2, 32], strides = [1, 1]} : vector<2x128xf32> to vector<2x32xf32>
    %100 = vector.extract_strided_slice %86 {offsets = [0, 96], sizes = [2, 32], strides = [1, 1]} : vector<2x128xf32> to vector<2x32xf32>
    %101 = arith.mulf %92, %100 : vector<2x32xf32>
    %102 = arith.addf %99, %101 : vector<2x32xf32>
    %103 = math.tanh %102 : vector<2x32xf32>
    %cst_44 = arith.constant 1.000000e+00 : f32
    %104 = vector.broadcast %cst_44 : f32 to vector<2x32xf32>
    %105 = arith.subf %104, %98 : vector<2x32xf32>
    %106 = arith.mulf %105, %103 : vector<2x32xf32>
    %107 = arith.mulf %98, %3 : vector<2x32xf32>
    %108 = arith.addf %106, %107 : vector<2x32xf32>
    %c0_45 = arith.constant 0 : index
    %c0_46 = arith.constant 0 : index
    %109 = vector.load %arg13[%c0_45, %c0_46] : memref<32x128xf32, #tpu.memory_space<vmem>>, vector<32x128xf32>
    %cst_47 = arith.constant dense<0.000000e+00> : vector<2x128xf32>
    %110 = tpu.matmul %108, %109, %cst_47 {dimension_numbers = #tpu.dot_dimension_numbers<[1], [0], [0], [1], [0, 0, 1, 1], [], []>} : vector<2x32xf32>, vector<32x128xf32>, vector<2x128xf32> -> vector<2x128xf32>
    %c0_48 = arith.constant 0 : index
    %c0_49 = arith.constant 0 : index
    %111 = vector.load %arg14[%c0_48, %c0_49] : memref<32x128xf32, #tpu.memory_space<vmem>>, vector<32x128xf32>
    %cst_50 = arith.constant dense<0.000000e+00> : vector<2x128xf32>
    %112 = tpu.matmul %4, %111, %cst_50 {dimension_numbers = #tpu.dot_dimension_numbers<[1], [0], [0], [1], [0, 0, 1, 1], [], []>} : vector<2x32xf32>, vector<32x128xf32>, vector<2x128xf32> -> vector<2x128xf32>
    %113 = arith.addf %110, %112 : vector<2x128xf32>
    %c0_51 = arith.constant 0 : index
    %c0_52 = arith.constant 0 : index
    %114 = vector.load %arg15[%c0_51, %c0_52] : memref<1x128xf32, #tpu.memory_space<vmem>>, vector<1x128xf32>
    %115 = vector.broadcast %114 : vector<1x128xf32> to vector<2x128xf32>
    %116 = arith.addf %113, %115 : vector<2x128xf32>
    %117 = vector.extract_strided_slice %116 {offsets = [0, 0], sizes = [2, 32], strides = [1, 1]} : vector<2x128xf32> to vector<2x32xf32>
    %118 = arith.negf %117 : vector<2x32xf32>
    %119 = math.exp %118 : vector<2x32xf32>
    %cst_53 = arith.constant 1.000000e+00 : f32
    %120 = vector.broadcast %cst_53 : f32 to vector<2x32xf32>
    %121 = arith.addf %120, %119 : vector<2x32xf32>
    %122 = arith.divf %120, %121 : vector<2x32xf32>
    %123 = vector.extract_strided_slice %116 {offsets = [0, 32], sizes = [2, 32], strides = [1, 1]} : vector<2x128xf32> to vector<2x32xf32>
    %124 = arith.negf %123 : vector<2x32xf32>
    %125 = math.exp %124 : vector<2x32xf32>
    %cst_54 = arith.constant 1.000000e+00 : f32
    %126 = vector.broadcast %cst_54 : f32 to vector<2x32xf32>
    %127 = arith.addf %126, %125 : vector<2x32xf32>
    %128 = arith.divf %126, %127 : vector<2x32xf32>
    %129 = vector.extract_strided_slice %116 {offsets = [0, 64], sizes = [2, 32], strides = [1, 1]} : vector<2x128xf32> to vector<2x32xf32>
    %130 = vector.extract_strided_slice %116 {offsets = [0, 96], sizes = [2, 32], strides = [1, 1]} : vector<2x128xf32> to vector<2x32xf32>
    %131 = arith.mulf %122, %130 : vector<2x32xf32>
    %132 = arith.addf %129, %131 : vector<2x32xf32>
    %133 = math.tanh %132 : vector<2x32xf32>
    %cst_55 = arith.constant 1.000000e+00 : f32
    %134 = vector.broadcast %cst_55 : f32 to vector<2x32xf32>
    %135 = arith.subf %134, %128 : vector<2x32xf32>
    %136 = arith.mulf %135, %133 : vector<2x32xf32>
    %137 = arith.mulf %128, %4 : vector<2x32xf32>
    %138 = arith.addf %136, %137 : vector<2x32xf32>
    %c0_56 = arith.constant 0 : index
    %c1 = arith.constant 1 : index
    %139 = vector.load %arg1[%c0_56, %c1] : memref<2x8xi32, #tpu.memory_space<vmem>>, vector<2x1xi32>
    %140 = vector.broadcast %139 : vector<2x1xi32> to vector<2x50xi32>
    %141 = arith.cmpi eq, %140, %0 : vector<2x50xi32>
    %142 = arith.extui %141 : vector<2x50xi1> to vector<2x50xi32>
    %143 = arith.sitofp %142 : vector<2x50xi32> to vector<2x50xf32>
    %c0_57 = arith.constant 0 : index
    %c0_58 = arith.constant 0 : index
    %144 = vector.load %arg3[%c0_57, %c0_58] : memref<50x32xf32, #tpu.memory_space<vmem>>, vector<50x32xf32>
    %cst_59 = arith.constant dense<0.000000e+00> : vector<2x32xf32>
    %145 = tpu.matmul %143, %144, %cst_59 {dimension_numbers = #tpu.dot_dimension_numbers<[1], [0], [0], [1], [0, 0, 1, 1], [], []>} : vector<2x50xf32>, vector<50x32xf32>, vector<2x32xf32> -> vector<2x32xf32>
    %c0_60 = arith.constant 0 : index
    %c0_61 = arith.constant 0 : index
    %146 = vector.load %arg4[%c0_60, %c0_61] : memref<32x128xf32, #tpu.memory_space<vmem>>, vector<32x128xf32>
    %cst_62 = arith.constant dense<0.000000e+00> : vector<2x128xf32>
    %147 = tpu.matmul %145, %146, %cst_62 {dimension_numbers = #tpu.dot_dimension_numbers<[1], [0], [0], [1], [0, 0, 1, 1], [], []>} : vector<2x32xf32>, vector<32x128xf32>, vector<2x128xf32> -> vector<2x128xf32>
    %c0_63 = arith.constant 0 : index
    %c0_64 = arith.constant 0 : index
    %148 = vector.load %arg5[%c0_63, %c0_64] : memref<32x128xf32, #tpu.memory_space<vmem>>, vector<32x128xf32>
    %cst_65 = arith.constant dense<0.000000e+00> : vector<2x128xf32>
    %149 = tpu.matmul %41, %148, %cst_65 {dimension_numbers = #tpu.dot_dimension_numbers<[1], [0], [0], [1], [0, 0, 1, 1], [], []>} : vector<2x32xf32>, vector<32x128xf32>, vector<2x128xf32> -> vector<2x128xf32>
    %150 = arith.addf %147, %149 : vector<2x128xf32>
    %c0_66 = arith.constant 0 : index
    %c0_67 = arith.constant 0 : index
    %151 = vector.load %arg6[%c0_66, %c0_67] : memref<1x128xf32, #tpu.memory_space<vmem>>, vector<1x128xf32>
    %152 = vector.broadcast %151 : vector<1x128xf32> to vector<2x128xf32>
    %153 = arith.addf %150, %152 : vector<2x128xf32>
    %154 = vector.extract_strided_slice %153 {offsets = [0, 0], sizes = [2, 32], strides = [1, 1]} : vector<2x128xf32> to vector<2x32xf32>
    %155 = arith.negf %154 : vector<2x32xf32>
    %156 = math.exp %155 : vector<2x32xf32>
    %cst_68 = arith.constant 1.000000e+00 : f32
    %157 = vector.broadcast %cst_68 : f32 to vector<2x32xf32>
    %158 = arith.addf %157, %156 : vector<2x32xf32>
    %159 = arith.divf %157, %158 : vector<2x32xf32>
    %160 = vector.extract_strided_slice %153 {offsets = [0, 32], sizes = [2, 32], strides = [1, 1]} : vector<2x128xf32> to vector<2x32xf32>
    %161 = arith.negf %160 : vector<2x32xf32>
    %162 = math.exp %161 : vector<2x32xf32>
    %cst_69 = arith.constant 1.000000e+00 : f32
    %163 = vector.broadcast %cst_69 : f32 to vector<2x32xf32>
    %164 = arith.addf %163, %162 : vector<2x32xf32>
    %165 = arith.divf %163, %164 : vector<2x32xf32>
    %166 = vector.extract_strided_slice %153 {offsets = [0, 64], sizes = [2, 32], strides = [1, 1]} : vector<2x128xf32> to vector<2x32xf32>
    %167 = vector.extract_strided_slice %153 {offsets = [0, 96], sizes = [2, 32], strides = [1, 1]} : vector<2x128xf32> to vector<2x32xf32>
    %168 = arith.mulf %159, %167 : vector<2x32xf32>
    %169 = arith.addf %166, %168 : vector<2x32xf32>
    %170 = math.tanh %169 : vector<2x32xf32>
    %cst_70 = arith.constant 1.000000e+00 : f32
    %171 = vector.broadcast %cst_70 : f32 to vector<2x32xf32>
    %172 = arith.subf %171, %165 : vector<2x32xf32>
    %173 = arith.mulf %172, %170 : vector<2x32xf32>
    %174 = arith.mulf %165, %41 : vector<2x32xf32>
    %175 = arith.addf %173, %174 : vector<2x32xf32>
    %c0_71 = arith.constant 0 : index
    %c0_72 = arith.constant 0 : index
    %176 = vector.load %arg7[%c0_71, %c0_72] : memref<32x128xf32, #tpu.memory_space<vmem>>, vector<32x128xf32>
    %cst_73 = arith.constant dense<0.000000e+00> : vector<2x128xf32>
    %177 = tpu.matmul %175, %176, %cst_73 {dimension_numbers = #tpu.dot_dimension_numbers<[1], [0], [0], [1], [0, 0, 1, 1], [], []>} : vector<2x32xf32>, vector<32x128xf32>, vector<2x128xf32> -> vector<2x128xf32>
    %c0_74 = arith.constant 0 : index
    %c0_75 = arith.constant 0 : index
    %178 = vector.load %arg8[%c0_74, %c0_75] : memref<32x128xf32, #tpu.memory_space<vmem>>, vector<32x128xf32>
    %cst_76 = arith.constant dense<0.000000e+00> : vector<2x128xf32>
    %179 = tpu.matmul %71, %178, %cst_76 {dimension_numbers = #tpu.dot_dimension_numbers<[1], [0], [0], [1], [0, 0, 1, 1], [], []>} : vector<2x32xf32>, vector<32x128xf32>, vector<2x128xf32> -> vector<2x128xf32>
    %180 = arith.addf %177, %179 : vector<2x128xf32>
    %c0_77 = arith.constant 0 : index
    %c0_78 = arith.constant 0 : index
    %181 = vector.load %arg9[%c0_77, %c0_78] : memref<1x128xf32, #tpu.memory_space<vmem>>, vector<1x128xf32>
    %182 = vector.broadcast %181 : vector<1x128xf32> to vector<2x128xf32>
    %183 = arith.addf %180, %182 : vector<2x128xf32>
    %184 = vector.extract_strided_slice %183 {offsets = [0, 0], sizes = [2, 32], strides = [1, 1]} : vector<2x128xf32> to vector<2x32xf32>
    %185 = arith.negf %184 : vector<2x32xf32>
    %186 = math.exp %185 : vector<2x32xf32>
    %cst_79 = arith.constant 1.000000e+00 : f32
    %187 = vector.broadcast %cst_79 : f32 to vector<2x32xf32>
    %188 = arith.addf %187, %186 : vector<2x32xf32>
    %189 = arith.divf %187, %188 : vector<2x32xf32>
    %190 = vector.extract_strided_slice %183 {offsets = [0, 32], sizes = [2, 32], strides = [1, 1]} : vector<2x128xf32> to vector<2x32xf32>
    %191 = arith.negf %190 : vector<2x32xf32>
    %192 = math.exp %191 : vector<2x32xf32>
    %cst_80 = arith.constant 1.000000e+00 : f32
    %193 = vector.broadcast %cst_80 : f32 to vector<2x32xf32>
    %194 = arith.addf %193, %192 : vector<2x32xf32>
    %195 = arith.divf %193, %194 : vector<2x32xf32>
    %196 = vector.extract_strided_slice %183 {offsets = [0, 64], sizes = [2, 32], strides = [1, 1]} : vector<2x128xf32> to vector<2x32xf32>
    %197 = vector.extract_strided_slice %183 {offsets = [0, 96], sizes = [2, 32], strides = [1, 1]} : vector<2x128xf32> to vector<2x32xf32>
    %198 = arith.mulf %189, %197 : vector<2x32xf32>
    %199 = arith.addf %196, %198 : vector<2x32xf32>
    %200 = math.tanh %199 : vector<2x32xf32>
    %cst_81 = arith.constant 1.000000e+00 : f32
    %201 = vector.broadcast %cst_81 : f32 to vector<2x32xf32>
    %202 = arith.subf %201, %195 : vector<2x32xf32>
    %203 = arith.mulf %202, %200 : vector<2x32xf32>
    %204 = arith.mulf %195, %71 : vector<2x32xf32>
    %205 = arith.addf %203, %204 : vector<2x32xf32>
    %c0_82 = arith.constant 0 : index
    %c1_83 = arith.constant 1 : index
    %206 = vector.load %arg2[%c0_82, %c1_83] : memref<2x12xi32, #tpu.memory_space<vmem>>, vector<2x1xi32>
    %207 = vector.broadcast %206 : vector<2x1xi32> to vector<2x50xi32>
    %208 = arith.cmpi eq, %207, %0 : vector<2x50xi32>
    %209 = arith.extui %208 : vector<2x50xi1> to vector<2x50xi32>
    %210 = arith.sitofp %209 : vector<2x50xi32> to vector<2x50xf32>
    %c0_84 = arith.constant 0 : index
    %c0_85 = arith.constant 0 : index
    %211 = vector.load %arg3[%c0_84, %c0_85] : memref<50x32xf32, #tpu.memory_space<vmem>>, vector<50x32xf32>
    %cst_86 = arith.constant dense<0.000000e+00> : vector<2x32xf32>
    %212 = tpu.matmul %210, %211, %cst_86 {dimension_numbers = #tpu.dot_dimension_numbers<[1], [0], [0], [1], [0, 0, 1, 1], [], []>} : vector<2x50xf32>, vector<50x32xf32>, vector<2x32xf32> -> vector<2x32xf32>
    %c0_87 = arith.constant 0 : index
    %c0_88 = arith.constant 0 : index
    %213 = vector.load %arg10[%c0_87, %c0_88] : memref<32x128xf32, #tpu.memory_space<vmem>>, vector<32x128xf32>
    %cst_89 = arith.constant dense<0.000000e+00> : vector<2x128xf32>
    %214 = tpu.matmul %212, %213, %cst_89 {dimension_numbers = #tpu.dot_dimension_numbers<[1], [0], [0], [1], [0, 0, 1, 1], [], []>} : vector<2x32xf32>, vector<32x128xf32>, vector<2x128xf32> -> vector<2x128xf32>
    %c0_90 = arith.constant 0 : index
    %c0_91 = arith.constant 0 : index
    %215 = vector.load %arg11[%c0_90, %c0_91] : memref<32x128xf32, #tpu.memory_space<vmem>>, vector<32x128xf32>
    %cst_92 = arith.constant dense<0.000000e+00> : vector<2x128xf32>
    %216 = tpu.matmul %108, %215, %cst_92 {dimension_numbers = #tpu.dot_dimension_numbers<[1], [0], [0], [1], [0, 0, 1, 1], [], []>} : vector<2x32xf32>, vector<32x128xf32>, vector<2x128xf32> -> vector<2x128xf32>
    %217 = arith.addf %214, %216 : vector<2x128xf32>
    %c0_93 = arith.constant 0 : index
    %c0_94 = arith.constant 0 : index
    %218 = vector.load %arg12[%c0_93, %c0_94] : memref<1x128xf32, #tpu.memory_space<vmem>>, vector<1x128xf32>
    %219 = vector.broadcast %218 : vector<1x128xf32> to vector<2x128xf32>
    %220 = arith.addf %217, %219 : vector<2x128xf32>
    %221 = vector.extract_strided_slice %220 {offsets = [0, 0], sizes = [2, 32], strides = [1, 1]} : vector<2x128xf32> to vector<2x32xf32>
    %222 = arith.negf %221 : vector<2x32xf32>
    %223 = math.exp %222 : vector<2x32xf32>
    %cst_95 = arith.constant 1.000000e+00 : f32
    %224 = vector.broadcast %cst_95 : f32 to vector<2x32xf32>
    %225 = arith.addf %224, %223 : vector<2x32xf32>
    %226 = arith.divf %224, %225 : vector<2x32xf32>
    %227 = vector.extract_strided_slice %220 {offsets = [0, 32], sizes = [2, 32], strides = [1, 1]} : vector<2x128xf32> to vector<2x32xf32>
    %228 = arith.negf %227 : vector<2x32xf32>
    %229 = math.exp %228 : vector<2x32xf32>
    %cst_96 = arith.constant 1.000000e+00 : f32
    %230 = vector.broadcast %cst_96 : f32 to vector<2x32xf32>
    %231 = arith.addf %230, %229 : vector<2x32xf32>
    %232 = arith.divf %230, %231 : vector<2x32xf32>
    %233 = vector.extract_strided_slice %220 {offsets = [0, 64], sizes = [2, 32], strides = [1, 1]} : vector<2x128xf32> to vector<2x32xf32>
    %234 = vector.extract_strided_slice %220 {offsets = [0, 96], sizes = [2, 32], strides = [1, 1]} : vector<2x128xf32> to vector<2x32xf32>
    %235 = arith.mulf %226, %234 : vector<2x32xf32>
    %236 = arith.addf %233, %235 : vector<2x32xf32>
    %237 = math.tanh %236 : vector<2x32xf32>
    %cst_97 = arith.constant 1.000000e+00 : f32
    %238 = vector.broadcast %cst_97 : f32 to vector<2x32xf32>
    %239 = arith.subf %238, %232 : vector<2x32xf32>
    %240 = arith.mulf %239, %237 : vector<2x32xf32>
    %241 = arith.mulf %232, %108 : vector<2x32xf32>
    %242 = arith.addf %240, %241 : vector<2x32xf32>
    %c0_98 = arith.constant 0 : index
    %c0_99 = arith.constant 0 : index
    %243 = vector.load %arg13[%c0_98, %c0_99] : memref<32x128xf32, #tpu.memory_space<vmem>>, vector<32x128xf32>
    %cst_100 = arith.constant dense<0.000000e+00> : vector<2x128xf32>
    %244 = tpu.matmul %242, %243, %cst_100 {dimension_numbers = #tpu.dot_dimension_numbers<[1], [0], [0], [1], [0, 0, 1, 1], [], []>} : vector<2x32xf32>, vector<32x128xf32>, vector<2x128xf32> -> vector<2x128xf32>
    %c0_101 = arith.constant 0 : index
    %c0_102 = arith.constant 0 : index
    %245 = vector.load %arg14[%c0_101, %c0_102] : memref<32x128xf32, #tpu.memory_space<vmem>>, vector<32x128xf32>
    %cst_103 = arith.constant dense<0.000000e+00> : vector<2x128xf32>
    %246 = tpu.matmul %138, %245, %cst_103 {dimension_numbers = #tpu.dot_dimension_numbers<[1], [0], [0], [1], [0, 0, 1, 1], [], []>} : vector<2x32xf32>, vector<32x128xf32>, vector<2x128xf32> -> vector<2x128xf32>
    %247 = arith.addf %244, %246 : vector<2x128xf32>
    %c0_104 = arith.constant 0 : index
    %c0_105 = arith.constant 0 : index
    %248 = vector.load %arg15[%c0_104, %c0_105] : memref<1x128xf32, #tpu.memory_space<vmem>>, vector<1x128xf32>
    %249 = vector.broadcast %248 : vector<1x128xf32> to vector<2x128xf32>
    %250 = arith.addf %247, %249 : vector<2x128xf32>
    %251 = vector.extract_strided_slice %250 {offsets = [0, 0], sizes = [2, 32], strides = [1, 1]} : vector<2x128xf32> to vector<2x32xf32>
    %252 = arith.negf %251 : vector<2x32xf32>
    %253 = math.exp %252 : vector<2x32xf32>
    %cst_106 = arith.constant 1.000000e+00 : f32
    %254 = vector.broadcast %cst_106 : f32 to vector<2x32xf32>
    %255 = arith.addf %254, %253 : vector<2x32xf32>
    %256 = arith.divf %254, %255 : vector<2x32xf32>
    %257 = vector.extract_strided_slice %250 {offsets = [0, 32], sizes = [2, 32], strides = [1, 1]} : vector<2x128xf32> to vector<2x32xf32>
    %258 = arith.negf %257 : vector<2x32xf32>
    %259 = math.exp %258 : vector<2x32xf32>
    %cst_107 = arith.constant 1.000000e+00 : f32
    %260 = vector.broadcast %cst_107 : f32 to vector<2x32xf32>
    %261 = arith.addf %260, %259 : vector<2x32xf32>
    %262 = arith.divf %260, %261 : vector<2x32xf32>
    %263 = vector.extract_strided_slice %250 {offsets = [0, 64], sizes = [2, 32], strides = [1, 1]} : vector<2x128xf32> to vector<2x32xf32>
    %264 = vector.extract_strided_slice %250 {offsets = [0, 96], sizes = [2, 32], strides = [1, 1]} : vector<2x128xf32> to vector<2x32xf32>
    %265 = arith.mulf %256, %264 : vector<2x32xf32>
    %266 = arith.addf %263, %265 : vector<2x32xf32>
    %267 = math.tanh %266 : vector<2x32xf32>
    %cst_108 = arith.constant 1.000000e+00 : f32
    %268 = vector.broadcast %cst_108 : f32 to vector<2x32xf32>
    %269 = arith.subf %268, %262 : vector<2x32xf32>
    %270 = arith.mulf %269, %267 : vector<2x32xf32>
    %271 = arith.mulf %262, %138 : vector<2x32xf32>
    %272 = arith.addf %270, %271 : vector<2x32xf32>
    %c0_109 = arith.constant 0 : index
    %c2 = arith.constant 2 : index
    %273 = vector.load %arg1[%c0_109, %c2] : memref<2x8xi32, #tpu.memory_space<vmem>>, vector<2x1xi32>
    %274 = vector.broadcast %273 : vector<2x1xi32> to vector<2x50xi32>
    %275 = arith.cmpi eq, %274, %0 : vector<2x50xi32>
    %276 = arith.extui %275 : vector<2x50xi1> to vector<2x50xi32>
    %277 = arith.sitofp %276 : vector<2x50xi32> to vector<2x50xf32>
    %c0_110 = arith.constant 0 : index
    %c0_111 = arith.constant 0 : index
    %278 = vector.load %arg3[%c0_110, %c0_111] : memref<50x32xf32, #tpu.memory_space<vmem>>, vector<50x32xf32>
    %cst_112 = arith.constant dense<0.000000e+00> : vector<2x32xf32>
    %279 = tpu.matmul %277, %278, %cst_112 {dimension_numbers = #tpu.dot_dimension_numbers<[1], [0], [0], [1], [0, 0, 1, 1], [], []>} : vector<2x50xf32>, vector<50x32xf32>, vector<2x32xf32> -> vector<2x32xf32>
    %c0_113 = arith.constant 0 : index
    %c0_114 = arith.constant 0 : index
    %280 = vector.load %arg4[%c0_113, %c0_114] : memref<32x128xf32, #tpu.memory_space<vmem>>, vector<32x128xf32>
    %cst_115 = arith.constant dense<0.000000e+00> : vector<2x128xf32>
    %281 = tpu.matmul %279, %280, %cst_115 {dimension_numbers = #tpu.dot_dimension_numbers<[1], [0], [0], [1], [0, 0, 1, 1], [], []>} : vector<2x32xf32>, vector<32x128xf32>, vector<2x128xf32> -> vector<2x128xf32>
    %c0_116 = arith.constant 0 : index
    %c0_117 = arith.constant 0 : index
    %282 = vector.load %arg5[%c0_116, %c0_117] : memref<32x128xf32, #tpu.memory_space<vmem>>, vector<32x128xf32>
    %cst_118 = arith.constant dense<0.000000e+00> : vector<2x128xf32>
    %283 = tpu.matmul %175, %282, %cst_118 {dimension_numbers = #tpu.dot_dimension_numbers<[1], [0], [0], [1], [0, 0, 1, 1], [], []>} : vector<2x32xf32>, vector<32x128xf32>, vector<2x128xf32> -> vector<2x128xf32>
    %284 = arith.addf %281, %283 : vector<2x128xf32>
    %c0_119 = arith.constant 0 : index
    %c0_120 = arith.constant 0 : index
    %285 = vector.load %arg6[%c0_119, %c0_120] : memref<1x128xf32, #tpu.memory_space<vmem>>, vector<1x128xf32>
    %286 = vector.broadcast %285 : vector<1x128xf32> to vector<2x128xf32>
    %287 = arith.addf %284, %286 : vector<2x128xf32>
    %288 = vector.extract_strided_slice %287 {offsets = [0, 0], sizes = [2, 32], strides = [1, 1]} : vector<2x128xf32> to vector<2x32xf32>
    %289 = arith.negf %288 : vector<2x32xf32>
    %290 = math.exp %289 : vector<2x32xf32>
    %cst_121 = arith.constant 1.000000e+00 : f32
    %291 = vector.broadcast %cst_121 : f32 to vector<2x32xf32>
    %292 = arith.addf %291, %290 : vector<2x32xf32>
    %293 = arith.divf %291, %292 : vector<2x32xf32>
    %294 = vector.extract_strided_slice %287 {offsets = [0, 32], sizes = [2, 32], strides = [1, 1]} : vector<2x128xf32> to vector<2x32xf32>
    %295 = arith.negf %294 : vector<2x32xf32>
    %296 = math.exp %295 : vector<2x32xf32>
    %cst_122 = arith.constant 1.000000e+00 : f32
    %297 = vector.broadcast %cst_122 : f32 to vector<2x32xf32>
    %298 = arith.addf %297, %296 : vector<2x32xf32>
    %299 = arith.divf %297, %298 : vector<2x32xf32>
    %300 = vector.extract_strided_slice %287 {offsets = [0, 64], sizes = [2, 32], strides = [1, 1]} : vector<2x128xf32> to vector<2x32xf32>
    %301 = vector.extract_strided_slice %287 {offsets = [0, 96], sizes = [2, 32], strides = [1, 1]} : vector<2x128xf32> to vector<2x32xf32>
    %302 = arith.mulf %293, %301 : vector<2x32xf32>
    %303 = arith.addf %300, %302 : vector<2x32xf32>
    %304 = math.tanh %303 : vector<2x32xf32>
    %cst_123 = arith.constant 1.000000e+00 : f32
    %305 = vector.broadcast %cst_123 : f32 to vector<2x32xf32>
    %306 = arith.subf %305, %299 : vector<2x32xf32>
    %307 = arith.mulf %306, %304 : vector<2x32xf32>
    %308 = arith.mulf %299, %175 : vector<2x32xf32>
    %309 = arith.addf %307, %308 : vector<2x32xf32>
    %c0_124 = arith.constant 0 : index
    %c0_125 = arith.constant 0 : index
    %310 = vector.load %arg7[%c0_124, %c0_125] : memref<32x128xf32, #tpu.memory_space<vmem>>, vector<32x128xf32>
    %cst_126 = arith.constant dense<0.000000e+00> : vector<2x128xf32>
    %311 = tpu.matmul %309, %310, %cst_126 {dimension_numbers = #tpu.dot_dimension_numbers<[1], [0], [0], [1], [0, 0, 1, 1], [], []>} : vector<2x32xf32>, vector<32x128xf32>, vector<2x128xf32> -> vector<2x128xf32>
    %c0_127 = arith.constant 0 : index
    %c0_128 = arith.constant 0 : index
    %312 = vector.load %arg8[%c0_127, %c0_128] : memref<32x128xf32, #tpu.memory_space<vmem>>, vector<32x128xf32>
    %cst_129 = arith.constant dense<0.000000e+00> : vector<2x128xf32>
    %313 = tpu.matmul %205, %312, %cst_129 {dimension_numbers = #tpu.dot_dimension_numbers<[1], [0], [0], [1], [0, 0, 1, 1], [], []>} : vector<2x32xf32>, vector<32x128xf32>, vector<2x128xf32> -> vector<2x128xf32>
    %314 = arith.addf %311, %313 : vector<2x128xf32>
    %c0_130 = arith.constant 0 : index
    %c0_131 = arith.constant 0 : index
    %315 = vector.load %arg9[%c0_130, %c0_131] : memref<1x128xf32, #tpu.memory_space<vmem>>, vector<1x128xf32>
    %316 = vector.broadcast %315 : vector<1x128xf32> to vector<2x128xf32>
    %317 = arith.addf %314, %316 : vector<2x128xf32>
    %318 = vector.extract_strided_slice %317 {offsets = [0, 0], sizes = [2, 32], strides = [1, 1]} : vector<2x128xf32> to vector<2x32xf32>
    %319 = arith.negf %318 : vector<2x32xf32>
    %320 = math.exp %319 : vector<2x32xf32>
    %cst_132 = arith.constant 1.000000e+00 : f32
    %321 = vector.broadcast %cst_132 : f32 to vector<2x32xf32>
    %322 = arith.addf %321, %320 : vector<2x32xf32>
    %323 = arith.divf %321, %322 : vector<2x32xf32>
    %324 = vector.extract_strided_slice %317 {offsets = [0, 32], sizes = [2, 32], strides = [1, 1]} : vector<2x128xf32> to vector<2x32xf32>
    %325 = arith.negf %324 : vector<2x32xf32>
    %326 = math.exp %325 : vector<2x32xf32>
    %cst_133 = arith.constant 1.000000e+00 : f32
    %327 = vector.broadcast %cst_133 : f32 to vector<2x32xf32>
    %328 = arith.addf %327, %326 : vector<2x32xf32>
    %329 = arith.divf %327, %328 : vector<2x32xf32>
    %330 = vector.extract_strided_slice %317 {offsets = [0, 64], sizes = [2, 32], strides = [1, 1]} : vector<2x128xf32> to vector<2x32xf32>
    %331 = vector.extract_strided_slice %317 {offsets = [0, 96], sizes = [2, 32], strides = [1, 1]} : vector<2x128xf32> to vector<2x32xf32>
    %332 = arith.mulf %323, %331 : vector<2x32xf32>
    %333 = arith.addf %330, %332 : vector<2x32xf32>
    %334 = math.tanh %333 : vector<2x32xf32>
    %cst_134 = arith.constant 1.000000e+00 : f32
    %335 = vector.broadcast %cst_134 : f32 to vector<2x32xf32>
    %336 = arith.subf %335, %329 : vector<2x32xf32>
    %337 = arith.mulf %336, %334 : vector<2x32xf32>
    %338 = arith.mulf %329, %205 : vector<2x32xf32>
    %339 = arith.addf %337, %338 : vector<2x32xf32>
    %c0_135 = arith.constant 0 : index
    %c2_136 = arith.constant 2 : index
    %340 = vector.load %arg2[%c0_135, %c2_136] : memref<2x12xi32, #tpu.memory_space<vmem>>, vector<2x1xi32>
    %341 = vector.broadcast %340 : vector<2x1xi32> to vector<2x50xi32>
    %342 = arith.cmpi eq, %341, %0 : vector<2x50xi32>
    %343 = arith.extui %342 : vector<2x50xi1> to vector<2x50xi32>
    %344 = arith.sitofp %343 : vector<2x50xi32> to vector<2x50xf32>
    %c0_137 = arith.constant 0 : index
    %c0_138 = arith.constant 0 : index
    %345 = vector.load %arg3[%c0_137, %c0_138] : memref<50x32xf32, #tpu.memory_space<vmem>>, vector<50x32xf32>
    %cst_139 = arith.constant dense<0.000000e+00> : vector<2x32xf32>
    %346 = tpu.matmul %344, %345, %cst_139 {dimension_numbers = #tpu.dot_dimension_numbers<[1], [0], [0], [1], [0, 0, 1, 1], [], []>} : vector<2x50xf32>, vector<50x32xf32>, vector<2x32xf32> -> vector<2x32xf32>
    %c0_140 = arith.constant 0 : index
    %c0_141 = arith.constant 0 : index
    %347 = vector.load %arg10[%c0_140, %c0_141] : memref<32x128xf32, #tpu.memory_space<vmem>>, vector<32x128xf32>
    %cst_142 = arith.constant dense<0.000000e+00> : vector<2x128xf32>
    %348 = tpu.matmul %346, %347, %cst_142 {dimension_numbers = #tpu.dot_dimension_numbers<[1], [0], [0], [1], [0, 0, 1, 1], [], []>} : vector<2x32xf32>, vector<32x128xf32>, vector<2x128xf32> -> vector<2x128xf32>
    %c0_143 = arith.constant 0 : index
    %c0_144 = arith.constant 0 : index
    %349 = vector.load %arg11[%c0_143, %c0_144] : memref<32x128xf32, #tpu.memory_space<vmem>>, vector<32x128xf32>
    %cst_145 = arith.constant dense<0.000000e+00> : vector<2x128xf32>
    %350 = tpu.matmul %242, %349, %cst_145 {dimension_numbers = #tpu.dot_dimension_numbers<[1], [0], [0], [1], [0, 0, 1, 1], [], []>} : vector<2x32xf32>, vector<32x128xf32>, vector<2x128xf32> -> vector<2x128xf32>
    %351 = arith.addf %348, %350 : vector<2x128xf32>
    %c0_146 = arith.constant 0 : index
    %c0_147 = arith.constant 0 : index
    %352 = vector.load %arg12[%c0_146, %c0_147] : memref<1x128xf32, #tpu.memory_space<vmem>>, vector<1x128xf32>
    %353 = vector.broadcast %352 : vector<1x128xf32> to vector<2x128xf32>
    %354 = arith.addf %351, %353 : vector<2x128xf32>
    %355 = vector.extract_strided_slice %354 {offsets = [0, 0], sizes = [2, 32], strides = [1, 1]} : vector<2x128xf32> to vector<2x32xf32>
    %356 = arith.negf %355 : vector<2x32xf32>
    %357 = math.exp %356 : vector<2x32xf32>
    %cst_148 = arith.constant 1.000000e+00 : f32
    %358 = vector.broadcast %cst_148 : f32 to vector<2x32xf32>
    %359 = arith.addf %358, %357 : vector<2x32xf32>
    %360 = arith.divf %358, %359 : vector<2x32xf32>
    %361 = vector.extract_strided_slice %354 {offsets = [0, 32], sizes = [2, 32], strides = [1, 1]} : vector<2x128xf32> to vector<2x32xf32>
    %362 = arith.negf %361 : vector<2x32xf32>
    %363 = math.exp %362 : vector<2x32xf32>
    %cst_149 = arith.constant 1.000000e+00 : f32
    %364 = vector.broadcast %cst_149 : f32 to vector<2x32xf32>
    %365 = arith.addf %364, %363 : vector<2x32xf32>
    %366 = arith.divf %364, %365 : vector<2x32xf32>
    %367 = vector.extract_strided_slice %354 {offsets = [0, 64], sizes = [2, 32], strides = [1, 1]} : vector<2x128xf32> to vector<2x32xf32>
    %368 = vector.extract_strided_slice %354 {offsets = [0, 96], sizes = [2, 32], strides = [1, 1]} : vector<2x128xf32> to vector<2x32xf32>
    %369 = arith.mulf %360, %368 : vector<2x32xf32>
    %370 = arith.addf %367, %369 : vector<2x32xf32>
    %371 = math.tanh %370 : vector<2x32xf32>
    %cst_150 = arith.constant 1.000000e+00 : f32
    %372 = vector.broadcast %cst_150 : f32 to vector<2x32xf32>
    %373 = arith.subf %372, %366 : vector<2x32xf32>
    %374 = arith.mulf %373, %371 : vector<2x32xf32>
    %375 = arith.mulf %366, %242 : vector<2x32xf32>
    %376 = arith.addf %374, %375 : vector<2x32xf32>
    %c0_151 = arith.constant 0 : index
    %c0_152 = arith.constant 0 : index
    %377 = vector.load %arg13[%c0_151, %c0_152] : memref<32x128xf32, #tpu.memory_space<vmem>>, vector<32x128xf32>
    %cst_153 = arith.constant dense<0.000000e+00> : vector<2x128xf32>
    %378 = tpu.matmul %376, %377, %cst_153 {dimension_numbers = #tpu.dot_dimension_numbers<[1], [0], [0], [1], [0, 0, 1, 1], [], []>} : vector<2x32xf32>, vector<32x128xf32>, vector<2x128xf32> -> vector<2x128xf32>
    %c0_154 = arith.constant 0 : index
    %c0_155 = arith.constant 0 : index
    %379 = vector.load %arg14[%c0_154, %c0_155] : memref<32x128xf32, #tpu.memory_space<vmem>>, vector<32x128xf32>
    %cst_156 = arith.constant dense<0.000000e+00> : vector<2x128xf32>
    %380 = tpu.matmul %272, %379, %cst_156 {dimension_numbers = #tpu.dot_dimension_numbers<[1], [0], [0], [1], [0, 0, 1, 1], [], []>} : vector<2x32xf32>, vector<32x128xf32>, vector<2x128xf32> -> vector<2x128xf32>
    %381 = arith.addf %378, %380 : vector<2x128xf32>
    %c0_157 = arith.constant 0 : index
    %c0_158 = arith.constant 0 : index
    %382 = vector.load %arg15[%c0_157, %c0_158] : memref<1x128xf32, #tpu.memory_space<vmem>>, vector<1x128xf32>
    %383 = vector.broadcast %382 : vector<1x128xf32> to vector<2x128xf32>
    %384 = arith.addf %381, %383 : vector<2x128xf32>
    %385 = vector.extract_strided_slice %384 {offsets = [0, 0], sizes = [2, 32], strides = [1, 1]} : vector<2x128xf32> to vector<2x32xf32>
    %386 = arith.negf %385 : vector<2x32xf32>
    %387 = math.exp %386 : vector<2x32xf32>
    %cst_159 = arith.constant 1.000000e+00 : f32
    %388 = vector.broadcast %cst_159 : f32 to vector<2x32xf32>
    %389 = arith.addf %388, %387 : vector<2x32xf32>
    %390 = arith.divf %388, %389 : vector<2x32xf32>
    %391 = vector.extract_strided_slice %384 {offsets = [0, 32], sizes = [2, 32], strides = [1, 1]} : vector<2x128xf32> to vector<2x32xf32>
    %392 = arith.negf %391 : vector<2x32xf32>
    %393 = math.exp %392 : vector<2x32xf32>
    %cst_160 = arith.constant 1.000000e+00 : f32
    %394 = vector.broadcast %cst_160 : f32 to vector<2x32xf32>
    %395 = arith.addf %394, %393 : vector<2x32xf32>
    %396 = arith.divf %394, %395 : vector<2x32xf32>
    %397 = vector.extract_strided_slice %384 {offsets = [0, 64], sizes = [2, 32], strides = [1, 1]} : vector<2x128xf32> to vector<2x32xf32>
    %398 = vector.extract_strided_slice %384 {offsets = [0, 96], sizes = [2, 32], strides = [1, 1]} : vector<2x128xf32> to vector<2x32xf32>
    %399 = arith.mulf %390, %398 : vector<2x32xf32>
    %400 = arith.addf %397, %399 : vector<2x32xf32>
    %401 = math.tanh %400 : vector<2x32xf32>
    %cst_161 = arith.constant 1.000000e+00 : f32
    %402 = vector.broadcast %cst_161 : f32 to vector<2x32xf32>
    %403 = arith.subf %402, %396 : vector<2x32xf32>
    %404 = arith.mulf %403, %401 : vector<2x32xf32>
    %405 = arith.mulf %396, %272 : vector<2x32xf32>
    %406 = arith.addf %404, %405 : vector<2x32xf32>
    %c0_162 = arith.constant 0 : index
    %c3 = arith.constant 3 : index
    %407 = vector.load %arg1[%c0_162, %c3] : memref<2x8xi32, #tpu.memory_space<vmem>>, vector<2x1xi32>
    %408 = vector.broadcast %407 : vector<2x1xi32> to vector<2x50xi32>
    %409 = arith.cmpi eq, %408, %0 : vector<2x50xi32>
    %410 = arith.extui %409 : vector<2x50xi1> to vector<2x50xi32>
    %411 = arith.sitofp %410 : vector<2x50xi32> to vector<2x50xf32>
    %c0_163 = arith.constant 0 : index
    %c0_164 = arith.constant 0 : index
    %412 = vector.load %arg3[%c0_163, %c0_164] : memref<50x32xf32, #tpu.memory_space<vmem>>, vector<50x32xf32>
    %cst_165 = arith.constant dense<0.000000e+00> : vector<2x32xf32>
    %413 = tpu.matmul %411, %412, %cst_165 {dimension_numbers = #tpu.dot_dimension_numbers<[1], [0], [0], [1], [0, 0, 1, 1], [], []>} : vector<2x50xf32>, vector<50x32xf32>, vector<2x32xf32> -> vector<2x32xf32>
    %c0_166 = arith.constant 0 : index
    %c0_167 = arith.constant 0 : index
    %414 = vector.load %arg4[%c0_166, %c0_167] : memref<32x128xf32, #tpu.memory_space<vmem>>, vector<32x128xf32>
    %cst_168 = arith.constant dense<0.000000e+00> : vector<2x128xf32>
    %415 = tpu.matmul %413, %414, %cst_168 {dimension_numbers = #tpu.dot_dimension_numbers<[1], [0], [0], [1], [0, 0, 1, 1], [], []>} : vector<2x32xf32>, vector<32x128xf32>, vector<2x128xf32> -> vector<2x128xf32>
    %c0_169 = arith.constant 0 : index
    %c0_170 = arith.constant 0 : index
    %416 = vector.load %arg5[%c0_169, %c0_170] : memref<32x128xf32, #tpu.memory_space<vmem>>, vector<32x128xf32>
    %cst_171 = arith.constant dense<0.000000e+00> : vector<2x128xf32>
    %417 = tpu.matmul %309, %416, %cst_171 {dimension_numbers = #tpu.dot_dimension_numbers<[1], [0], [0], [1], [0, 0, 1, 1], [], []>} : vector<2x32xf32>, vector<32x128xf32>, vector<2x128xf32> -> vector<2x128xf32>
    %418 = arith.addf %415, %417 : vector<2x128xf32>
    %c0_172 = arith.constant 0 : index
    %c0_173 = arith.constant 0 : index
    %419 = vector.load %arg6[%c0_172, %c0_173] : memref<1x128xf32, #tpu.memory_space<vmem>>, vector<1x128xf32>
    %420 = vector.broadcast %419 : vector<1x128xf32> to vector<2x128xf32>
    %421 = arith.addf %418, %420 : vector<2x128xf32>
    %422 = vector.extract_strided_slice %421 {offsets = [0, 0], sizes = [2, 32], strides = [1, 1]} : vector<2x128xf32> to vector<2x32xf32>
    %423 = arith.negf %422 : vector<2x32xf32>
    %424 = math.exp %423 : vector<2x32xf32>
    %cst_174 = arith.constant 1.000000e+00 : f32
    %425 = vector.broadcast %cst_174 : f32 to vector<2x32xf32>
    %426 = arith.addf %425, %424 : vector<2x32xf32>
    %427 = arith.divf %425, %426 : vector<2x32xf32>
    %428 = vector.extract_strided_slice %421 {offsets = [0, 32], sizes = [2, 32], strides = [1, 1]} : vector<2x128xf32> to vector<2x32xf32>
    %429 = arith.negf %428 : vector<2x32xf32>
    %430 = math.exp %429 : vector<2x32xf32>
    %cst_175 = arith.constant 1.000000e+00 : f32
    %431 = vector.broadcast %cst_175 : f32 to vector<2x32xf32>
    %432 = arith.addf %431, %430 : vector<2x32xf32>
    %433 = arith.divf %431, %432 : vector<2x32xf32>
    %434 = vector.extract_strided_slice %421 {offsets = [0, 64], sizes = [2, 32], strides = [1, 1]} : vector<2x128xf32> to vector<2x32xf32>
    %435 = vector.extract_strided_slice %421 {offsets = [0, 96], sizes = [2, 32], strides = [1, 1]} : vector<2x128xf32> to vector<2x32xf32>
    %436 = arith.mulf %427, %435 : vector<2x32xf32>
    %437 = arith.addf %434, %436 : vector<2x32xf32>
    %438 = math.tanh %437 : vector<2x32xf32>
    %cst_176 = arith.constant 1.000000e+00 : f32
    %439 = vector.broadcast %cst_176 : f32 to vector<2x32xf32>
    %440 = arith.subf %439, %433 : vector<2x32xf32>
    %441 = arith.mulf %440, %438 : vector<2x32xf32>
    %442 = arith.mulf %433, %309 : vector<2x32xf32>
    %443 = arith.addf %441, %442 : vector<2x32xf32>
    %c0_177 = arith.constant 0 : index
    %c0_178 = arith.constant 0 : index
    %444 = vector.load %arg7[%c0_177, %c0_178] : memref<32x128xf32, #tpu.memory_space<vmem>>, vector<32x128xf32>
    %cst_179 = arith.constant dense<0.000000e+00> : vector<2x128xf32>
    %445 = tpu.matmul %443, %444, %cst_179 {dimension_numbers = #tpu.dot_dimension_numbers<[1], [0], [0], [1], [0, 0, 1, 1], [], []>} : vector<2x32xf32>, vector<32x128xf32>, vector<2x128xf32> -> vector<2x128xf32>
    %c0_180 = arith.constant 0 : index
    %c0_181 = arith.constant 0 : index
    %446 = vector.load %arg8[%c0_180, %c0_181] : memref<32x128xf32, #tpu.memory_space<vmem>>, vector<32x128xf32>
    %cst_182 = arith.constant dense<0.000000e+00> : vector<2x128xf32>
    %447 = tpu.matmul %339, %446, %cst_182 {dimension_numbers = #tpu.dot_dimension_numbers<[1], [0], [0], [1], [0, 0, 1, 1], [], []>} : vector<2x32xf32>, vector<32x128xf32>, vector<2x128xf32> -> vector<2x128xf32>
    %448 = arith.addf %445, %447 : vector<2x128xf32>
    %c0_183 = arith.constant 0 : index
    %c0_184 = arith.constant 0 : index
    %449 = vector.load %arg9[%c0_183, %c0_184] : memref<1x128xf32, #tpu.memory_space<vmem>>, vector<1x128xf32>
    %450 = vector.broadcast %449 : vector<1x128xf32> to vector<2x128xf32>
    %451 = arith.addf %448, %450 : vector<2x128xf32>
    %452 = vector.extract_strided_slice %451 {offsets = [0, 0], sizes = [2, 32], strides = [1, 1]} : vector<2x128xf32> to vector<2x32xf32>
    %453 = arith.negf %452 : vector<2x32xf32>
    %454 = math.exp %453 : vector<2x32xf32>
    %cst_185 = arith.constant 1.000000e+00 : f32
    %455 = vector.broadcast %cst_185 : f32 to vector<2x32xf32>
    %456 = arith.addf %455, %454 : vector<2x32xf32>
    %457 = arith.divf %455, %456 : vector<2x32xf32>
    %458 = vector.extract_strided_slice %451 {offsets = [0, 32], sizes = [2, 32], strides = [1, 1]} : vector<2x128xf32> to vector<2x32xf32>
    %459 = arith.negf %458 : vector<2x32xf32>
    %460 = math.exp %459 : vector<2x32xf32>
    %cst_186 = arith.constant 1.000000e+00 : f32
    %461 = vector.broadcast %cst_186 : f32 to vector<2x32xf32>
    %462 = arith.addf %461, %460 : vector<2x32xf32>
    %463 = arith.divf %461, %462 : vector<2x32xf32>
    %464 = vector.extract_strided_slice %451 {offsets = [0, 64], sizes = [2, 32], strides = [1, 1]} : vector<2x128xf32> to vector<2x32xf32>
    %465 = vector.extract_strided_slice %451 {offsets = [0, 96], sizes = [2, 32], strides = [1, 1]} : vector<2x128xf32> to vector<2x32xf32>
    %466 = arith.mulf %457, %465 : vector<2x32xf32>
    %467 = arith.addf %464, %466 : vector<2x32xf32>
    %468 = math.tanh %467 : vector<2x32xf32>
    %cst_187 = arith.constant 1.000000e+00 : f32
    %469 = vector.broadcast %cst_187 : f32 to vector<2x32xf32>
    %470 = arith.subf %469, %463 : vector<2x32xf32>
    %471 = arith.mulf %470, %468 : vector<2x32xf32>
    %472 = arith.mulf %463, %339 : vector<2x32xf32>
    %473 = arith.addf %471, %472 : vector<2x32xf32>
    %c0_188 = arith.constant 0 : index
    %c3_189 = arith.constant 3 : index
    %474 = vector.load %arg2[%c0_188, %c3_189] : memref<2x12xi32, #tpu.memory_space<vmem>>, vector<2x1xi32>
    %475 = vector.broadcast %474 : vector<2x1xi32> to vector<2x50xi32>
    %476 = arith.cmpi eq, %475, %0 : vector<2x50xi32>
    %477 = arith.extui %476 : vector<2x50xi1> to vector<2x50xi32>
    %478 = arith.sitofp %477 : vector<2x50xi32> to vector<2x50xf32>
    %c0_190 = arith.constant 0 : index
    %c0_191 = arith.constant 0 : index
    %479 = vector.load %arg3[%c0_190, %c0_191] : memref<50x32xf32, #tpu.memory_space<vmem>>, vector<50x32xf32>
    %cst_192 = arith.constant dense<0.000000e+00> : vector<2x32xf32>
    %480 = tpu.matmul %478, %479, %cst_192 {dimension_numbers = #tpu.dot_dimension_numbers<[1], [0], [0], [1], [0, 0, 1, 1], [], []>} : vector<2x50xf32>, vector<50x32xf32>, vector<2x32xf32> -> vector<2x32xf32>
    %c0_193 = arith.constant 0 : index
    %c0_194 = arith.constant 0 : index
    %481 = vector.load %arg10[%c0_193, %c0_194] : memref<32x128xf32, #tpu.memory_space<vmem>>, vector<32x128xf32>
    %cst_195 = arith.constant dense<0.000000e+00> : vector<2x128xf32>
    %482 = tpu.matmul %480, %481, %cst_195 {dimension_numbers = #tpu.dot_dimension_numbers<[1], [0], [0], [1], [0, 0, 1, 1], [], []>} : vector<2x32xf32>, vector<32x128xf32>, vector<2x128xf32> -> vector<2x128xf32>
    %c0_196 = arith.constant 0 : index
    %c0_197 = arith.constant 0 : index
    %483 = vector.load %arg11[%c0_196, %c0_197] : memref<32x128xf32, #tpu.memory_space<vmem>>, vector<32x128xf32>
    %cst_198 = arith.constant dense<0.000000e+00> : vector<2x128xf32>
    %484 = tpu.matmul %376, %483, %cst_198 {dimension_numbers = #tpu.dot_dimension_numbers<[1], [0], [0], [1], [0, 0, 1, 1], [], []>} : vector<2x32xf32>, vector<32x128xf32>, vector<2x128xf32> -> vector<2x128xf32>
    %485 = arith.addf %482, %484 : vector<2x128xf32>
    %c0_199 = arith.constant 0 : index
    %c0_200 = arith.constant 0 : index
    %486 = vector.load %arg12[%c0_199, %c0_200] : memref<1x128xf32, #tpu.memory_space<vmem>>, vector<1x128xf32>
    %487 = vector.broadcast %486 : vector<1x128xf32> to vector<2x128xf32>
    %488 = arith.addf %485, %487 : vector<2x128xf32>
    %489 = vector.extract_strided_slice %488 {offsets = [0, 0], sizes = [2, 32], strides = [1, 1]} : vector<2x128xf32> to vector<2x32xf32>
    %490 = arith.negf %489 : vector<2x32xf32>
    %491 = math.exp %490 : vector<2x32xf32>
    %cst_201 = arith.constant 1.000000e+00 : f32
    %492 = vector.broadcast %cst_201 : f32 to vector<2x32xf32>
    %493 = arith.addf %492, %491 : vector<2x32xf32>
    %494 = arith.divf %492, %493 : vector<2x32xf32>
    %495 = vector.extract_strided_slice %488 {offsets = [0, 32], sizes = [2, 32], strides = [1, 1]} : vector<2x128xf32> to vector<2x32xf32>
    %496 = arith.negf %495 : vector<2x32xf32>
    %497 = math.exp %496 : vector<2x32xf32>
    %cst_202 = arith.constant 1.000000e+00 : f32
    %498 = vector.broadcast %cst_202 : f32 to vector<2x32xf32>
    %499 = arith.addf %498, %497 : vector<2x32xf32>
    %500 = arith.divf %498, %499 : vector<2x32xf32>
    %501 = vector.extract_strided_slice %488 {offsets = [0, 64], sizes = [2, 32], strides = [1, 1]} : vector<2x128xf32> to vector<2x32xf32>
    %502 = vector.extract_strided_slice %488 {offsets = [0, 96], sizes = [2, 32], strides = [1, 1]} : vector<2x128xf32> to vector<2x32xf32>
    %503 = arith.mulf %494, %502 : vector<2x32xf32>
    %504 = arith.addf %501, %503 : vector<2x32xf32>
    %505 = math.tanh %504 : vector<2x32xf32>
    %cst_203 = arith.constant 1.000000e+00 : f32
    %506 = vector.broadcast %cst_203 : f32 to vector<2x32xf32>
    %507 = arith.subf %506, %500 : vector<2x32xf32>
    %508 = arith.mulf %507, %505 : vector<2x32xf32>
    %509 = arith.mulf %500, %376 : vector<2x32xf32>
    %510 = arith.addf %508, %509 : vector<2x32xf32>
    %c0_204 = arith.constant 0 : index
    %c0_205 = arith.constant 0 : index
    %511 = vector.load %arg13[%c0_204, %c0_205] : memref<32x128xf32, #tpu.memory_space<vmem>>, vector<32x128xf32>
    %cst_206 = arith.constant dense<0.000000e+00> : vector<2x128xf32>
    %512 = tpu.matmul %510, %511, %cst_206 {dimension_numbers = #tpu.dot_dimension_numbers<[1], [0], [0], [1], [0, 0, 1, 1], [], []>} : vector<2x32xf32>, vector<32x128xf32>, vector<2x128xf32> -> vector<2x128xf32>
    %c0_207 = arith.constant 0 : index
    %c0_208 = arith.constant 0 : index
    %513 = vector.load %arg14[%c0_207, %c0_208] : memref<32x128xf32, #tpu.memory_space<vmem>>, vector<32x128xf32>
    %cst_209 = arith.constant dense<0.000000e+00> : vector<2x128xf32>
    %514 = tpu.matmul %406, %513, %cst_209 {dimension_numbers = #tpu.dot_dimension_numbers<[1], [0], [0], [1], [0, 0, 1, 1], [], []>} : vector<2x32xf32>, vector<32x128xf32>, vector<2x128xf32> -> vector<2x128xf32>
    %515 = arith.addf %512, %514 : vector<2x128xf32>
    %c0_210 = arith.constant 0 : index
    %c0_211 = arith.constant 0 : index
    %516 = vector.load %arg15[%c0_210, %c0_211] : memref<1x128xf32, #tpu.memory_space<vmem>>, vector<1x128xf32>
    %517 = vector.broadcast %516 : vector<1x128xf32> to vector<2x128xf32>
    %518 = arith.addf %515, %517 : vector<2x128xf32>
    %519 = vector.extract_strided_slice %518 {offsets = [0, 0], sizes = [2, 32], strides = [1, 1]} : vector<2x128xf32> to vector<2x32xf32>
    %520 = arith.negf %519 : vector<2x32xf32>
    %521 = math.exp %520 : vector<2x32xf32>
    %cst_212 = arith.constant 1.000000e+00 : f32
    %522 = vector.broadcast %cst_212 : f32 to vector<2x32xf32>
    %523 = arith.addf %522, %521 : vector<2x32xf32>
    %524 = arith.divf %522, %523 : vector<2x32xf32>
    %525 = vector.extract_strided_slice %518 {offsets = [0, 32], sizes = [2, 32], strides = [1, 1]} : vector<2x128xf32> to vector<2x32xf32>
    %526 = arith.negf %525 : vector<2x32xf32>
    %527 = math.exp %526 : vector<2x32xf32>
    %cst_213 = arith.constant 1.000000e+00 : f32
    %528 = vector.broadcast %cst_213 : f32 to vector<2x32xf32>
    %529 = arith.addf %528, %527 : vector<2x32xf32>
    %530 = arith.divf %528, %529 : vector<2x32xf32>
    %531 = vector.extract_strided_slice %518 {offsets = [0, 64], sizes = [2, 32], strides = [1, 1]} : vector<2x128xf32> to vector<2x32xf32>
    %532 = vector.extract_strided_slice %518 {offsets = [0, 96], sizes = [2, 32], strides = [1, 1]} : vector<2x128xf32> to vector<2x32xf32>
    %533 = arith.mulf %524, %532 : vector<2x32xf32>
    %534 = arith.addf %531, %533 : vector<2x32xf32>
    %535 = math.tanh %534 : vector<2x32xf32>
    %cst_214 = arith.constant 1.000000e+00 : f32
    %536 = vector.broadcast %cst_214 : f32 to vector<2x32xf32>
    %537 = arith.subf %536, %530 : vector<2x32xf32>
    %538 = arith.mulf %537, %535 : vector<2x32xf32>
    %539 = arith.mulf %530, %406 : vector<2x32xf32>
    %540 = arith.addf %538, %539 : vector<2x32xf32>
    %c0_215 = arith.constant 0 : index
    %c4 = arith.constant 4 : index
    %541 = vector.load %arg1[%c0_215, %c4] : memref<2x8xi32, #tpu.memory_space<vmem>>, vector<2x1xi32>
    %542 = vector.broadcast %541 : vector<2x1xi32> to vector<2x50xi32>
    %543 = arith.cmpi eq, %542, %0 : vector<2x50xi32>
    %544 = arith.extui %543 : vector<2x50xi1> to vector<2x50xi32>
    %545 = arith.sitofp %544 : vector<2x50xi32> to vector<2x50xf32>
    %c0_216 = arith.constant 0 : index
    %c0_217 = arith.constant 0 : index
    %546 = vector.load %arg3[%c0_216, %c0_217] : memref<50x32xf32, #tpu.memory_space<vmem>>, vector<50x32xf32>
    %cst_218 = arith.constant dense<0.000000e+00> : vector<2x32xf32>
    %547 = tpu.matmul %545, %546, %cst_218 {dimension_numbers = #tpu.dot_dimension_numbers<[1], [0], [0], [1], [0, 0, 1, 1], [], []>} : vector<2x50xf32>, vector<50x32xf32>, vector<2x32xf32> -> vector<2x32xf32>
    %c0_219 = arith.constant 0 : index
    %c0_220 = arith.constant 0 : index
    %548 = vector.load %arg4[%c0_219, %c0_220] : memref<32x128xf32, #tpu.memory_space<vmem>>, vector<32x128xf32>
    %cst_221 = arith.constant dense<0.000000e+00> : vector<2x128xf32>
    %549 = tpu.matmul %547, %548, %cst_221 {dimension_numbers = #tpu.dot_dimension_numbers<[1], [0], [0], [1], [0, 0, 1, 1], [], []>} : vector<2x32xf32>, vector<32x128xf32>, vector<2x128xf32> -> vector<2x128xf32>
    %c0_222 = arith.constant 0 : index
    %c0_223 = arith.constant 0 : index
    %550 = vector.load %arg5[%c0_222, %c0_223] : memref<32x128xf32, #tpu.memory_space<vmem>>, vector<32x128xf32>
    %cst_224 = arith.constant dense<0.000000e+00> : vector<2x128xf32>
    %551 = tpu.matmul %443, %550, %cst_224 {dimension_numbers = #tpu.dot_dimension_numbers<[1], [0], [0], [1], [0, 0, 1, 1], [], []>} : vector<2x32xf32>, vector<32x128xf32>, vector<2x128xf32> -> vector<2x128xf32>
    %552 = arith.addf %549, %551 : vector<2x128xf32>
    %c0_225 = arith.constant 0 : index
    %c0_226 = arith.constant 0 : index
    %553 = vector.load %arg6[%c0_225, %c0_226] : memref<1x128xf32, #tpu.memory_space<vmem>>, vector<1x128xf32>
    %554 = vector.broadcast %553 : vector<1x128xf32> to vector<2x128xf32>
    %555 = arith.addf %552, %554 : vector<2x128xf32>
    %556 = vector.extract_strided_slice %555 {offsets = [0, 0], sizes = [2, 32], strides = [1, 1]} : vector<2x128xf32> to vector<2x32xf32>
    %557 = arith.negf %556 : vector<2x32xf32>
    %558 = math.exp %557 : vector<2x32xf32>
    %cst_227 = arith.constant 1.000000e+00 : f32
    %559 = vector.broadcast %cst_227 : f32 to vector<2x32xf32>
    %560 = arith.addf %559, %558 : vector<2x32xf32>
    %561 = arith.divf %559, %560 : vector<2x32xf32>
    %562 = vector.extract_strided_slice %555 {offsets = [0, 32], sizes = [2, 32], strides = [1, 1]} : vector<2x128xf32> to vector<2x32xf32>
    %563 = arith.negf %562 : vector<2x32xf32>
    %564 = math.exp %563 : vector<2x32xf32>
    %cst_228 = arith.constant 1.000000e+00 : f32
    %565 = vector.broadcast %cst_228 : f32 to vector<2x32xf32>
    %566 = arith.addf %565, %564 : vector<2x32xf32>
    %567 = arith.divf %565, %566 : vector<2x32xf32>
    %568 = vector.extract_strided_slice %555 {offsets = [0, 64], sizes = [2, 32], strides = [1, 1]} : vector<2x128xf32> to vector<2x32xf32>
    %569 = vector.extract_strided_slice %555 {offsets = [0, 96], sizes = [2, 32], strides = [1, 1]} : vector<2x128xf32> to vector<2x32xf32>
    %570 = arith.mulf %561, %569 : vector<2x32xf32>
    %571 = arith.addf %568, %570 : vector<2x32xf32>
    %572 = math.tanh %571 : vector<2x32xf32>
    %cst_229 = arith.constant 1.000000e+00 : f32
    %573 = vector.broadcast %cst_229 : f32 to vector<2x32xf32>
    %574 = arith.subf %573, %567 : vector<2x32xf32>
    %575 = arith.mulf %574, %572 : vector<2x32xf32>
    %576 = arith.mulf %567, %443 : vector<2x32xf32>
    %577 = arith.addf %575, %576 : vector<2x32xf32>
    %c0_230 = arith.constant 0 : index
    %c0_231 = arith.constant 0 : index
    %578 = vector.load %arg7[%c0_230, %c0_231] : memref<32x128xf32, #tpu.memory_space<vmem>>, vector<32x128xf32>
    %cst_232 = arith.constant dense<0.000000e+00> : vector<2x128xf32>
    %579 = tpu.matmul %577, %578, %cst_232 {dimension_numbers = #tpu.dot_dimension_numbers<[1], [0], [0], [1], [0, 0, 1, 1], [], []>} : vector<2x32xf32>, vector<32x128xf32>, vector<2x128xf32> -> vector<2x128xf32>
    %c0_233 = arith.constant 0 : index
    %c0_234 = arith.constant 0 : index
    %580 = vector.load %arg8[%c0_233, %c0_234] : memref<32x128xf32, #tpu.memory_space<vmem>>, vector<32x128xf32>
    %cst_235 = arith.constant dense<0.000000e+00> : vector<2x128xf32>
    %581 = tpu.matmul %473, %580, %cst_235 {dimension_numbers = #tpu.dot_dimension_numbers<[1], [0], [0], [1], [0, 0, 1, 1], [], []>} : vector<2x32xf32>, vector<32x128xf32>, vector<2x128xf32> -> vector<2x128xf32>
    %582 = arith.addf %579, %581 : vector<2x128xf32>
    %c0_236 = arith.constant 0 : index
    %c0_237 = arith.constant 0 : index
    %583 = vector.load %arg9[%c0_236, %c0_237] : memref<1x128xf32, #tpu.memory_space<vmem>>, vector<1x128xf32>
    %584 = vector.broadcast %583 : vector<1x128xf32> to vector<2x128xf32>
    %585 = arith.addf %582, %584 : vector<2x128xf32>
    %586 = vector.extract_strided_slice %585 {offsets = [0, 0], sizes = [2, 32], strides = [1, 1]} : vector<2x128xf32> to vector<2x32xf32>
    %587 = arith.negf %586 : vector<2x32xf32>
    %588 = math.exp %587 : vector<2x32xf32>
    %cst_238 = arith.constant 1.000000e+00 : f32
    %589 = vector.broadcast %cst_238 : f32 to vector<2x32xf32>
    %590 = arith.addf %589, %588 : vector<2x32xf32>
    %591 = arith.divf %589, %590 : vector<2x32xf32>
    %592 = vector.extract_strided_slice %585 {offsets = [0, 32], sizes = [2, 32], strides = [1, 1]} : vector<2x128xf32> to vector<2x32xf32>
    %593 = arith.negf %592 : vector<2x32xf32>
    %594 = math.exp %593 : vector<2x32xf32>
    %cst_239 = arith.constant 1.000000e+00 : f32
    %595 = vector.broadcast %cst_239 : f32 to vector<2x32xf32>
    %596 = arith.addf %595, %594 : vector<2x32xf32>
    %597 = arith.divf %595, %596 : vector<2x32xf32>
    %598 = vector.extract_strided_slice %585 {offsets = [0, 64], sizes = [2, 32], strides = [1, 1]} : vector<2x128xf32> to vector<2x32xf32>
    %599 = vector.extract_strided_slice %585 {offsets = [0, 96], sizes = [2, 32], strides = [1, 1]} : vector<2x128xf32> to vector<2x32xf32>
    %600 = arith.mulf %591, %599 : vector<2x32xf32>
    %601 = arith.addf %598, %600 : vector<2x32xf32>
    %602 = math.tanh %601 : vector<2x32xf32>
    %cst_240 = arith.constant 1.000000e+00 : f32
    %603 = vector.broadcast %cst_240 : f32 to vector<2x32xf32>
    %604 = arith.subf %603, %597 : vector<2x32xf32>
    %605 = arith.mulf %604, %602 : vector<2x32xf32>
    %606 = arith.mulf %597, %473 : vector<2x32xf32>
    %607 = arith.addf %605, %606 : vector<2x32xf32>
    %c0_241 = arith.constant 0 : index
    %c4_242 = arith.constant 4 : index
    %608 = vector.load %arg2[%c0_241, %c4_242] : memref<2x12xi32, #tpu.memory_space<vmem>>, vector<2x1xi32>
    %609 = vector.broadcast %608 : vector<2x1xi32> to vector<2x50xi32>
    %610 = arith.cmpi eq, %609, %0 : vector<2x50xi32>
    %611 = arith.extui %610 : vector<2x50xi1> to vector<2x50xi32>
    %612 = arith.sitofp %611 : vector<2x50xi32> to vector<2x50xf32>
    %c0_243 = arith.constant 0 : index
    %c0_244 = arith.constant 0 : index
    %613 = vector.load %arg3[%c0_243, %c0_244] : memref<50x32xf32, #tpu.memory_space<vmem>>, vector<50x32xf32>
    %cst_245 = arith.constant dense<0.000000e+00> : vector<2x32xf32>
    %614 = tpu.matmul %612, %613, %cst_245 {dimension_numbers = #tpu.dot_dimension_numbers<[1], [0], [0], [1], [0, 0, 1, 1], [], []>} : vector<2x50xf32>, vector<50x32xf32>, vector<2x32xf32> -> vector<2x32xf32>
    %c0_246 = arith.constant 0 : index
    %c0_247 = arith.constant 0 : index
    %615 = vector.load %arg10[%c0_246, %c0_247] : memref<32x128xf32, #tpu.memory_space<vmem>>, vector<32x128xf32>
    %cst_248 = arith.constant dense<0.000000e+00> : vector<2x128xf32>
    %616 = tpu.matmul %614, %615, %cst_248 {dimension_numbers = #tpu.dot_dimension_numbers<[1], [0], [0], [1], [0, 0, 1, 1], [], []>} : vector<2x32xf32>, vector<32x128xf32>, vector<2x128xf32> -> vector<2x128xf32>
    %c0_249 = arith.constant 0 : index
    %c0_250 = arith.constant 0 : index
    %617 = vector.load %arg11[%c0_249, %c0_250] : memref<32x128xf32, #tpu.memory_space<vmem>>, vector<32x128xf32>
    %cst_251 = arith.constant dense<0.000000e+00> : vector<2x128xf32>
    %618 = tpu.matmul %510, %617, %cst_251 {dimension_numbers = #tpu.dot_dimension_numbers<[1], [0], [0], [1], [0, 0, 1, 1], [], []>} : vector<2x32xf32>, vector<32x128xf32>, vector<2x128xf32> -> vector<2x128xf32>
    %619 = arith.addf %616, %618 : vector<2x128xf32>
    %c0_252 = arith.constant 0 : index
    %c0_253 = arith.constant 0 : index
    %620 = vector.load %arg12[%c0_252, %c0_253] : memref<1x128xf32, #tpu.memory_space<vmem>>, vector<1x128xf32>
    %621 = vector.broadcast %620 : vector<1x128xf32> to vector<2x128xf32>
    %622 = arith.addf %619, %621 : vector<2x128xf32>
    %623 = vector.extract_strided_slice %622 {offsets = [0, 0], sizes = [2, 32], strides = [1, 1]} : vector<2x128xf32> to vector<2x32xf32>
    %624 = arith.negf %623 : vector<2x32xf32>
    %625 = math.exp %624 : vector<2x32xf32>
    %cst_254 = arith.constant 1.000000e+00 : f32
    %626 = vector.broadcast %cst_254 : f32 to vector<2x32xf32>
    %627 = arith.addf %626, %625 : vector<2x32xf32>
    %628 = arith.divf %626, %627 : vector<2x32xf32>
    %629 = vector.extract_strided_slice %622 {offsets = [0, 32], sizes = [2, 32], strides = [1, 1]} : vector<2x128xf32> to vector<2x32xf32>
    %630 = arith.negf %629 : vector<2x32xf32>
    %631 = math.exp %630 : vector<2x32xf32>
    %cst_255 = arith.constant 1.000000e+00 : f32
    %632 = vector.broadcast %cst_255 : f32 to vector<2x32xf32>
    %633 = arith.addf %632, %631 : vector<2x32xf32>
    %634 = arith.divf %632, %633 : vector<2x32xf32>
    %635 = vector.extract_strided_slice %622 {offsets = [0, 64], sizes = [2, 32], strides = [1, 1]} : vector<2x128xf32> to vector<2x32xf32>
    %636 = vector.extract_strided_slice %622 {offsets = [0, 96], sizes = [2, 32], strides = [1, 1]} : vector<2x128xf32> to vector<2x32xf32>
    %637 = arith.mulf %628, %636 : vector<2x32xf32>
    %638 = arith.addf %635, %637 : vector<2x32xf32>
    %639 = math.tanh %638 : vector<2x32xf32>
    %cst_256 = arith.constant 1.000000e+00 : f32
    %640 = vector.broadcast %cst_256 : f32 to vector<2x32xf32>
    %641 = arith.subf %640, %634 : vector<2x32xf32>
    %642 = arith.mulf %641, %639 : vector<2x32xf32>
    %643 = arith.mulf %634, %510 : vector<2x32xf32>
    %644 = arith.addf %642, %643 : vector<2x32xf32>
    %c0_257 = arith.constant 0 : index
    %c0_258 = arith.constant 0 : index
    %645 = vector.load %arg13[%c0_257, %c0_258] : memref<32x128xf32, #tpu.memory_space<vmem>>, vector<32x128xf32>
    %cst_259 = arith.constant dense<0.000000e+00> : vector<2x128xf32>
    %646 = tpu.matmul %644, %645, %cst_259 {dimension_numbers = #tpu.dot_dimension_numbers<[1], [0], [0], [1], [0, 0, 1, 1], [], []>} : vector<2x32xf32>, vector<32x128xf32>, vector<2x128xf32> -> vector<2x128xf32>
    %c0_260 = arith.constant 0 : index
    %c0_261 = arith.constant 0 : index
    %647 = vector.load %arg14[%c0_260, %c0_261] : memref<32x128xf32, #tpu.memory_space<vmem>>, vector<32x128xf32>
    %cst_262 = arith.constant dense<0.000000e+00> : vector<2x128xf32>
    %648 = tpu.matmul %540, %647, %cst_262 {dimension_numbers = #tpu.dot_dimension_numbers<[1], [0], [0], [1], [0, 0, 1, 1], [], []>} : vector<2x32xf32>, vector<32x128xf32>, vector<2x128xf32> -> vector<2x128xf32>
    %649 = arith.addf %646, %648 : vector<2x128xf32>
    %c0_263 = arith.constant 0 : index
    %c0_264 = arith.constant 0 : index
    %650 = vector.load %arg15[%c0_263, %c0_264] : memref<1x128xf32, #tpu.memory_space<vmem>>, vector<1x128xf32>
    %651 = vector.broadcast %650 : vector<1x128xf32> to vector<2x128xf32>
    %652 = arith.addf %649, %651 : vector<2x128xf32>
    %653 = vector.extract_strided_slice %652 {offsets = [0, 0], sizes = [2, 32], strides = [1, 1]} : vector<2x128xf32> to vector<2x32xf32>
    %654 = arith.negf %653 : vector<2x32xf32>
    %655 = math.exp %654 : vector<2x32xf32>
    %cst_265 = arith.constant 1.000000e+00 : f32
    %656 = vector.broadcast %cst_265 : f32 to vector<2x32xf32>
    %657 = arith.addf %656, %655 : vector<2x32xf32>
    %658 = arith.divf %656, %657 : vector<2x32xf32>
    %659 = vector.extract_strided_slice %652 {offsets = [0, 32], sizes = [2, 32], strides = [1, 1]} : vector<2x128xf32> to vector<2x32xf32>
    %660 = arith.negf %659 : vector<2x32xf32>
    %661 = math.exp %660 : vector<2x32xf32>
    %cst_266 = arith.constant 1.000000e+00 : f32
    %662 = vector.broadcast %cst_266 : f32 to vector<2x32xf32>
    %663 = arith.addf %662, %661 : vector<2x32xf32>
    %664 = arith.divf %662, %663 : vector<2x32xf32>
    %665 = vector.extract_strided_slice %652 {offsets = [0, 64], sizes = [2, 32], strides = [1, 1]} : vector<2x128xf32> to vector<2x32xf32>
    %666 = vector.extract_strided_slice %652 {offsets = [0, 96], sizes = [2, 32], strides = [1, 1]} : vector<2x128xf32> to vector<2x32xf32>
    %667 = arith.mulf %658, %666 : vector<2x32xf32>
    %668 = arith.addf %665, %667 : vector<2x32xf32>
    %669 = math.tanh %668 : vector<2x32xf32>
    %cst_267 = arith.constant 1.000000e+00 : f32
    %670 = vector.broadcast %cst_267 : f32 to vector<2x32xf32>
    %671 = arith.subf %670, %664 : vector<2x32xf32>
    %672 = arith.mulf %671, %669 : vector<2x32xf32>
    %673 = arith.mulf %664, %540 : vector<2x32xf32>
    %674 = arith.addf %672, %673 : vector<2x32xf32>
    %c0_268 = arith.constant 0 : index
    %c5 = arith.constant 5 : index
    %675 = vector.load %arg1[%c0_268, %c5] : memref<2x8xi32, #tpu.memory_space<vmem>>, vector<2x1xi32>
    %676 = vector.broadcast %675 : vector<2x1xi32> to vector<2x50xi32>
    %677 = arith.cmpi eq, %676, %0 : vector<2x50xi32>
    %678 = arith.extui %677 : vector<2x50xi1> to vector<2x50xi32>
    %679 = arith.sitofp %678 : vector<2x50xi32> to vector<2x50xf32>
    %c0_269 = arith.constant 0 : index
    %c0_270 = arith.constant 0 : index
    %680 = vector.load %arg3[%c0_269, %c0_270] : memref<50x32xf32, #tpu.memory_space<vmem>>, vector<50x32xf32>
    %cst_271 = arith.constant dense<0.000000e+00> : vector<2x32xf32>
    %681 = tpu.matmul %679, %680, %cst_271 {dimension_numbers = #tpu.dot_dimension_numbers<[1], [0], [0], [1], [0, 0, 1, 1], [], []>} : vector<2x50xf32>, vector<50x32xf32>, vector<2x32xf32> -> vector<2x32xf32>
    %c0_272 = arith.constant 0 : index
    %c0_273 = arith.constant 0 : index
    %682 = vector.load %arg4[%c0_272, %c0_273] : memref<32x128xf32, #tpu.memory_space<vmem>>, vector<32x128xf32>
    %cst_274 = arith.constant dense<0.000000e+00> : vector<2x128xf32>
    %683 = tpu.matmul %681, %682, %cst_274 {dimension_numbers = #tpu.dot_dimension_numbers<[1], [0], [0], [1], [0, 0, 1, 1], [], []>} : vector<2x32xf32>, vector<32x128xf32>, vector<2x128xf32> -> vector<2x128xf32>
    %c0_275 = arith.constant 0 : index
    %c0_276 = arith.constant 0 : index
    %684 = vector.load %arg5[%c0_275, %c0_276] : memref<32x128xf32, #tpu.memory_space<vmem>>, vector<32x128xf32>
    %cst_277 = arith.constant dense<0.000000e+00> : vector<2x128xf32>
    %685 = tpu.matmul %577, %684, %cst_277 {dimension_numbers = #tpu.dot_dimension_numbers<[1], [0], [0], [1], [0, 0, 1, 1], [], []>} : vector<2x32xf32>, vector<32x128xf32>, vector<2x128xf32> -> vector<2x128xf32>
    %686 = arith.addf %683, %685 : vector<2x128xf32>
    %c0_278 = arith.constant 0 : index
    %c0_279 = arith.constant 0 : index
    %687 = vector.load %arg6[%c0_278, %c0_279] : memref<1x128xf32, #tpu.memory_space<vmem>>, vector<1x128xf32>
    %688 = vector.broadcast %687 : vector<1x128xf32> to vector<2x128xf32>
    %689 = arith.addf %686, %688 : vector<2x128xf32>
    %690 = vector.extract_strided_slice %689 {offsets = [0, 0], sizes = [2, 32], strides = [1, 1]} : vector<2x128xf32> to vector<2x32xf32>
    %691 = arith.negf %690 : vector<2x32xf32>
    %692 = math.exp %691 : vector<2x32xf32>
    %cst_280 = arith.constant 1.000000e+00 : f32
    %693 = vector.broadcast %cst_280 : f32 to vector<2x32xf32>
    %694 = arith.addf %693, %692 : vector<2x32xf32>
    %695 = arith.divf %693, %694 : vector<2x32xf32>
    %696 = vector.extract_strided_slice %689 {offsets = [0, 32], sizes = [2, 32], strides = [1, 1]} : vector<2x128xf32> to vector<2x32xf32>
    %697 = arith.negf %696 : vector<2x32xf32>
    %698 = math.exp %697 : vector<2x32xf32>
    %cst_281 = arith.constant 1.000000e+00 : f32
    %699 = vector.broadcast %cst_281 : f32 to vector<2x32xf32>
    %700 = arith.addf %699, %698 : vector<2x32xf32>
    %701 = arith.divf %699, %700 : vector<2x32xf32>
    %702 = vector.extract_strided_slice %689 {offsets = [0, 64], sizes = [2, 32], strides = [1, 1]} : vector<2x128xf32> to vector<2x32xf32>
    %703 = vector.extract_strided_slice %689 {offsets = [0, 96], sizes = [2, 32], strides = [1, 1]} : vector<2x128xf32> to vector<2x32xf32>
    %704 = arith.mulf %695, %703 : vector<2x32xf32>
    %705 = arith.addf %702, %704 : vector<2x32xf32>
    %706 = math.tanh %705 : vector<2x32xf32>
    %cst_282 = arith.constant 1.000000e+00 : f32
    %707 = vector.broadcast %cst_282 : f32 to vector<2x32xf32>
    %708 = arith.subf %707, %701 : vector<2x32xf32>
    %709 = arith.mulf %708, %706 : vector<2x32xf32>
    %710 = arith.mulf %701, %577 : vector<2x32xf32>
    %711 = arith.addf %709, %710 : vector<2x32xf32>
    %c0_283 = arith.constant 0 : index
    %c0_284 = arith.constant 0 : index
    %712 = vector.load %arg7[%c0_283, %c0_284] : memref<32x128xf32, #tpu.memory_space<vmem>>, vector<32x128xf32>
    %cst_285 = arith.constant dense<0.000000e+00> : vector<2x128xf32>
    %713 = tpu.matmul %711, %712, %cst_285 {dimension_numbers = #tpu.dot_dimension_numbers<[1], [0], [0], [1], [0, 0, 1, 1], [], []>} : vector<2x32xf32>, vector<32x128xf32>, vector<2x128xf32> -> vector<2x128xf32>
    %c0_286 = arith.constant 0 : index
    %c0_287 = arith.constant 0 : index
    %714 = vector.load %arg8[%c0_286, %c0_287] : memref<32x128xf32, #tpu.memory_space<vmem>>, vector<32x128xf32>
    %cst_288 = arith.constant dense<0.000000e+00> : vector<2x128xf32>
    %715 = tpu.matmul %607, %714, %cst_288 {dimension_numbers = #tpu.dot_dimension_numbers<[1], [0], [0], [1], [0, 0, 1, 1], [], []>} : vector<2x32xf32>, vector<32x128xf32>, vector<2x128xf32> -> vector<2x128xf32>
    %716 = arith.addf %713, %715 : vector<2x128xf32>
    %c0_289 = arith.constant 0 : index
    %c0_290 = arith.constant 0 : index
    %717 = vector.load %arg9[%c0_289, %c0_290] : memref<1x128xf32, #tpu.memory_space<vmem>>, vector<1x128xf32>
    %718 = vector.broadcast %717 : vector<1x128xf32> to vector<2x128xf32>
    %719 = arith.addf %716, %718 : vector<2x128xf32>
    %720 = vector.extract_strided_slice %719 {offsets = [0, 0], sizes = [2, 32], strides = [1, 1]} : vector<2x128xf32> to vector<2x32xf32>
    %721 = arith.negf %720 : vector<2x32xf32>
    %722 = math.exp %721 : vector<2x32xf32>
    %cst_291 = arith.constant 1.000000e+00 : f32
    %723 = vector.broadcast %cst_291 : f32 to vector<2x32xf32>
    %724 = arith.addf %723, %722 : vector<2x32xf32>
    %725 = arith.divf %723, %724 : vector<2x32xf32>
    %726 = vector.extract_strided_slice %719 {offsets = [0, 32], sizes = [2, 32], strides = [1, 1]} : vector<2x128xf32> to vector<2x32xf32>
    %727 = arith.negf %726 : vector<2x32xf32>
    %728 = math.exp %727 : vector<2x32xf32>
    %cst_292 = arith.constant 1.000000e+00 : f32
    %729 = vector.broadcast %cst_292 : f32 to vector<2x32xf32>
    %730 = arith.addf %729, %728 : vector<2x32xf32>
    %731 = arith.divf %729, %730 : vector<2x32xf32>
    %732 = vector.extract_strided_slice %719 {offsets = [0, 64], sizes = [2, 32], strides = [1, 1]} : vector<2x128xf32> to vector<2x32xf32>
    %733 = vector.extract_strided_slice %719 {offsets = [0, 96], sizes = [2, 32], strides = [1, 1]} : vector<2x128xf32> to vector<2x32xf32>
    %734 = arith.mulf %725, %733 : vector<2x32xf32>
    %735 = arith.addf %732, %734 : vector<2x32xf32>
    %736 = math.tanh %735 : vector<2x32xf32>
    %cst_293 = arith.constant 1.000000e+00 : f32
    %737 = vector.broadcast %cst_293 : f32 to vector<2x32xf32>
    %738 = arith.subf %737, %731 : vector<2x32xf32>
    %739 = arith.mulf %738, %736 : vector<2x32xf32>
    %740 = arith.mulf %731, %607 : vector<2x32xf32>
    %741 = arith.addf %739, %740 : vector<2x32xf32>
    %c0_294 = arith.constant 0 : index
    %c5_295 = arith.constant 5 : index
    %742 = vector.load %arg2[%c0_294, %c5_295] : memref<2x12xi32, #tpu.memory_space<vmem>>, vector<2x1xi32>
    %743 = vector.broadcast %742 : vector<2x1xi32> to vector<2x50xi32>
    %744 = arith.cmpi eq, %743, %0 : vector<2x50xi32>
    %745 = arith.extui %744 : vector<2x50xi1> to vector<2x50xi32>
    %746 = arith.sitofp %745 : vector<2x50xi32> to vector<2x50xf32>
    %c0_296 = arith.constant 0 : index
    %c0_297 = arith.constant 0 : index
    %747 = vector.load %arg3[%c0_296, %c0_297] : memref<50x32xf32, #tpu.memory_space<vmem>>, vector<50x32xf32>
    %cst_298 = arith.constant dense<0.000000e+00> : vector<2x32xf32>
    %748 = tpu.matmul %746, %747, %cst_298 {dimension_numbers = #tpu.dot_dimension_numbers<[1], [0], [0], [1], [0, 0, 1, 1], [], []>} : vector<2x50xf32>, vector<50x32xf32>, vector<2x32xf32> -> vector<2x32xf32>
    %c0_299 = arith.constant 0 : index
    %c0_300 = arith.constant 0 : index
    %749 = vector.load %arg10[%c0_299, %c0_300] : memref<32x128xf32, #tpu.memory_space<vmem>>, vector<32x128xf32>
    %cst_301 = arith.constant dense<0.000000e+00> : vector<2x128xf32>
    %750 = tpu.matmul %748, %749, %cst_301 {dimension_numbers = #tpu.dot_dimension_numbers<[1], [0], [0], [1], [0, 0, 1, 1], [], []>} : vector<2x32xf32>, vector<32x128xf32>, vector<2x128xf32> -> vector<2x128xf32>
    %c0_302 = arith.constant 0 : index
    %c0_303 = arith.constant 0 : index
    %751 = vector.load %arg11[%c0_302, %c0_303] : memref<32x128xf32, #tpu.memory_space<vmem>>, vector<32x128xf32>
    %cst_304 = arith.constant dense<0.000000e+00> : vector<2x128xf32>
    %752 = tpu.matmul %644, %751, %cst_304 {dimension_numbers = #tpu.dot_dimension_numbers<[1], [0], [0], [1], [0, 0, 1, 1], [], []>} : vector<2x32xf32>, vector<32x128xf32>, vector<2x128xf32> -> vector<2x128xf32>
    %753 = arith.addf %750, %752 : vector<2x128xf32>
    %c0_305 = arith.constant 0 : index
    %c0_306 = arith.constant 0 : index
    %754 = vector.load %arg12[%c0_305, %c0_306] : memref<1x128xf32, #tpu.memory_space<vmem>>, vector<1x128xf32>
    %755 = vector.broadcast %754 : vector<1x128xf32> to vector<2x128xf32>
    %756 = arith.addf %753, %755 : vector<2x128xf32>
    %757 = vector.extract_strided_slice %756 {offsets = [0, 0], sizes = [2, 32], strides = [1, 1]} : vector<2x128xf32> to vector<2x32xf32>
    %758 = arith.negf %757 : vector<2x32xf32>
    %759 = math.exp %758 : vector<2x32xf32>
    %cst_307 = arith.constant 1.000000e+00 : f32
    %760 = vector.broadcast %cst_307 : f32 to vector<2x32xf32>
    %761 = arith.addf %760, %759 : vector<2x32xf32>
    %762 = arith.divf %760, %761 : vector<2x32xf32>
    %763 = vector.extract_strided_slice %756 {offsets = [0, 32], sizes = [2, 32], strides = [1, 1]} : vector<2x128xf32> to vector<2x32xf32>
    %764 = arith.negf %763 : vector<2x32xf32>
    %765 = math.exp %764 : vector<2x32xf32>
    %cst_308 = arith.constant 1.000000e+00 : f32
    %766 = vector.broadcast %cst_308 : f32 to vector<2x32xf32>
    %767 = arith.addf %766, %765 : vector<2x32xf32>
    %768 = arith.divf %766, %767 : vector<2x32xf32>
    %769 = vector.extract_strided_slice %756 {offsets = [0, 64], sizes = [2, 32], strides = [1, 1]} : vector<2x128xf32> to vector<2x32xf32>
    %770 = vector.extract_strided_slice %756 {offsets = [0, 96], sizes = [2, 32], strides = [1, 1]} : vector<2x128xf32> to vector<2x32xf32>
    %771 = arith.mulf %762, %770 : vector<2x32xf32>
    %772 = arith.addf %769, %771 : vector<2x32xf32>
    %773 = math.tanh %772 : vector<2x32xf32>
    %cst_309 = arith.constant 1.000000e+00 : f32
    %774 = vector.broadcast %cst_309 : f32 to vector<2x32xf32>
    %775 = arith.subf %774, %768 : vector<2x32xf32>
    %776 = arith.mulf %775, %773 : vector<2x32xf32>
    %777 = arith.mulf %768, %644 : vector<2x32xf32>
    %778 = arith.addf %776, %777 : vector<2x32xf32>
    %c0_310 = arith.constant 0 : index
    %c0_311 = arith.constant 0 : index
    %779 = vector.load %arg13[%c0_310, %c0_311] : memref<32x128xf32, #tpu.memory_space<vmem>>, vector<32x128xf32>
    %cst_312 = arith.constant dense<0.000000e+00> : vector<2x128xf32>
    %780 = tpu.matmul %778, %779, %cst_312 {dimension_numbers = #tpu.dot_dimension_numbers<[1], [0], [0], [1], [0, 0, 1, 1], [], []>} : vector<2x32xf32>, vector<32x128xf32>, vector<2x128xf32> -> vector<2x128xf32>
    %c0_313 = arith.constant 0 : index
    %c0_314 = arith.constant 0 : index
    %781 = vector.load %arg14[%c0_313, %c0_314] : memref<32x128xf32, #tpu.memory_space<vmem>>, vector<32x128xf32>
    %cst_315 = arith.constant dense<0.000000e+00> : vector<2x128xf32>
    %782 = tpu.matmul %674, %781, %cst_315 {dimension_numbers = #tpu.dot_dimension_numbers<[1], [0], [0], [1], [0, 0, 1, 1], [], []>} : vector<2x32xf32>, vector<32x128xf32>, vector<2x128xf32> -> vector<2x128xf32>
    %783 = arith.addf %780, %782 : vector<2x128xf32>
    %c0_316 = arith.constant 0 : index
    %c0_317 = arith.constant 0 : index
    %784 = vector.load %arg15[%c0_316, %c0_317] : memref<1x128xf32, #tpu.memory_space<vmem>>, vector<1x128xf32>
    %785 = vector.broadcast %784 : vector<1x128xf32> to vector<2x128xf32>
    %786 = arith.addf %783, %785 : vector<2x128xf32>
    %787 = vector.extract_strided_slice %786 {offsets = [0, 0], sizes = [2, 32], strides = [1, 1]} : vector<2x128xf32> to vector<2x32xf32>
    %788 = arith.negf %787 : vector<2x32xf32>
    %789 = math.exp %788 : vector<2x32xf32>
    %cst_318 = arith.constant 1.000000e+00 : f32
    %790 = vector.broadcast %cst_318 : f32 to vector<2x32xf32>
    %791 = arith.addf %790, %789 : vector<2x32xf32>
    %792 = arith.divf %790, %791 : vector<2x32xf32>
    %793 = vector.extract_strided_slice %786 {offsets = [0, 32], sizes = [2, 32], strides = [1, 1]} : vector<2x128xf32> to vector<2x32xf32>
    %794 = arith.negf %793 : vector<2x32xf32>
    %795 = math.exp %794 : vector<2x32xf32>
    %cst_319 = arith.constant 1.000000e+00 : f32
    %796 = vector.broadcast %cst_319 : f32 to vector<2x32xf32>
    %797 = arith.addf %796, %795 : vector<2x32xf32>
    %798 = arith.divf %796, %797 : vector<2x32xf32>
    %799 = vector.extract_strided_slice %786 {offsets = [0, 64], sizes = [2, 32], strides = [1, 1]} : vector<2x128xf32> to vector<2x32xf32>
    %800 = vector.extract_strided_slice %786 {offsets = [0, 96], sizes = [2, 32], strides = [1, 1]} : vector<2x128xf32> to vector<2x32xf32>
    %801 = arith.mulf %792, %800 : vector<2x32xf32>
    %802 = arith.addf %799, %801 : vector<2x32xf32>
    %803 = math.tanh %802 : vector<2x32xf32>
    %cst_320 = arith.constant 1.000000e+00 : f32
    %804 = vector.broadcast %cst_320 : f32 to vector<2x32xf32>
    %805 = arith.subf %804, %798 : vector<2x32xf32>
    %806 = arith.mulf %805, %803 : vector<2x32xf32>
    %807 = arith.mulf %798, %674 : vector<2x32xf32>
    %808 = arith.addf %806, %807 : vector<2x32xf32>
    %c0_321 = arith.constant 0 : index
    %c6 = arith.constant 6 : index
    %809 = vector.load %arg1[%c0_321, %c6] : memref<2x8xi32, #tpu.memory_space<vmem>>, vector<2x1xi32>
    %810 = vector.broadcast %809 : vector<2x1xi32> to vector<2x50xi32>
    %811 = arith.cmpi eq, %810, %0 : vector<2x50xi32>
    %812 = arith.extui %811 : vector<2x50xi1> to vector<2x50xi32>
    %813 = arith.sitofp %812 : vector<2x50xi32> to vector<2x50xf32>
    %c0_322 = arith.constant 0 : index
    %c0_323 = arith.constant 0 : index
    %814 = vector.load %arg3[%c0_322, %c0_323] : memref<50x32xf32, #tpu.memory_space<vmem>>, vector<50x32xf32>
    %cst_324 = arith.constant dense<0.000000e+00> : vector<2x32xf32>
    %815 = tpu.matmul %813, %814, %cst_324 {dimension_numbers = #tpu.dot_dimension_numbers<[1], [0], [0], [1], [0, 0, 1, 1], [], []>} : vector<2x50xf32>, vector<50x32xf32>, vector<2x32xf32> -> vector<2x32xf32>
    %c0_325 = arith.constant 0 : index
    %c0_326 = arith.constant 0 : index
    %816 = vector.load %arg4[%c0_325, %c0_326] : memref<32x128xf32, #tpu.memory_space<vmem>>, vector<32x128xf32>
    %cst_327 = arith.constant dense<0.000000e+00> : vector<2x128xf32>
    %817 = tpu.matmul %815, %816, %cst_327 {dimension_numbers = #tpu.dot_dimension_numbers<[1], [0], [0], [1], [0, 0, 1, 1], [], []>} : vector<2x32xf32>, vector<32x128xf32>, vector<2x128xf32> -> vector<2x128xf32>
    %c0_328 = arith.constant 0 : index
    %c0_329 = arith.constant 0 : index
    %818 = vector.load %arg5[%c0_328, %c0_329] : memref<32x128xf32, #tpu.memory_space<vmem>>, vector<32x128xf32>
    %cst_330 = arith.constant dense<0.000000e+00> : vector<2x128xf32>
    %819 = tpu.matmul %711, %818, %cst_330 {dimension_numbers = #tpu.dot_dimension_numbers<[1], [0], [0], [1], [0, 0, 1, 1], [], []>} : vector<2x32xf32>, vector<32x128xf32>, vector<2x128xf32> -> vector<2x128xf32>
    %820 = arith.addf %817, %819 : vector<2x128xf32>
    %c0_331 = arith.constant 0 : index
    %c0_332 = arith.constant 0 : index
    %821 = vector.load %arg6[%c0_331, %c0_332] : memref<1x128xf32, #tpu.memory_space<vmem>>, vector<1x128xf32>
    %822 = vector.broadcast %821 : vector<1x128xf32> to vector<2x128xf32>
    %823 = arith.addf %820, %822 : vector<2x128xf32>
    %824 = vector.extract_strided_slice %823 {offsets = [0, 0], sizes = [2, 32], strides = [1, 1]} : vector<2x128xf32> to vector<2x32xf32>
    %825 = arith.negf %824 : vector<2x32xf32>
    %826 = math.exp %825 : vector<2x32xf32>
    %cst_333 = arith.constant 1.000000e+00 : f32
    %827 = vector.broadcast %cst_333 : f32 to vector<2x32xf32>
    %828 = arith.addf %827, %826 : vector<2x32xf32>
    %829 = arith.divf %827, %828 : vector<2x32xf32>
    %830 = vector.extract_strided_slice %823 {offsets = [0, 32], sizes = [2, 32], strides = [1, 1]} : vector<2x128xf32> to vector<2x32xf32>
    %831 = arith.negf %830 : vector<2x32xf32>
    %832 = math.exp %831 : vector<2x32xf32>
    %cst_334 = arith.constant 1.000000e+00 : f32
    %833 = vector.broadcast %cst_334 : f32 to vector<2x32xf32>
    %834 = arith.addf %833, %832 : vector<2x32xf32>
    %835 = arith.divf %833, %834 : vector<2x32xf32>
    %836 = vector.extract_strided_slice %823 {offsets = [0, 64], sizes = [2, 32], strides = [1, 1]} : vector<2x128xf32> to vector<2x32xf32>
    %837 = vector.extract_strided_slice %823 {offsets = [0, 96], sizes = [2, 32], strides = [1, 1]} : vector<2x128xf32> to vector<2x32xf32>
    %838 = arith.mulf %829, %837 : vector<2x32xf32>
    %839 = arith.addf %836, %838 : vector<2x32xf32>
    %840 = math.tanh %839 : vector<2x32xf32>
    %cst_335 = arith.constant 1.000000e+00 : f32
    %841 = vector.broadcast %cst_335 : f32 to vector<2x32xf32>
    %842 = arith.subf %841, %835 : vector<2x32xf32>
    %843 = arith.mulf %842, %840 : vector<2x32xf32>
    %844 = arith.mulf %835, %711 : vector<2x32xf32>
    %845 = arith.addf %843, %844 : vector<2x32xf32>
    %c0_336 = arith.constant 0 : index
    %c0_337 = arith.constant 0 : index
    %846 = vector.load %arg7[%c0_336, %c0_337] : memref<32x128xf32, #tpu.memory_space<vmem>>, vector<32x128xf32>
    %cst_338 = arith.constant dense<0.000000e+00> : vector<2x128xf32>
    %847 = tpu.matmul %845, %846, %cst_338 {dimension_numbers = #tpu.dot_dimension_numbers<[1], [0], [0], [1], [0, 0, 1, 1], [], []>} : vector<2x32xf32>, vector<32x128xf32>, vector<2x128xf32> -> vector<2x128xf32>
    %c0_339 = arith.constant 0 : index
    %c0_340 = arith.constant 0 : index
    %848 = vector.load %arg8[%c0_339, %c0_340] : memref<32x128xf32, #tpu.memory_space<vmem>>, vector<32x128xf32>
    %cst_341 = arith.constant dense<0.000000e+00> : vector<2x128xf32>
    %849 = tpu.matmul %741, %848, %cst_341 {dimension_numbers = #tpu.dot_dimension_numbers<[1], [0], [0], [1], [0, 0, 1, 1], [], []>} : vector<2x32xf32>, vector<32x128xf32>, vector<2x128xf32> -> vector<2x128xf32>
    %850 = arith.addf %847, %849 : vector<2x128xf32>
    %c0_342 = arith.constant 0 : index
    %c0_343 = arith.constant 0 : index
    %851 = vector.load %arg9[%c0_342, %c0_343] : memref<1x128xf32, #tpu.memory_space<vmem>>, vector<1x128xf32>
    %852 = vector.broadcast %851 : vector<1x128xf32> to vector<2x128xf32>
    %853 = arith.addf %850, %852 : vector<2x128xf32>
    %854 = vector.extract_strided_slice %853 {offsets = [0, 0], sizes = [2, 32], strides = [1, 1]} : vector<2x128xf32> to vector<2x32xf32>
    %855 = arith.negf %854 : vector<2x32xf32>
    %856 = math.exp %855 : vector<2x32xf32>
    %cst_344 = arith.constant 1.000000e+00 : f32
    %857 = vector.broadcast %cst_344 : f32 to vector<2x32xf32>
    %858 = arith.addf %857, %856 : vector<2x32xf32>
    %859 = arith.divf %857, %858 : vector<2x32xf32>
    %860 = vector.extract_strided_slice %853 {offsets = [0, 32], sizes = [2, 32], strides = [1, 1]} : vector<2x128xf32> to vector<2x32xf32>
    %861 = arith.negf %860 : vector<2x32xf32>
    %862 = math.exp %861 : vector<2x32xf32>
    %cst_345 = arith.constant 1.000000e+00 : f32
    %863 = vector.broadcast %cst_345 : f32 to vector<2x32xf32>
    %864 = arith.addf %863, %862 : vector<2x32xf32>
    %865 = arith.divf %863, %864 : vector<2x32xf32>
    %866 = vector.extract_strided_slice %853 {offsets = [0, 64], sizes = [2, 32], strides = [1, 1]} : vector<2x128xf32> to vector<2x32xf32>
    %867 = vector.extract_strided_slice %853 {offsets = [0, 96], sizes = [2, 32], strides = [1, 1]} : vector<2x128xf32> to vector<2x32xf32>
    %868 = arith.mulf %859, %867 : vector<2x32xf32>
    %869 = arith.addf %866, %868 : vector<2x32xf32>
    %870 = math.tanh %869 : vector<2x32xf32>
    %cst_346 = arith.constant 1.000000e+00 : f32
    %871 = vector.broadcast %cst_346 : f32 to vector<2x32xf32>
    %872 = arith.subf %871, %865 : vector<2x32xf32>
    %873 = arith.mulf %872, %870 : vector<2x32xf32>
    %874 = arith.mulf %865, %741 : vector<2x32xf32>
    %875 = arith.addf %873, %874 : vector<2x32xf32>
    %c0_347 = arith.constant 0 : index
    %c6_348 = arith.constant 6 : index
    %876 = vector.load %arg2[%c0_347, %c6_348] : memref<2x12xi32, #tpu.memory_space<vmem>>, vector<2x1xi32>
    %877 = vector.broadcast %876 : vector<2x1xi32> to vector<2x50xi32>
    %878 = arith.cmpi eq, %877, %0 : vector<2x50xi32>
    %879 = arith.extui %878 : vector<2x50xi1> to vector<2x50xi32>
    %880 = arith.sitofp %879 : vector<2x50xi32> to vector<2x50xf32>
    %c0_349 = arith.constant 0 : index
    %c0_350 = arith.constant 0 : index
    %881 = vector.load %arg3[%c0_349, %c0_350] : memref<50x32xf32, #tpu.memory_space<vmem>>, vector<50x32xf32>
    %cst_351 = arith.constant dense<0.000000e+00> : vector<2x32xf32>
    %882 = tpu.matmul %880, %881, %cst_351 {dimension_numbers = #tpu.dot_dimension_numbers<[1], [0], [0], [1], [0, 0, 1, 1], [], []>} : vector<2x50xf32>, vector<50x32xf32>, vector<2x32xf32> -> vector<2x32xf32>
    %c0_352 = arith.constant 0 : index
    %c0_353 = arith.constant 0 : index
    %883 = vector.load %arg10[%c0_352, %c0_353] : memref<32x128xf32, #tpu.memory_space<vmem>>, vector<32x128xf32>
    %cst_354 = arith.constant dense<0.000000e+00> : vector<2x128xf32>
    %884 = tpu.matmul %882, %883, %cst_354 {dimension_numbers = #tpu.dot_dimension_numbers<[1], [0], [0], [1], [0, 0, 1, 1], [], []>} : vector<2x32xf32>, vector<32x128xf32>, vector<2x128xf32> -> vector<2x128xf32>
    %c0_355 = arith.constant 0 : index
    %c0_356 = arith.constant 0 : index
    %885 = vector.load %arg11[%c0_355, %c0_356] : memref<32x128xf32, #tpu.memory_space<vmem>>, vector<32x128xf32>
    %cst_357 = arith.constant dense<0.000000e+00> : vector<2x128xf32>
    %886 = tpu.matmul %778, %885, %cst_357 {dimension_numbers = #tpu.dot_dimension_numbers<[1], [0], [0], [1], [0, 0, 1, 1], [], []>} : vector<2x32xf32>, vector<32x128xf32>, vector<2x128xf32> -> vector<2x128xf32>
    %887 = arith.addf %884, %886 : vector<2x128xf32>
    %c0_358 = arith.constant 0 : index
    %c0_359 = arith.constant 0 : index
    %888 = vector.load %arg12[%c0_358, %c0_359] : memref<1x128xf32, #tpu.memory_space<vmem>>, vector<1x128xf32>
    %889 = vector.broadcast %888 : vector<1x128xf32> to vector<2x128xf32>
    %890 = arith.addf %887, %889 : vector<2x128xf32>
    %891 = vector.extract_strided_slice %890 {offsets = [0, 0], sizes = [2, 32], strides = [1, 1]} : vector<2x128xf32> to vector<2x32xf32>
    %892 = arith.negf %891 : vector<2x32xf32>
    %893 = math.exp %892 : vector<2x32xf32>
    %cst_360 = arith.constant 1.000000e+00 : f32
    %894 = vector.broadcast %cst_360 : f32 to vector<2x32xf32>
    %895 = arith.addf %894, %893 : vector<2x32xf32>
    %896 = arith.divf %894, %895 : vector<2x32xf32>
    %897 = vector.extract_strided_slice %890 {offsets = [0, 32], sizes = [2, 32], strides = [1, 1]} : vector<2x128xf32> to vector<2x32xf32>
    %898 = arith.negf %897 : vector<2x32xf32>
    %899 = math.exp %898 : vector<2x32xf32>
    %cst_361 = arith.constant 1.000000e+00 : f32
    %900 = vector.broadcast %cst_361 : f32 to vector<2x32xf32>
    %901 = arith.addf %900, %899 : vector<2x32xf32>
    %902 = arith.divf %900, %901 : vector<2x32xf32>
    %903 = vector.extract_strided_slice %890 {offsets = [0, 64], sizes = [2, 32], strides = [1, 1]} : vector<2x128xf32> to vector<2x32xf32>
    %904 = vector.extract_strided_slice %890 {offsets = [0, 96], sizes = [2, 32], strides = [1, 1]} : vector<2x128xf32> to vector<2x32xf32>
    %905 = arith.mulf %896, %904 : vector<2x32xf32>
    %906 = arith.addf %903, %905 : vector<2x32xf32>
    %907 = math.tanh %906 : vector<2x32xf32>
    %cst_362 = arith.constant 1.000000e+00 : f32
    %908 = vector.broadcast %cst_362 : f32 to vector<2x32xf32>
    %909 = arith.subf %908, %902 : vector<2x32xf32>
    %910 = arith.mulf %909, %907 : vector<2x32xf32>
    %911 = arith.mulf %902, %778 : vector<2x32xf32>
    %912 = arith.addf %910, %911 : vector<2x32xf32>
    %c0_363 = arith.constant 0 : index
    %c0_364 = arith.constant 0 : index
    %913 = vector.load %arg13[%c0_363, %c0_364] : memref<32x128xf32, #tpu.memory_space<vmem>>, vector<32x128xf32>
    %cst_365 = arith.constant dense<0.000000e+00> : vector<2x128xf32>
    %914 = tpu.matmul %912, %913, %cst_365 {dimension_numbers = #tpu.dot_dimension_numbers<[1], [0], [0], [1], [0, 0, 1, 1], [], []>} : vector<2x32xf32>, vector<32x128xf32>, vector<2x128xf32> -> vector<2x128xf32>
    %c0_366 = arith.constant 0 : index
    %c0_367 = arith.constant 0 : index
    %915 = vector.load %arg14[%c0_366, %c0_367] : memref<32x128xf32, #tpu.memory_space<vmem>>, vector<32x128xf32>
    %cst_368 = arith.constant dense<0.000000e+00> : vector<2x128xf32>
    %916 = tpu.matmul %808, %915, %cst_368 {dimension_numbers = #tpu.dot_dimension_numbers<[1], [0], [0], [1], [0, 0, 1, 1], [], []>} : vector<2x32xf32>, vector<32x128xf32>, vector<2x128xf32> -> vector<2x128xf32>
    %917 = arith.addf %914, %916 : vector<2x128xf32>
    %c0_369 = arith.constant 0 : index
    %c0_370 = arith.constant 0 : index
    %918 = vector.load %arg15[%c0_369, %c0_370] : memref<1x128xf32, #tpu.memory_space<vmem>>, vector<1x128xf32>
    %919 = vector.broadcast %918 : vector<1x128xf32> to vector<2x128xf32>
    %920 = arith.addf %917, %919 : vector<2x128xf32>
    %921 = vector.extract_strided_slice %920 {offsets = [0, 0], sizes = [2, 32], strides = [1, 1]} : vector<2x128xf32> to vector<2x32xf32>
    %922 = arith.negf %921 : vector<2x32xf32>
    %923 = math.exp %922 : vector<2x32xf32>
    %cst_371 = arith.constant 1.000000e+00 : f32
    %924 = vector.broadcast %cst_371 : f32 to vector<2x32xf32>
    %925 = arith.addf %924, %923 : vector<2x32xf32>
    %926 = arith.divf %924, %925 : vector<2x32xf32>
    %927 = vector.extract_strided_slice %920 {offsets = [0, 32], sizes = [2, 32], strides = [1, 1]} : vector<2x128xf32> to vector<2x32xf32>
    %928 = arith.negf %927 : vector<2x32xf32>
    %929 = math.exp %928 : vector<2x32xf32>
    %cst_372 = arith.constant 1.000000e+00 : f32
    %930 = vector.broadcast %cst_372 : f32 to vector<2x32xf32>
    %931 = arith.addf %930, %929 : vector<2x32xf32>
    %932 = arith.divf %930, %931 : vector<2x32xf32>
    %933 = vector.extract_strided_slice %920 {offsets = [0, 64], sizes = [2, 32], strides = [1, 1]} : vector<2x128xf32> to vector<2x32xf32>
    %934 = vector.extract_strided_slice %920 {offsets = [0, 96], sizes = [2, 32], strides = [1, 1]} : vector<2x128xf32> to vector<2x32xf32>
    %935 = arith.mulf %926, %934 : vector<2x32xf32>
    %936 = arith.addf %933, %935 : vector<2x32xf32>
    %937 = math.tanh %936 : vector<2x32xf32>
    %cst_373 = arith.constant 1.000000e+00 : f32
    %938 = vector.broadcast %cst_373 : f32 to vector<2x32xf32>
    %939 = arith.subf %938, %932 : vector<2x32xf32>
    %940 = arith.mulf %939, %937 : vector<2x32xf32>
    %941 = arith.mulf %932, %808 : vector<2x32xf32>
    %942 = arith.addf %940, %941 : vector<2x32xf32>
    %c0_374 = arith.constant 0 : index
    %c7 = arith.constant 7 : index
    %943 = vector.load %arg1[%c0_374, %c7] : memref<2x8xi32, #tpu.memory_space<vmem>>, vector<2x1xi32>
    %944 = vector.broadcast %943 : vector<2x1xi32> to vector<2x50xi32>
    %945 = arith.cmpi eq, %944, %0 : vector<2x50xi32>
    %946 = arith.extui %945 : vector<2x50xi1> to vector<2x50xi32>
    %947 = arith.sitofp %946 : vector<2x50xi32> to vector<2x50xf32>
    %c0_375 = arith.constant 0 : index
    %c0_376 = arith.constant 0 : index
    %948 = vector.load %arg3[%c0_375, %c0_376] : memref<50x32xf32, #tpu.memory_space<vmem>>, vector<50x32xf32>
    %cst_377 = arith.constant dense<0.000000e+00> : vector<2x32xf32>
    %949 = tpu.matmul %947, %948, %cst_377 {dimension_numbers = #tpu.dot_dimension_numbers<[1], [0], [0], [1], [0, 0, 1, 1], [], []>} : vector<2x50xf32>, vector<50x32xf32>, vector<2x32xf32> -> vector<2x32xf32>
    %c0_378 = arith.constant 0 : index
    %c0_379 = arith.constant 0 : index
    %950 = vector.load %arg4[%c0_378, %c0_379] : memref<32x128xf32, #tpu.memory_space<vmem>>, vector<32x128xf32>
    %cst_380 = arith.constant dense<0.000000e+00> : vector<2x128xf32>
    %951 = tpu.matmul %949, %950, %cst_380 {dimension_numbers = #tpu.dot_dimension_numbers<[1], [0], [0], [1], [0, 0, 1, 1], [], []>} : vector<2x32xf32>, vector<32x128xf32>, vector<2x128xf32> -> vector<2x128xf32>
    %c0_381 = arith.constant 0 : index
    %c0_382 = arith.constant 0 : index
    %952 = vector.load %arg5[%c0_381, %c0_382] : memref<32x128xf32, #tpu.memory_space<vmem>>, vector<32x128xf32>
    %cst_383 = arith.constant dense<0.000000e+00> : vector<2x128xf32>
    %953 = tpu.matmul %845, %952, %cst_383 {dimension_numbers = #tpu.dot_dimension_numbers<[1], [0], [0], [1], [0, 0, 1, 1], [], []>} : vector<2x32xf32>, vector<32x128xf32>, vector<2x128xf32> -> vector<2x128xf32>
    %954 = arith.addf %951, %953 : vector<2x128xf32>
    %c0_384 = arith.constant 0 : index
    %c0_385 = arith.constant 0 : index
    %955 = vector.load %arg6[%c0_384, %c0_385] : memref<1x128xf32, #tpu.memory_space<vmem>>, vector<1x128xf32>
    %956 = vector.broadcast %955 : vector<1x128xf32> to vector<2x128xf32>
    %957 = arith.addf %954, %956 : vector<2x128xf32>
    %958 = vector.extract_strided_slice %957 {offsets = [0, 0], sizes = [2, 32], strides = [1, 1]} : vector<2x128xf32> to vector<2x32xf32>
    %959 = arith.negf %958 : vector<2x32xf32>
    %960 = math.exp %959 : vector<2x32xf32>
    %cst_386 = arith.constant 1.000000e+00 : f32
    %961 = vector.broadcast %cst_386 : f32 to vector<2x32xf32>
    %962 = arith.addf %961, %960 : vector<2x32xf32>
    %963 = arith.divf %961, %962 : vector<2x32xf32>
    %964 = vector.extract_strided_slice %957 {offsets = [0, 32], sizes = [2, 32], strides = [1, 1]} : vector<2x128xf32> to vector<2x32xf32>
    %965 = arith.negf %964 : vector<2x32xf32>
    %966 = math.exp %965 : vector<2x32xf32>
    %cst_387 = arith.constant 1.000000e+00 : f32
    %967 = vector.broadcast %cst_387 : f32 to vector<2x32xf32>
    %968 = arith.addf %967, %966 : vector<2x32xf32>
    %969 = arith.divf %967, %968 : vector<2x32xf32>
    %970 = vector.extract_strided_slice %957 {offsets = [0, 64], sizes = [2, 32], strides = [1, 1]} : vector<2x128xf32> to vector<2x32xf32>
    %971 = vector.extract_strided_slice %957 {offsets = [0, 96], sizes = [2, 32], strides = [1, 1]} : vector<2x128xf32> to vector<2x32xf32>
    %972 = arith.mulf %963, %971 : vector<2x32xf32>
    %973 = arith.addf %970, %972 : vector<2x32xf32>
    %974 = math.tanh %973 : vector<2x32xf32>
    %cst_388 = arith.constant 1.000000e+00 : f32
    %975 = vector.broadcast %cst_388 : f32 to vector<2x32xf32>
    %976 = arith.subf %975, %969 : vector<2x32xf32>
    %977 = arith.mulf %976, %974 : vector<2x32xf32>
    %978 = arith.mulf %969, %845 : vector<2x32xf32>
    %979 = arith.addf %977, %978 : vector<2x32xf32>
    %c0_389 = arith.constant 0 : index
    %c0_390 = arith.constant 0 : index
    %980 = vector.load %arg7[%c0_389, %c0_390] : memref<32x128xf32, #tpu.memory_space<vmem>>, vector<32x128xf32>
    %cst_391 = arith.constant dense<0.000000e+00> : vector<2x128xf32>
    %981 = tpu.matmul %979, %980, %cst_391 {dimension_numbers = #tpu.dot_dimension_numbers<[1], [0], [0], [1], [0, 0, 1, 1], [], []>} : vector<2x32xf32>, vector<32x128xf32>, vector<2x128xf32> -> vector<2x128xf32>
    %c0_392 = arith.constant 0 : index
    %c0_393 = arith.constant 0 : index
    %982 = vector.load %arg8[%c0_392, %c0_393] : memref<32x128xf32, #tpu.memory_space<vmem>>, vector<32x128xf32>
    %cst_394 = arith.constant dense<0.000000e+00> : vector<2x128xf32>
    %983 = tpu.matmul %875, %982, %cst_394 {dimension_numbers = #tpu.dot_dimension_numbers<[1], [0], [0], [1], [0, 0, 1, 1], [], []>} : vector<2x32xf32>, vector<32x128xf32>, vector<2x128xf32> -> vector<2x128xf32>
    %984 = arith.addf %981, %983 : vector<2x128xf32>
    %c0_395 = arith.constant 0 : index
    %c0_396 = arith.constant 0 : index
    %985 = vector.load %arg9[%c0_395, %c0_396] : memref<1x128xf32, #tpu.memory_space<vmem>>, vector<1x128xf32>
    %986 = vector.broadcast %985 : vector<1x128xf32> to vector<2x128xf32>
    %987 = arith.addf %984, %986 : vector<2x128xf32>
    %988 = vector.extract_strided_slice %987 {offsets = [0, 0], sizes = [2, 32], strides = [1, 1]} : vector<2x128xf32> to vector<2x32xf32>
    %989 = arith.negf %988 : vector<2x32xf32>
    %990 = math.exp %989 : vector<2x32xf32>
    %cst_397 = arith.constant 1.000000e+00 : f32
    %991 = vector.broadcast %cst_397 : f32 to vector<2x32xf32>
    %992 = arith.addf %991, %990 : vector<2x32xf32>
    %993 = arith.divf %991, %992 : vector<2x32xf32>
    %994 = vector.extract_strided_slice %987 {offsets = [0, 32], sizes = [2, 32], strides = [1, 1]} : vector<2x128xf32> to vector<2x32xf32>
    %995 = arith.negf %994 : vector<2x32xf32>
    %996 = math.exp %995 : vector<2x32xf32>
    %cst_398 = arith.constant 1.000000e+00 : f32
    %997 = vector.broadcast %cst_398 : f32 to vector<2x32xf32>
    %998 = arith.addf %997, %996 : vector<2x32xf32>
    %999 = arith.divf %997, %998 : vector<2x32xf32>
    %1000 = vector.extract_strided_slice %987 {offsets = [0, 64], sizes = [2, 32], strides = [1, 1]} : vector<2x128xf32> to vector<2x32xf32>
    %1001 = vector.extract_strided_slice %987 {offsets = [0, 96], sizes = [2, 32], strides = [1, 1]} : vector<2x128xf32> to vector<2x32xf32>
    %1002 = arith.mulf %993, %1001 : vector<2x32xf32>
    %1003 = arith.addf %1000, %1002 : vector<2x32xf32>
    %1004 = math.tanh %1003 : vector<2x32xf32>
    %cst_399 = arith.constant 1.000000e+00 : f32
    %1005 = vector.broadcast %cst_399 : f32 to vector<2x32xf32>
    %1006 = arith.subf %1005, %999 : vector<2x32xf32>
    %1007 = arith.mulf %1006, %1004 : vector<2x32xf32>
    %1008 = arith.mulf %999, %875 : vector<2x32xf32>
    %1009 = arith.addf %1007, %1008 : vector<2x32xf32>
    %c0_400 = arith.constant 0 : index
    %c7_401 = arith.constant 7 : index
    %1010 = vector.load %arg2[%c0_400, %c7_401] : memref<2x12xi32, #tpu.memory_space<vmem>>, vector<2x1xi32>
    %1011 = vector.broadcast %1010 : vector<2x1xi32> to vector<2x50xi32>
    %1012 = arith.cmpi eq, %1011, %0 : vector<2x50xi32>
    %1013 = arith.extui %1012 : vector<2x50xi1> to vector<2x50xi32>
    %1014 = arith.sitofp %1013 : vector<2x50xi32> to vector<2x50xf32>
    %c0_402 = arith.constant 0 : index
    %c0_403 = arith.constant 0 : index
    %1015 = vector.load %arg3[%c0_402, %c0_403] : memref<50x32xf32, #tpu.memory_space<vmem>>, vector<50x32xf32>
    %cst_404 = arith.constant dense<0.000000e+00> : vector<2x32xf32>
    %1016 = tpu.matmul %1014, %1015, %cst_404 {dimension_numbers = #tpu.dot_dimension_numbers<[1], [0], [0], [1], [0, 0, 1, 1], [], []>} : vector<2x50xf32>, vector<50x32xf32>, vector<2x32xf32> -> vector<2x32xf32>
    %c0_405 = arith.constant 0 : index
    %c0_406 = arith.constant 0 : index
    %1017 = vector.load %arg10[%c0_405, %c0_406] : memref<32x128xf32, #tpu.memory_space<vmem>>, vector<32x128xf32>
    %cst_407 = arith.constant dense<0.000000e+00> : vector<2x128xf32>
    %1018 = tpu.matmul %1016, %1017, %cst_407 {dimension_numbers = #tpu.dot_dimension_numbers<[1], [0], [0], [1], [0, 0, 1, 1], [], []>} : vector<2x32xf32>, vector<32x128xf32>, vector<2x128xf32> -> vector<2x128xf32>
    %c0_408 = arith.constant 0 : index
    %c0_409 = arith.constant 0 : index
    %1019 = vector.load %arg11[%c0_408, %c0_409] : memref<32x128xf32, #tpu.memory_space<vmem>>, vector<32x128xf32>
    %cst_410 = arith.constant dense<0.000000e+00> : vector<2x128xf32>
    %1020 = tpu.matmul %912, %1019, %cst_410 {dimension_numbers = #tpu.dot_dimension_numbers<[1], [0], [0], [1], [0, 0, 1, 1], [], []>} : vector<2x32xf32>, vector<32x128xf32>, vector<2x128xf32> -> vector<2x128xf32>
    %1021 = arith.addf %1018, %1020 : vector<2x128xf32>
    %c0_411 = arith.constant 0 : index
    %c0_412 = arith.constant 0 : index
    %1022 = vector.load %arg12[%c0_411, %c0_412] : memref<1x128xf32, #tpu.memory_space<vmem>>, vector<1x128xf32>
    %1023 = vector.broadcast %1022 : vector<1x128xf32> to vector<2x128xf32>
    %1024 = arith.addf %1021, %1023 : vector<2x128xf32>
    %1025 = vector.extract_strided_slice %1024 {offsets = [0, 0], sizes = [2, 32], strides = [1, 1]} : vector<2x128xf32> to vector<2x32xf32>
    %1026 = arith.negf %1025 : vector<2x32xf32>
    %1027 = math.exp %1026 : vector<2x32xf32>
    %cst_413 = arith.constant 1.000000e+00 : f32
    %1028 = vector.broadcast %cst_413 : f32 to vector<2x32xf32>
    %1029 = arith.addf %1028, %1027 : vector<2x32xf32>
    %1030 = arith.divf %1028, %1029 : vector<2x32xf32>
    %1031 = vector.extract_strided_slice %1024 {offsets = [0, 32], sizes = [2, 32], strides = [1, 1]} : vector<2x128xf32> to vector<2x32xf32>
    %1032 = arith.negf %1031 : vector<2x32xf32>
    %1033 = math.exp %1032 : vector<2x32xf32>
    %cst_414 = arith.constant 1.000000e+00 : f32
    %1034 = vector.broadcast %cst_414 : f32 to vector<2x32xf32>
    %1035 = arith.addf %1034, %1033 : vector<2x32xf32>
    %1036 = arith.divf %1034, %1035 : vector<2x32xf32>
    %1037 = vector.extract_strided_slice %1024 {offsets = [0, 64], sizes = [2, 32], strides = [1, 1]} : vector<2x128xf32> to vector<2x32xf32>
    %1038 = vector.extract_strided_slice %1024 {offsets = [0, 96], sizes = [2, 32], strides = [1, 1]} : vector<2x128xf32> to vector<2x32xf32>
    %1039 = arith.mulf %1030, %1038 : vector<2x32xf32>
    %1040 = arith.addf %1037, %1039 : vector<2x32xf32>
    %1041 = math.tanh %1040 : vector<2x32xf32>
    %cst_415 = arith.constant 1.000000e+00 : f32
    %1042 = vector.broadcast %cst_415 : f32 to vector<2x32xf32>
    %1043 = arith.subf %1042, %1036 : vector<2x32xf32>
    %1044 = arith.mulf %1043, %1041 : vector<2x32xf32>
    %1045 = arith.mulf %1036, %912 : vector<2x32xf32>
    %1046 = arith.addf %1044, %1045 : vector<2x32xf32>
    %c0_416 = arith.constant 0 : index
    %c0_417 = arith.constant 0 : index
    %1047 = vector.load %arg13[%c0_416, %c0_417] : memref<32x128xf32, #tpu.memory_space<vmem>>, vector<32x128xf32>
    %cst_418 = arith.constant dense<0.000000e+00> : vector<2x128xf32>
    %1048 = tpu.matmul %1046, %1047, %cst_418 {dimension_numbers = #tpu.dot_dimension_numbers<[1], [0], [0], [1], [0, 0, 1, 1], [], []>} : vector<2x32xf32>, vector<32x128xf32>, vector<2x128xf32> -> vector<2x128xf32>
    %c0_419 = arith.constant 0 : index
    %c0_420 = arith.constant 0 : index
    %1049 = vector.load %arg14[%c0_419, %c0_420] : memref<32x128xf32, #tpu.memory_space<vmem>>, vector<32x128xf32>
    %cst_421 = arith.constant dense<0.000000e+00> : vector<2x128xf32>
    %1050 = tpu.matmul %942, %1049, %cst_421 {dimension_numbers = #tpu.dot_dimension_numbers<[1], [0], [0], [1], [0, 0, 1, 1], [], []>} : vector<2x32xf32>, vector<32x128xf32>, vector<2x128xf32> -> vector<2x128xf32>
    %1051 = arith.addf %1048, %1050 : vector<2x128xf32>
    %c0_422 = arith.constant 0 : index
    %c0_423 = arith.constant 0 : index
    %1052 = vector.load %arg15[%c0_422, %c0_423] : memref<1x128xf32, #tpu.memory_space<vmem>>, vector<1x128xf32>
    %1053 = vector.broadcast %1052 : vector<1x128xf32> to vector<2x128xf32>
    %1054 = arith.addf %1051, %1053 : vector<2x128xf32>
    %1055 = vector.extract_strided_slice %1054 {offsets = [0, 0], sizes = [2, 32], strides = [1, 1]} : vector<2x128xf32> to vector<2x32xf32>
    %1056 = arith.negf %1055 : vector<2x32xf32>
    %1057 = math.exp %1056 : vector<2x32xf32>
    %cst_424 = arith.constant 1.000000e+00 : f32
    %1058 = vector.broadcast %cst_424 : f32 to vector<2x32xf32>
    %1059 = arith.addf %1058, %1057 : vector<2x32xf32>
    %1060 = arith.divf %1058, %1059 : vector<2x32xf32>
    %1061 = vector.extract_strided_slice %1054 {offsets = [0, 32], sizes = [2, 32], strides = [1, 1]} : vector<2x128xf32> to vector<2x32xf32>
    %1062 = arith.negf %1061 : vector<2x32xf32>
    %1063 = math.exp %1062 : vector<2x32xf32>
    %cst_425 = arith.constant 1.000000e+00 : f32
    %1064 = vector.broadcast %cst_425 : f32 to vector<2x32xf32>
    %1065 = arith.addf %1064, %1063 : vector<2x32xf32>
    %1066 = arith.divf %1064, %1065 : vector<2x32xf32>
    %1067 = vector.extract_strided_slice %1054 {offsets = [0, 64], sizes = [2, 32], strides = [1, 1]} : vector<2x128xf32> to vector<2x32xf32>
    %1068 = vector.extract_strided_slice %1054 {offsets = [0, 96], sizes = [2, 32], strides = [1, 1]} : vector<2x128xf32> to vector<2x32xf32>
    %1069 = arith.mulf %1060, %1068 : vector<2x32xf32>
    %1070 = arith.addf %1067, %1069 : vector<2x32xf32>
    %1071 = math.tanh %1070 : vector<2x32xf32>
    %cst_426 = arith.constant 1.000000e+00 : f32
    %1072 = vector.broadcast %cst_426 : f32 to vector<2x32xf32>
    %1073 = arith.subf %1072, %1066 : vector<2x32xf32>
    %1074 = arith.mulf %1073, %1071 : vector<2x32xf32>
    %1075 = arith.mulf %1066, %942 : vector<2x32xf32>
    %1076 = arith.addf %1074, %1075 : vector<2x32xf32>
    %c0_427 = arith.constant 0 : index
    %c8 = arith.constant 8 : index
    %1077 = vector.load %arg2[%c0_427, %c8] : memref<2x12xi32, #tpu.memory_space<vmem>>, vector<2x1xi32>
    %1078 = vector.broadcast %1077 : vector<2x1xi32> to vector<2x50xi32>
    %1079 = arith.cmpi eq, %1078, %0 : vector<2x50xi32>
    %1080 = arith.extui %1079 : vector<2x50xi1> to vector<2x50xi32>
    %1081 = arith.sitofp %1080 : vector<2x50xi32> to vector<2x50xf32>
    %c0_428 = arith.constant 0 : index
    %c0_429 = arith.constant 0 : index
    %1082 = vector.load %arg3[%c0_428, %c0_429] : memref<50x32xf32, #tpu.memory_space<vmem>>, vector<50x32xf32>
    %cst_430 = arith.constant dense<0.000000e+00> : vector<2x32xf32>
    %1083 = tpu.matmul %1081, %1082, %cst_430 {dimension_numbers = #tpu.dot_dimension_numbers<[1], [0], [0], [1], [0, 0, 1, 1], [], []>} : vector<2x50xf32>, vector<50x32xf32>, vector<2x32xf32> -> vector<2x32xf32>
    %c0_431 = arith.constant 0 : index
    %c0_432 = arith.constant 0 : index
    %1084 = vector.load %arg10[%c0_431, %c0_432] : memref<32x128xf32, #tpu.memory_space<vmem>>, vector<32x128xf32>
    %cst_433 = arith.constant dense<0.000000e+00> : vector<2x128xf32>
    %1085 = tpu.matmul %1083, %1084, %cst_433 {dimension_numbers = #tpu.dot_dimension_numbers<[1], [0], [0], [1], [0, 0, 1, 1], [], []>} : vector<2x32xf32>, vector<32x128xf32>, vector<2x128xf32> -> vector<2x128xf32>
    %c0_434 = arith.constant 0 : index
    %c0_435 = arith.constant 0 : index
    %1086 = vector.load %arg11[%c0_434, %c0_435] : memref<32x128xf32, #tpu.memory_space<vmem>>, vector<32x128xf32>
    %cst_436 = arith.constant dense<0.000000e+00> : vector<2x128xf32>
    %1087 = tpu.matmul %1046, %1086, %cst_436 {dimension_numbers = #tpu.dot_dimension_numbers<[1], [0], [0], [1], [0, 0, 1, 1], [], []>} : vector<2x32xf32>, vector<32x128xf32>, vector<2x128xf32> -> vector<2x128xf32>
    %1088 = arith.addf %1085, %1087 : vector<2x128xf32>
    %c0_437 = arith.constant 0 : index
    %c0_438 = arith.constant 0 : index
    %1089 = vector.load %arg12[%c0_437, %c0_438] : memref<1x128xf32, #tpu.memory_space<vmem>>, vector<1x128xf32>
    %1090 = vector.broadcast %1089 : vector<1x128xf32> to vector<2x128xf32>
    %1091 = arith.addf %1088, %1090 : vector<2x128xf32>
    %1092 = vector.extract_strided_slice %1091 {offsets = [0, 0], sizes = [2, 32], strides = [1, 1]} : vector<2x128xf32> to vector<2x32xf32>
    %1093 = arith.negf %1092 : vector<2x32xf32>
    %1094 = math.exp %1093 : vector<2x32xf32>
    %cst_439 = arith.constant 1.000000e+00 : f32
    %1095 = vector.broadcast %cst_439 : f32 to vector<2x32xf32>
    %1096 = arith.addf %1095, %1094 : vector<2x32xf32>
    %1097 = arith.divf %1095, %1096 : vector<2x32xf32>
    %1098 = vector.extract_strided_slice %1091 {offsets = [0, 32], sizes = [2, 32], strides = [1, 1]} : vector<2x128xf32> to vector<2x32xf32>
    %1099 = arith.negf %1098 : vector<2x32xf32>
    %1100 = math.exp %1099 : vector<2x32xf32>
    %cst_440 = arith.constant 1.000000e+00 : f32
    %1101 = vector.broadcast %cst_440 : f32 to vector<2x32xf32>
    %1102 = arith.addf %1101, %1100 : vector<2x32xf32>
    %1103 = arith.divf %1101, %1102 : vector<2x32xf32>
    %1104 = vector.extract_strided_slice %1091 {offsets = [0, 64], sizes = [2, 32], strides = [1, 1]} : vector<2x128xf32> to vector<2x32xf32>
    %1105 = vector.extract_strided_slice %1091 {offsets = [0, 96], sizes = [2, 32], strides = [1, 1]} : vector<2x128xf32> to vector<2x32xf32>
    %1106 = arith.mulf %1097, %1105 : vector<2x32xf32>
    %1107 = arith.addf %1104, %1106 : vector<2x32xf32>
    %1108 = math.tanh %1107 : vector<2x32xf32>
    %cst_441 = arith.constant 1.000000e+00 : f32
    %1109 = vector.broadcast %cst_441 : f32 to vector<2x32xf32>
    %1110 = arith.subf %1109, %1103 : vector<2x32xf32>
    %1111 = arith.mulf %1110, %1108 : vector<2x32xf32>
    %1112 = arith.mulf %1103, %1046 : vector<2x32xf32>
    %1113 = arith.addf %1111, %1112 : vector<2x32xf32>
    %c0_442 = arith.constant 0 : index
    %c0_443 = arith.constant 0 : index
    %1114 = vector.load %arg13[%c0_442, %c0_443] : memref<32x128xf32, #tpu.memory_space<vmem>>, vector<32x128xf32>
    %cst_444 = arith.constant dense<0.000000e+00> : vector<2x128xf32>
    %1115 = tpu.matmul %1113, %1114, %cst_444 {dimension_numbers = #tpu.dot_dimension_numbers<[1], [0], [0], [1], [0, 0, 1, 1], [], []>} : vector<2x32xf32>, vector<32x128xf32>, vector<2x128xf32> -> vector<2x128xf32>
    %c0_445 = arith.constant 0 : index
    %c0_446 = arith.constant 0 : index
    %1116 = vector.load %arg14[%c0_445, %c0_446] : memref<32x128xf32, #tpu.memory_space<vmem>>, vector<32x128xf32>
    %cst_447 = arith.constant dense<0.000000e+00> : vector<2x128xf32>
    %1117 = tpu.matmul %1076, %1116, %cst_447 {dimension_numbers = #tpu.dot_dimension_numbers<[1], [0], [0], [1], [0, 0, 1, 1], [], []>} : vector<2x32xf32>, vector<32x128xf32>, vector<2x128xf32> -> vector<2x128xf32>
    %1118 = arith.addf %1115, %1117 : vector<2x128xf32>
    %c0_448 = arith.constant 0 : index
    %c0_449 = arith.constant 0 : index
    %1119 = vector.load %arg15[%c0_448, %c0_449] : memref<1x128xf32, #tpu.memory_space<vmem>>, vector<1x128xf32>
    %1120 = vector.broadcast %1119 : vector<1x128xf32> to vector<2x128xf32>
    %1121 = arith.addf %1118, %1120 : vector<2x128xf32>
    %1122 = vector.extract_strided_slice %1121 {offsets = [0, 0], sizes = [2, 32], strides = [1, 1]} : vector<2x128xf32> to vector<2x32xf32>
    %1123 = arith.negf %1122 : vector<2x32xf32>
    %1124 = math.exp %1123 : vector<2x32xf32>
    %cst_450 = arith.constant 1.000000e+00 : f32
    %1125 = vector.broadcast %cst_450 : f32 to vector<2x32xf32>
    %1126 = arith.addf %1125, %1124 : vector<2x32xf32>
    %1127 = arith.divf %1125, %1126 : vector<2x32xf32>
    %1128 = vector.extract_strided_slice %1121 {offsets = [0, 32], sizes = [2, 32], strides = [1, 1]} : vector<2x128xf32> to vector<2x32xf32>
    %1129 = arith.negf %1128 : vector<2x32xf32>
    %1130 = math.exp %1129 : vector<2x32xf32>
    %cst_451 = arith.constant 1.000000e+00 : f32
    %1131 = vector.broadcast %cst_451 : f32 to vector<2x32xf32>
    %1132 = arith.addf %1131, %1130 : vector<2x32xf32>
    %1133 = arith.divf %1131, %1132 : vector<2x32xf32>
    %1134 = vector.extract_strided_slice %1121 {offsets = [0, 64], sizes = [2, 32], strides = [1, 1]} : vector<2x128xf32> to vector<2x32xf32>
    %1135 = vector.extract_strided_slice %1121 {offsets = [0, 96], sizes = [2, 32], strides = [1, 1]} : vector<2x128xf32> to vector<2x32xf32>
    %1136 = arith.mulf %1127, %1135 : vector<2x32xf32>
    %1137 = arith.addf %1134, %1136 : vector<2x32xf32>
    %1138 = math.tanh %1137 : vector<2x32xf32>
    %cst_452 = arith.constant 1.000000e+00 : f32
    %1139 = vector.broadcast %cst_452 : f32 to vector<2x32xf32>
    %1140 = arith.subf %1139, %1133 : vector<2x32xf32>
    %1141 = arith.mulf %1140, %1138 : vector<2x32xf32>
    %1142 = arith.mulf %1133, %1076 : vector<2x32xf32>
    %1143 = arith.addf %1141, %1142 : vector<2x32xf32>
    %c0_453 = arith.constant 0 : index
    %c9 = arith.constant 9 : index
    %1144 = vector.load %arg2[%c0_453, %c9] : memref<2x12xi32, #tpu.memory_space<vmem>>, vector<2x1xi32>
    %1145 = vector.broadcast %1144 : vector<2x1xi32> to vector<2x50xi32>
    %1146 = arith.cmpi eq, %1145, %0 : vector<2x50xi32>
    %1147 = arith.extui %1146 : vector<2x50xi1> to vector<2x50xi32>
    %1148 = arith.sitofp %1147 : vector<2x50xi32> to vector<2x50xf32>
    %c0_454 = arith.constant 0 : index
    %c0_455 = arith.constant 0 : index
    %1149 = vector.load %arg3[%c0_454, %c0_455] : memref<50x32xf32, #tpu.memory_space<vmem>>, vector<50x32xf32>
    %cst_456 = arith.constant dense<0.000000e+00> : vector<2x32xf32>
    %1150 = tpu.matmul %1148, %1149, %cst_456 {dimension_numbers = #tpu.dot_dimension_numbers<[1], [0], [0], [1], [0, 0, 1, 1], [], []>} : vector<2x50xf32>, vector<50x32xf32>, vector<2x32xf32> -> vector<2x32xf32>
    %c0_457 = arith.constant 0 : index
    %c0_458 = arith.constant 0 : index
    %1151 = vector.load %arg10[%c0_457, %c0_458] : memref<32x128xf32, #tpu.memory_space<vmem>>, vector<32x128xf32>
    %cst_459 = arith.constant dense<0.000000e+00> : vector<2x128xf32>
    %1152 = tpu.matmul %1150, %1151, %cst_459 {dimension_numbers = #tpu.dot_dimension_numbers<[1], [0], [0], [1], [0, 0, 1, 1], [], []>} : vector<2x32xf32>, vector<32x128xf32>, vector<2x128xf32> -> vector<2x128xf32>
    %c0_460 = arith.constant 0 : index
    %c0_461 = arith.constant 0 : index
    %1153 = vector.load %arg11[%c0_460, %c0_461] : memref<32x128xf32, #tpu.memory_space<vmem>>, vector<32x128xf32>
    %cst_462 = arith.constant dense<0.000000e+00> : vector<2x128xf32>
    %1154 = tpu.matmul %1113, %1153, %cst_462 {dimension_numbers = #tpu.dot_dimension_numbers<[1], [0], [0], [1], [0, 0, 1, 1], [], []>} : vector<2x32xf32>, vector<32x128xf32>, vector<2x128xf32> -> vector<2x128xf32>
    %1155 = arith.addf %1152, %1154 : vector<2x128xf32>
    %c0_463 = arith.constant 0 : index
    %c0_464 = arith.constant 0 : index
    %1156 = vector.load %arg12[%c0_463, %c0_464] : memref<1x128xf32, #tpu.memory_space<vmem>>, vector<1x128xf32>
    %1157 = vector.broadcast %1156 : vector<1x128xf32> to vector<2x128xf32>
    %1158 = arith.addf %1155, %1157 : vector<2x128xf32>
    %1159 = vector.extract_strided_slice %1158 {offsets = [0, 0], sizes = [2, 32], strides = [1, 1]} : vector<2x128xf32> to vector<2x32xf32>
    %1160 = arith.negf %1159 : vector<2x32xf32>
    %1161 = math.exp %1160 : vector<2x32xf32>
    %cst_465 = arith.constant 1.000000e+00 : f32
    %1162 = vector.broadcast %cst_465 : f32 to vector<2x32xf32>
    %1163 = arith.addf %1162, %1161 : vector<2x32xf32>
    %1164 = arith.divf %1162, %1163 : vector<2x32xf32>
    %1165 = vector.extract_strided_slice %1158 {offsets = [0, 32], sizes = [2, 32], strides = [1, 1]} : vector<2x128xf32> to vector<2x32xf32>
    %1166 = arith.negf %1165 : vector<2x32xf32>
    %1167 = math.exp %1166 : vector<2x32xf32>
    %cst_466 = arith.constant 1.000000e+00 : f32
    %1168 = vector.broadcast %cst_466 : f32 to vector<2x32xf32>
    %1169 = arith.addf %1168, %1167 : vector<2x32xf32>
    %1170 = arith.divf %1168, %1169 : vector<2x32xf32>
    %1171 = vector.extract_strided_slice %1158 {offsets = [0, 64], sizes = [2, 32], strides = [1, 1]} : vector<2x128xf32> to vector<2x32xf32>
    %1172 = vector.extract_strided_slice %1158 {offsets = [0, 96], sizes = [2, 32], strides = [1, 1]} : vector<2x128xf32> to vector<2x32xf32>
    %1173 = arith.mulf %1164, %1172 : vector<2x32xf32>
    %1174 = arith.addf %1171, %1173 : vector<2x32xf32>
    %1175 = math.tanh %1174 : vector<2x32xf32>
    %cst_467 = arith.constant 1.000000e+00 : f32
    %1176 = vector.broadcast %cst_467 : f32 to vector<2x32xf32>
    %1177 = arith.subf %1176, %1170 : vector<2x32xf32>
    %1178 = arith.mulf %1177, %1175 : vector<2x32xf32>
    %1179 = arith.mulf %1170, %1113 : vector<2x32xf32>
    %1180 = arith.addf %1178, %1179 : vector<2x32xf32>
    %c0_468 = arith.constant 0 : index
    %c0_469 = arith.constant 0 : index
    %1181 = vector.load %arg13[%c0_468, %c0_469] : memref<32x128xf32, #tpu.memory_space<vmem>>, vector<32x128xf32>
    %cst_470 = arith.constant dense<0.000000e+00> : vector<2x128xf32>
    %1182 = tpu.matmul %1180, %1181, %cst_470 {dimension_numbers = #tpu.dot_dimension_numbers<[1], [0], [0], [1], [0, 0, 1, 1], [], []>} : vector<2x32xf32>, vector<32x128xf32>, vector<2x128xf32> -> vector<2x128xf32>
    %c0_471 = arith.constant 0 : index
    %c0_472 = arith.constant 0 : index
    %1183 = vector.load %arg14[%c0_471, %c0_472] : memref<32x128xf32, #tpu.memory_space<vmem>>, vector<32x128xf32>
    %cst_473 = arith.constant dense<0.000000e+00> : vector<2x128xf32>
    %1184 = tpu.matmul %1143, %1183, %cst_473 {dimension_numbers = #tpu.dot_dimension_numbers<[1], [0], [0], [1], [0, 0, 1, 1], [], []>} : vector<2x32xf32>, vector<32x128xf32>, vector<2x128xf32> -> vector<2x128xf32>
    %1185 = arith.addf %1182, %1184 : vector<2x128xf32>
    %c0_474 = arith.constant 0 : index
    %c0_475 = arith.constant 0 : index
    %1186 = vector.load %arg15[%c0_474, %c0_475] : memref<1x128xf32, #tpu.memory_space<vmem>>, vector<1x128xf32>
    %1187 = vector.broadcast %1186 : vector<1x128xf32> to vector<2x128xf32>
    %1188 = arith.addf %1185, %1187 : vector<2x128xf32>
    %1189 = vector.extract_strided_slice %1188 {offsets = [0, 0], sizes = [2, 32], strides = [1, 1]} : vector<2x128xf32> to vector<2x32xf32>
    %1190 = arith.negf %1189 : vector<2x32xf32>
    %1191 = math.exp %1190 : vector<2x32xf32>
    %cst_476 = arith.constant 1.000000e+00 : f32
    %1192 = vector.broadcast %cst_476 : f32 to vector<2x32xf32>
    %1193 = arith.addf %1192, %1191 : vector<2x32xf32>
    %1194 = arith.divf %1192, %1193 : vector<2x32xf32>
    %1195 = vector.extract_strided_slice %1188 {offsets = [0, 32], sizes = [2, 32], strides = [1, 1]} : vector<2x128xf32> to vector<2x32xf32>
    %1196 = arith.negf %1195 : vector<2x32xf32>
    %1197 = math.exp %1196 : vector<2x32xf32>
    %cst_477 = arith.constant 1.000000e+00 : f32
    %1198 = vector.broadcast %cst_477 : f32 to vector<2x32xf32>
    %1199 = arith.addf %1198, %1197 : vector<2x32xf32>
    %1200 = arith.divf %1198, %1199 : vector<2x32xf32>
    %1201 = vector.extract_strided_slice %1188 {offsets = [0, 64], sizes = [2, 32], strides = [1, 1]} : vector<2x128xf32> to vector<2x32xf32>
    %1202 = vector.extract_strided_slice %1188 {offsets = [0, 96], sizes = [2, 32], strides = [1, 1]} : vector<2x128xf32> to vector<2x32xf32>
    %1203 = arith.mulf %1194, %1202 : vector<2x32xf32>
    %1204 = arith.addf %1201, %1203 : vector<2x32xf32>
    %1205 = math.tanh %1204 : vector<2x32xf32>
    %cst_478 = arith.constant 1.000000e+00 : f32
    %1206 = vector.broadcast %cst_478 : f32 to vector<2x32xf32>
    %1207 = arith.subf %1206, %1200 : vector<2x32xf32>
    %1208 = arith.mulf %1207, %1205 : vector<2x32xf32>
    %1209 = arith.mulf %1200, %1143 : vector<2x32xf32>
    %1210 = arith.addf %1208, %1209 : vector<2x32xf32>
    %c0_479 = arith.constant 0 : index
    %c10 = arith.constant 10 : index
    %1211 = vector.load %arg2[%c0_479, %c10] : memref<2x12xi32, #tpu.memory_space<vmem>>, vector<2x1xi32>
    %1212 = vector.broadcast %1211 : vector<2x1xi32> to vector<2x50xi32>
    %1213 = arith.cmpi eq, %1212, %0 : vector<2x50xi32>
    %1214 = arith.extui %1213 : vector<2x50xi1> to vector<2x50xi32>
    %1215 = arith.sitofp %1214 : vector<2x50xi32> to vector<2x50xf32>
    %c0_480 = arith.constant 0 : index
    %c0_481 = arith.constant 0 : index
    %1216 = vector.load %arg3[%c0_480, %c0_481] : memref<50x32xf32, #tpu.memory_space<vmem>>, vector<50x32xf32>
    %cst_482 = arith.constant dense<0.000000e+00> : vector<2x32xf32>
    %1217 = tpu.matmul %1215, %1216, %cst_482 {dimension_numbers = #tpu.dot_dimension_numbers<[1], [0], [0], [1], [0, 0, 1, 1], [], []>} : vector<2x50xf32>, vector<50x32xf32>, vector<2x32xf32> -> vector<2x32xf32>
    %c0_483 = arith.constant 0 : index
    %c0_484 = arith.constant 0 : index
    %1218 = vector.load %arg10[%c0_483, %c0_484] : memref<32x128xf32, #tpu.memory_space<vmem>>, vector<32x128xf32>
    %cst_485 = arith.constant dense<0.000000e+00> : vector<2x128xf32>
    %1219 = tpu.matmul %1217, %1218, %cst_485 {dimension_numbers = #tpu.dot_dimension_numbers<[1], [0], [0], [1], [0, 0, 1, 1], [], []>} : vector<2x32xf32>, vector<32x128xf32>, vector<2x128xf32> -> vector<2x128xf32>
    %c0_486 = arith.constant 0 : index
    %c0_487 = arith.constant 0 : index
    %1220 = vector.load %arg11[%c0_486, %c0_487] : memref<32x128xf32, #tpu.memory_space<vmem>>, vector<32x128xf32>
    %cst_488 = arith.constant dense<0.000000e+00> : vector<2x128xf32>
    %1221 = tpu.matmul %1180, %1220, %cst_488 {dimension_numbers = #tpu.dot_dimension_numbers<[1], [0], [0], [1], [0, 0, 1, 1], [], []>} : vector<2x32xf32>, vector<32x128xf32>, vector<2x128xf32> -> vector<2x128xf32>
    %1222 = arith.addf %1219, %1221 : vector<2x128xf32>
    %c0_489 = arith.constant 0 : index
    %c0_490 = arith.constant 0 : index
    %1223 = vector.load %arg12[%c0_489, %c0_490] : memref<1x128xf32, #tpu.memory_space<vmem>>, vector<1x128xf32>
    %1224 = vector.broadcast %1223 : vector<1x128xf32> to vector<2x128xf32>
    %1225 = arith.addf %1222, %1224 : vector<2x128xf32>
    %1226 = vector.extract_strided_slice %1225 {offsets = [0, 0], sizes = [2, 32], strides = [1, 1]} : vector<2x128xf32> to vector<2x32xf32>
    %1227 = arith.negf %1226 : vector<2x32xf32>
    %1228 = math.exp %1227 : vector<2x32xf32>
    %cst_491 = arith.constant 1.000000e+00 : f32
    %1229 = vector.broadcast %cst_491 : f32 to vector<2x32xf32>
    %1230 = arith.addf %1229, %1228 : vector<2x32xf32>
    %1231 = arith.divf %1229, %1230 : vector<2x32xf32>
    %1232 = vector.extract_strided_slice %1225 {offsets = [0, 32], sizes = [2, 32], strides = [1, 1]} : vector<2x128xf32> to vector<2x32xf32>
    %1233 = arith.negf %1232 : vector<2x32xf32>
    %1234 = math.exp %1233 : vector<2x32xf32>
    %cst_492 = arith.constant 1.000000e+00 : f32
    %1235 = vector.broadcast %cst_492 : f32 to vector<2x32xf32>
    %1236 = arith.addf %1235, %1234 : vector<2x32xf32>
    %1237 = arith.divf %1235, %1236 : vector<2x32xf32>
    %1238 = vector.extract_strided_slice %1225 {offsets = [0, 64], sizes = [2, 32], strides = [1, 1]} : vector<2x128xf32> to vector<2x32xf32>
    %1239 = vector.extract_strided_slice %1225 {offsets = [0, 96], sizes = [2, 32], strides = [1, 1]} : vector<2x128xf32> to vector<2x32xf32>
    %1240 = arith.mulf %1231, %1239 : vector<2x32xf32>
    %1241 = arith.addf %1238, %1240 : vector<2x32xf32>
    %1242 = math.tanh %1241 : vector<2x32xf32>
    %cst_493 = arith.constant 1.000000e+00 : f32
    %1243 = vector.broadcast %cst_493 : f32 to vector<2x32xf32>
    %1244 = arith.subf %1243, %1237 : vector<2x32xf32>
    %1245 = arith.mulf %1244, %1242 : vector<2x32xf32>
    %1246 = arith.mulf %1237, %1180 : vector<2x32xf32>
    %1247 = arith.addf %1245, %1246 : vector<2x32xf32>
    %c0_494 = arith.constant 0 : index
    %c0_495 = arith.constant 0 : index
    %1248 = vector.load %arg13[%c0_494, %c0_495] : memref<32x128xf32, #tpu.memory_space<vmem>>, vector<32x128xf32>
    %cst_496 = arith.constant dense<0.000000e+00> : vector<2x128xf32>
    %1249 = tpu.matmul %1247, %1248, %cst_496 {dimension_numbers = #tpu.dot_dimension_numbers<[1], [0], [0], [1], [0, 0, 1, 1], [], []>} : vector<2x32xf32>, vector<32x128xf32>, vector<2x128xf32> -> vector<2x128xf32>
    %c0_497 = arith.constant 0 : index
    %c0_498 = arith.constant 0 : index
    %1250 = vector.load %arg14[%c0_497, %c0_498] : memref<32x128xf32, #tpu.memory_space<vmem>>, vector<32x128xf32>
    %cst_499 = arith.constant dense<0.000000e+00> : vector<2x128xf32>
    %1251 = tpu.matmul %1210, %1250, %cst_499 {dimension_numbers = #tpu.dot_dimension_numbers<[1], [0], [0], [1], [0, 0, 1, 1], [], []>} : vector<2x32xf32>, vector<32x128xf32>, vector<2x128xf32> -> vector<2x128xf32>
    %1252 = arith.addf %1249, %1251 : vector<2x128xf32>
    %c0_500 = arith.constant 0 : index
    %c0_501 = arith.constant 0 : index
    %1253 = vector.load %arg15[%c0_500, %c0_501] : memref<1x128xf32, #tpu.memory_space<vmem>>, vector<1x128xf32>
    %1254 = vector.broadcast %1253 : vector<1x128xf32> to vector<2x128xf32>
    %1255 = arith.addf %1252, %1254 : vector<2x128xf32>
    %1256 = vector.extract_strided_slice %1255 {offsets = [0, 0], sizes = [2, 32], strides = [1, 1]} : vector<2x128xf32> to vector<2x32xf32>
    %1257 = arith.negf %1256 : vector<2x32xf32>
    %1258 = math.exp %1257 : vector<2x32xf32>
    %cst_502 = arith.constant 1.000000e+00 : f32
    %1259 = vector.broadcast %cst_502 : f32 to vector<2x32xf32>
    %1260 = arith.addf %1259, %1258 : vector<2x32xf32>
    %1261 = arith.divf %1259, %1260 : vector<2x32xf32>
    %1262 = vector.extract_strided_slice %1255 {offsets = [0, 32], sizes = [2, 32], strides = [1, 1]} : vector<2x128xf32> to vector<2x32xf32>
    %1263 = arith.negf %1262 : vector<2x32xf32>
    %1264 = math.exp %1263 : vector<2x32xf32>
    %cst_503 = arith.constant 1.000000e+00 : f32
    %1265 = vector.broadcast %cst_503 : f32 to vector<2x32xf32>
    %1266 = arith.addf %1265, %1264 : vector<2x32xf32>
    %1267 = arith.divf %1265, %1266 : vector<2x32xf32>
    %1268 = vector.extract_strided_slice %1255 {offsets = [0, 64], sizes = [2, 32], strides = [1, 1]} : vector<2x128xf32> to vector<2x32xf32>
    %1269 = vector.extract_strided_slice %1255 {offsets = [0, 96], sizes = [2, 32], strides = [1, 1]} : vector<2x128xf32> to vector<2x32xf32>
    %1270 = arith.mulf %1261, %1269 : vector<2x32xf32>
    %1271 = arith.addf %1268, %1270 : vector<2x32xf32>
    %1272 = math.tanh %1271 : vector<2x32xf32>
    %cst_504 = arith.constant 1.000000e+00 : f32
    %1273 = vector.broadcast %cst_504 : f32 to vector<2x32xf32>
    %1274 = arith.subf %1273, %1267 : vector<2x32xf32>
    %1275 = arith.mulf %1274, %1272 : vector<2x32xf32>
    %1276 = arith.mulf %1267, %1210 : vector<2x32xf32>
    %1277 = arith.addf %1275, %1276 : vector<2x32xf32>
    %c0_505 = arith.constant 0 : index
    %c11 = arith.constant 11 : index
    %1278 = vector.load %arg2[%c0_505, %c11] : memref<2x12xi32, #tpu.memory_space<vmem>>, vector<2x1xi32>
    %1279 = vector.broadcast %1278 : vector<2x1xi32> to vector<2x50xi32>
    %1280 = arith.cmpi eq, %1279, %0 : vector<2x50xi32>
    %1281 = arith.extui %1280 : vector<2x50xi1> to vector<2x50xi32>
    %1282 = arith.sitofp %1281 : vector<2x50xi32> to vector<2x50xf32>
    %c0_506 = arith.constant 0 : index
    %c0_507 = arith.constant 0 : index
    %1283 = vector.load %arg3[%c0_506, %c0_507] : memref<50x32xf32, #tpu.memory_space<vmem>>, vector<50x32xf32>
    %cst_508 = arith.constant dense<0.000000e+00> : vector<2x32xf32>
    %1284 = tpu.matmul %1282, %1283, %cst_508 {dimension_numbers = #tpu.dot_dimension_numbers<[1], [0], [0], [1], [0, 0, 1, 1], [], []>} : vector<2x50xf32>, vector<50x32xf32>, vector<2x32xf32> -> vector<2x32xf32>
    %c0_509 = arith.constant 0 : index
    %c0_510 = arith.constant 0 : index
    %1285 = vector.load %arg10[%c0_509, %c0_510] : memref<32x128xf32, #tpu.memory_space<vmem>>, vector<32x128xf32>
    %cst_511 = arith.constant dense<0.000000e+00> : vector<2x128xf32>
    %1286 = tpu.matmul %1284, %1285, %cst_511 {dimension_numbers = #tpu.dot_dimension_numbers<[1], [0], [0], [1], [0, 0, 1, 1], [], []>} : vector<2x32xf32>, vector<32x128xf32>, vector<2x128xf32> -> vector<2x128xf32>
    %c0_512 = arith.constant 0 : index
    %c0_513 = arith.constant 0 : index
    %1287 = vector.load %arg11[%c0_512, %c0_513] : memref<32x128xf32, #tpu.memory_space<vmem>>, vector<32x128xf32>
    %cst_514 = arith.constant dense<0.000000e+00> : vector<2x128xf32>
    %1288 = tpu.matmul %1247, %1287, %cst_514 {dimension_numbers = #tpu.dot_dimension_numbers<[1], [0], [0], [1], [0, 0, 1, 1], [], []>} : vector<2x32xf32>, vector<32x128xf32>, vector<2x128xf32> -> vector<2x128xf32>
    %1289 = arith.addf %1286, %1288 : vector<2x128xf32>
    %c0_515 = arith.constant 0 : index
    %c0_516 = arith.constant 0 : index
    %1290 = vector.load %arg12[%c0_515, %c0_516] : memref<1x128xf32, #tpu.memory_space<vmem>>, vector<1x128xf32>
    %1291 = vector.broadcast %1290 : vector<1x128xf32> to vector<2x128xf32>
    %1292 = arith.addf %1289, %1291 : vector<2x128xf32>
    %1293 = vector.extract_strided_slice %1292 {offsets = [0, 0], sizes = [2, 32], strides = [1, 1]} : vector<2x128xf32> to vector<2x32xf32>
    %1294 = arith.negf %1293 : vector<2x32xf32>
    %1295 = math.exp %1294 : vector<2x32xf32>
    %cst_517 = arith.constant 1.000000e+00 : f32
    %1296 = vector.broadcast %cst_517 : f32 to vector<2x32xf32>
    %1297 = arith.addf %1296, %1295 : vector<2x32xf32>
    %1298 = arith.divf %1296, %1297 : vector<2x32xf32>
    %1299 = vector.extract_strided_slice %1292 {offsets = [0, 32], sizes = [2, 32], strides = [1, 1]} : vector<2x128xf32> to vector<2x32xf32>
    %1300 = arith.negf %1299 : vector<2x32xf32>
    %1301 = math.exp %1300 : vector<2x32xf32>
    %cst_518 = arith.constant 1.000000e+00 : f32
    %1302 = vector.broadcast %cst_518 : f32 to vector<2x32xf32>
    %1303 = arith.addf %1302, %1301 : vector<2x32xf32>
    %1304 = arith.divf %1302, %1303 : vector<2x32xf32>
    %1305 = vector.extract_strided_slice %1292 {offsets = [0, 64], sizes = [2, 32], strides = [1, 1]} : vector<2x128xf32> to vector<2x32xf32>
    %1306 = vector.extract_strided_slice %1292 {offsets = [0, 96], sizes = [2, 32], strides = [1, 1]} : vector<2x128xf32> to vector<2x32xf32>
    %1307 = arith.mulf %1298, %1306 : vector<2x32xf32>
    %1308 = arith.addf %1305, %1307 : vector<2x32xf32>
    %1309 = math.tanh %1308 : vector<2x32xf32>
    %cst_519 = arith.constant 1.000000e+00 : f32
    %1310 = vector.broadcast %cst_519 : f32 to vector<2x32xf32>
    %1311 = arith.subf %1310, %1304 : vector<2x32xf32>
    %1312 = arith.mulf %1311, %1309 : vector<2x32xf32>
    %1313 = arith.mulf %1304, %1247 : vector<2x32xf32>
    %1314 = arith.addf %1312, %1313 : vector<2x32xf32>
    %c0_520 = arith.constant 0 : index
    %c0_521 = arith.constant 0 : index
    %1315 = vector.load %arg13[%c0_520, %c0_521] : memref<32x128xf32, #tpu.memory_space<vmem>>, vector<32x128xf32>
    %cst_522 = arith.constant dense<0.000000e+00> : vector<2x128xf32>
    %1316 = tpu.matmul %1314, %1315, %cst_522 {dimension_numbers = #tpu.dot_dimension_numbers<[1], [0], [0], [1], [0, 0, 1, 1], [], []>} : vector<2x32xf32>, vector<32x128xf32>, vector<2x128xf32> -> vector<2x128xf32>
    %c0_523 = arith.constant 0 : index
    %c0_524 = arith.constant 0 : index
    %1317 = vector.load %arg14[%c0_523, %c0_524] : memref<32x128xf32, #tpu.memory_space<vmem>>, vector<32x128xf32>
    %cst_525 = arith.constant dense<0.000000e+00> : vector<2x128xf32>
    %1318 = tpu.matmul %1277, %1317, %cst_525 {dimension_numbers = #tpu.dot_dimension_numbers<[1], [0], [0], [1], [0, 0, 1, 1], [], []>} : vector<2x32xf32>, vector<32x128xf32>, vector<2x128xf32> -> vector<2x128xf32>
    %1319 = arith.addf %1316, %1318 : vector<2x128xf32>
    %c0_526 = arith.constant 0 : index
    %c0_527 = arith.constant 0 : index
    %1320 = vector.load %arg15[%c0_526, %c0_527] : memref<1x128xf32, #tpu.memory_space<vmem>>, vector<1x128xf32>
    %1321 = vector.broadcast %1320 : vector<1x128xf32> to vector<2x128xf32>
    %1322 = arith.addf %1319, %1321 : vector<2x128xf32>
    %1323 = vector.extract_strided_slice %1322 {offsets = [0, 0], sizes = [2, 32], strides = [1, 1]} : vector<2x128xf32> to vector<2x32xf32>
    %1324 = arith.negf %1323 : vector<2x32xf32>
    %1325 = math.exp %1324 : vector<2x32xf32>
    %cst_528 = arith.constant 1.000000e+00 : f32
    %1326 = vector.broadcast %cst_528 : f32 to vector<2x32xf32>
    %1327 = arith.addf %1326, %1325 : vector<2x32xf32>
    %1328 = arith.divf %1326, %1327 : vector<2x32xf32>
    %1329 = vector.extract_strided_slice %1322 {offsets = [0, 32], sizes = [2, 32], strides = [1, 1]} : vector<2x128xf32> to vector<2x32xf32>
    %1330 = arith.negf %1329 : vector<2x32xf32>
    %1331 = math.exp %1330 : vector<2x32xf32>
    %cst_529 = arith.constant 1.000000e+00 : f32
    %1332 = vector.broadcast %cst_529 : f32 to vector<2x32xf32>
    %1333 = arith.addf %1332, %1331 : vector<2x32xf32>
    %1334 = arith.divf %1332, %1333 : vector<2x32xf32>
    %1335 = vector.extract_strided_slice %1322 {offsets = [0, 64], sizes = [2, 32], strides = [1, 1]} : vector<2x128xf32> to vector<2x32xf32>
    %1336 = vector.extract_strided_slice %1322 {offsets = [0, 96], sizes = [2, 32], strides = [1, 1]} : vector<2x128xf32> to vector<2x32xf32>
    %1337 = arith.mulf %1328, %1336 : vector<2x32xf32>
    %1338 = arith.addf %1335, %1337 : vector<2x32xf32>
    %1339 = math.tanh %1338 : vector<2x32xf32>
    %cst_530 = arith.constant 1.000000e+00 : f32
    %1340 = vector.broadcast %cst_530 : f32 to vector<2x32xf32>
    %1341 = arith.subf %1340, %1334 : vector<2x32xf32>
    %1342 = arith.mulf %1341, %1339 : vector<2x32xf32>
    %1343 = arith.mulf %1334, %1277 : vector<2x32xf32>
    %1344 = arith.addf %1342, %1343 : vector<2x32xf32>
    %c0_531 = arith.constant 0 : index
    %c0_532 = arith.constant 0 : index
    %1345 = vector.load %arg16[%c0_531, %c0_532] : memref<32x1xf32, #tpu.memory_space<vmem>>, vector<32x1xf32>
    %cst_533 = arith.constant dense<0.000000e+00> : vector<2x1xf32>
    %1346 = tpu.matmul %1009, %1345, %cst_533 {dimension_numbers = #tpu.dot_dimension_numbers<[1], [0], [0], [1], [0, 0, 1, 1], [], []>} : vector<2x32xf32>, vector<32x1xf32>, vector<2x1xf32> -> vector<2x1xf32>
    %c0_534 = arith.constant 0 : index
    %c0_535 = arith.constant 0 : index
    %1347 = vector.load %arg17[%c0_534, %c0_535] : memref<32x1xf32, #tpu.memory_space<vmem>>, vector<32x1xf32>
    %cst_536 = arith.constant dense<0.000000e+00> : vector<2x1xf32>
    %1348 = tpu.matmul %1344, %1347, %cst_536 {dimension_numbers = #tpu.dot_dimension_numbers<[1], [0], [0], [1], [0, 0, 1, 1], [], []>} : vector<2x32xf32>, vector<32x1xf32>, vector<2x1xf32> -> vector<2x1xf32>
    %1349 = arith.addf %1346, %1348 : vector<2x1xf32>
    %c0_537 = arith.constant 0 : index
    %c0_538 = arith.constant 0 : index
    %1350 = vector.load %arg18[%c0_537, %c0_538] : memref<1x1xf32, #tpu.memory_space<vmem>>, vector<1x1xf32>
    %1351 = vector.broadcast %1350 : vector<1x1xf32> to vector<2x1xf32>
    %1352 = arith.addf %1349, %1351 : vector<2x1xf32>
    %1353 = arith.negf %1352 : vector<2x1xf32>
    %1354 = math.exp %1353 : vector<2x1xf32>
    %cst_539 = arith.constant 1.000000e+00 : f32
    %1355 = vector.broadcast %cst_539 : f32 to vector<2x1xf32>
    %1356 = arith.addf %1355, %1354 : vector<2x1xf32>
    %1357 = arith.divf %1355, %1356 : vector<2x1xf32>
    %c0_540 = arith.constant 0 : index
    %c0_541 = arith.constant 0 : index
    %1358 = vector.load %arg19[%c0_540, %c0_541] : memref<2x1xf32, #tpu.memory_space<vmem>>, vector<2x1xf32>
    tpu.vector_store %arg19[%c0_540, %c0_541], %1357 {strides = array<i32>} : memref<2x1xf32, #tpu.memory_space<vmem>>, vector<2x1xf32>,
    return
  }
  func.func @transform_0(%arg0: i32) -> (i32, i32) {
    %c0_i32 = arith.constant 0 : i32
    %c0_i32_0 = arith.constant 0 : i32
    %c0_i32_1 = arith.constant 0 : i32
    return %c0_i32, %c0_i32_0 : i32, i32
  }
  func.func @transform_1(%arg0: i32) -> (i32, i32) {
    %c0_i32 = arith.constant 0 : i32
    %c0_i32_0 = arith.constant 0 : i32
    %c0_i32_1 = arith.constant 0 : i32
    return %c0_i32, %c0_i32_0 : i32, i32
  }
  func.func @transform_2(%arg0: i32) -> (i32, i32) {
    %c0_i32 = arith.constant 0 : i32
    %c0_i32_0 = arith.constant 0 : i32
    %c0_i32_1 = arith.constant 0 : i32
    return %c0_i32, %c0_i32_0 : i32, i32
  }
  func.func @transform_3(%arg0: i32) -> (i32, i32) {
    %c0_i32 = arith.constant 0 : i32
    %c0_i32_0 = arith.constant 0 : i32
    %c0_i32_1 = arith.constant 0 : i32
    return %c0_i32, %c0_i32_0 : i32, i32
  }
  func.func @transform_4(%arg0: i32) -> (i32, i32) {
    %c0_i32 = arith.constant 0 : i32
    %c0_i32_0 = arith.constant 0 : i32
    %c0_i32_1 = arith.constant 0 : i32
    return %c0_i32, %c0_i32_0 : i32, i32
  }
  func.func @transform_5(%arg0: i32) -> (i32, i32) {
    %c0_i32 = arith.constant 0 : i32
    %c0_i32_0 = arith.constant 0 : i32
    %c0_i32_1 = arith.constant 0 : i32
    return %c0_i32, %c0_i32_0 : i32, i32
  }
  func.func @transform_6(%arg0: i32) -> (i32, i32) {
    %c0_i32 = arith.constant 0 : i32
    %c0_i32_0 = arith.constant 0 : i32
    %c0_i32_1 = arith.constant 0 : i32
    return %c0_i32, %c0_i32_0 : i32, i32
  }
  func.func @transform_7(%arg0: i32) -> (i32, i32) {
    %c0_i32 = arith.constant 0 : i32
    %c0_i32_0 = arith.constant 0 : i32
    %c0_i32_1 = arith.constant 0 : i32
    return %c0_i32, %c0_i32_0 : i32, i32
  }
  func.func @transform_8(%arg0: i32) -> (i32, i32) {
    %c0_i32 = arith.constant 0 : i32
    %c0_i32_0 = arith.constant 0 : i32
    %c0_i32_1 = arith.constant 0 : i32
    return %c0_i32, %c0_i32_0 : i32, i32
  }
  func.func @transform_9(%arg0: i32) -> (i32, i32) {
    %c0_i32 = arith.constant 0 : i32
    %c0_i32_0 = arith.constant 0 : i32
    %c0_i32_1 = arith.constant 0 : i32
    return %c0_i32, %c0_i32_0 : i32, i32
  }
  func.func @transform_10(%arg0: i32) -> (i32, i32) {
    %c0_i32 = arith.constant 0 : i32
    %c0_i32_0 = arith.constant 0 : i32
    %c0_i32_1 = arith.constant 0 : i32
    return %c0_i32, %c0_i32_0 : i32, i32
  }
  func.func @transform_11(%arg0: i32) -> (i32, i32) {
    %c0_i32 = arith.constant 0 : i32
    %c0_i32_0 = arith.constant 0 : i32
    %c0_i32_1 = arith.constant 0 : i32
    return %c0_i32, %c0_i32_0 : i32, i32
  }
  func.func @transform_12(%arg0: i32) -> (i32, i32) {
    %c0_i32 = arith.constant 0 : i32
    %c0_i32_0 = arith.constant 0 : i32
    %c0_i32_1 = arith.constant 0 : i32
    return %c0_i32, %c0_i32_0 : i32, i32
  }
  func.func @transform_13(%arg0: i32) -> (i32, i32) {
    %c0_i32 = arith.constant 0 : i32
    %c0_i32_0 = arith.constant 0 : i32
    %c0_i32_1 = arith.constant 0 : i32
    return %c0_i32, %c0_i32_0 : i32, i32
  }
  func.func @transform_14(%arg0: i32) -> (i32, i32) {
    %c0_i32 = arith.constant 0 : i32
    %c0_i32_0 = arith.constant 0 : i32
    %c0_i32_1 = arith.constant 0 : i32
    return %c0_i32, %c0_i32_0 : i32, i32
  }
  func.func @transform_15(%arg0: i32) -> (i32, i32) {
    %c0_i32 = arith.constant 0 : i32
    %c0_i32_0 = arith.constant 0 : i32
    %c0_i32_1 = arith.constant 0 : i32
    return %c0_i32, %c0_i32_0 : i32, i32
  }
  func.func @transform_16(%arg0: i32) -> (i32, i32) {
    %c0_i32 = arith.constant 0 : i32
    %c0_i32_0 = arith.constant 0 : i32
    %c0_i32_1 = arith.constant 0 : i32
    return %c0_i32, %c0_i32_0 : i32, i32
  }
  func.func @transform_17(%arg0: i32) -> (i32, i32) {
    %c0_i32 = arith.constant 0 : i32
    %c0_i32_0 = arith.constant 0 : i32
    %c0_i32_1 = arith.constant 0 : i32
    return %c0_i32, %c0_i32_0 : i32, i32
  }
  func.func @transform_18(%arg0: i32) -> (i32, i32) {
    %c0_i32 = arith.constant 0 : i32
    %c0_i32_0 = arith.constant 0 : i32
    %c0_i32_1 = arith.constant 0 : i32
    return %c0_i32, %c0_i32_0 : i32, i32
  }
}

</mosaic_0001>

<llo_original>
// kernel: fused_forward.1
$region0: #{fused_forward.1}
  #allocation0 [shape = 'u32[]', space=smem, size = 0x4, offset = 0x4, fixed_abs, tag = 'smem constant byte address 0x4 - core index']
  #allocation1 [shape = 'u32[144,128]{1,0:T(1,128)}', space=vmem, size = 0x12000, scoped, tag = 'internal scratch']
  #allocation2 [shape = 'f32[1,1]{1,0:T(1,128)S(1)}', space=vmem, size = 0x200, scoped, tag = 'scoped memory for fused_forward.1']
  %s0 = inlined_call_operand.vmem [shape: s32[2,8], index: 0, kind: input, shape index: {}]
  %s1 = inlined_call_operand.hbm [shape: s32[2,12], index: 1, kind: input, shape index: {}]
  %s2 = inlined_call_operand.vmem [shape: f32[50,32], index: 2, kind: input, shape index: {}]
  %s3 = inlined_call_operand.vmem [shape: f32[32,128], index: 3, kind: input, shape index: {}]
  %s4 = inlined_call_operand.vmem [shape: f32[32,128], index: 4, kind: input, shape index: {}]
  %s5 = inlined_call_operand.vmem [shape: f32[1,128], index: 5, kind: input, shape index: {}]
  %s6 = inlined_call_operand.vmem [shape: f32[32,128], index: 6, kind: input, shape index: {}]
  %s7 = inlined_call_operand.vmem [shape: f32[32,128], index: 7, kind: input, shape index: {}]
  %s8 = inlined_call_operand.vmem [shape: f32[1,128], index: 8, kind: input, shape index: {}]
  %s9 = inlined_call_operand.hbm [shape: f32[32,128], index: 9, kind: input, shape index: {}]
  %s10 = inlined_call_operand.hbm [shape: f32[32,128], index: 10, kind: input, shape index: {}]
  %s11 = inlined_call_operand.hbm [shape: f32[1,128], index: 11, kind: input, shape index: {}]
  %s12 = inlined_call_operand.hbm [shape: f32[32,128], index: 12, kind: input, shape index: {}]
  %s13 = inlined_call_operand.hbm [shape: f32[32,128], index: 13, kind: input, shape index: {}]
  %s14 = inlined_call_operand.vmem [shape: f32[1,128], index: 14, kind: input, shape index: {}]
  %s15 = inlined_call_operand.vmem [shape: f32[32,1], index: 15, kind: input, shape index: {}]
  %s16 = inlined_call_operand.vmem [shape: f32[32,1], index: 16, kind: input, shape index: {}]
  %s17 = inlined_call_operand.<no memory space> [shape: f32[1,1], index: 17, kind: input, shape index: {}]
  %s18 = inlined_call_operand.vmem [shape: f32[2,1], index: 18, kind: output, shape index: {}]
  %s19 = sld [smem:[#allocation0]]
  $region106: #{fused_forward.1} parent=0
    _
  %s21 = ssub.s32 1, %s19
  %s22 = scalar_select 0, %s21, %s19
  %v23 = vstv %s17
  %24 = vst [vmem:[#allocation2] sm:$0x1] %v23
  $region1: #{fused_forward.1} parent=0
    #allocation3 [shape = 'u8[1024]{0}', space=vmem, size = 0x400, scoped, tag = 'input window, operand 1, single buffered']
    #allocation4 [shape = 's32[1]{0}', space=sflag, size = 0x4, scoped, tag = 'scoped memory for fused_forward.1']
    #allocation5 [shape = 'u8[16384]{0}', space=vmem, size = 0x4000, scoped, tag = 'input window, operand 9, single buffered']
    #allocation6 [shape = 's32[1]{0}', space=sflag, size = 0x4, scoped, tag = 'scoped memory for fused_forward.1']
    #allocation7 [shape = 'u8[16384]{0}', space=vmem, size = 0x4000, scoped, tag = 'input window, operand 10, single buffered']
    #allocation8 [shape = 'u8[512]{0}', space=vmem, size = 0x400, scoped, tag = 'input window, operand 11, single buffered']
    #allocation9 [shape = 's32[1]{0}', space=sflag, size = 0x4, scoped, tag = 'scoped memory for fused_forward.1']
    #allocation10 [shape = 'u8[16384]{0}', space=vmem, size = 0x4000, scoped, tag = 'input window, operand 12, single buffered']
    #allocation11 [shape = 'u8[16384]{0}', space=vmem, size = 0x4000, scoped, tag = 'input window, operand 13, single buffered']
    #allocation12 [shape = 's32[1]{0}', space=sflag, size = 0x4, scoped, tag = 'scoped memory for fused_forward.1']
    %25 = vsyncpa [#allocation4], 0
    %26 = vsyncpa [#allocation6], 0
    %27 = vsyncpa [#allocation9], 0
    %28 = vsyncpa [#allocation12], 0
    // Predicated region
    $region2: #{fused_forward.1} parent=1 // pred_check
      _
    $region3: #{fused_forward.1} parent=1 // pred_check_branch
      %30 = sbr.rel (0) target = $region5
    $region4: #{fused_forward.1} parent=1 // pred_region
      _
    $region5: #{fused_forward.1} parent=1 // pred_fallthru
      _
    // Predicated region
    $region6: #{fused_forward.1} parent=1 // pred_check
      _
    $region7: #{fused_forward.1} parent=1 // pred_check_branch
      %32 = sbr.rel (0) target = $region9
    $region8: #{fused_forward.1} parent=1 // pred_region
      %s34 = ssub.s32 32, 32
      %35 = vsyncadd [#allocation4], %s34
      %s37 = sshll.u32 [#allocation3], 4
      %s38 = int_to_ptr.vmem [resolvable:$true] %s37
      %40 = dma.hbm_to_vmem [thread:$0]  %s1, 32, %s38, [#allocation4]
    $region9: #{fused_forward.1} parent=1 // pred_fallthru
      _
    // Predicated region
    $region10: #{fused_forward.1} parent=1 // pred_check
      _
    $region11: #{fused_forward.1} parent=1 // pred_check_branch
      %42 = sbr.rel (0) target = $region13
    $region12: #{fused_forward.1} parent=1 // pred_region
      _
    $region13: #{fused_forward.1} parent=1 // pred_fallthru
      _
    // Predicated region
    $region14: #{fused_forward.1} parent=1 // pred_check
      _
    $region15: #{fused_forward.1} parent=1 // pred_check_branch
      %44 = sbr.rel (0) target = $region17
    $region16: #{fused_forward.1} parent=1 // pred_region
      _
    $region17: #{fused_forward.1} parent=1 // pred_fallthru
      _
    // Predicated region
    $region18: #{fused_forward.1} parent=1 // pred_check
      _
    $region19: #{fused_forward.1} parent=1 // pred_check_branch
      %46 = sbr.rel (0) target = $region21
    $region20: #{fused_forward.1} parent=1 // pred_region
      _
    $region21: #{fused_forward.1} parent=1 // pred_fallthru
      _
    // Predicated region
    $region22: #{fused_forward.1} parent=1 // pred_check
      _
    $region23: #{fused_forward.1} parent=1 // pred_check_branch
      %48 = sbr.rel (0) target = $region25
    $region24: #{fused_forward.1} parent=1 // pred_region
      _
    $region25: #{fused_forward.1} parent=1 // pred_fallthru
      _
    // Predicated region
    $region26: #{fused_forward.1} parent=1 // pred_check
      _
    $region27: #{fused_forward.1} parent=1 // pred_check_branch
      %50 = sbr.rel (0) target = $region29
    $region28: #{fused_forward.1} parent=1 // pred_region
      _
    $region29: #{fused_forward.1} parent=1 // pred_fallthru
      _
    // Predicated region
    $region30: #{fused_forward.1} parent=1 // pred_check
      _
    $region31: #{fused_forward.1} parent=1 // pred_check_branch
      %52 = sbr.rel (0) target = $region33
    $region32: #{fused_forward.1} parent=1 // pred_region
      _
    $region33: #{fused_forward.1} parent=1 // pred_fallthru
      _
    // Predicated region
    $region34: #{fused_forward.1} parent=1 // pred_check
      _
    $region35: #{fused_forward.1} parent=1 // pred_check_branch
      %54 = sbr.rel (0) target = $region37
    $region36: #{fused_forward.1} parent=1 // pred_region
      _
    $region37: #{fused_forward.1} parent=1 // pred_fallthru
      _
    // Predicated region
    $region38: #{fused_forward.1} parent=1 // pred_check
      _
    $region39: #{fused_forward.1} parent=1 // pred_check_branch
      %56 = sbr.rel (0) target = $region41
    $region40: #{fused_forward.1} parent=1 // pred_region
      %s58 = ssub.s32 512, 512
      %59 = vsyncadd [#allocation6], %s58
      %s60 = sshll.u32 [#allocation5], 4
      %s61 = int_to_ptr.vmem [resolvable:$true] %s60
      %66 = dma.hbm_to_vmem [thread:$0]  %s9, 512, %s61, [#allocation6], 128, 128, 8
    $region41: #{fused_forward.1} parent=1 // pred_fallthru
      _
    // Predicated region
    $region42: #{fused_forward.1} parent=1 // pred_check
      _
    $region43: #{fused_forward.1} parent=1 // pred_check_branch
      %68 = sbr.rel (0) target = $region45
    $region44: #{fused_forward.1} parent=1 // pred_region
      %s70 = ssub.s32 512, 512
      %71 = vsyncadd [#allocation6], %s70
      %s72 = sshll.u32 [#allocation7], 4
      %s73 = int_to_ptr.vmem [resolvable:$true] %s72
      %78 = dma.hbm_to_vmem [thread:$0]  %s10, 512, %s73, [#allocation6], 128, 128, 8
    $region45: #{fused_forward.1} parent=1 // pred_fallthru
      _
    // Predicated region
    $region46: #{fused_forward.1} parent=1 // pred_check
      _
    $region47: #{fused_forward.1} parent=1 // pred_check_branch
      %80 = sbr.rel (0) target = $region49
    $region48: #{fused_forward.1} parent=1 // pred_region
      %s82 = ssub.s32 16, 16
      %83 = vsyncadd [#allocation9], %s82
      %s85 = sshll.u32 [#allocation8], 4
      %s86 = int_to_ptr.vmem [resolvable:$true] %s85
      %88 = dma.hbm_to_vmem [thread:$0]  %s11, 16, %s86, [#allocation9]
    $region49: #{fused_forward.1} parent=1 // pred_fallthru
      _
    // Predicated region
    $region50: #{fused_forward.1} parent=1 // pred_check
      _
    $region51: #{fused_forward.1} parent=1 // pred_check_branch
      %90 = sbr.rel (0) target = $region53
    $region52: #{fused_forward.1} parent=1 // pred_region
      %s92 = ssub.s32 512, 512
      %93 = vsyncadd [#allocation9], %s92
      %s94 = sshll.u32 [#allocation10], 4
      %s95 = int_to_ptr.vmem [resolvable:$true] %s94
      %100 = dma.hbm_to_vmem [thread:$0]  %s12, 512, %s95, [#allocation9], 128, 128, 8
    $region53: #{fused_forward.1} parent=1 // pred_fallthru
      _
    // Predicated region
    $region54: #{fused_forward.1} parent=1 // pred_check
      _
    $region55: #{fused_forward.1} parent=1 // pred_check_branch
      %102 = sbr.rel (0) target = $region57
    $region56: #{fused_forward.1} parent=1 // pred_region
      %s104 = ssub.s32 512, 512
      %105 = vsyncadd [#allocation12], %s104
      %s106 = sshll.u32 [#allocation11], 4
      %s107 = int_to_ptr.vmem [resolvable:$true] %s106
      %112 = dma.hbm_to_vmem [thread:$0]  %s13, 512, %s107, [#allocation12], 128, 128, 8
    $region57: #{fused_forward.1} parent=1 // pred_fallthru
      _
    // Predicated region
    $region58: #{fused_forward.1} parent=1 // pred_check
      _
    $region59: #{fused_forward.1} parent=1 // pred_check_branch
      %114 = sbr.rel (0) target = $region61
    $region60: #{fused_forward.1} parent=1 // pred_region
      _
    $region61: #{fused_forward.1} parent=1 // pred_fallthru
      _
    // Predicated region
    $region62: #{fused_forward.1} parent=1 // pred_check
      _
    $region63: #{fused_forward.1} parent=1 // pred_check_branch
      %116 = sbr.rel (0) target = $region65
    $region64: #{fused_forward.1} parent=1 // pred_region
      _
    $region65: #{fused_forward.1} parent=1 // pred_fallthru
      _
    // Predicated region
    $region66: #{fused_forward.1} parent=1 // pred_check
      _
    $region67: #{fused_forward.1} parent=1 // pred_check_branch
      %118 = sbr.rel (0) target = $region69
    $region68: #{fused_forward.1} parent=1 // pred_region
      _
    $region69: #{fused_forward.1} parent=1 // pred_fallthru
      _
    // Predicated region
    $region70: #{fused_forward.1} parent=1 // pred_check
      _
    $region71: #{fused_forward.1} parent=1 // pred_check_branch
      %120 = sbr.rel (0) target = $region73
    $region72: #{fused_forward.1} parent=1 // pred_region
      _
    $region73: #{fused_forward.1} parent=1 // pred_fallthru
      _
    // Predicated region
    $region74: #{fused_forward.1} parent=1 // pred_check
      _
    $region75: #{fused_forward.1} parent=1 // pred_check_branch
      %122 = sbr.rel (0) target = $region77
    $region76: #{fused_forward.1} parent=1 // pred_region
      %123 = dma.done [#allocation4], 32
    $region77: #{fused_forward.1} parent=1 // pred_fallthru
      _
    // Predicated region
    $region78: #{fused_forward.1} parent=1 // pred_check
      _
    $region79: #{fused_forward.1} parent=1 // pred_check_branch
      %125 = sbr.rel (0) target = $region81
    $region80: #{fused_forward.1} parent=1 // pred_region
      %126 = dma.done [#allocation6], 512
    $region81: #{fused_forward.1} parent=1 // pred_fallthru
      _
    // Predicated region
    $region82: #{fused_forward.1} parent=1 // pred_check
      _
    $region83: #{fused_forward.1} parent=1 // pred_check_branch
      %128 = sbr.rel (0) target = $region85
    $region84: #{fused_forward.1} parent=1 // pred_region
      %129 = dma.done [#allocation6], 512
    $region85: #{fused_forward.1} parent=1 // pred_fallthru
      _
    // Predicated region
    $region86: #{fused_forward.1} parent=1 // pred_check
      _
    $region87: #{fused_forward.1} parent=1 // pred_check_branch
      %131 = sbr.rel (0) target = $region89
    $region88: #{fused_forward.1} parent=1 // pred_region
      %132 = dma.done [#allocation9], 16
    $region89: #{fused_forward.1} parent=1 // pred_fallthru
      _
    // Predicated region
    $region90: #{fused_forward.1} parent=1 // pred_check
      _
    $region91: #{fused_forward.1} parent=1 // pred_check_branch
      %134 = sbr.rel (0) target = $region93
    $region92: #{fused_forward.1} parent=1 // pred_region
      %135 = dma.done [#allocation9], 512
    $region93: #{fused_forward.1} parent=1 // pred_fallthru
      _
    // Predicated region
    $region94: #{fused_forward.1} parent=1 // pred_check
      _
    $region95: #{fused_forward.1} parent=1 // pred_check_branch
      %137 = sbr.rel (0) target = $region97
    $region96: #{fused_forward.1} parent=1 // pred_region
      %138 = dma.done [#allocation12], 512
    $region97: #{fused_forward.1} parent=1 // pred_fallthru
      _
    %v139 = vlaneseq
    %v140 = vand.u32 %v139, 127
    %v141 = vld [vmem:[%s0] sm:$0x3]
    %142 = vset.pattern.permute.xlu0 0
    %143 = vperm.xlu0 %142, %v141
    %v144 = vpop.permute.xlu0 %143
    %vm145 = vcmp.eq.s32.totalorder %v144, %v140
    %v146 = vsel %vm145, 1, 0
    %v147 = vcvt.s32.f32 %v146
    %v148 = vld [vmem:[%s2] sm:$0xff]
    %v149 = vld [vmem:[%s2 + $0x8] sm:$0xff]
    %v150 = vld [vmem:[%s2 + $0x10] sm:$0xff]
    %v151 = vld [vmem:[%s2 + $0x18] sm:$0xff]
    %v152 = vld [vmem:[%s2 + $0x20] sm:$0xff]
    %v153 = vld [vmem:[%s2 + $0x28] sm:$0xff]
    %v154 = vld [vmem:[%s2 + $0x30] sm:$0x3]
    %vm155 = vcmask 408576
    %v157 = vsel %vm155, %v147, 0
    %vm159 = vcmask 1041408
    %v161 = vsel %vm159, %v154, 0
    %163 = vmatprep.subr.mxu0 0.0
    %164 = vmatpush1.msra.mxu0 0.0
    %165 = vmatprep.subr.mxu0 0.0
    %166 = vmatpush1.msra.mxu0 0.0
    %167 = vmatprep.subr.mxu0 0.0
    %168 = vmatpush1.msra.mxu0 0.0
    %169 = vmatprep.subr.mxu0 0.0
    %170 = vmatpush1.msra.mxu0 0.0
    %171 = vmatprep.subr.mxu0 0.0
    %172 = vmatpush1.msra.mxu0 0.0
    %173 = vmatprep.subr.mxu0 0.0
    %174 = vmatpush1.msra.mxu0 0.0
    %175 = vmatprep.subr.mxu0 0.0
    %176 = vmatpush1.msra.mxu0 0.0
    %177 = vmatprep.subr.mxu0 0.0
    %178 = vmatpush1.msra.mxu0 0.0
    %179 = vmatprep.subr.mxu0 0.0
    %180 = vmatpush1.msra.mxu0 0.0
    %181 = vmatprep.subr.mxu0 0.0
    %182 = vmatpush1.msra.mxu0 %v161
    %183 = vmatprep.subr.mxu0 0.0
    %184 = vmatpush1.msra.mxu0 %v153
    %185 = vmatprep.subr.mxu0 0.0
    %186 = vmatpush1.msra.mxu0 %v152
    %187 = vmatprep.subr.mxu0 0.0
    %188 = vmatpush1.msra.mxu0 %v151
    %189 = vmatprep.subr.mxu0 0.0
    %190 = vmatpush1.msra.mxu0 %v150
    %191 = vmatprep.subr.mxu0 0.0
    %192 = vmatpush1.msra.mxu0 %v149
    %193 = vmatprep.subr.mxu0 0.0
    %194 = vmatpush1.msra.mxu0 %v148
    %195 = vmatprep.subr.mxu0 0.0
    %196 = vmatpush2.msra.mxu0 0.0
    %197 = vmatprep.subr.mxu0 0.0
    %198 = vmatpush2.msra.mxu0 0.0
    %199 = vmatprep.subr.mxu0 0.0
    %200 = vmatpush2.msra.mxu0 0.0
    %201 = vmatprep.subr.mxu0 0.0
    %202 = vmatpush2.msra.mxu0 0.0
    %203 = vmatprep.subr.mxu0 0.0
    %204 = vmatpush2.msra.mxu0 0.0
    %205 = vmatprep.subr.mxu0 0.0
    %206 = vmatpush2.msra.mxu0 0.0
    %207 = vmatprep.subr.mxu0 0.0
    %208 = vmatpush2.msra.mxu0 0.0
    %209 = vmatprep.subr.mxu0 0.0
    %210 = vmatpush2.msra.mxu0 0.0
    %211 = vmatprep.subr.mxu0 0.0
    %212 = vmatpush2.msra.mxu0 0.0
    %213 = vmatprep.subr.mxu0 0.0
    %214 = vmatpush2.msra.mxu0 0.0
    %215 = vmatprep.subr.mxu0 0.0
    %216 = vmatpush2.msra.mxu0 0.0
    %217 = vmatprep.subr.mxu0 0.0
    %218 = vmatpush2.msra.mxu0 0.0
    %219 = vmatprep.subr.mxu0 0.0
    %220 = vmatpush2.msra.mxu0 0.0
    %221 = vmatprep.subr.mxu0 0.0
    %222 = vmatpush2.msra.mxu0 0.0
    %223 = vmatprep.subr.mxu0 0.0
    %224 = vmatpush2.msra.mxu0 0.0
    %225 = vmatprep.subr.mxu0 0.0
    %226 = vmatpush2.msra.mxu0 0.0
    %227 = vmatprep.mubr.f32.mxu0 0.0
    %228 = vmatmul.mubr.f32.gmra.mxu0 %v157
    %v229 = vpop.f32.mrf.mxu0
    %v230 = vadd.f32 0.0, %v229
    %v231 = vpop.f32.mrf.mxu0
    %232 = vdwg.mxu0
    %v233 = vld [vmem:[%s3] sm:$0xff]
    %v234 = vld [vmem:[%s3 + $0x8] sm:$0xff]
    %v235 = vld [vmem:[%s3 + $0x10] sm:$0xff]
    %v236 = vld [vmem:[%s3 + $0x18] sm:$0xff]
    %v237 = vld [vmem:[%s4] sm:$0xff]
    %v238 = vld [vmem:[%s4 + $0x8] sm:$0xff]
    %v239 = vld [vmem:[%s4 + $0x10] sm:$0xff]
    %v240 = vld [vmem:[%s4 + $0x18] sm:$0xff]
    %vm241 = vcmask 261120
    %v243 = vsel %vm241, 0.0, 0
    %245 = vmatprep.subr.mxu0 0.0
    %246 = vmatpush1.msra.mxu0 0.0
    %247 = vmatprep.subr.mxu0 0.0
    %248 = vmatpush1.msra.mxu0 0.0
    %249 = vmatprep.subr.mxu0 0.0
    %250 = vmatpush1.msra.mxu0 0.0
    %251 = vmatprep.subr.mxu0 0.0
    %252 = vmatpush1.msra.mxu0 0.0
    %253 = vmatprep.subr.mxu0 0.0
    %254 = vmatpush1.msra.mxu0 0.0
    %255 = vmatprep.subr.mxu0 0.0
    %256 = vmatpush1.msra.mxu0 0.0
    %257 = vmatprep.subr.mxu0 0.0
    %258 = vmatpush1.msra.mxu0 0.0
    %259 = vmatprep.subr.mxu0 0.0
    %260 = vmatpush1.msra.mxu0 0.0
    %261 = vmatprep.subr.mxu0 0.0
    %262 = vmatpush1.msra.mxu0 0.0
    %263 = vmatprep.subr.mxu0 0.0
    %264 = vmatpush1.msra.mxu0 0.0
    %265 = vmatprep.subr.mxu0 0.0
    %266 = vmatpush1.msra.mxu0 0.0
    %267 = vmatprep.subr.mxu0 0.0
    %268 = vmatpush1.msra.mxu0 0.0
    %269 = vmatprep.subr.mxu0 0.0
    %270 = vmatpush1.msra.mxu0 %v240
    %271 = vmatprep.subr.mxu0 0.0
    %272 = vmatpush1.msra.mxu0 %v239
    %273 = vmatprep.subr.mxu0 0.0
    %274 = vmatpush1.msra.mxu0 %v238
    %275 = vmatprep.subr.mxu0 0.0
    %276 = vmatpush1.msra.mxu0 %v237
    %277 = vmatprep.subr.mxu0 0.0
    %278 = vmatpush2.msra.mxu0 0.0
    %279 = vmatprep.subr.mxu0 0.0
    %280 = vmatpush2.msra.mxu0 0.0
    %281 = vmatprep.subr.mxu0 0.0
    %282 = vmatpush2.msra.mxu0 0.0
    %283 = vmatprep.subr.mxu0 0.0
    %284 = vmatpush2.msra.mxu0 0.0
    %285 = vmatprep.subr.mxu0 0.0
    %286 = vmatpush2.msra.mxu0 0.0
    %287 = vmatprep.subr.mxu0 0.0
    %288 = vmatpush2.msra.mxu0 0.0
    %289 = vmatprep.subr.mxu0 0.0
    %290 = vmatpush2.msra.mxu0 0.0
    %291 = vmatprep.subr.mxu0 0.0
    %292 = vmatpush2.msra.mxu0 0.0
    %293 = vmatprep.subr.mxu0 0.0
    %294 = vmatpush2.msra.mxu0 0.0
    %295 = vmatprep.subr.mxu0 0.0
    %296 = vmatpush2.msra.mxu0 0.0
    %297 = vmatprep.subr.mxu0 0.0
    %298 = vmatpush2.msra.mxu0 0.0
    %299 = vmatprep.subr.mxu0 0.0
    %300 = vmatpush2.msra.mxu0 0.0
    %301 = vmatprep.subr.mxu0 0.0
    %302 = vmatpush2.msra.mxu0 0.0
    %303 = vmatprep.subr.mxu0 0.0
    %304 = vmatpush2.msra.mxu0 0.0
    %305 = vmatprep.subr.mxu0 0.0
    %306 = vmatpush2.msra.mxu0 0.0
    %307 = vmatprep.subr.mxu0 0.0
    %308 = vmatpush2.msra.mxu0 0.0
    %309 = vmatprep.mubr.f32.mxu0 0.0
    %310 = vmatmul.mubr.f32.gmra.mxu0 %v243
    %v311 = vpop.f32.mrf.mxu0
    %v312 = vadd.f32 0.0, %v311
    %v313 = vpop.f32.mrf.mxu0
    %314 = vdwg.mxu0
    %v316 = vsel %vm241, %v230, 0
    %318 = vmatprep.subr.mxu0 0.0
    %319 = vmatpush1.msra.mxu0 0.0
    %320 = vmatprep.subr.mxu0 0.0
    %321 = vmatpush1.msra.mxu0 0.0
    %322 = vmatprep.subr.mxu0 0.0
    %323 = vmatpush1.msra.mxu0 0.0
    %324 = vmatprep.subr.mxu0 0.0
    %325 = vmatpush1.msra.mxu0 0.0
    %326 = vmatprep.subr.mxu0 0.0
    %327 = vmatpush1.msra.mxu0 0.0
    %328 = vmatprep.subr.mxu0 0.0
    %329 = vmatpush1.msra.mxu0 0.0
    %330 = vmatprep.subr.mxu0 0.0
    %331 = vmatpush1.msra.mxu0 0.0
    %332 = vmatprep.subr.mxu0 0.0
    %333 = vmatpush1.msra.mxu0 0.0
    %334 = vmatprep.subr.mxu0 0.0
    %335 = vmatpush1.msra.mxu0 0.0
    %336 = vmatprep.subr.mxu0 0.0
    %337 = vmatpush1.msra.mxu0 0.0
    %338 = vmatprep.subr.mxu0 0.0
    %339 = vmatpush1.msra.mxu0 0.0
    %340 = vmatprep.subr.mxu0 0.0
    %341 = vmatpush1.msra.mxu0 0.0
    %342 = vmatprep.subr.mxu0 0.0
    %343 = vmatpush1.msra.mxu0 %v236
    %344 = vmatprep.subr.mxu0 0.0
    %345 = vmatpush1.msra.mxu0 %v235
    %346 = vmatprep.subr.mxu0 0.0
    %347 = vmatpush1.msra.mxu0 %v234
    %348 = vmatprep.subr.mxu0 0.0
    %349 = vmatpush1.msra.mxu0 %v233
    %350 = vmatprep.subr.mxu0 0.0
    %351 = vmatpush2.msra.mxu0 0.0
    %352 = vmatprep.subr.mxu0 0.0
    %353 = vmatpush2.msra.mxu0 0.0
    %354 = vmatprep.subr.mxu0 0.0
    %355 = vmatpush2.msra.mxu0 0.0
    %356 = vmatprep.subr.mxu0 0.0
    %357 = vmatpush2.msra.mxu0 0.0
    %358 = vmatprep.subr.mxu0 0.0
    %359 = vmatpush2.msra.mxu0 0.0
    %360 = vmatprep.subr.mxu0 0.0
    %361 = vmatpush2.msra.mxu0 0.0
    %362 = vmatprep.subr.mxu0 0.0
    %363 = vmatpush2.msra.mxu0 0.0
    %364 = vmatprep.subr.mxu0 0.0
    %365 = vmatpush2.msra.mxu0 0.0
    %366 = vmatprep.subr.mxu0 0.0
    %367 = vmatpush2.msra.mxu0 0.0
    %368 = vmatprep.subr.mxu0 0.0
    %369 = vmatpush2.msra.mxu0 0.0
    %370 = vmatprep.subr.mxu0 0.0
    %371 = vmatpush2.msra.mxu0 0.0
    %372 = vmatprep.subr.mxu0 0.0
    %373 = vmatpush2.msra.mxu0 0.0
    %374 = vmatprep.subr.mxu0 0.0
    %375 = vmatpush2.msra.mxu0 0.0
    %376 = vmatprep.subr.mxu0 0.0
    %377 = vmatpush2.msra.mxu0 0.0
    %378 = vmatprep.subr.mxu0 0.0
    %379 = vmatpush2.msra.mxu0 0.0
    %380 = vmatprep.subr.mxu0 0.0
    %381 = vmatpush2.msra.mxu0 0.0
    %382 = vmatprep.mubr.f32.mxu0 0.0
    %383 = vmatmul.mubr.f32.gmra.mxu0 %v316
    %v384 = vpop.f32.mrf.mxu0
    %v385 = vadd.f32 %v312, %v384
    %v386 = vpop.f32.mrf.mxu0
    %387 = vdwg.mxu0
    %v388 = vld [vmem:[%s5] sm:$0x1]
    %v390 = vlaneseq
    %v391 = vshrl.u32 %v390, 7
    %v392 = vsub.s32 0, %v391
    %v393 = vrot.slane %v388, %v392
    %v395 = vadd.f32 %v385, %v393
    %v396 = vxor.u32 %v395, 2147483648
    %v397 = vmul.f32 %v396, 1.442695
    %v398 = vpow.pop %v397
    %v399 = vadd.f32 %v398, 1.0
    %v400 = vrcp.pop %v399
    %v401 = vmul.f32 1.0, %v400
    %403 = vrot.lane.b32.xlu0 %v395, 32
    %v404 = vpop.permute.xlu0 %403
    %v406 = vmul.f32 %v401, %v404
    %408 = vrot.lane.b32.xlu0 %v406, 64
    %v409 = vpop.permute.xlu0 %408
    %v411 = vadd.f32 %v395, %v409
    %v412 = vtanh.pop %v411
    %v413 = vsub.f32 1.0, %v401
    %415 = vrot.lane.b32.xlu0 %v412, 96
    %v416 = vpop.permute.xlu0 %415
    %v418 = vmul.f32 %v413, %v416
    %v419 = vmul.f32 %v401, 0.0
    %v420 = vadd.f32 %v418, %v419
    %v421 = vld [vmem:[%s6] sm:$0xff]
    %v422 = vld [vmem:[%s6 + $0x8] sm:$0xff]
    %v423 = vld [vmem:[%s6 + $0x10] sm:$0xff]
    %v424 = vld [vmem:[%s6 + $0x18] sm:$0xff]
    %v425 = vld [vmem:[%s7] sm:$0xff]
    %v426 = vld [vmem:[%s7 + $0x8] sm:$0xff]
    %v427 = vld [vmem:[%s7 + $0x10] sm:$0xff]
    %v428 = vld [vmem:[%s7 + $0x18] sm:$0xff]
    %429 = vmatprep.subr.mxu0 0.0
    %430 = vmatpush1.msra.mxu0 0.0
    %431 = vmatprep.subr.mxu0 0.0
    %432 = vmatpush1.msra.mxu0 0.0
    %433 = vmatprep.subr.mxu0 0.0
    %434 = vmatpush1.msra.mxu0 0.0
    %435 = vmatprep.subr.mxu0 0.0
    %436 = vmatpush1.msra.mxu0 0.0
    %437 = vmatprep.subr.mxu0 0.0
    %438 = vmatpush1.msra.mxu0 0.0
    %439 = vmatprep.subr.mxu0 0.0
    %440 = vmatpush1.msra.mxu0 0.0
    %441 = vmatprep.subr.mxu0 0.0
    %442 = vmatpush1.msra.mxu0 0.0
    %443 = vmatprep.subr.mxu0 0.0
    %444 = vmatpush1.msra.mxu0 0.0
    %445 = vmatprep.subr.mxu0 0.0
    %446 = vmatpush1.msra.mxu0 0.0
    %447 = vmatprep.subr.mxu0 0.0
    %448 = vmatpush1.msra.mxu0 0.0
    %449 = vmatprep.subr.mxu0 0.0
    %450 = vmatpush1.msra.mxu0 0.0
    %451 = vmatprep.subr.mxu0 0.0
    %452 = vmatpush1.msra.mxu0 0.0
    %453 = vmatprep.subr.mxu0 0.0
    %454 = vmatpush1.msra.mxu0 %v428
    %455 = vmatprep.subr.mxu0 0.0
    %456 = vmatpush1.msra.mxu0 %v427
    %457 = vmatprep.subr.mxu0 0.0
    %458 = vmatpush1.msra.mxu0 %v426
    %459 = vmatprep.subr.mxu0 0.0
    %460 = vmatpush1.msra.mxu0 %v425
    %461 = vmatprep.subr.mxu0 0.0
    %462 = vmatpush2.msra.mxu0 0.0
    %463 = vmatprep.subr.mxu0 0.0
    %464 = vmatpush2.msra.mxu0 0.0
    %465 = vmatprep.subr.mxu0 0.0
    %466 = vmatpush2.msra.mxu0 0.0
    %467 = vmatprep.subr.mxu0 0.0
    %468 = vmatpush2.msra.mxu0 0.0
    %469 = vmatprep.subr.mxu0 0.0
    %470 = vmatpush2.msra.mxu0 0.0
    %471 = vmatprep.subr.mxu0 0.0
    %472 = vmatpush2.msra.mxu0 0.0
    %473 = vmatprep.subr.mxu0 0.0
    %474 = vmatpush2.msra.mxu0 0.0
    %475 = vmatprep.subr.mxu0 0.0
    %476 = vmatpush2.msra.mxu0 0.0
    %477 = vmatprep.subr.mxu0 0.0
    %478 = vmatpush2.msra.mxu0 0.0
    %479 = vmatprep.subr.mxu0 0.0
    %480 = vmatpush2.msra.mxu0 0.0
    %481 = vmatprep.subr.mxu0 0.0
    %482 = vmatpush2.msra.mxu0 0.0
    %483 = vmatprep.subr.mxu0 0.0
    %484 = vmatpush2.msra.mxu0 0.0
    %485 = vmatprep.subr.mxu0 0.0
    %486 = vmatpush2.msra.mxu0 0.0
    %487 = vmatprep.subr.mxu0 0.0
    %488 = vmatpush2.msra.mxu0 0.0
    %489 = vmatprep.subr.mxu0 0.0
    %490 = vmatpush2.msra.mxu0 0.0
    %491 = vmatprep.subr.mxu0 0.0
    %492 = vmatpush2.msra.mxu0 0.0
    %493 = vmatprep.mubr.f32.mxu0 0.0
    %494 = vmatmul.mubr.f32.gmra.mxu0 %v243
    %v495 = vpop.f32.mrf.mxu0
    %v496 = vadd.f32 0.0, %v495
    %v497 = vpop.f32.mrf.mxu0
    %498 = vdwg.mxu0
    %500 = vrot.lane.b32.xlu0 %v420, 96
    %v501 = vpop.permute.xlu0 %500
    %v502 = vsel %vm241, %v501, 0
    %504 = vmatprep.subr.mxu0 0.0
    %505 = vmatpush1.msra.mxu0 0.0
    %506 = vmatprep.subr.mxu0 0.0
    %507 = vmatpush1.msra.mxu0 0.0
    %508 = vmatprep.subr.mxu0 0.0
    %509 = vmatpush1.msra.mxu0 0.0
    %510 = vmatprep.subr.mxu0 0.0
    %511 = vmatpush1.msra.mxu0 0.0
    %512 = vmatprep.subr.mxu0 0.0
    %513 = vmatpush1.msra.mxu0 0.0
    %514 = vmatprep.subr.mxu0 0.0
    %515 = vmatpush1.msra.mxu0 0.0
    %516 = vmatprep.subr.mxu0 0.0
    %517 = vmatpush1.msra.mxu0 0.0
    %518 = vmatprep.subr.mxu0 0.0
    %519 = vmatpush1.msra.mxu0 0.0
    %520 = vmatprep.subr.mxu0 0.0
    %521 = vmatpush1.msra.mxu0 0.0
    %522 = vmatprep.subr.mxu0 0.0
    %523 = vmatpush1.msra.mxu0 0.0
    %524 = vmatprep.subr.mxu0 0.0
    %525 = vmatpush1.msra.mxu0 0.0
    %526 = vmatprep.subr.mxu0 0.0
    %527 = vmatpush1.msra.mxu0 0.0
    %528 = vmatprep.subr.mxu0 0.0
    %529 = vmatpush1.msra.mxu0 %v424
    %530 = vmatprep.subr.mxu0 0.0
    %531 = vmatpush1.msra.mxu0 %v423
    %532 = vmatprep.subr.mxu0 0.0
    %533 = vmatpush1.msra.mxu0 %v422
    %534 = vmatprep.subr.mxu0 0.0
    %535 = vmatpush1.msra.mxu0 %v421
    %536 = vmatprep.subr.mxu0 0.0
    %537 = vmatpush2.msra.mxu0 0.0
    %538 = vmatprep.subr.mxu0 0.0
    %539 = vmatpush2.msra.mxu0 0.0
    %540 = vmatprep.subr.mxu0 0.0
    %541 = vmatpush2.msra.mxu0 0.0
    %542 = vmatprep.subr.mxu0 0.0
    %543 = vmatpush2.msra.mxu0 0.0
    %544 = vmatprep.subr.mxu0 0.0
    %545 = vmatpush2.msra.mxu0 0.0
    %546 = vmatprep.subr.mxu0 0.0
    %547 = vmatpush2.msra.mxu0 0.0
    %548 = vmatprep.subr.mxu0 0.0
    %549 = vmatpush2.msra.mxu0 0.0
    %550 = vmatprep.subr.mxu0 0.0
    %551 = vmatpush2.msra.mxu0 0.0
    %552 = vmatprep.subr.mxu0 0.0
    %553 = vmatpush2.msra.mxu0 0.0
    %554 = vmatprep.subr.mxu0 0.0
    %555 = vmatpush2.msra.mxu0 0.0
    %556 = vmatprep.subr.mxu0 0.0
    %557 = vmatpush2.msra.mxu0 0.0
    %558 = vmatprep.subr.mxu0 0.0
    %559 = vmatpush2.msra.mxu0 0.0
    %560 = vmatprep.subr.mxu0 0.0
    %561 = vmatpush2.msra.mxu0 0.0
    %562 = vmatprep.subr.mxu0 0.0
    %563 = vmatpush2.msra.mxu0 0.0
    %564 = vmatprep.subr.mxu0 0.0
    %565 = vmatpush2.msra.mxu0 0.0
    %566 = vmatprep.subr.mxu0 0.0
    %567 = vmatpush2.msra.mxu0 0.0
    %568 = vmatprep.mubr.f32.mxu0 0.0
    %569 = vmatmul.mubr.f32.gmra.mxu0 %v502
    %v570 = vpop.f32.mrf.mxu0
    %v571 = vadd.f32 %v496, %v570
    %v572 = vpop.f32.mrf.mxu0
    %573 = vdwg.mxu0
    %v574 = vld [vmem:[%s8] sm:$0x1]
    %v576 = vlaneseq
    %v577 = vshrl.u32 %v576, 7
    %v578 = vsub.s32 0, %v577
    %v579 = vrot.slane %v574, %v578
    %v581 = vadd.f32 %v571, %v579
    %v582 = vxor.u32 %v581, 2147483648
    %v583 = vmul.f32 %v582, 1.442695
    %v584 = vpow.pop %v583
    %v585 = vadd.f32 %v584, 1.0
    %v586 = vrcp.pop %v585
    %v587 = vmul.f32 1.0, %v586
    %589 = vrot.lane.b32.xlu0 %v581, 32
    %v590 = vpop.permute.xlu0 %589
    %v592 = vmul.f32 %v587, %v590
    %594 = vrot.lane.b32.xlu0 %v592, 64
    %v595 = vpop.permute.xlu0 %594
    %v597 = vadd.f32 %v581, %v595
    %v598 = vtanh.pop %v597
    %v599 = vsub.f32 1.0, %v587
    %601 = vrot.lane.b32.xlu0 %v598, 96
    %v602 = vpop.permute.xlu0 %601
    %v604 = vmul.f32 %v599, %v602
    %v605 = vmul.f32 %v587, 0.0
    %v606 = vadd.f32 %v604, %v605
    %v607 = vld [vmem:[#allocation3] sm:$0x3]
    %608 = vset.pattern.permute.xlu0 0
    %609 = vperm.xlu0 %608, %v607
    %v610 = vpop.permute.xlu0 %609
    %vm611 = vcmp.eq.s32.totalorder %v610, %v140
    %v612 = vsel %vm611, 1, 0
    %v613 = vcvt.s32.f32 %v612
    %v615 = vsel %vm155, %v613, 0
    %617 = vmatprep.subr.mxu0 0.0
    %618 = vmatpush1.msra.mxu0 0.0
    %619 = vmatprep.subr.mxu0 0.0
    %620 = vmatpush1.msra.mxu0 0.0
    %621 = vmatprep.subr.mxu0 0.0
    %622 = vmatpush1.msra.mxu0 0.0
    %623 = vmatprep.subr.mxu0 0.0
    %624 = vmatpush1.msra.mxu0 0.0
    %625 = vmatprep.subr.mxu0 0.0
    %626 = vmatpush1.msra.mxu0 0.0
    %627 = vmatprep.subr.mxu0 0.0
    %628 = vmatpush1.msra.mxu0 0.0
    %629 = vmatprep.subr.mxu0 0.0
    %630 = vmatpush1.msra.mxu0 0.0
    %631 = vmatprep.subr.mxu0 0.0
    %632 = vmatpush1.msra.mxu0 0.0
    %633 = vmatprep.subr.mxu0 0.0
    %634 = vmatpush1.msra.mxu0 0.0
    %635 = vmatprep.subr.mxu0 0.0
    %636 = vmatpush1.msra.mxu0 %v161
    %637 = vmatprep.subr.mxu0 0.0
    %638 = vmatpush1.msra.mxu0 %v153
    %639 = vmatprep.subr.mxu0 0.0
    %640 = vmatpush1.msra.mxu0 %v152
    %641 = vmatprep.subr.mxu0 0.0
    %642 = vmatpush1.msra.mxu0 %v151
    %643 = vmatprep.subr.mxu0 0.0
    %644 = vmatpush1.msra.mxu0 %v150
    %645 = vmatprep.subr.mxu0 0.0
    %646 = vmatpush1.msra.mxu0 %v149
    %647 = vmatprep.subr.mxu0 0.0
    %648 = vmatpush1.msra.mxu0 %v148
    %649 = vmatprep.subr.mxu0 0.0
    %650 = vmatpush2.msra.mxu0 0.0
    %651 = vmatprep.subr.mxu0 0.0
    %652 = vmatpush2.msra.mxu0 0.0
    %653 = vmatprep.subr.mxu0 0.0
    %654 = vmatpush2.msra.mxu0 0.0
    %655 = vmatprep.subr.mxu0 0.0
    %656 = vmatpush2.msra.mxu0 0.0
    %657 = vmatprep.subr.mxu0 0.0
    %658 = vmatpush2.msra.mxu0 0.0
    %659 = vmatprep.subr.mxu0 0.0
    %660 = vmatpush2.msra.mxu0 0.0
    %661 = vmatprep.subr.mxu0 0.0
    %662 = vmatpush2.msra.mxu0 0.0
    %663 = vmatprep.subr.mxu0 0.0
    %664 = vmatpush2.msra.mxu0 0.0
    %665 = vmatprep.subr.mxu0 0.0
    %666 = vmatpush2.msra.mxu0 0.0
    %667 = vmatprep.subr.mxu0 0.0
    %668 = vmatpush2.msra.mxu0 0.0
    %669 = vmatprep.subr.mxu0 0.0
    %670 = vmatpush2.msra.mxu0 0.0
    %671 = vmatprep.subr.mxu0 0.0
    %672 = vmatpush2.msra.mxu0 0.0
    %673 = vmatprep.subr.mxu0 0.0
    %674 = vmatpush2.msra.mxu0 0.0
    %675 = vmatprep.subr.mxu0 0.0
    %676 = vmatpush2.msra.mxu0 0.0
    %677 = vmatprep.subr.mxu0 0.0
    %678 = vmatpush2.msra.mxu0 0.0
    %679 = vmatprep.subr.mxu0 0.0
    %680 = vmatpush2.msra.mxu0 0.0
    %681 = vmatprep.mubr.f32.mxu0 0.0
    %682 = vmatmul.mubr.f32.gmra.mxu0 %v615
    %v683 = vpop.f32.mrf.mxu0
    %v684 = vadd.f32 0.0, %v683
    %v685 = vpop.f32.mrf.mxu0
    %686 = vdwg.mxu0
    %v687 = vld [vmem:[#allocation5] sm:$0xff]
    %v688 = vld [vmem:[#allocation5 + $0x8] sm:$0xff]
    %v689 = vld [vmem:[#allocation5 + $0x10] sm:$0xff]
    %v690 = vld [vmem:[#allocation5 + $0x18] sm:$0xff]
    %v691 = vld [vmem:[#allocation7] sm:$0xff]
    %v692 = vld [vmem:[#allocation7 + $0x8] sm:$0xff]
    %v693 = vld [vmem:[#allocation7 + $0x10] sm:$0xff]
    %v694 = vld [vmem:[#allocation7 + $0x18] sm:$0xff]
    %695 = vmatprep.subr.mxu0 0.0
    %696 = vmatpush1.msra.mxu0 0.0
    %697 = vmatprep.subr.mxu0 0.0
    %698 = vmatpush1.msra.mxu0 0.0
    %699 = vmatprep.subr.mxu0 0.0
    %700 = vmatpush1.msra.mxu0 0.0
    %701 = vmatprep.subr.mxu0 0.0
    %702 = vmatpush1.msra.mxu0 0.0
    %703 = vmatprep.subr.mxu0 0.0
    %704 = vmatpush1.msra.mxu0 0.0
    %705 = vmatprep.subr.mxu0 0.0
    %706 = vmatpush1.msra.mxu0 0.0
    %707 = vmatprep.subr.mxu0 0.0
    %708 = vmatpush1.msra.mxu0 0.0
    %709 = vmatprep.subr.mxu0 0.0
    %710 = vmatpush1.msra.mxu0 0.0
    %711 = vmatprep.subr.mxu0 0.0
    %712 = vmatpush1.msra.mxu0 0.0
    %713 = vmatprep.subr.mxu0 0.0
    %714 = vmatpush1.msra.mxu0 0.0
    %715 = vmatprep.subr.mxu0 0.0
    %716 = vmatpush1.msra.mxu0 0.0
    %717 = vmatprep.subr.mxu0 0.0
    %718 = vmatpush1.msra.mxu0 0.0
    %719 = vmatprep.subr.mxu0 0.0
    %720 = vmatpush1.msra.mxu0 %v694
    %721 = vmatprep.subr.mxu0 0.0
    %722 = vmatpush1.msra.mxu0 %v693
    %723 = vmatprep.subr.mxu0 0.0
    %724 = vmatpush1.msra.mxu0 %v692
    %725 = vmatprep.subr.mxu0 0.0
    %726 = vmatpush1.msra.mxu0 %v691
    %727 = vmatprep.subr.mxu0 0.0
    %728 = vmatpush2.msra.mxu0 0.0
    %729 = vmatprep.subr.mxu0 0.0
    %730 = vmatpush2.msra.mxu0 0.0
    %731 = vmatprep.subr.mxu0 0.0
    %732 = vmatpush2.msra.mxu0 0.0
    %733 = vmatprep.subr.mxu0 0.0
    %734 = vmatpush2.msra.mxu0 0.0
    %735 = vmatprep.subr.mxu0 0.0
    %736 = vmatpush2.msra.mxu0 0.0
    %737 = vmatprep.subr.mxu0 0.0
    %738 = vmatpush2.msra.mxu0 0.0
    %739 = vmatprep.subr.mxu0 0.0
    %740 = vmatpush2.msra.mxu0 0.0
    %741 = vmatprep.subr.mxu0 0.0
    %742 = vmatpush2.msra.mxu0 0.0
    %743 = vmatprep.subr.mxu0 0.0
    %744 = vmatpush2.msra.mxu0 0.0
    %745 = vmatprep.subr.mxu0 0.0
    %746 = vmatpush2.msra.mxu0 0.0
    %747 = vmatprep.subr.mxu0 0.0
    %748 = vmatpush2.msra.mxu0 0.0
    %749 = vmatprep.subr.mxu0 0.0
    %750 = vmatpush2.msra.mxu0 0.0
    %751 = vmatprep.subr.mxu0 0.0
    %752 = vmatpush2.msra.mxu0 0.0
    %753 = vmatprep.subr.mxu0 0.0
    %754 = vmatpush2.msra.mxu0 0.0
    %755 = vmatprep.subr.mxu0 0.0
    %756 = vmatpush2.msra.mxu0 0.0
    %757 = vmatprep.subr.mxu0 0.0
    %758 = vmatpush2.msra.mxu0 0.0
    %759 = vmatprep.mubr.f32.mxu0 0.0
    %760 = vmatmul.mubr.f32.gmra.mxu0 %v243
    %v761 = vpop.f32.mrf.mxu0
    %v762 = vadd.f32 0.0, %v761
    %v763 = vpop.f32.mrf.mxu0
    %764 = vdwg.mxu0
    %v766 = vsel %vm241, %v684, 0
    %768 = vmatprep.subr.mxu0 0.0
    %769 = vmatpush1.msra.mxu0 0.0
    %770 = vmatprep.subr.mxu0 0.0
    %771 = vmatpush1.msra.mxu0 0.0
    %772 = vmatprep.subr.mxu0 0.0
    %773 = vmatpush1.msra.mxu0 0.0
    %774 = vmatprep.subr.mxu0 0.0
    %775 = vmatpush1.msra.mxu0 0.0
    %776 = vmatprep.subr.mxu0 0.0
    %777 = vmatpush1.msra.mxu0 0.0
    %778 = vmatprep.subr.mxu0 0.0
    %779 = vmatpush1.msra.mxu0 0.0
    %780 = vmatprep.subr.mxu0 0.0
    %781 = vmatpush1.msra.mxu0 0.0
    %782 = vmatprep.subr.mxu0 0.0
    %783 = vmatpush1.msra.mxu0 0.0
    %784 = vmatprep.subr.mxu0 0.0
    %785 = vmatpush1.msra.mxu0 0.0
    %786 = vmatprep.subr.mxu0 0.0
    %787 = vmatpush1.msra.mxu0 0.0
    %788 = vmatprep.subr.mxu0 0.0
    %789 = vmatpush1.msra.mxu0 0.0
    %790 = vmatprep.subr.mxu0 0.0
    %791 = vmatpush1.msra.mxu0 0.0
    %792 = vmatprep.subr.mxu0 0.0
    %793 = vmatpush1.msra.mxu0 %v690
    %794 = vmatprep.subr.mxu0 0.0
    %795 = vmatpush1.msra.mxu0 %v689
    %796 = vmatprep.subr.mxu0 0.0
    %797 = vmatpush1.msra.mxu0 %v688
    %798 = vmatprep.subr.mxu0 0.0
    %799 = vmatpush1.msra.mxu0 %v687
    %800 = vmatprep.subr.mxu0 0.0
    %801 = vmatpush2.msra.mxu0 0.0
    %802 = vmatprep.subr.mxu0 0.0
    %803 = vmatpush2.msra.mxu0 0.0
    %804 = vmatprep.subr.mxu0 0.0
    %805 = vmatpush2.msra.mxu0 0.0
    %806 = vmatprep.subr.mxu0 0.0
    %807 = vmatpush2.msra.mxu0 0.0
    %808 = vmatprep.subr.mxu0 0.0
    %809 = vmatpush2.msra.mxu0 0.0
    %810 = vmatprep.subr.mxu0 0.0
    %811 = vmatpush2.msra.mxu0 0.0
    %812 = vmatprep.subr.mxu0 0.0
    %813 = vmatpush2.msra.mxu0 0.0
    %814 = vmatprep.subr.mxu0 0.0
    %815 = vmatpush2.msra.mxu0 0.0
    %816 = vmatprep.subr.mxu0 0.0
    %817 = vmatpush2.msra.mxu0 0.0
    %818 = vmatprep.subr.mxu0 0.0
    %819 = vmatpush2.msra.mxu0 0.0
    %820 = vmatprep.subr.mxu0 0.0
    %821 = vmatpush2.msra.mxu0 0.0
    %822 = vmatprep.subr.mxu0 0.0
    %823 = vmatpush2.msra.mxu0 0.0
    %824 = vmatprep.subr.mxu0 0.0
    %825 = vmatpush2.msra.mxu0 0.0
    %826 = vmatprep.subr.mxu0 0.0
    %827 = vmatpush2.msra.mxu0 0.0
    %828 = vmatprep.subr.mxu0 0.0
    %829 = vmatpush2.msra.mxu0 0.0
    %830 = vmatprep.subr.mxu0 0.0
    %831 = vmatpush2.msra.mxu0 0.0
    %832 = vmatprep.mubr.f32.mxu0 0.0
    %833 = vmatmul.mubr.f32.gmra.mxu0 %v766
    %v834 = vpop.f32.mrf.mxu0
    %v835 = vadd.f32 %v762, %v834
    %v836 = vpop.f32.mrf.mxu0
    %837 = vdwg.mxu0
    %v838 = vld [vmem:[#allocation8] sm:$0x1]
    %v840 = vlaneseq
    %v841 = vshrl.u32 %v840, 7
    %v842 = vsub.s32 0, %v841
    %v843 = vrot.slane %v838, %v842
    %v845 = vadd.f32 %v835, %v843
    %v846 = vxor.u32 %v845, 2147483648
    %v847 = vmul.f32 %v846, 1.442695
    %v848 = vpow.pop %v847
    %v849 = vadd.f32 %v848, 1.0
    %v850 = vrcp.pop %v849
    %v851 = vmul.f32 1.0, %v850
    %853 = vrot.lane.b32.xlu0 %v845, 32
    %v854 = vpop.permute.xlu0 %853
    %v856 = vmul.f32 %v851, %v854
    %858 = vrot.lane.b32.xlu0 %v856, 64
    %v859 = vpop.permute.xlu0 %858
    %v861 = vadd.f32 %v845, %v859
    %v862 = vtanh.pop %v861
    %v863 = vsub.f32 1.0, %v851
    %865 = vrot.lane.b32.xlu0 %v862, 96
    %v866 = vpop.permute.xlu0 %865
    %v868 = vmul.f32 %v863, %v866
    %v869 = vmul.f32 %v851, 0.0
    %v870 = vadd.f32 %v868, %v869
    %v871 = vld [vmem:[#allocation10] sm:$0xff]
    %v872 = vld [vmem:[#allocation10 + $0x8] sm:$0xff]
    %v873 = vld [vmem:[#allocation10 + $0x10] sm:$0xff]
    %v874 = vld [vmem:[#allocation10 + $0x18] sm:$0xff]
    %v875 = vld [vmem:[#allocation11] sm:$0xff]
    %v876 = vld [vmem:[#allocation11 + $0x8] sm:$0xff]
    %v877 = vld [vmem:[#allocation11 + $0x10] sm:$0xff]
    %v878 = vld [vmem:[#allocation11 + $0x18] sm:$0xff]
    %879 = vmatprep.subr.mxu0 0.0
    %880 = vmatpush1.msra.mxu0 0.0
    %881 = vmatprep.subr.mxu0 0.0
    %882 = vmatpush1.msra.mxu0 0.0
    %883 = vmatprep.subr.mxu0 0.0
    %884 = vmatpush1.msra.mxu0 0.0
    %885 = vmatprep.subr.mxu0 0.0
    %886 = vmatpush1.msra.mxu0 0.0
    %887 = vmatprep.subr.mxu0 0.0
    %888 = vmatpush1.msra.mxu0 0.0
    %889 = vmatprep.subr.mxu0 0.0
    %890 = vmatpush1.msra.mxu0 0.0
    %891 = vmatprep.subr.mxu0 0.0
    %892 = vmatpush1.msra.mxu0 0.0
    %893 = vmatprep.subr.mxu0 0.0
    %894 = vmatpush1.msra.mxu0 0.0
    %895 = vmatprep.subr.mxu0 0.0
    %896 = vmatpush1.msra.mxu0 0.0
    %897 = vmatprep.subr.mxu0 0.0
    %898 = vmatpush1.msra.mxu0 0.0
    %899 = vmatprep.subr.mxu0 0.0
    %900 = vmatpush1.msra.mxu0 0.0
    %901 = vmatprep.subr.mxu0 0.0
    %902 = vmatpush1.msra.mxu0 0.0
    %903 = vmatprep.subr.mxu0 0.0
    %904 = vmatpush1.msra.mxu0 %v878
    %905 = vmatprep.subr.mxu0 0.0
    %906 = vmatpush1.msra.mxu0 %v877
    %907 = vmatprep.subr.mxu0 0.0
    %908 = vmatpush1.msra.mxu0 %v876
    %909 = vmatprep.subr.mxu0 0.0
    %910 = vmatpush1.msra.mxu0 %v875
    %911 = vmatprep.subr.mxu0 0.0
    %912 = vmatpush2.msra.mxu0 0.0
    %913 = vmatprep.subr.mxu0 0.0
    %914 = vmatpush2.msra.mxu0 0.0
    %915 = vmatprep.subr.mxu0 0.0
    %916 = vmatpush2.msra.mxu0 0.0
    %917 = vmatprep.subr.mxu0 0.0
    %918 = vmatpush2.msra.mxu0 0.0
    %919 = vmatprep.subr.mxu0 0.0
    %920 = vmatpush2.msra.mxu0 0.0
    %921 = vmatprep.subr.mxu0 0.0
    %922 = vmatpush2.msra.mxu0 0.0
    %923 = vmatprep.subr.mxu0 0.0
    %924 = vmatpush2.msra.mxu0 0.0
    %925 = vmatprep.subr.mxu0 0.0
    %926 = vmatpush2.msra.mxu0 0.0
    %927 = vmatprep.subr.mxu0 0.0
    %928 = vmatpush2.msra.mxu0 0.0
    %929 = vmatprep.subr.mxu0 0.0
    %930 = vmatpush2.msra.mxu0 0.0
    %931 = vmatprep.subr.mxu0 0.0
    %932 = vmatpush2.msra.mxu0 0.0
    %933 = vmatprep.subr.mxu0 0.0
    %934 = vmatpush2.msra.mxu0 0.0
    %935 = vmatprep.subr.mxu0 0.0
    %936 = vmatpush2.msra.mxu0 0.0
    %937 = vmatprep.subr.mxu0 0.0
    %938 = vmatpush2.msra.mxu0 0.0
    %939 = vmatprep.subr.mxu0 0.0
    %940 = vmatpush2.msra.mxu0 0.0
    %941 = vmatprep.subr.mxu0 0.0
    %942 = vmatpush2.msra.mxu0 0.0
    %943 = vmatprep.mubr.f32.mxu0 0.0
    %944 = vmatmul.mubr.f32.gmra.mxu0 %v243
    %v945 = vpop.f32.mrf.mxu0
    %v946 = vadd.f32 0.0, %v945
    %v947 = vpop.f32.mrf.mxu0
    %948 = vdwg.mxu0
    %950 = vrot.lane.b32.xlu0 %v870, 96
    %v951 = vpop.permute.xlu0 %950
    %v952 = vsel %vm241, %v951, 0
    %954 = vmatprep.subr.mxu0 0.0
    %955 = vmatpush1.msra.mxu0 0.0
    %956 = vmatprep.subr.mxu0 0.0
    %957 = vmatpush1.msra.mxu0 0.0
    %958 = vmatprep.subr.mxu0 0.0
    %959 = vmatpush1.msra.mxu0 0.0
    %960 = vmatprep.subr.mxu0 0.0
    %961 = vmatpush1.msra.mxu0 0.0
    %962 = vmatprep.subr.mxu0 0.0
    %963 = vmatpush1.msra.mxu0 0.0
    %964 = vmatprep.subr.mxu0 0.0
    %965 = vmatpush1.msra.mxu0 0.0
    %966 = vmatprep.subr.mxu0 0.0
    %967 = vmatpush1.msra.mxu0 0.0
    %968 = vmatprep.subr.mxu0 0.0
    %969 = vmatpush1.msra.mxu0 0.0
    %970 = vmatprep.subr.mxu0 0.0
    %971 = vmatpush1.msra.mxu0 0.0
    %972 = vmatprep.subr.mxu0 0.0
    %973 = vmatpush1.msra.mxu0 0.0
    %974 = vmatprep.subr.mxu0 0.0
    %975 = vmatpush1.msra.mxu0 0.0
    %976 = vmatprep.subr.mxu0 0.0
    %977 = vmatpush1.msra.mxu0 0.0
    %978 = vmatprep.subr.mxu0 0.0
    %979 = vmatpush1.msra.mxu0 %v874
    %980 = vmatprep.subr.mxu0 0.0
    %981 = vmatpush1.msra.mxu0 %v873
    %982 = vmatprep.subr.mxu0 0.0
    %983 = vmatpush1.msra.mxu0 %v872
    %984 = vmatprep.subr.mxu0 0.0
    %985 = vmatpush1.msra.mxu0 %v871
    %986 = vmatprep.subr.mxu0 0.0
    %987 = vmatpush2.msra.mxu0 0.0
    %988 = vmatprep.subr.mxu0 0.0
    %989 = vmatpush2.msra.mxu0 0.0
    %990 = vmatprep.subr.mxu0 0.0
    %991 = vmatpush2.msra.mxu0 0.0
    %992 = vmatprep.subr.mxu0 0.0
    %993 = vmatpush2.msra.mxu0 0.0
    %994 = vmatprep.subr.mxu0 0.0
    %995 = vmatpush2.msra.mxu0 0.0
    %996 = vmatprep.subr.mxu0 0.0
    %997 = vmatpush2.msra.mxu0 0.0
    %998 = vmatprep.subr.mxu0 0.0
    %999 = vmatpush2.msra.mxu0 0.0
    %1000 = vmatprep.subr.mxu0 0.0
    %1001 = vmatpush2.msra.mxu0 0.0
    %1002 = vmatprep.subr.mxu0 0.0
    %1003 = vmatpush2.msra.mxu0 0.0
    %1004 = vmatprep.subr.mxu0 0.0
    %1005 = vmatpush2.msra.mxu0 0.0
    %1006 = vmatprep.subr.mxu0 0.0
    %1007 = vmatpush2.msra.mxu0 0.0
    %1008 = vmatprep.subr.mxu0 0.0
    %1009 = vmatpush2.msra.mxu0 0.0
    %1010 = vmatprep.subr.mxu0 0.0
    %1011 = vmatpush2.msra.mxu0 0.0
    %1012 = vmatprep.subr.mxu0 0.0
    %1013 = vmatpush2.msra.mxu0 0.0
    %1014 = vmatprep.subr.mxu0 0.0
    %1015 = vmatpush2.msra.mxu0 0.0
    %1016 = vmatprep.subr.mxu0 0.0
    %1017 = vmatpush2.msra.mxu0 0.0
    %1018 = vmatprep.mubr.f32.mxu0 0.0
    %1019 = vmatmul.mubr.f32.gmra.mxu0 %v952
    %v1020 = vpop.f32.mrf.mxu0
    %v1021 = vadd.f32 %v946, %v1020
    %v1022 = vpop.f32.mrf.mxu0
    %1023 = vdwg.mxu0
    %v1024 = vld [vmem:[%s14] sm:$0x1]
    %v1026 = vlaneseq
    %v1027 = vshrl.u32 %v1026, 7
    %v1028 = vsub.s32 0, %v1027
    %v1029 = vrot.slane %v1024, %v1028
    %v1031 = vadd.f32 %v1021, %v1029
    %v1032 = vxor.u32 %v1031, 2147483648
    %v1033 = vmul.f32 %v1032, 1.442695
    %v1034 = vpow.pop %v1033
    %v1035 = vadd.f32 %v1034, 1.0
    %v1036 = vrcp.pop %v1035
    %v1037 = vmul.f32 1.0, %v1036
    %1039 = vrot.lane.b32.xlu0 %v1031, 32
    %v1040 = vpop.permute.xlu0 %1039
    %v1042 = vmul.f32 %v1037, %v1040
    %1044 = vrot.lane.b32.xlu0 %v1042, 64
    %v1045 = vpop.permute.xlu0 %1044
    %v1047 = vadd.f32 %v1031, %v1045
    %v1048 = vtanh.pop %v1047
    %v1049 = vsub.f32 1.0, %v1037
    %1051 = vrot.lane.b32.xlu0 %v1048, 96
    %v1052 = vpop.permute.xlu0 %1051
    %v1054 = vmul.f32 %v1049, %v1052
    %v1055 = vmul.f32 %v1037, 0.0
    %v1056 = vadd.f32 %v1054, %v1055
    %1057 = vset.pattern.permute.xlu0 1
    %1058 = vperm.xlu0 %1057, %v141
    %v1059 = vpop.permute.xlu0 %1058
    %vm1060 = vcmp.eq.s32.totalorder %v1059, %v140
    %v1061 = vsel %vm1060, 1, 0
    %v1062 = vcvt.s32.f32 %v1061
    %v1064 = vsel %vm155, %v1062, 0
    %1066 = vmatprep.subr.mxu0 0.0
    %1067 = vmatpush1.msra.mxu0 0.0
    %1068 = vmatprep.subr.mxu0 0.0
    %1069 = vmatpush1.msra.mxu0 0.0
    %1070 = vmatprep.subr.mxu0 0.0
    %1071 = vmatpush1.msra.mxu0 0.0
    %1072 = vmatprep.subr.mxu0 0.0
    %1073 = vmatpush1.msra.mxu0 0.0
    %1074 = vmatprep.subr.mxu0 0.0
    %1075 = vmatpush1.msra.mxu0 0.0
    %1076 = vmatprep.subr.mxu0 0.0
    %1077 = vmatpush1.msra.mxu0 0.0
    %1078 = vmatprep.subr.mxu0 0.0
    %1079 = vmatpush1.msra.mxu0 0.0
    %1080 = vmatprep.subr.mxu0 0.0
    %1081 = vmatpush1.msra.mxu0 0.0
    %1082 = vmatprep.subr.mxu0 0.0
    %1083 = vmatpush1.msra.mxu0 0.0
    %1084 = vmatprep.subr.mxu0 0.0
    %1085 = vmatpush1.msra.mxu0 %v161
    %1086 = vmatprep.subr.mxu0 0.0
    %1087 = vmatpush1.msra.mxu0 %v153
    %1088 = vmatprep.subr.mxu0 0.0
    %1089 = vmatpush1.msra.mxu0 %v152
    %1090 = vmatprep.subr.mxu0 0.0
    %1091 = vmatpush1.msra.mxu0 %v151
    %1092 = vmatprep.subr.mxu0 0.0
    %1093 = vmatpush1.msra.mxu0 %v150
    %1094 = vmatprep.subr.mxu0 0.0
    %1095 = vmatpush1.msra.mxu0 %v149
    %1096 = vmatprep.subr.mxu0 0.0
    %1097 = vmatpush1.msra.mxu0 %v148
    %1098 = vmatprep.subr.mxu0 0.0
    %1099 = vmatpush2.msra.mxu0 0.0
    %1100 = vmatprep.subr.mxu0 0.0
    %1101 = vmatpush2.msra.mxu0 0.0
    %1102 = vmatprep.subr.mxu0 0.0
    %1103 = vmatpush2.msra.mxu0 0.0
    %1104 = vmatprep.subr.mxu0 0.0
    %1105 = vmatpush2.msra.mxu0 0.0
    %1106 = vmatprep.subr.mxu0 0.0
    %1107 = vmatpush2.msra.mxu0 0.0
    %1108 = vmatprep.subr.mxu0 0.0
    %1109 = vmatpush2.msra.mxu0 0.0
    %1110 = vmatprep.subr.mxu0 0.0
    %1111 = vmatpush2.msra.mxu0 0.0
    %1112 = vmatprep.subr.mxu0 0.0
    %1113 = vmatpush2.msra.mxu0 0.0
    %1114 = vmatprep.subr.mxu0 0.0
    %1115 = vmatpush2.msra.mxu0 0.0
    %1116 = vmatprep.subr.mxu0 0.0
    %1117 = vmatpush2.msra.mxu0 0.0
    %1118 = vmatprep.subr.mxu0 0.0
    %1119 = vmatpush2.msra.mxu0 0.0
    %1120 = vmatprep.subr.mxu0 0.0
    %1121 = vmatpush2.msra.mxu0 0.0
    %1122 = vmatprep.subr.mxu0 0.0
    %1123 = vmatpush2.msra.mxu0 0.0
    %1124 = vmatprep.subr.mxu0 0.0
    %1125 = vmatpush2.msra.mxu0 0.0
    %1126 = vmatprep.subr.mxu0 0.0
    %1127 = vmatpush2.msra.mxu0 0.0
    %1128 = vmatprep.subr.mxu0 0.0
    %1129 = vmatpush2.msra.mxu0 0.0
    %1130 = vmatprep.mubr.f32.mxu0 0.0
    %1131 = vmatmul.mubr.f32.gmra.mxu0 %v1064
    %v1132 = vpop.f32.mrf.mxu0
    %v1133 = vadd.f32 0.0, %v1132
    %v1134 = vpop.f32.mrf.mxu0
    %1135 = vdwg.mxu0
    %1136 = vmatprep.subr.mxu0 0.0
    %1137 = vmatpush1.msra.mxu0 0.0
    %1138 = vmatprep.subr.mxu0 0.0
    %1139 = vmatpush1.msra.mxu0 0.0
    %1140 = vmatprep.subr.mxu0 0.0
    %1141 = vmatpush1.msra.mxu0 0.0
    %1142 = vmatprep.subr.mxu0 0.0
    %1143 = vmatpush1.msra.mxu0 0.0
    %1144 = vmatprep.subr.mxu0 0.0
    %1145 = vmatpush1.msra.mxu0 0.0
    %1146 = vmatprep.subr.mxu0 0.0
    %1147 = vmatpush1.msra.mxu0 0.0
    %1148 = vmatprep.subr.mxu0 0.0
    %1149 = vmatpush1.msra.mxu0 0.0
    %1150 = vmatprep.subr.mxu0 0.0
    %1151 = vmatpush1.msra.mxu0 0.0
    %1152 = vmatprep.subr.mxu0 0.0
    %1153 = vmatpush1.msra.mxu0 0.0
    %1154 = vmatprep.subr.mxu0 0.0
    %1155 = vmatpush1.msra.mxu0 0.0
    %1156 = vmatprep.subr.mxu0 0.0
    %1157 = vmatpush1.msra.mxu0 0.0
    %1158 = vmatprep.subr.mxu0 0.0
    %1159 = vmatpush1.msra.mxu0 0.0
    %1160 = vmatprep.subr.mxu0 0.0
    %1161 = vmatpush1.msra.mxu0 %v240
    %1162 = vmatprep.subr.mxu0 0.0
    %1163 = vmatpush1.msra.mxu0 %v239
    %1164 = vmatprep.subr.mxu0 0.0
    %1165 = vmatpush1.msra.mxu0 %v238
    %1166 = vmatprep.subr.mxu0 0.0
    %1167 = vmatpush1.msra.mxu0 %v237
    %1168 = vmatprep.subr.mxu0 0.0
    %1169 = vmatpush2.msra.mxu0 0.0
    %1170 = vmatprep.subr.mxu0 0.0
    %1171 = vmatpush2.msra.mxu0 0.0
    %1172 = vmatprep.subr.mxu0 0.0
    %1173 = vmatpush2.msra.mxu0 0.0
    %1174 = vmatprep.subr.mxu0 0.0
    %1175 = vmatpush2.msra.mxu0 0.0
    %1176 = vmatprep.subr.mxu0 0.0
    %1177 = vmatpush2.msra.mxu0 0.0
    %1178 = vmatprep.subr.mxu0 0.0
    %1179 = vmatpush2.msra.mxu0 0.0
    %1180 = vmatprep.subr.mxu0 0.0
    %1181 = vmatpush2.msra.mxu0 0.0
    %1182 = vmatprep.subr.mxu0 0.0
    %1183 = vmatpush2.msra.mxu0 0.0
    %1184 = vmatprep.subr.mxu0 0.0
    %1185 = vmatpush2.msra.mxu0 0.0
    %1186 = vmatprep.subr.mxu0 0.0
    %1187 = vmatpush2.msra.mxu0 0.0
    %1188 = vmatprep.subr.mxu0 0.0
    %1189 = vmatpush2.msra.mxu0 0.0
    %1190 = vmatprep.subr.mxu0 0.0
    %1191 = vmatpush2.msra.mxu0 0.0
    %1192 = vmatprep.subr.mxu0 0.0
    %1193 = vmatpush2.msra.mxu0 0.0
    %1194 = vmatprep.subr.mxu0 0.0
    %1195 = vmatpush2.msra.mxu0 0.0
    %1196 = vmatprep.subr.mxu0 0.0
    %1197 = vmatpush2.msra.mxu0 0.0
    %1198 = vmatprep.subr.mxu0 0.0
    %1199 = vmatpush2.msra.mxu0 0.0
    %1200 = vmatprep.mubr.f32.mxu0 0.0
    %1201 = vmatmul.mubr.f32.gmra.mxu0 %v502
    %v1202 = vpop.f32.mrf.mxu0
    %v1203 = vadd.f32 0.0, %v1202
    %v1204 = vpop.f32.mrf.mxu0
    %1205 = vdwg.mxu0
    %v1207 = vsel %vm241, %v1133, 0
    %1209 = vmatprep.subr.mxu0 0.0
    %1210 = vmatpush1.msra.mxu0 0.0
    %1211 = vmatprep.subr.mxu0 0.0
    %1212 = vmatpush1.msra.mxu0 0.0
    %1213 = vmatprep.subr.mxu0 0.0
    %1214 = vmatpush1.msra.mxu0 0.0
    %1215 = vmatprep.subr.mxu0 0.0
    %1216 = vmatpush1.msra.mxu0 0.0
    %1217 = vmatprep.subr.mxu0 0.0
    %1218 = vmatpush1.msra.mxu0 0.0
    %1219 = vmatprep.subr.mxu0 0.0
    %1220 = vmatpush1.msra.mxu0 0.0
    %1221 = vmatprep.subr.mxu0 0.0
    %1222 = vmatpush1.msra.mxu0 0.0
    %1223 = vmatprep.subr.mxu0 0.0
    %1224 = vmatpush1.msra.mxu0 0.0
    %1225 = vmatprep.subr.mxu0 0.0
    %1226 = vmatpush1.msra.mxu0 0.0
    %1227 = vmatprep.subr.mxu0 0.0
    %1228 = vmatpush1.msra.mxu0 0.0
    %1229 = vmatprep.subr.mxu0 0.0
    %1230 = vmatpush1.msra.mxu0 0.0
    %1231 = vmatprep.subr.mxu0 0.0
    %1232 = vmatpush1.msra.mxu0 0.0
    %1233 = vmatprep.subr.mxu0 0.0
    %1234 = vmatpush1.msra.mxu0 %v236
    %1235 = vmatprep.subr.mxu0 0.0
    %1236 = vmatpush1.msra.mxu0 %v235
    %1237 = vmatprep.subr.mxu0 0.0
    %1238 = vmatpush1.msra.mxu0 %v234
    %1239 = vmatprep.subr.mxu0 0.0
    %1240 = vmatpush1.msra.mxu0 %v233
    %1241 = vmatprep.subr.mxu0 0.0
    %1242 = vmatpush2.msra.mxu0 0.0
    %1243 = vmatprep.subr.mxu0 0.0
    %1244 = vmatpush2.msra.mxu0 0.0
    %1245 = vmatprep.subr.mxu0 0.0
    %1246 = vmatpush2.msra.mxu0 0.0
    %1247 = vmatprep.subr.mxu0 0.0
    %1248 = vmatpush2.msra.mxu0 0.0
    %1249 = vmatprep.subr.mxu0 0.0
    %1250 = vmatpush2.msra.mxu0 0.0
    %1251 = vmatprep.subr.mxu0 0.0
    %1252 = vmatpush2.msra.mxu0 0.0
    %1253 = vmatprep.subr.mxu0 0.0
    %1254 = vmatpush2.msra.mxu0 0.0
    %1255 = vmatprep.subr.mxu0 0.0
    %1256 = vmatpush2.msra.mxu0 0.0
    %1257 = vmatprep.subr.mxu0 0.0
    %1258 = vmatpush2.msra.mxu0 0.0
    %1259 = vmatprep.subr.mxu0 0.0
    %1260 = vmatpush2.msra.mxu0 0.0
    %1261 = vmatprep.subr.mxu0 0.0
    %1262 = vmatpush2.msra.mxu0 0.0
    %1263 = vmatprep.subr.mxu0 0.0
    %1264 = vmatpush2.msra.mxu0 0.0
    %1265 = vmatprep.subr.mxu0 0.0
    %1266 = vmatpush2.msra.mxu0 0.0
    %1267 = vmatprep.subr.mxu0 0.0
    %1268 = vmatpush2.msra.mxu0 0.0
    %1269 = vmatprep.subr.mxu0 0.0
    %1270 = vmatpush2.msra.mxu0 0.0
    %1271 = vmatprep.subr.mxu0 0.0
    %1272 = vmatpush2.msra.mxu0 0.0
    %1273 = vmatprep.mubr.f32.mxu0 0.0
    %1274 = vmatmul.mubr.f32.gmra.mxu0 %v1207
    %v1275 = vpop.f32.mrf.mxu0
    %v1276 = vadd.f32 %v1203, %v1275
    %v1277 = vpop.f32.mrf.mxu0
    %1278 = vdwg.mxu0
    %v1279 = vadd.f32 %v1276, %v393
    %v1280 = vxor.u32 %v1279, 2147483648
    %v1281 = vmul.f32 %v1280, 1.442695
    %v1282 = vpow.pop %v1281
    %v1283 = vadd.f32 %v1282, 1.0
    %v1284 = vrcp.pop %v1283
    %v1285 = vmul.f32 1.0, %v1284
    %1287 = vrot.lane.b32.xlu0 %v1279, 32
    %v1288 = vpop.permute.xlu0 %1287
    %v1290 = vmul.f32 %v1285, %v1288
    %1292 = vrot.lane.b32.xlu0 %v1290, 64
    %v1293 = vpop.permute.xlu0 %1292
    %v1295 = vadd.f32 %v1279, %v1293
    %v1296 = vtanh.pop %v1295
    %v1297 = vsub.f32 1.0, %v1285
    %1299 = vrot.lane.b32.xlu0 %v1296, 96
    %v1300 = vpop.permute.xlu0 %1299
    %v1302 = vmul.f32 %v1297, %v1300
    %v1303 = vmul.f32 %v1285, %v420
    %v1304 = vadd.f32 %v1302, %v1303
    %1306 = vrot.lane.b32.xlu0 %v606, 96
    %v1307 = vpop.permute.xlu0 %1306
    %v1308 = vsel %vm241, %v1307, 0
    %1310 = vmatprep.subr.mxu0 0.0
    %1311 = vmatpush1.msra.mxu0 0.0
    %1312 = vmatprep.subr.mxu0 0.0
    %1313 = vmatpush1.msra.mxu0 0.0
    %1314 = vmatprep.subr.mxu0 0.0
    %1315 = vmatpush1.msra.mxu0 0.0
    %1316 = vmatprep.subr.mxu0 0.0
    %1317 = vmatpush1.msra.mxu0 0.0
    %1318 = vmatprep.subr.mxu0 0.0
    %1319 = vmatpush1.msra.mxu0 0.0
    %1320 = vmatprep.subr.mxu0 0.0
    %1321 = vmatpush1.msra.mxu0 0.0
    %1322 = vmatprep.subr.mxu0 0.0
    %1323 = vmatpush1.msra.mxu0 0.0
    %1324 = vmatprep.subr.mxu0 0.0
    %1325 = vmatpush1.msra.mxu0 0.0
    %1326 = vmatprep.subr.mxu0 0.0
    %1327 = vmatpush1.msra.mxu0 0.0
    %1328 = vmatprep.subr.mxu0 0.0
    %1329 = vmatpush1.msra.mxu0 0.0
    %1330 = vmatprep.subr.mxu0 0.0
    %1331 = vmatpush1.msra.mxu0 0.0
    %1332 = vmatprep.subr.mxu0 0.0
    %1333 = vmatpush1.msra.mxu0 0.0
    %1334 = vmatprep.subr.mxu0 0.0
    %1335 = vmatpush1.msra.mxu0 %v428
    %1336 = vmatprep.subr.mxu0 0.0
    %1337 = vmatpush1.msra.mxu0 %v427
    %1338 = vmatprep.subr.mxu0 0.0
    %1339 = vmatpush1.msra.mxu0 %v426
    %1340 = vmatprep.subr.mxu0 0.0
    %1341 = vmatpush1.msra.mxu0 %v425
    %1342 = vmatprep.subr.mxu0 0.0
    %1343 = vmatpush2.msra.mxu0 0.0
    %1344 = vmatprep.subr.mxu0 0.0
    %1345 = vmatpush2.msra.mxu0 0.0
    %1346 = vmatprep.subr.mxu0 0.0
    %1347 = vmatpush2.msra.mxu0 0.0
    %1348 = vmatprep.subr.mxu0 0.0
    %1349 = vmatpush2.msra.mxu0 0.0
    %1350 = vmatprep.subr.mxu0 0.0
    %1351 = vmatpush2.msra.mxu0 0.0
    %1352 = vmatprep.subr.mxu0 0.0
    %1353 = vmatpush2.msra.mxu0 0.0
    %1354 = vmatprep.subr.mxu0 0.0
    %1355 = vmatpush2.msra.mxu0 0.0
    %1356 = vmatprep.subr.mxu0 0.0
    %1357 = vmatpush2.msra.mxu0 0.0
    %1358 = vmatprep.subr.mxu0 0.0
    %1359 = vmatpush2.msra.mxu0 0.0
    %1360 = vmatprep.subr.mxu0 0.0
    %1361 = vmatpush2.msra.mxu0 0.0
    %1362 = vmatprep.subr.mxu0 0.0
    %1363 = vmatpush2.msra.mxu0 0.0
    %1364 = vmatprep.subr.mxu0 0.0
    %1365 = vmatpush2.msra.mxu0 0.0
    %1366 = vmatprep.subr.mxu0 0.0
    %1367 = vmatpush2.msra.mxu0 0.0
    %1368 = vmatprep.subr.mxu0 0.0
    %1369 = vmatpush2.msra.mxu0 0.0
    %1370 = vmatprep.subr.mxu0 0.0
    %1371 = vmatpush2.msra.mxu0 0.0
    %1372 = vmatprep.subr.mxu0 0.0
    %1373 = vmatpush2.msra.mxu0 0.0
    %1374 = vmatprep.mubr.f32.mxu0 0.0
    %1375 = vmatmul.mubr.f32.gmra.mxu0 %v1308
    %v1376 = vpop.f32.mrf.mxu0
    %v1377 = vadd.f32 0.0, %v1376
    %v1378 = vpop.f32.mrf.mxu0
    %1379 = vdwg.mxu0
    %1381 = vrot.lane.b32.xlu0 %v1304, 96
    %v1382 = vpop.permute.xlu0 %1381
    %v1383 = vsel %vm241, %v1382, 0
    %1385 = vmatprep.subr.mxu0 0.0
    %1386 = vmatpush1.msra.mxu0 0.0
    %1387 = vmatprep.subr.mxu0 0.0
    %1388 = vmatpush1.msra.mxu0 0.0
    %1389 = vmatprep.subr.mxu0 0.0
    %1390 = vmatpush1.msra.mxu0 0.0
    %1391 = vmatprep.subr.mxu0 0.0
    %1392 = vmatpush1.msra.mxu0 0.0
    %1393 = vmatprep.subr.mxu0 0.0
    %1394 = vmatpush1.msra.mxu0 0.0
    %1395 = vmatprep.subr.mxu0 0.0
    %1396 = vmatpush1.msra.mxu0 0.0
    %1397 = vmatprep.subr.mxu0 0.0
    %1398 = vmatpush1.msra.mxu0 0.0
    %1399 = vmatprep.subr.mxu0 0.0
    %1400 = vmatpush1.msra.mxu0 0.0
    %1401 = vmatprep.subr.mxu0 0.0
    %1402 = vmatpush1.msra.mxu0 0.0
    %1403 = vmatprep.subr.mxu0 0.0
    %1404 = vmatpush1.msra.mxu0 0.0
    %1405 = vmatprep.subr.mxu0 0.0
    %1406 = vmatpush1.msra.mxu0 0.0
    %1407 = vmatprep.subr.mxu0 0.0
    %1408 = vmatpush1.msra.mxu0 0.0
    %1409 = vmatprep.subr.mxu0 0.0
    %1410 = vmatpush1.msra.mxu0 %v424
    %1411 = vmatprep.subr.mxu0 0.0
    %1412 = vmatpush1.msra.mxu0 %v423
    %1413 = vmatprep.subr.mxu0 0.0
    %1414 = vmatpush1.msra.mxu0 %v422
    %1415 = vmatprep.subr.mxu0 0.0
    %1416 = vmatpush1.msra.mxu0 %v421
    %1417 = vmatprep.subr.mxu0 0.0
    %1418 = vmatpush2.msra.mxu0 0.0
    %1419 = vmatprep.subr.mxu0 0.0
    %1420 = vmatpush2.msra.mxu0 0.0
    %1421 = vmatprep.subr.mxu0 0.0
    %1422 = vmatpush2.msra.mxu0 0.0
    %1423 = vmatprep.subr.mxu0 0.0
    %1424 = vmatpush2.msra.mxu0 0.0
    %1425 = vmatprep.subr.mxu0 0.0
    %1426 = vmatpush2.msra.mxu0 0.0
    %1427 = vmatprep.subr.mxu0 0.0
    %1428 = vmatpush2.msra.mxu0 0.0
    %1429 = vmatprep.subr.mxu0 0.0
    %1430 = vmatpush2.msra.mxu0 0.0
    %1431 = vmatprep.subr.mxu0 0.0
    %1432 = vmatpush2.msra.mxu0 0.0
    %1433 = vmatprep.subr.mxu0 0.0
    %1434 = vmatpush2.msra.mxu0 0.0
    %1435 = vmatprep.subr.mxu0 0.0
    %1436 = vmatpush2.msra.mxu0 0.0
    %1437 = vmatprep.subr.mxu0 0.0
    %1438 = vmatpush2.msra.mxu0 0.0
    %1439 = vmatprep.subr.mxu0 0.0
    %1440 = vmatpush2.msra.mxu0 0.0
    %1441 = vmatprep.subr.mxu0 0.0
    %1442 = vmatpush2.msra.mxu0 0.0
    %1443 = vmatprep.subr.mxu0 0.0
    %1444 = vmatpush2.msra.mxu0 0.0
    %1445 = vmatprep.subr.mxu0 0.0
    %1446 = vmatpush2.msra.mxu0 0.0
    %1447 = vmatprep.subr.mxu0 0.0
    %1448 = vmatpush2.msra.mxu0 0.0
    %1449 = vmatprep.mubr.f32.mxu0 0.0
    %1450 = vmatmul.mubr.f32.gmra.mxu0 %v1383
    %v1451 = vpop.f32.mrf.mxu0
    %v1452 = vadd.f32 %v1377, %v1451
    %v1453 = vpop.f32.mrf.mxu0
    %1454 = vdwg.mxu0
    %v1455 = vadd.f32 %v1452, %v579
    %v1456 = vxor.u32 %v1455, 2147483648
    %v1457 = vmul.f32 %v1456, 1.442695
    %v1458 = vpow.pop %v1457
    %v1459 = vadd.f32 %v1458, 1.0
    %v1460 = vrcp.pop %v1459
    %v1461 = vmul.f32 1.0, %v1460
    %1463 = vrot.lane.b32.xlu0 %v1455, 32
    %v1464 = vpop.permute.xlu0 %1463
    %v1466 = vmul.f32 %v1461, %v1464
    %1468 = vrot.lane.b32.xlu0 %v1466, 64
    %v1469 = vpop.permute.xlu0 %1468
    %v1471 = vadd.f32 %v1455, %v1469
    %v1472 = vtanh.pop %v1471
    %v1473 = vsub.f32 1.0, %v1461
    %1475 = vrot.lane.b32.xlu0 %v1472, 96
    %v1476 = vpop.permute.xlu0 %1475
    %v1478 = vmul.f32 %v1473, %v1476
    %v1479 = vmul.f32 %v1461, %v606
    %v1480 = vadd.f32 %v1478, %v1479
    %1481 = vset.pattern.permute.xlu0 1
    %1482 = vperm.xlu0 %1481, %v607
    %v1483 = vpop.permute.xlu0 %1482
    %vm1484 = vcmp.eq.s32.totalorder %v1483, %v140
    %v1485 = vsel %vm1484, 1, 0
    %v1486 = vcvt.s32.f32 %v1485
    %v1488 = vsel %vm155, %v1486, 0
    %1490 = vmatprep.subr.mxu0 0.0
    %1491 = vmatpush1.msra.mxu0 0.0
    %1492 = vmatprep.subr.mxu0 0.0
    %1493 = vmatpush1.msra.mxu0 0.0
    %1494 = vmatprep.subr.mxu0 0.0
    %1495 = vmatpush1.msra.mxu0 0.0
    %1496 = vmatprep.subr.mxu0 0.0
    %1497 = vmatpush1.msra.mxu0 0.0
    %1498 = vmatprep.subr.mxu0 0.0
    %1499 = vmatpush1.msra.mxu0 0.0
    %1500 = vmatprep.subr.mxu0 0.0
    %1501 = vmatpush1.msra.mxu0 0.0
    %1502 = vmatprep.subr.mxu0 0.0
    %1503 = vmatpush1.msra.mxu0 0.0
    %1504 = vmatprep.subr.mxu0 0.0
    %1505 = vmatpush1.msra.mxu0 0.0
    %1506 = vmatprep.subr.mxu0 0.0
    %1507 = vmatpush1.msra.mxu0 0.0
    %1508 = vmatprep.subr.mxu0 0.0
    %1509 = vmatpush1.msra.mxu0 %v161
    %1510 = vmatprep.subr.mxu0 0.0
    %1511 = vmatpush1.msra.mxu0 %v153
    %1512 = vmatprep.subr.mxu0 0.0
    %1513 = vmatpush1.msra.mxu0 %v152
    %1514 = vmatprep.subr.mxu0 0.0
    %1515 = vmatpush1.msra.mxu0 %v151
    %1516 = vmatprep.subr.mxu0 0.0
    %1517 = vmatpush1.msra.mxu0 %v150
    %1518 = vmatprep.subr.mxu0 0.0
    %1519 = vmatpush1.msra.mxu0 %v149
    %1520 = vmatprep.subr.mxu0 0.0
    %1521 = vmatpush1.msra.mxu0 %v148
    %1522 = vmatprep.subr.mxu0 0.0
    %1523 = vmatpush2.msra.mxu0 0.0
    %1524 = vmatprep.subr.mxu0 0.0
    %1525 = vmatpush2.msra.mxu0 0.0
    %1526 = vmatprep.subr.mxu0 0.0
    %1527 = vmatpush2.msra.mxu0 0.0
    %1528 = vmatprep.subr.mxu0 0.0
    %1529 = vmatpush2.msra.mxu0 0.0
    %1530 = vmatprep.subr.mxu0 0.0
    %1531 = vmatpush2.msra.mxu0 0.0
    %1532 = vmatprep.subr.mxu0 0.0
    %1533 = vmatpush2.msra.mxu0 0.0
    %1534 = vmatprep.subr.mxu0 0.0
    %1535 = vmatpush2.msra.mxu0 0.0
    %1536 = vmatprep.subr.mxu0 0.0
    %1537 = vmatpush2.msra.mxu0 0.0
    %1538 = vmatprep.subr.mxu0 0.0
    %1539 = vmatpush2.msra.mxu0 0.0
    %1540 = vmatprep.subr.mxu0 0.0
    %1541 = vmatpush2.msra.mxu0 0.0
    %1542 = vmatprep.subr.mxu0 0.0
    %1543 = vmatpush2.msra.mxu0 0.0
    %1544 = vmatprep.subr.mxu0 0.0
    %1545 = vmatpush2.msra.mxu0 0.0
    %1546 = vmatprep.subr.mxu0 0.0
    %1547 = vmatpush2.msra.mxu0 0.0
    %1548 = vmatprep.subr.mxu0 0.0
    %1549 = vmatpush2.msra.mxu0 0.0
    %1550 = vmatprep.subr.mxu0 0.0
    %1551 = vmatpush2.msra.mxu0 0.0
    %1552 = vmatprep.subr.mxu0 0.0
    %1553 = vmatpush2.msra.mxu0 0.0
    %1554 = vmatprep.mubr.f32.mxu0 0.0
    %1555 = vmatmul.mubr.f32.gmra.mxu0 %v1488
    %v1556 = vpop.f32.mrf.mxu0
    %v1557 = vadd.f32 0.0, %v1556
    %v1558 = vpop.f32.mrf.mxu0
    %1559 = vdwg.mxu0
    %1560 = vmatprep.subr.mxu0 0.0
    %1561 = vmatpush1.msra.mxu0 0.0
    %1562 = vmatprep.subr.mxu0 0.0
    %1563 = vmatpush1.msra.mxu0 0.0
    %1564 = vmatprep.subr.mxu0 0.0
    %1565 = vmatpush1.msra.mxu0 0.0
    %1566 = vmatprep.subr.mxu0 0.0
    %1567 = vmatpush1.msra.mxu0 0.0
    %1568 = vmatprep.subr.mxu0 0.0
    %1569 = vmatpush1.msra.mxu0 0.0
    %1570 = vmatprep.subr.mxu0 0.0
    %1571 = vmatpush1.msra.mxu0 0.0
    %1572 = vmatprep.subr.mxu0 0.0
    %1573 = vmatpush1.msra.mxu0 0.0
    %1574 = vmatprep.subr.mxu0 0.0
    %1575 = vmatpush1.msra.mxu0 0.0
    %1576 = vmatprep.subr.mxu0 0.0
    %1577 = vmatpush1.msra.mxu0 0.0
    %1578 = vmatprep.subr.mxu0 0.0
    %1579 = vmatpush1.msra.mxu0 0.0
    %1580 = vmatprep.subr.mxu0 0.0
    %1581 = vmatpush1.msra.mxu0 0.0
    %1582 = vmatprep.subr.mxu0 0.0
    %1583 = vmatpush1.msra.mxu0 0.0
    %1584 = vmatprep.subr.mxu0 0.0
    %1585 = vmatpush1.msra.mxu0 %v694
    %1586 = vmatprep.subr.mxu0 0.0
    %1587 = vmatpush1.msra.mxu0 %v693
    %1588 = vmatprep.subr.mxu0 0.0
    %1589 = vmatpush1.msra.mxu0 %v692
    %1590 = vmatprep.subr.mxu0 0.0
    %1591 = vmatpush1.msra.mxu0 %v691
    %1592 = vmatprep.subr.mxu0 0.0
    %1593 = vmatpush2.msra.mxu0 0.0
    %1594 = vmatprep.subr.mxu0 0.0
    %1595 = vmatpush2.msra.mxu0 0.0
    %1596 = vmatprep.subr.mxu0 0.0
    %1597 = vmatpush2.msra.mxu0 0.0
    %1598 = vmatprep.subr.mxu0 0.0
    %1599 = vmatpush2.msra.mxu0 0.0
    %1600 = vmatprep.subr.mxu0 0.0
    %1601 = vmatpush2.msra.mxu0 0.0
    %1602 = vmatprep.subr.mxu0 0.0
    %1603 = vmatpush2.msra.mxu0 0.0
    %1604 = vmatprep.subr.mxu0 0.0
    %1605 = vmatpush2.msra.mxu0 0.0
    %1606 = vmatprep.subr.mxu0 0.0
    %1607 = vmatpush2.msra.mxu0 0.0
    %1608 = vmatprep.subr.mxu0 0.0
    %1609 = vmatpush2.msra.mxu0 0.0
    %1610 = vmatprep.subr.mxu0 0.0
    %1611 = vmatpush2.msra.mxu0 0.0
    %1612 = vmatprep.subr.mxu0 0.0
    %1613 = vmatpush2.msra.mxu0 0.0
    %1614 = vmatprep.subr.mxu0 0.0
    %1615 = vmatpush2.msra.mxu0 0.0
    %1616 = vmatprep.subr.mxu0 0.0
    %1617 = vmatpush2.msra.mxu0 0.0
    %1618 = vmatprep.subr.mxu0 0.0
    %1619 = vmatpush2.msra.mxu0 0.0
    %1620 = vmatprep.subr.mxu0 0.0
    %1621 = vmatpush2.msra.mxu0 0.0
    %1622 = vmatprep.subr.mxu0 0.0
    %1623 = vmatpush2.msra.mxu0 0.0
    %1624 = vmatprep.mubr.f32.mxu0 0.0
    %1625 = vmatmul.mubr.f32.gmra.mxu0 %v952
    %v1626 = vpop.f32.mrf.mxu0
    %v1627 = vadd.f32 0.0, %v1626
    %v1628 = vpop.f32.mrf.mxu0
    %1629 = vdwg.mxu0
    %v1631 = vsel %vm241, %v1557, 0
    %1633 = vmatprep.subr.mxu0 0.0
    %1634 = vmatpush1.msra.mxu0 0.0
    %1635 = vmatprep.subr.mxu0 0.0
    %1636 = vmatpush1.msra.mxu0 0.0
    %1637 = vmatprep.subr.mxu0 0.0
    %1638 = vmatpush1.msra.mxu0 0.0
    %1639 = vmatprep.subr.mxu0 0.0
    %1640 = vmatpush1.msra.mxu0 0.0
    %1641 = vmatprep.subr.mxu0 0.0
    %1642 = vmatpush1.msra.mxu0 0.0
    %1643 = vmatprep.subr.mxu0 0.0
    %1644 = vmatpush1.msra.mxu0 0.0
    %1645 = vmatprep.subr.mxu0 0.0
    %1646 = vmatpush1.msra.mxu0 0.0
    %1647 = vmatprep.subr.mxu0 0.0
    %1648 = vmatpush1.msra.mxu0 0.0
    %1649 = vmatprep.subr.mxu0 0.0
    %1650 = vmatpush1.msra.mxu0 0.0
    %1651 = vmatprep.subr.mxu0 0.0
    %1652 = vmatpush1.msra.mxu0 0.0
    %1653 = vmatprep.subr.mxu0 0.0
    %1654 = vmatpush1.msra.mxu0 0.0
    %1655 = vmatprep.subr.mxu0 0.0
    %1656 = vmatpush1.msra.mxu0 0.0
    %1657 = vmatprep.subr.mxu0 0.0
    %1658 = vmatpush1.msra.mxu0 %v690
    %1659 = vmatprep.subr.mxu0 0.0
    %1660 = vmatpush1.msra.mxu0 %v689
    %1661 = vmatprep.subr.mxu0 0.0
    %1662 = vmatpush1.msra.mxu0 %v688
    %1663 = vmatprep.subr.mxu0 0.0
    %1664 = vmatpush1.msra.mxu0 %v687
    %1665 = vmatprep.subr.mxu0 0.0
    %1666 = vmatpush2.msra.mxu0 0.0
    %1667 = vmatprep.subr.mxu0 0.0
    %1668 = vmatpush2.msra.mxu0 0.0
    %1669 = vmatprep.subr.mxu0 0.0
    %1670 = vmatpush2.msra.mxu0 0.0
    %1671 = vmatprep.subr.mxu0 0.0
    %1672 = vmatpush2.msra.mxu0 0.0
    %1673 = vmatprep.subr.mxu0 0.0
    %1674 = vmatpush2.msra.mxu0 0.0
    %1675 = vmatprep.subr.mxu0 0.0
    %1676 = vmatpush2.msra.mxu0 0.0
    %1677 = vmatprep.subr.mxu0 0.0
    %1678 = vmatpush2.msra.mxu0 0.0
    %1679 = vmatprep.subr.mxu0 0.0
    %1680 = vmatpush2.msra.mxu0 0.0
    %1681 = vmatprep.subr.mxu0 0.0
    %1682 = vmatpush2.msra.mxu0 0.0
    %1683 = vmatprep.subr.mxu0 0.0
    %1684 = vmatpush2.msra.mxu0 0.0
    %1685 = vmatprep.subr.mxu0 0.0
    %1686 = vmatpush2.msra.mxu0 0.0
    %1687 = vmatprep.subr.mxu0 0.0
    %1688 = vmatpush2.msra.mxu0 0.0
    %1689 = vmatprep.subr.mxu0 0.0
    %1690 = vmatpush2.msra.mxu0 0.0
    %1691 = vmatprep.subr.mxu0 0.0
    %1692 = vmatpush2.msra.mxu0 0.0
    %1693 = vmatprep.subr.mxu0 0.0
    %1694 = vmatpush2.msra.mxu0 0.0
    %1695 = vmatprep.subr.mxu0 0.0
    %1696 = vmatpush2.msra.mxu0 0.0
    %1697 = vmatprep.mubr.f32.mxu0 0.0
    %1698 = vmatmul.mubr.f32.gmra.mxu0 %v1631
    %v1699 = vpop.f32.mrf.mxu0
    %v1700 = vadd.f32 %v1627, %v1699
    %v1701 = vpop.f32.mrf.mxu0
    %1702 = vdwg.mxu0
    %v1703 = vadd.f32 %v1700, %v843
    %v1704 = vxor.u32 %v1703, 2147483648
    %v1705 = vmul.f32 %v1704, 1.442695
    %v1706 = vpow.pop %v1705
    %v1707 = vadd.f32 %v1706, 1.0
    %v1708 = vrcp.pop %v1707
    %v1709 = vmul.f32 1.0, %v1708
    %1711 = vrot.lane.b32.xlu0 %v1703, 32
    %v1712 = vpop.permute.xlu0 %1711
    %v1714 = vmul.f32 %v1709, %v1712
    %1716 = vrot.lane.b32.xlu0 %v1714, 64
    %v1717 = vpop.permute.xlu0 %1716
    %v1719 = vadd.f32 %v1703, %v1717
    %v1720 = vtanh.pop %v1719
    %v1721 = vsub.f32 1.0, %v1709
    %1723 = vrot.lane.b32.xlu0 %v1720, 96
    %v1724 = vpop.permute.xlu0 %1723
    %v1726 = vmul.f32 %v1721, %v1724
    %v1727 = vmul.f32 %v1709, %v870
    %v1728 = vadd.f32 %v1726, %v1727
    %1730 = vrot.lane.b32.xlu0 %v1056, 96
    %v1731 = vpop.permute.xlu0 %1730
    %v1732 = vsel %vm241, %v1731, 0
    %1734 = vmatprep.subr.mxu0 0.0
    %1735 = vmatpush1.msra.mxu0 0.0
    %1736 = vmatprep.subr.mxu0 0.0
    %1737 = vmatpush1.msra.mxu0 0.0
    %1738 = vmatprep.subr.mxu0 0.0
    %1739 = vmatpush1.msra.mxu0 0.0
    %1740 = vmatprep.subr.mxu0 0.0
    %1741 = vmatpush1.msra.mxu0 0.0
    %1742 = vmatprep.subr.mxu0 0.0
    %1743 = vmatpush1.msra.mxu0 0.0
    %1744 = vmatprep.subr.mxu0 0.0
    %1745 = vmatpush1.msra.mxu0 0.0
    %1746 = vmatprep.subr.mxu0 0.0
    %1747 = vmatpush1.msra.mxu0 0.0
    %1748 = vmatprep.subr.mxu0 0.0
    %1749 = vmatpush1.msra.mxu0 0.0
    %1750 = vmatprep.subr.mxu0 0.0
    %1751 = vmatpush1.msra.mxu0 0.0
    %1752 = vmatprep.subr.mxu0 0.0
    %1753 = vmatpush1.msra.mxu0 0.0
    %1754 = vmatprep.subr.mxu0 0.0
    %1755 = vmatpush1.msra.mxu0 0.0
    %1756 = vmatprep.subr.mxu0 0.0
    %1757 = vmatpush1.msra.mxu0 0.0
    %1758 = vmatprep.subr.mxu0 0.0
    %1759 = vmatpush1.msra.mxu0 %v878
    %1760 = vmatprep.subr.mxu0 0.0
    %1761 = vmatpush1.msra.mxu0 %v877
    %1762 = vmatprep.subr.mxu0 0.0
    %1763 = vmatpush1.msra.mxu0 %v876
    %1764 = vmatprep.subr.mxu0 0.0
    %1765 = vmatpush1.msra.mxu0 %v875
    %1766 = vmatprep.subr.mxu0 0.0
    %1767 = vmatpush2.msra.mxu0 0.0
    %1768 = vmatprep.subr.mxu0 0.0
    %1769 = vmatpush2.msra.mxu0 0.0
    %1770 = vmatprep.subr.mxu0 0.0
    %1771 = vmatpush2.msra.mxu0 0.0
    %1772 = vmatprep.subr.mxu0 0.0
    %1773 = vmatpush2.msra.mxu0 0.0
    %1774 = vmatprep.subr.mxu0 0.0
    %1775 = vmatpush2.msra.mxu0 0.0
    %1776 = vmatprep.subr.mxu0 0.0
    %1777 = vmatpush2.msra.mxu0 0.0
    %1778 = vmatprep.subr.mxu0 0.0
    %1779 = vmatpush2.msra.mxu0 0.0
    %1780 = vmatprep.subr.mxu0 0.0
    %1781 = vmatpush2.msra.mxu0 0.0
    %1782 = vmatprep.subr.mxu0 0.0
    %1783 = vmatpush2.msra.mxu0 0.0
    %1784 = vmatprep.subr.mxu0 0.0
    %1785 = vmatpush2.msra.mxu0 0.0
    %1786 = vmatprep.subr.mxu0 0.0
    %1787 = vmatpush2.msra.mxu0 0.0
    %1788 = vmatprep.subr.mxu0 0.0
    %1789 = vmatpush2.msra.mxu0 0.0
    %1790 = vmatprep.subr.mxu0 0.0
    %1791 = vmatpush2.msra.mxu0 0.0
    %1792 = vmatprep.subr.mxu0 0.0
    %1793 = vmatpush2.msra.mxu0 0.0
    %1794 = vmatprep.subr.mxu0 0.0
    %1795 = vmatpush2.msra.mxu0 0.0
    %1796 = vmatprep.subr.mxu0 0.0
    %1797 = vmatpush2.msra.mxu0 0.0
    %1798 = vmatprep.mubr.f32.mxu0 0.0
    %1799 = vmatmul.mubr.f32.gmra.mxu0 %v1732
    %v1800 = vpop.f32.mrf.mxu0
    %v1801 = vadd.f32 0.0, %v1800
    %v1802 = vpop.f32.mrf.mxu0
    %1803 = vdwg.mxu0
    %1805 = vrot.lane.b32.xlu0 %v1728, 96
    %v1806 = vpop.permute.xlu0 %1805
    %v1807 = vsel %vm241, %v1806, 0
    %1809 = vmatprep.subr.mxu0 0.0
    %1810 = vmatpush1.msra.mxu0 0.0
    %1811 = vmatprep.subr.mxu0 0.0
    %1812 = vmatpush1.msra.mxu0 0.0
    %1813 = vmatprep.subr.mxu0 0.0
    %1814 = vmatpush1.msra.mxu0 0.0
    %1815 = vmatprep.subr.mxu0 0.0
    %1816 = vmatpush1.msra.mxu0 0.0
    %1817 = vmatprep.subr.mxu0 0.0
    %1818 = vmatpush1.msra.mxu0 0.0
    %1819 = vmatprep.subr.mxu0 0.0
    %1820 = vmatpush1.msra.mxu0 0.0
    %1821 = vmatprep.subr.mxu0 0.0
    %1822 = vmatpush1.msra.mxu0 0.0
    %1823 = vmatprep.subr.mxu0 0.0
    %1824 = vmatpush1.msra.mxu0 0.0
    %1825 = vmatprep.subr.mxu0 0.0
    %1826 = vmatpush1.msra.mxu0 0.0
    %1827 = vmatprep.subr.mxu0 0.0
    %1828 = vmatpush1.msra.mxu0 0.0
    %1829 = vmatprep.subr.mxu0 0.0
    %1830 = vmatpush1.msra.mxu0 0.0
    %1831 = vmatprep.subr.mxu0 0.0
    %1832 = vmatpush1.msra.mxu0 0.0
    %1833 = vmatprep.subr.mxu0 0.0
    %1834 = vmatpush1.msra.mxu0 %v874
    %1835 = vmatprep.subr.mxu0 0.0
    %1836 = vmatpush1.msra.mxu0 %v873
    %1837 = vmatprep.subr.mxu0 0.0
    %1838 = vmatpush1.msra.mxu0 %v872
    %1839 = vmatprep.subr.mxu0 0.0
    %1840 = vmatpush1.msra.mxu0 %v871
    %1841 = vmatprep.subr.mxu0 0.0
    %1842 = vmatpush2.msra.mxu0 0.0
    %1843 = vmatprep.subr.mxu0 0.0
    %1844 = vmatpush2.msra.mxu0 0.0
    %1845 = vmatprep.subr.mxu0 0.0
    %1846 = vmatpush2.msra.mxu0 0.0
    %1847 = vmatprep.subr.mxu0 0.0
    %1848 = vmatpush2.msra.mxu0 0.0
    %1849 = vmatprep.subr.mxu0 0.0
    %1850 = vmatpush2.msra.mxu0 0.0
    %1851 = vmatprep.subr.mxu0 0.0
    %1852 = vmatpush2.msra.mxu0 0.0
    %1853 = vmatprep.subr.mxu0 0.0
    %1854 = vmatpush2.msra.mxu0 0.0
    %1855 = vmatprep.subr.mxu0 0.0
    %1856 = vmatpush2.msra.mxu0 0.0
    %1857 = vmatprep.subr.mxu0 0.0
    %1858 = vmatpush2.msra.mxu0 0.0
    %1859 = vmatprep.subr.mxu0 0.0
    %1860 = vmatpush2.msra.mxu0 0.0
    %1861 = vmatprep.subr.mxu0 0.0
    %1862 = vmatpush2.msra.mxu0 0.0
    %1863 = vmatprep.subr.mxu0 0.0
    %1864 = vmatpush2.msra.mxu0 0.0
    %1865 = vmatprep.subr.mxu0 0.0
    %1866 = vmatpush2.msra.mxu0 0.0
    %1867 = vmatprep.subr.mxu0 0.0
    %1868 = vmatpush2.msra.mxu0 0.0
    %1869 = vmatprep.subr.mxu0 0.0
    %1870 = vmatpush2.msra.mxu0 0.0
    %1871 = vmatprep.subr.mxu0 0.0
    %1872 = vmatpush2.msra.mxu0 0.0
    %1873 = vmatprep.mubr.f32.mxu0 0.0
    %1874 = vmatmul.mubr.f32.gmra.mxu0 %v1807
    %v1875 = vpop.f32.mrf.mxu0
    %v1876 = vadd.f32 %v1801, %v1875
    %v1877 = vpop.f32.mrf.mxu0
    %1878 = vdwg.mxu0
    %v1879 = vadd.f32 %v1876, %v1029
    %v1880 = vxor.u32 %v1879, 2147483648
    %v1881 = vmul.f32 %v1880, 1.442695
    %v1882 = vpow.pop %v1881
    %v1883 = vadd.f32 %v1882, 1.0
    %v1884 = vrcp.pop %v1883
    %v1885 = vmul.f32 1.0, %v1884
    %1887 = vrot.lane.b32.xlu0 %v1879, 32
    %v1888 = vpop.permute.xlu0 %1887
    %v1890 = vmul.f32 %v1885, %v1888
    %1892 = vrot.lane.b32.xlu0 %v1890, 64
    %v1893 = vpop.permute.xlu0 %1892
    %v1895 = vadd.f32 %v1879, %v1893
    %v1896 = vtanh.pop %v1895
    %v1897 = vsub.f32 1.0, %v1885
    %1899 = vrot.lane.b32.xlu0 %v1896, 96
    %v1900 = vpop.permute.xlu0 %1899
    %v1902 = vmul.f32 %v1897, %v1900
    %v1903 = vmul.f32 %v1885, %v1056
    %v1904 = vadd.f32 %v1902, %v1903
    %1905 = vset.pattern.permute.xlu0 2
    %1906 = vperm.xlu0 %1905, %v141
    %v1907 = vpop.permute.xlu0 %1906
    %vm1908 = vcmp.eq.s32.totalorder %v1907, %v140
    %v1909 = vsel %vm1908, 1, 0
    %v1910 = vcvt.s32.f32 %v1909
    %v1912 = vsel %vm155, %v1910, 0
    %1914 = vmatprep.subr.mxu0 0.0
    %1915 = vmatpush1.msra.mxu0 0.0
    %1916 = vmatprep.subr.mxu0 0.0
    %1917 = vmatpush1.msra.mxu0 0.0
    %1918 = vmatprep.subr.mxu0 0.0
    %1919 = vmatpush1.msra.mxu0 0.0
    %1920 = vmatprep.subr.mxu0 0.0
    %1921 = vmatpush1.msra.mxu0 0.0
    %1922 = vmatprep.subr.mxu0 0.0
    %1923 = vmatpush1.msra.mxu0 0.0
    %1924 = vmatprep.subr.mxu0 0.0
    %1925 = vmatpush1.msra.mxu0 0.0
    %1926 = vmatprep.subr.mxu0 0.0
    %1927 = vmatpush1.msra.mxu0 0.0
    %1928 = vmatprep.subr.mxu0 0.0
    %1929 = vmatpush1.msra.mxu0 0.0
    %1930 = vmatprep.subr.mxu0 0.0
    %1931 = vmatpush1.msra.mxu0 0.0
    %1932 = vmatprep.subr.mxu0 0.0
    %1933 = vmatpush1.msra.mxu0 %v161
    %1934 = vmatprep.subr.mxu0 0.0
    %1935 = vmatpush1.msra.mxu0 %v153
    %1936 = vmatprep.subr.mxu0 0.0
    %1937 = vmatpush1.msra.mxu0 %v152
    %1938 = vmatprep.subr.mxu0 0.0
    %1939 = vmatpush1.msra.mxu0 %v151
    %1940 = vmatprep.subr.mxu0 0.0
    %1941 = vmatpush1.msra.mxu0 %v150
    %1942 = vmatprep.subr.mxu0 0.0
    %1943 = vmatpush1.msra.mxu0 %v149
    %1944 = vmatprep.subr.mxu0 0.0
    %1945 = vmatpush1.msra.mxu0 %v148
    %1946 = vmatprep.subr.mxu0 0.0
    %1947 = vmatpush2.msra.mxu0 0.0
    %1948 = vmatprep.subr.mxu0 0.0
    %1949 = vmatpush2.msra.mxu0 0.0
    %1950 = vmatprep.subr.mxu0 0.0
    %1951 = vmatpush2.msra.mxu0 0.0
    %1952 = vmatprep.subr.mxu0 0.0
    %1953 = vmatpush2.msra.mxu0 0.0
    %1954 = vmatprep.subr.mxu0 0.0
    %1955 = vmatpush2.msra.mxu0 0.0
    %1956 = vmatprep.subr.mxu0 0.0
    %1957 = vmatpush2.msra.mxu0 0.0
    %1958 = vmatprep.subr.mxu0 0.0
    %1959 = vmatpush2.msra.mxu0 0.0
    %1960 = vmatprep.subr.mxu0 0.0
    %1961 = vmatpush2.msra.mxu0 0.0
    %1962 = vmatprep.subr.mxu0 0.0
    %1963 = vmatpush2.msra.mxu0 0.0
    %1964 = vmatprep.subr.mxu0 0.0
    %1965 = vmatpush2.msra.mxu0 0.0
    %1966 = vmatprep.subr.mxu0 0.0
    %1967 = vmatpush2.msra.mxu0 0.0
    %1968 = vmatprep.subr.mxu0 0.0
    %1969 = vmatpush2.msra.mxu0 0.0
    %1970 = vmatprep.subr.mxu0 0.0
    %1971 = vmatpush2.msra.mxu0 0.0
    %1972 = vmatprep.subr.mxu0 0.0
    %1973 = vmatpush2.msra.mxu0 0.0
    %1974 = vmatprep.subr.mxu0 0.0
    %1975 = vmatpush2.msra.mxu0 0.0
    %1976 = vmatprep.subr.mxu0 0.0
    %1977 = vmatpush2.msra.mxu0 0.0
    %1978 = vmatprep.mubr.f32.mxu0 0.0
    %1979 = vmatmul.mubr.f32.gmra.mxu0 %v1912
    %v1980 = vpop.f32.mrf.mxu0
    %v1981 = vadd.f32 0.0, %v1980
    %v1982 = vpop.f32.mrf.mxu0
    %1983 = vdwg.mxu0
    %1984 = vmatprep.subr.mxu0 0.0
    %1985 = vmatpush1.msra.mxu0 0.0
    %1986 = vmatprep.subr.mxu0 0.0
    %1987 = vmatpush1.msra.mxu0 0.0
    %1988 = vmatprep.subr.mxu0 0.0
    %1989 = vmatpush1.msra.mxu0 0.0
    %1990 = vmatprep.subr.mxu0 0.0
    %1991 = vmatpush1.msra.mxu0 0.0
    %1992 = vmatprep.subr.mxu0 0.0
    %1993 = vmatpush1.msra.mxu0 0.0
    %1994 = vmatprep.subr.mxu0 0.0
    %1995 = vmatpush1.msra.mxu0 0.0
    %1996 = vmatprep.subr.mxu0 0.0
    %1997 = vmatpush1.msra.mxu0 0.0
    %1998 = vmatprep.subr.mxu0 0.0
    %1999 = vmatpush1.msra.mxu0 0.0
    %2000 = vmatprep.subr.mxu0 0.0
    %2001 = vmatpush1.msra.mxu0 0.0
    %2002 = vmatprep.subr.mxu0 0.0
    %2003 = vmatpush1.msra.mxu0 0.0
    %2004 = vmatprep.subr.mxu0 0.0
    %2005 = vmatpush1.msra.mxu0 0.0
    %2006 = vmatprep.subr.mxu0 0.0
    %2007 = vmatpush1.msra.mxu0 0.0
    %2008 = vmatprep.subr.mxu0 0.0
    %2009 = vmatpush1.msra.mxu0 %v240
    %2010 = vmatprep.subr.mxu0 0.0
    %2011 = vmatpush1.msra.mxu0 %v239
    %2012 = vmatprep.subr.mxu0 0.0
    %2013 = vmatpush1.msra.mxu0 %v238
    %2014 = vmatprep.subr.mxu0 0.0
    %2015 = vmatpush1.msra.mxu0 %v237
    %2016 = vmatprep.subr.mxu0 0.0
    %2017 = vmatpush2.msra.mxu0 0.0
    %2018 = vmatprep.subr.mxu0 0.0
    %2019 = vmatpush2.msra.mxu0 0.0
    %2020 = vmatprep.subr.mxu0 0.0
    %2021 = vmatpush2.msra.mxu0 0.0
    %2022 = vmatprep.subr.mxu0 0.0
    %2023 = vmatpush2.msra.mxu0 0.0
    %2024 = vmatprep.subr.mxu0 0.0
    %2025 = vmatpush2.msra.mxu0 0.0
    %2026 = vmatprep.subr.mxu0 0.0
    %2027 = vmatpush2.msra.mxu0 0.0
    %2028 = vmatprep.subr.mxu0 0.0
    %2029 = vmatpush2.msra.mxu0 0.0
    %2030 = vmatprep.subr.mxu0 0.0
    %2031 = vmatpush2.msra.mxu0 0.0
    %2032 = vmatprep.subr.mxu0 0.0
    %2033 = vmatpush2.msra.mxu0 0.0
    %2034 = vmatprep.subr.mxu0 0.0
    %2035 = vmatpush2.msra.mxu0 0.0
    %2036 = vmatprep.subr.mxu0 0.0
    %2037 = vmatpush2.msra.mxu0 0.0
    %2038 = vmatprep.subr.mxu0 0.0
    %2039 = vmatpush2.msra.mxu0 0.0
    %2040 = vmatprep.subr.mxu0 0.0
    %2041 = vmatpush2.msra.mxu0 0.0
    %2042 = vmatprep.subr.mxu0 0.0
    %2043 = vmatpush2.msra.mxu0 0.0
    %2044 = vmatprep.subr.mxu0 0.0
    %2045 = vmatpush2.msra.mxu0 0.0
    %2046 = vmatprep.subr.mxu0 0.0
    %2047 = vmatpush2.msra.mxu0 0.0
    %2048 = vmatprep.mubr.f32.mxu0 0.0
    %2049 = vmatmul.mubr.f32.gmra.mxu0 %v1383
    %v2050 = vpop.f32.mrf.mxu0
    %v2051 = vadd.f32 0.0, %v2050
    %v2052 = vpop.f32.mrf.mxu0
    %2053 = vdwg.mxu0
    %v2055 = vsel %vm241, %v1981, 0
    %2057 = vmatprep.subr.mxu0 0.0
    %2058 = vmatpush1.msra.mxu0 0.0
    %2059 = vmatprep.subr.mxu0 0.0
    %2060 = vmatpush1.msra.mxu0 0.0
    %2061 = vmatprep.subr.mxu0 0.0
    %2062 = vmatpush1.msra.mxu0 0.0
    %2063 = vmatprep.subr.mxu0 0.0
    %2064 = vmatpush1.msra.mxu0 0.0
    %2065 = vmatprep.subr.mxu0 0.0
    %2066 = vmatpush1.msra.mxu0 0.0
    %2067 = vmatprep.subr.mxu0 0.0
    %2068 = vmatpush1.msra.mxu0 0.0
    %2069 = vmatprep.subr.mxu0 0.0
    %2070 = vmatpush1.msra.mxu0 0.0
    %2071 = vmatprep.subr.mxu0 0.0
    %2072 = vmatpush1.msra.mxu0 0.0
    %2073 = vmatprep.subr.mxu0 0.0
    %2074 = vmatpush1.msra.mxu0 0.0
    %2075 = vmatprep.subr.mxu0 0.0
    %2076 = vmatpush1.msra.mxu0 0.0
    %2077 = vmatprep.subr.mxu0 0.0
    %2078 = vmatpush1.msra.mxu0 0.0
    %2079 = vmatprep.subr.mxu0 0.0
    %2080 = vmatpush1.msra.mxu0 0.0
    %2081 = vmatprep.subr.mxu0 0.0
    %2082 = vmatpush1.msra.mxu0 %v236
    %2083 = vmatprep.subr.mxu0 0.0
    %2084 = vmatpush1.msra.mxu0 %v235
    %2085 = vmatprep.subr.mxu0 0.0
    %2086 = vmatpush1.msra.mxu0 %v234
    %2087 = vmatprep.subr.mxu0 0.0
    %2088 = vmatpush1.msra.mxu0 %v233
    %2089 = vmatprep.subr.mxu0 0.0
    %2090 = vmatpush2.msra.mxu0 0.0
    %2091 = vmatprep.subr.mxu0 0.0
    %2092 = vmatpush2.msra.mxu0 0.0
    %2093 = vmatprep.subr.mxu0 0.0
    %2094 = vmatpush2.msra.mxu0 0.0
    %2095 = vmatprep.subr.mxu0 0.0
    %2096 = vmatpush2.msra.mxu0 0.0
    %2097 = vmatprep.subr.mxu0 0.0
    %2098 = vmatpush2.msra.mxu0 0.0
    %2099 = vmatprep.subr.mxu0 0.0
    %2100 = vmatpush2.msra.mxu0 0.0
    %2101 = vmatprep.subr.mxu0 0.0
    %2102 = vmatpush2.msra.mxu0 0.0
    %2103 = vmatprep.subr.mxu0 0.0
    %2104 = vmatpush2.msra.mxu0 0.0
    %2105 = vmatprep.subr.mxu0 0.0
    %2106 = vmatpush2.msra.mxu0 0.0
    %2107 = vmatprep.subr.mxu0 0.0
    %2108 = vmatpush2.msra.mxu0 0.0
    %2109 = vmatprep.subr.mxu0 0.0
    %2110 = vmatpush2.msra.mxu0 0.0
    %2111 = vmatprep.subr.mxu0 0.0
    %2112 = vmatpush2.msra.mxu0 0.0
    %2113 = vmatprep.subr.mxu0 0.0
    %2114 = vmatpush2.msra.mxu0 0.0
    %2115 = vmatprep.subr.mxu0 0.0
    %2116 = vmatpush2.msra.mxu0 0.0
    %2117 = vmatprep.subr.mxu0 0.0
    %2118 = vmatpush2.msra.mxu0 0.0
    %2119 = vmatprep.subr.mxu0 0.0
    %2120 = vmatpush2.msra.mxu0 0.0
    %2121 = vmatprep.mubr.f32.mxu0 0.0
    %2122 = vmatmul.mubr.f32.gmra.mxu0 %v2055
    %v2123 = vpop.f32.mrf.mxu0
    %v2124 = vadd.f32 %v2051, %v2123
    %v2125 = vpop.f32.mrf.mxu0
    %2126 = vdwg.mxu0
    %v2127 = vadd.f32 %v2124, %v393
    %v2128 = vxor.u32 %v2127, 2147483648
    %v2129 = vmul.f32 %v2128, 1.442695
    %v2130 = vpow.pop %v2129
    %v2131 = vadd.f32 %v2130, 1.0
    %v2132 = vrcp.pop %v2131
    %v2133 = vmul.f32 1.0, %v2132
    %2135 = vrot.lane.b32.xlu0 %v2127, 32
    %v2136 = vpop.permute.xlu0 %2135
    %v2138 = vmul.f32 %v2133, %v2136
    %2140 = vrot.lane.b32.xlu0 %v2138, 64
    %v2141 = vpop.permute.xlu0 %2140
    %v2143 = vadd.f32 %v2127, %v2141
    %v2144 = vtanh.pop %v2143
    %v2145 = vsub.f32 1.0, %v2133
    %2147 = vrot.lane.b32.xlu0 %v2144, 96
    %v2148 = vpop.permute.xlu0 %2147
    %v2150 = vmul.f32 %v2145, %v2148
    %v2151 = vmul.f32 %v2133, %v1304
    %v2152 = vadd.f32 %v2150, %v2151
    %2154 = vrot.lane.b32.xlu0 %v1480, 96
    %v2155 = vpop.permute.xlu0 %2154
    %v2156 = vsel %vm241, %v2155, 0
    %2158 = vmatprep.subr.mxu0 0.0
    %2159 = vmatpush1.msra.mxu0 0.0
    %2160 = vmatprep.subr.mxu0 0.0
    %2161 = vmatpush1.msra.mxu0 0.0
    %2162 = vmatprep.subr.mxu0 0.0
    %2163 = vmatpush1.msra.mxu0 0.0
    %2164 = vmatprep.subr.mxu0 0.0
    %2165 = vmatpush1.msra.mxu0 0.0
    %2166 = vmatprep.subr.mxu0 0.0
    %2167 = vmatpush1.msra.mxu0 0.0
    %2168 = vmatprep.subr.mxu0 0.0
    %2169 = vmatpush1.msra.mxu0 0.0
    %2170 = vmatprep.subr.mxu0 0.0
    %2171 = vmatpush1.msra.mxu0 0.0
    %2172 = vmatprep.subr.mxu0 0.0
    %2173 = vmatpush1.msra.mxu0 0.0
    %2174 = vmatprep.subr.mxu0 0.0
    %2175 = vmatpush1.msra.mxu0 0.0
    %2176 = vmatprep.subr.mxu0 0.0
    %2177 = vmatpush1.msra.mxu0 0.0
    %2178 = vmatprep.subr.mxu0 0.0
    %2179 = vmatpush1.msra.mxu0 0.0
    %2180 = vmatprep.subr.mxu0 0.0
    %2181 = vmatpush1.msra.mxu0 0.0
    %2182 = vmatprep.subr.mxu0 0.0
    %2183 = vmatpush1.msra.mxu0 %v428
    %2184 = vmatprep.subr.mxu0 0.0
    %2185 = vmatpush1.msra.mxu0 %v427
    %2186 = vmatprep.subr.mxu0 0.0
    %2187 = vmatpush1.msra.mxu0 %v426
    %2188 = vmatprep.subr.mxu0 0.0
    %2189 = vmatpush1.msra.mxu0 %v425
    %2190 = vmatprep.subr.mxu0 0.0
    %2191 = vmatpush2.msra.mxu0 0.0
    %2192 = vmatprep.subr.mxu0 0.0
    %2193 = vmatpush2.msra.mxu0 0.0
    %2194 = vmatprep.subr.mxu0 0.0
    %2195 = vmatpush2.msra.mxu0 0.0
    %2196 = vmatprep.subr.mxu0 0.0
    %2197 = vmatpush2.msra.mxu0 0.0
    %2198 = vmatprep.subr.mxu0 0.0
    %2199 = vmatpush2.msra.mxu0 0.0
    %2200 = vmatprep.subr.mxu0 0.0
    %2201 = vmatpush2.msra.mxu0 0.0
    %2202 = vmatprep.subr.mxu0 0.0
    %2203 = vmatpush2.msra.mxu0 0.0
    %2204 = vmatprep.subr.mxu0 0.0
    %2205 = vmatpush2.msra.mxu0 0.0
    %2206 = vmatprep.subr.mxu0 0.0
    %2207 = vmatpush2.msra.mxu0 0.0
    %2208 = vmatprep.subr.mxu0 0.0
    %2209 = vmatpush2.msra.mxu0 0.0
    %2210 = vmatprep.subr.mxu0 0.0
    %2211 = vmatpush2.msra.mxu0 0.0
    %2212 = vmatprep.subr.mxu0 0.0
    %2213 = vmatpush2.msra.mxu0 0.0
    %2214 = vmatprep.subr.mxu0 0.0
    %2215 = vmatpush2.msra.mxu0 0.0
    %2216 = vmatprep.subr.mxu0 0.0
    %2217 = vmatpush2.msra.mxu0 0.0
    %2218 = vmatprep.subr.mxu0 0.0
    %2219 = vmatpush2.msra.mxu0 0.0
    %2220 = vmatprep.subr.mxu0 0.0
    %2221 = vmatpush2.msra.mxu0 0.0
    %2222 = vmatprep.mubr.f32.mxu0 0.0
    %2223 = vmatmul.mubr.f32.gmra.mxu0 %v2156
    %v2224 = vpop.f32.mrf.mxu0
    %v2225 = vadd.f32 0.0, %v2224
    %v2226 = vpop.f32.mrf.mxu0
    %2227 = vdwg.mxu0
    %2229 = vrot.lane.b32.xlu0 %v2152, 96
    %v2230 = vpop.permute.xlu0 %2229
    %v2231 = vsel %vm241, %v2230, 0
    %2233 = vmatprep.subr.mxu0 0.0
    %2234 = vmatpush1.msra.mxu0 0.0
    %2235 = vmatprep.subr.mxu0 0.0
    %2236 = vmatpush1.msra.mxu0 0.0
    %2237 = vmatprep.subr.mxu0 0.0
    %2238 = vmatpush1.msra.mxu0 0.0
    %2239 = vmatprep.subr.mxu0 0.0
    %2240 = vmatpush1.msra.mxu0 0.0
    %2241 = vmatprep.subr.mxu0 0.0
    %2242 = vmatpush1.msra.mxu0 0.0
    %2243 = vmatprep.subr.mxu0 0.0
    %2244 = vmatpush1.msra.mxu0 0.0
    %2245 = vmatprep.subr.mxu0 0.0
    %2246 = vmatpush1.msra.mxu0 0.0
    %2247 = vmatprep.subr.mxu0 0.0
    %2248 = vmatpush1.msra.mxu0 0.0
    %2249 = vmatprep.subr.mxu0 0.0
    %2250 = vmatpush1.msra.mxu0 0.0
    %2251 = vmatprep.subr.mxu0 0.0
    %2252 = vmatpush1.msra.mxu0 0.0
    %2253 = vmatprep.subr.mxu0 0.0
    %2254 = vmatpush1.msra.mxu0 0.0
    %2255 = vmatprep.subr.mxu0 0.0
    %2256 = vmatpush1.msra.mxu0 0.0
    %2257 = vmatprep.subr.mxu0 0.0
    %2258 = vmatpush1.msra.mxu0 %v424
    %2259 = vmatprep.subr.mxu0 0.0
    %2260 = vmatpush1.msra.mxu0 %v423
    %2261 = vmatprep.subr.mxu0 0.0
    %2262 = vmatpush1.msra.mxu0 %v422
    %2263 = vmatprep.subr.mxu0 0.0
    %2264 = vmatpush1.msra.mxu0 %v421
    %2265 = vmatprep.subr.mxu0 0.0
    %2266 = vmatpush2.msra.mxu0 0.0
    %2267 = vmatprep.subr.mxu0 0.0
    %2268 = vmatpush2.msra.mxu0 0.0
    %2269 = vmatprep.subr.mxu0 0.0
    %2270 = vmatpush2.msra.mxu0 0.0
    %2271 = vmatprep.subr.mxu0 0.0
    %2272 = vmatpush2.msra.mxu0 0.0
    %2273 = vmatprep.subr.mxu0 0.0
    %2274 = vmatpush2.msra.mxu0 0.0
    %2275 = vmatprep.subr.mxu0 0.0
    %2276 = vmatpush2.msra.mxu0 0.0
    %2277 = vmatprep.subr.mxu0 0.0
    %2278 = vmatpush2.msra.mxu0 0.0
    %2279 = vmatprep.subr.mxu0 0.0
    %2280 = vmatpush2.msra.mxu0 0.0
    %2281 = vmatprep.subr.mxu0 0.0
    %2282 = vmatpush2.msra.mxu0 0.0
    %2283 = vmatprep.subr.mxu0 0.0
    %2284 = vmatpush2.msra.mxu0 0.0
    %2285 = vmatprep.subr.mxu0 0.0
    %2286 = vmatpush2.msra.mxu0 0.0
    %2287 = vmatprep.subr.mxu0 0.0
    %2288 = vmatpush2.msra.mxu0 0.0
    %2289 = vmatprep.subr.mxu0 0.0
    %2290 = vmatpush2.msra.mxu0 0.0
    %2291 = vmatprep.subr.mxu0 0.0
    %2292 = vmatpush2.msra.mxu0 0.0
    %2293 = vmatprep.subr.mxu0 0.0
    %2294 = vmatpush2.msra.mxu0 0.0
    %2295 = vmatprep.subr.mxu0 0.0
    %2296 = vmatpush2.msra.mxu0 0.0
    %2297 = vmatprep.mubr.f32.mxu0 0.0
    %2298 = vmatmul.mubr.f32.gmra.mxu0 %v2231
    %v2299 = vpop.f32.mrf.mxu0
    %v2300 = vadd.f32 %v2225, %v2299
    %v2301 = vpop.f32.mrf.mxu0
    %2302 = vdwg.mxu0
    %v2303 = vadd.f32 %v2300, %v579
    %v2304 = vxor.u32 %v2303, 2147483648
    %v2305 = vmul.f32 %v2304, 1.442695
    %v2306 = vpow.pop %v2305
    %v2307 = vadd.f32 %v2306, 1.0
    %v2308 = vrcp.pop %v2307
    %v2309 = vmul.f32 1.0, %v2308
    %2311 = vrot.lane.b32.xlu0 %v2303, 32
    %v2312 = vpop.permute.xlu0 %2311
    %v2314 = vmul.f32 %v2309, %v2312
    %2316 = vrot.lane.b32.xlu0 %v2314, 64
    %v2317 = vpop.permute.xlu0 %2316
    %v2319 = vadd.f32 %v2303, %v2317
    %v2320 = vtanh.pop %v2319
    %v2321 = vsub.f32 1.0, %v2309
    %2323 = vrot.lane.b32.xlu0 %v2320, 96
    %v2324 = vpop.permute.xlu0 %2323
    %v2326 = vmul.f32 %v2321, %v2324
    %v2327 = vmul.f32 %v2309, %v1480
    %v2328 = vadd.f32 %v2326, %v2327
    %2329 = vset.pattern.permute.xlu0 2
    %2330 = vperm.xlu0 %2329, %v607
    %v2331 = vpop.permute.xlu0 %2330
    %vm2332 = vcmp.eq.s32.totalorder %v2331, %v140
    %v2333 = vsel %vm2332, 1, 0
    %v2334 = vcvt.s32.f32 %v2333
    %v2336 = vsel %vm155, %v2334, 0
    %2338 = vmatprep.subr.mxu0 0.0
    %2339 = vmatpush1.msra.mxu0 0.0
    %2340 = vmatprep.subr.mxu0 0.0
    %2341 = vmatpush1.msra.mxu0 0.0
    %2342 = vmatprep.subr.mxu0 0.0
    %2343 = vmatpush1.msra.mxu0 0.0
    %2344 = vmatprep.subr.mxu0 0.0
    %2345 = vmatpush1.msra.mxu0 0.0
    %2346 = vmatprep.subr.mxu0 0.0
    %2347 = vmatpush1.msra.mxu0 0.0
    %2348 = vmatprep.subr.mxu0 0.0
    %2349 = vmatpush1.msra.mxu0 0.0
    %2350 = vmatprep.subr.mxu0 0.0
    %2351 = vmatpush1.msra.mxu0 0.0
    %2352 = vmatprep.subr.mxu0 0.0
    %2353 = vmatpush1.msra.mxu0 0.0
    %2354 = vmatprep.subr.mxu0 0.0
    %2355 = vmatpush1.msra.mxu0 0.0
    %2356 = vmatprep.subr.mxu0 0.0
    %2357 = vmatpush1.msra.mxu0 %v161
    %2358 = vmatprep.subr.mxu0 0.0
    %2359 = vmatpush1.msra.mxu0 %v153
    %2360 = vmatprep.subr.mxu0 0.0
    %2361 = vmatpush1.msra.mxu0 %v152
    %2362 = vmatprep.subr.mxu0 0.0
    %2363 = vmatpush1.msra.mxu0 %v151
    %2364 = vmatprep.subr.mxu0 0.0
    %2365 = vmatpush1.msra.mxu0 %v150
    %2366 = vmatprep.subr.mxu0 0.0
    %2367 = vmatpush1.msra.mxu0 %v149
    %2368 = vmatprep.subr.mxu0 0.0
    %2369 = vmatpush1.msra.mxu0 %v148
    %2370 = vmatprep.subr.mxu0 0.0
    %2371 = vmatpush2.msra.mxu0 0.0
    %2372 = vmatprep.subr.mxu0 0.0
    %2373 = vmatpush2.msra.mxu0 0.0
    %2374 = vmatprep.subr.mxu0 0.0
    %2375 = vmatpush2.msra.mxu0 0.0
    %2376 = vmatprep.subr.mxu0 0.0
    %2377 = vmatpush2.msra.mxu0 0.0
    %2378 = vmatprep.subr.mxu0 0.0
    %2379 = vmatpush2.msra.mxu0 0.0
    %2380 = vmatprep.subr.mxu0 0.0
    %2381 = vmatpush2.msra.mxu0 0.0
    %2382 = vmatprep.subr.mxu0 0.0
    %2383 = vmatpush2.msra.mxu0 0.0
    %2384 = vmatprep.subr.mxu0 0.0
    %2385 = vmatpush2.msra.mxu0 0.0
    %2386 = vmatprep.subr.mxu0 0.0
    %2387 = vmatpush2.msra.mxu0 0.0
    %2388 = vmatprep.subr.mxu0 0.0
    %2389 = vmatpush2.msra.mxu0 0.0
    %2390 = vmatprep.subr.mxu0 0.0
    %2391 = vmatpush2.msra.mxu0 0.0
    %2392 = vmatprep.subr.mxu0 0.0
    %2393 = vmatpush2.msra.mxu0 0.0
    %2394 = vmatprep.subr.mxu0 0.0
    %2395 = vmatpush2.msra.mxu0 0.0
    %2396 = vmatprep.subr.mxu0 0.0
    %2397 = vmatpush2.msra.mxu0 0.0
    %2398 = vmatprep.subr.mxu0 0.0
    %2399 = vmatpush2.msra.mxu0 0.0
    %2400 = vmatprep.subr.mxu0 0.0
    %2401 = vmatpush2.msra.mxu0 0.0
    %2402 = vmatprep.mubr.f32.mxu0 0.0
    %2403 = vmatmul.mubr.f32.gmra.mxu0 %v2336
    %v2404 = vpop.f32.mrf.mxu0
    %v2405 = vadd.f32 0.0, %v2404
    %v2406 = vpop.f32.mrf.mxu0
    %2407 = vdwg.mxu0
    %2408 = vmatprep.subr.mxu0 0.0
    %2409 = vmatpush1.msra.mxu0 0.0
    %2410 = vmatprep.subr.mxu0 0.0
    %2411 = vmatpush1.msra.mxu0 0.0
    %2412 = vmatprep.subr.mxu0 0.0
    %2413 = vmatpush1.msra.mxu0 0.0
    %2414 = vmatprep.subr.mxu0 0.0
    %2415 = vmatpush1.msra.mxu0 0.0
    %2416 = vmatprep.subr.mxu0 0.0
    %2417 = vmatpush1.msra.mxu0 0.0
    %2418 = vmatprep.subr.mxu0 0.0
    %2419 = vmatpush1.msra.mxu0 0.0
    %2420 = vmatprep.subr.mxu0 0.0
    %2421 = vmatpush1.msra.mxu0 0.0
    %2422 = vmatprep.subr.mxu0 0.0
    %2423 = vmatpush1.msra.mxu0 0.0
    %2424 = vmatprep.subr.mxu0 0.0
    %2425 = vmatpush1.msra.mxu0 0.0
    %2426 = vmatprep.subr.mxu0 0.0
    %2427 = vmatpush1.msra.mxu0 0.0
    %2428 = vmatprep.subr.mxu0 0.0
    %2429 = vmatpush1.msra.mxu0 0.0
    %2430 = vmatprep.subr.mxu0 0.0
    %2431 = vmatpush1.msra.mxu0 0.0
    %2432 = vmatprep.subr.mxu0 0.0
    %2433 = vmatpush1.msra.mxu0 %v694
    %2434 = vmatprep.subr.mxu0 0.0
    %2435 = vmatpush1.msra.mxu0 %v693
    %2436 = vmatprep.subr.mxu0 0.0
    %2437 = vmatpush1.msra.mxu0 %v692
    %2438 = vmatprep.subr.mxu0 0.0
    %2439 = vmatpush1.msra.mxu0 %v691
    %2440 = vmatprep.subr.mxu0 0.0
    %2441 = vmatpush2.msra.mxu0 0.0
    %2442 = vmatprep.subr.mxu0 0.0
    %2443 = vmatpush2.msra.mxu0 0.0
    %2444 = vmatprep.subr.mxu0 0.0
    %2445 = vmatpush2.msra.mxu0 0.0
    %2446 = vmatprep.subr.mxu0 0.0
    %2447 = vmatpush2.msra.mxu0 0.0
    %2448 = vmatprep.subr.mxu0 0.0
    %2449 = vmatpush2.msra.mxu0 0.0
    %2450 = vmatprep.subr.mxu0 0.0
    %2451 = vmatpush2.msra.mxu0 0.0
    %2452 = vmatprep.subr.mxu0 0.0
    %2453 = vmatpush2.msra.mxu0 0.0
    %2454 = vmatprep.subr.mxu0 0.0
    %2455 = vmatpush2.msra.mxu0 0.0
    %2456 = vmatprep.subr.mxu0 0.0
    %2457 = vmatpush2.msra.mxu0 0.0
    %2458 = vmatprep.subr.mxu0 0.0
    %2459 = vmatpush2.msra.mxu0 0.0
    %2460 = vmatprep.subr.mxu0 0.0
    %2461 = vmatpush2.msra.mxu0 0.0
    %2462 = vmatprep.subr.mxu0 0.0
    %2463 = vmatpush2.msra.mxu0 0.0
    %2464 = vmatprep.subr.mxu0 0.0
    %2465 = vmatpush2.msra.mxu0 0.0
    %2466 = vmatprep.subr.mxu0 0.0
    %2467 = vmatpush2.msra.mxu0 0.0
    %2468 = vmatprep.subr.mxu0 0.0
    %2469 = vmatpush2.msra.mxu0 0.0
    %2470 = vmatprep.subr.mxu0 0.0
    %2471 = vmatpush2.msra.mxu0 0.0
    %2472 = vmatprep.mubr.f32.mxu0 0.0
    %2473 = vmatmul.mubr.f32.gmra.mxu0 %v1807
    %v2474 = vpop.f32.mrf.mxu0
    %v2475 = vadd.f32 0.0, %v2474
    %v2476 = vpop.f32.mrf.mxu0
    %2477 = vdwg.mxu0
    %v2479 = vsel %vm241, %v2405, 0
    %2481 = vmatprep.subr.mxu0 0.0
    %2482 = vmatpush1.msra.mxu0 0.0
    %2483 = vmatprep.subr.mxu0 0.0
    %2484 = vmatpush1.msra.mxu0 0.0
    %2485 = vmatprep.subr.mxu0 0.0
    %2486 = vmatpush1.msra.mxu0 0.0
    %2487 = vmatprep.subr.mxu0 0.0
    %2488 = vmatpush1.msra.mxu0 0.0
    %2489 = vmatprep.subr.mxu0 0.0
    %2490 = vmatpush1.msra.mxu0 0.0
    %2491 = vmatprep.subr.mxu0 0.0
    %2492 = vmatpush1.msra.mxu0 0.0
    %2493 = vmatprep.subr.mxu0 0.0
    %2494 = vmatpush1.msra.mxu0 0.0
    %2495 = vmatprep.subr.mxu0 0.0
    %2496 = vmatpush1.msra.mxu0 0.0
    %2497 = vmatprep.subr.mxu0 0.0
    %2498 = vmatpush1.msra.mxu0 0.0
    %2499 = vmatprep.subr.mxu0 0.0
    %2500 = vmatpush1.msra.mxu0 0.0
    %2501 = vmatprep.subr.mxu0 0.0
    %2502 = vmatpush1.msra.mxu0 0.0
    %2503 = vmatprep.subr.mxu0 0.0
    %2504 = vmatpush1.msra.mxu0 0.0
    %2505 = vmatprep.subr.mxu0 0.0
    %2506 = vmatpush1.msra.mxu0 %v690
    %2507 = vmatprep.subr.mxu0 0.0
    %2508 = vmatpush1.msra.mxu0 %v689
    %2509 = vmatprep.subr.mxu0 0.0
    %2510 = vmatpush1.msra.mxu0 %v688
    %2511 = vmatprep.subr.mxu0 0.0
    %2512 = vmatpush1.msra.mxu0 %v687
    %2513 = vmatprep.subr.mxu0 0.0
    %2514 = vmatpush2.msra.mxu0 0.0
    %2515 = vmatprep.subr.mxu0 0.0
    %2516 = vmatpush2.msra.mxu0 0.0
    %2517 = vmatprep.subr.mxu0 0.0
    %2518 = vmatpush2.msra.mxu0 0.0
    %2519 = vmatprep.subr.mxu0 0.0
    %2520 = vmatpush2.msra.mxu0 0.0
    %2521 = vmatprep.subr.mxu0 0.0
    %2522 = vmatpush2.msra.mxu0 0.0
    %2523 = vmatprep.subr.mxu0 0.0
    %2524 = vmatpush2.msra.mxu0 0.0
    %2525 = vmatprep.subr.mxu0 0.0
    %2526 = vmatpush2.msra.mxu0 0.0
    %2527 = vmatprep.subr.mxu0 0.0
    %2528 = vmatpush2.msra.mxu0 0.0
    %2529 = vmatprep.subr.mxu0 0.0
    %2530 = vmatpush2.msra.mxu0 0.0
    %2531 = vmatprep.subr.mxu0 0.0
    %2532 = vmatpush2.msra.mxu0 0.0
    %2533 = vmatprep.subr.mxu0 0.0
    %2534 = vmatpush2.msra.mxu0 0.0
    %2535 = vmatprep.subr.mxu0 0.0
    %2536 = vmatpush2.msra.mxu0 0.0
    %2537 = vmatprep.subr.mxu0 0.0
    %2538 = vmatpush2.msra.mxu0 0.0
    %2539 = vmatprep.subr.mxu0 0.0
    %2540 = vmatpush2.msra.mxu0 0.0
    %2541 = vmatprep.subr.mxu0 0.0
    %2542 = vmatpush2.msra.mxu0 0.0
    %2543 = vmatprep.subr.mxu0 0.0
    %2544 = vmatpush2.msra.mxu0 0.0
    %2545 = vmatprep.mubr.f32.mxu0 0.0
    %2546 = vmatmul.mubr.f32.gmra.mxu0 %v2479
    %v2547 = vpop.f32.mrf.mxu0
    %v2548 = vadd.f32 %v2475, %v2547
    %v2549 = vpop.f32.mrf.mxu0
    %2550 = vdwg.mxu0
    %v2551 = vadd.f32 %v2548, %v843
    %v2552 = vxor.u32 %v2551, 2147483648
    %v2553 = vmul.f32 %v2552, 1.442695
    %v2554 = vpow.pop %v2553
    %v2555 = vadd.f32 %v2554, 1.0
    %v2556 = vrcp.pop %v2555
    %v2557 = vmul.f32 1.0, %v2556
    %2559 = vrot.lane.b32.xlu0 %v2551, 32
    %v2560 = vpop.permute.xlu0 %2559
    %v2562 = vmul.f32 %v2557, %v2560
    %2564 = vrot.lane.b32.xlu0 %v2562, 64
    %v2565 = vpop.permute.xlu0 %2564
    %v2567 = vadd.f32 %v2551, %v2565
    %v2568 = vtanh.pop %v2567
    %v2569 = vsub.f32 1.0, %v2557
    %2571 = vrot.lane.b32.xlu0 %v2568, 96
    %v2572 = vpop.permute.xlu0 %2571
    %v2574 = vmul.f32 %v2569, %v2572
    %v2575 = vmul.f32 %v2557, %v1728
    %v2576 = vadd.f32 %v2574, %v2575
    %2578 = vrot.lane.b32.xlu0 %v1904, 96
    %v2579 = vpop.permute.xlu0 %2578
    %v2580 = vsel %vm241, %v2579, 0
    %2582 = vmatprep.subr.mxu0 0.0
    %2583 = vmatpush1.msra.mxu0 0.0
    %2584 = vmatprep.subr.mxu0 0.0
    %2585 = vmatpush1.msra.mxu0 0.0
    %2586 = vmatprep.subr.mxu0 0.0
    %2587 = vmatpush1.msra.mxu0 0.0
    %2588 = vmatprep.subr.mxu0 0.0
    %2589 = vmatpush1.msra.mxu0 0.0
    %2590 = vmatprep.subr.mxu0 0.0
    %2591 = vmatpush1.msra.mxu0 0.0
    %2592 = vmatprep.subr.mxu0 0.0
    %2593 = vmatpush1.msra.mxu0 0.0
    %2594 = vmatprep.subr.mxu0 0.0
    %2595 = vmatpush1.msra.mxu0 0.0
    %2596 = vmatprep.subr.mxu0 0.0
    %2597 = vmatpush1.msra.mxu0 0.0
    %2598 = vmatprep.subr.mxu0 0.0
    %2599 = vmatpush1.msra.mxu0 0.0
    %2600 = vmatprep.subr.mxu0 0.0
    %2601 = vmatpush1.msra.mxu0 0.0
    %2602 = vmatprep.subr.mxu0 0.0
    %2603 = vmatpush1.msra.mxu0 0.0
    %2604 = vmatprep.subr.mxu0 0.0
    %2605 = vmatpush1.msra.mxu0 0.0
    %2606 = vmatprep.subr.mxu0 0.0
    %2607 = vmatpush1.msra.mxu0 %v878
    %2608 = vmatprep.subr.mxu0 0.0
    %2609 = vmatpush1.msra.mxu0 %v877
    %2610 = vmatprep.subr.mxu0 0.0
    %2611 = vmatpush1.msra.mxu0 %v876
    %2612 = vmatprep.subr.mxu0 0.0
    %2613 = vmatpush1.msra.mxu0 %v875
    %2614 = vmatprep.subr.mxu0 0.0
    %2615 = vmatpush2.msra.mxu0 0.0
    %2616 = vmatprep.subr.mxu0 0.0
    %2617 = vmatpush2.msra.mxu0 0.0
    %2618 = vmatprep.subr.mxu0 0.0
    %2619 = vmatpush2.msra.mxu0 0.0
    %2620 = vmatprep.subr.mxu0 0.0
    %2621 = vmatpush2.msra.mxu0 0.0
    %2622 = vmatprep.subr.mxu0 0.0
    %2623 = vmatpush2.msra.mxu0 0.0
    %2624 = vmatprep.subr.mxu0 0.0
    %2625 = vmatpush2.msra.mxu0 0.0
    %2626 = vmatprep.subr.mxu0 0.0
    %2627 = vmatpush2.msra.mxu0 0.0
    %2628 = vmatprep.subr.mxu0 0.0
    %2629 = vmatpush2.msra.mxu0 0.0
    %2630 = vmatprep.subr.mxu0 0.0
    %2631 = vmatpush2.msra.mxu0 0.0
    %2632 = vmatprep.subr.mxu0 0.0
    %2633 = vmatpush2.msra.mxu0 0.0
    %2634 = vmatprep.subr.mxu0 0.0
    %2635 = vmatpush2.msra.mxu0 0.0
    %2636 = vmatprep.subr.mxu0 0.0
    %2637 = vmatpush2.msra.mxu0 0.0
    %2638 = vmatprep.subr.mxu0 0.0
    %2639 = vmatpush2.msra.mxu0 0.0
    %2640 = vmatprep.subr.mxu0 0.0
    %2641 = vmatpush2.msra.mxu0 0.0
    %2642 = vmatprep.subr.mxu0 0.0
    %2643 = vmatpush2.msra.mxu0 0.0
    %2644 = vmatprep.subr.mxu0 0.0
    %2645 = vmatpush2.msra.mxu0 0.0
    %2646 = vmatprep.mubr.f32.mxu0 0.0
    %2647 = vmatmul.mubr.f32.gmra.mxu0 %v2580
    %v2648 = vpop.f32.mrf.mxu0
    %v2649 = vadd.f32 0.0, %v2648
    %v2650 = vpop.f32.mrf.mxu0
    %2651 = vdwg.mxu0
    %2653 = vrot.lane.b32.xlu0 %v2576, 96
    %v2654 = vpop.permute.xlu0 %2653
    %v2655 = vsel %vm241, %v2654, 0
    %2657 = vmatprep.subr.mxu0 0.0
    %2658 = vmatpush1.msra.mxu0 0.0
    %2659 = vmatprep.subr.mxu0 0.0
    %2660 = vmatpush1.msra.mxu0 0.0
    %2661 = vmatprep.subr.mxu0 0.0
    %2662 = vmatpush1.msra.mxu0 0.0
    %2663 = vmatprep.subr.mxu0 0.0
    %2664 = vmatpush1.msra.mxu0 0.0
    %2665 = vmatprep.subr.mxu0 0.0
    %2666 = vmatpush1.msra.mxu0 0.0
    %2667 = vmatprep.subr.mxu0 0.0
    %2668 = vmatpush1.msra.mxu0 0.0
    %2669 = vmatprep.subr.mxu0 0.0
    %2670 = vmatpush1.msra.mxu0 0.0
    %2671 = vmatprep.subr.mxu0 0.0
    %2672 = vmatpush1.msra.mxu0 0.0
    %2673 = vmatprep.subr.mxu0 0.0
    %2674 = vmatpush1.msra.mxu0 0.0
    %2675 = vmatprep.subr.mxu0 0.0
    %2676 = vmatpush1.msra.mxu0 0.0
    %2677 = vmatprep.subr.mxu0 0.0
    %2678 = vmatpush1.msra.mxu0 0.0
    %2679 = vmatprep.subr.mxu0 0.0
    %2680 = vmatpush1.msra.mxu0 0.0
    %2681 = vmatprep.subr.mxu0 0.0
    %2682 = vmatpush1.msra.mxu0 %v874
    %2683 = vmatprep.subr.mxu0 0.0
    %2684 = vmatpush1.msra.mxu0 %v873
    %2685 = vmatprep.subr.mxu0 0.0
    %2686 = vmatpush1.msra.mxu0 %v872
    %2687 = vmatprep.subr.mxu0 0.0
    %2688 = vmatpush1.msra.mxu0 %v871
    %2689 = vmatprep.subr.mxu0 0.0
    %2690 = vmatpush2.msra.mxu0 0.0
    %2691 = vmatprep.subr.mxu0 0.0
    %2692 = vmatpush2.msra.mxu0 0.0
    %2693 = vmatprep.subr.mxu0 0.0
    %2694 = vmatpush2.msra.mxu0 0.0
    %2695 = vmatprep.subr.mxu0 0.0
    %2696 = vmatpush2.msra.mxu0 0.0
    %2697 = vmatprep.subr.mxu0 0.0
    %2698 = vmatpush2.msra.mxu0 0.0
    %2699 = vmatprep.subr.mxu0 0.0
    %2700 = vmatpush2.msra.mxu0 0.0
    %2701 = vmatprep.subr.mxu0 0.0
    %2702 = vmatpush2.msra.mxu0 0.0
    %2703 = vmatprep.subr.mxu0 0.0
    %2704 = vmatpush2.msra.mxu0 0.0
    %2705 = vmatprep.subr.mxu0 0.0
    %2706 = vmatpush2.msra.mxu0 0.0
    %2707 = vmatprep.subr.mxu0 0.0
    %2708 = vmatpush2.msra.mxu0 0.0
    %2709 = vmatprep.subr.mxu0 0.0
    %2710 = vmatpush2.msra.mxu0 0.0
    %2711 = vmatprep.subr.mxu0 0.0
    %2712 = vmatpush2.msra.mxu0 0.0
    %2713 = vmatprep.subr.mxu0 0.0
    %2714 = vmatpush2.msra.mxu0 0.0
    %2715 = vmatprep.subr.mxu0 0.0
    %2716 = vmatpush2.msra.mxu0 0.0
    %2717 = vmatprep.subr.mxu0 0.0
    %2718 = vmatpush2.msra.mxu0 0.0
    %2719 = vmatprep.subr.mxu0 0.0
    %2720 = vmatpush2.msra.mxu0 0.0
    %2721 = vmatprep.mubr.f32.mxu0 0.0
    %2722 = vmatmul.mubr.f32.gmra.mxu0 %v2655
    %v2723 = vpop.f32.mrf.mxu0
    %v2724 = vadd.f32 %v2649, %v2723
    %v2725 = vpop.f32.mrf.mxu0
    %2726 = vdwg.mxu0
    %v2727 = vadd.f32 %v2724, %v1029
    %v2728 = vxor.u32 %v2727, 2147483648
    %v2729 = vmul.f32 %v2728, 1.442695
    %v2730 = vpow.pop %v2729
    %v2731 = vadd.f32 %v2730, 1.0
    %v2732 = vrcp.pop %v2731
    %v2733 = vmul.f32 1.0, %v2732
    %2735 = vrot.lane.b32.xlu0 %v2727, 32
    %v2736 = vpop.permute.xlu0 %2735
    %v2738 = vmul.f32 %v2733, %v2736
    %2740 = vrot.lane.b32.xlu0 %v2738, 64
    %v2741 = vpop.permute.xlu0 %2740
    %v2743 = vadd.f32 %v2727, %v2741
    %v2744 = vtanh.pop %v2743
    %v2745 = vsub.f32 1.0, %v2733
    %2747 = vrot.lane.b32.xlu0 %v2744, 96
    %v2748 = vpop.permute.xlu0 %2747
    %v2750 = vmul.f32 %v2745, %v2748
    %v2751 = vmul.f32 %v2733, %v1904
    %v2752 = vadd.f32 %v2750, %v2751
    %2753 = vset.pattern.permute.xlu0 3
    %2754 = vperm.xlu0 %2753, %v141
    %v2755 = vpop.permute.xlu0 %2754
    %vm2756 = vcmp.eq.s32.totalorder %v2755, %v140
    %v2757 = vsel %vm2756, 1, 0
    %v2758 = vcvt.s32.f32 %v2757
    %v2760 = vsel %vm155, %v2758, 0
    %2762 = vmatprep.subr.mxu0 0.0
    %2763 = vmatpush1.msra.mxu0 0.0
    %2764 = vmatprep.subr.mxu0 0.0
    %2765 = vmatpush1.msra.mxu0 0.0
    %2766 = vmatprep.subr.mxu0 0.0
    %2767 = vmatpush1.msra.mxu0 0.0
    %2768 = vmatprep.subr.mxu0 0.0
    %2769 = vmatpush1.msra.mxu0 0.0
    %2770 = vmatprep.subr.mxu0 0.0
    %2771 = vmatpush1.msra.mxu0 0.0
    %2772 = vmatprep.subr.mxu0 0.0
    %2773 = vmatpush1.msra.mxu0 0.0
    %2774 = vmatprep.subr.mxu0 0.0
    %2775 = vmatpush1.msra.mxu0 0.0
    %2776 = vmatprep.subr.mxu0 0.0
    %2777 = vmatpush1.msra.mxu0 0.0
    %2778 = vmatprep.subr.mxu0 0.0
    %2779 = vmatpush1.msra.mxu0 0.0
    %2780 = vmatprep.subr.mxu0 0.0
    %2781 = vmatpush1.msra.mxu0 %v161
    %2782 = vmatprep.subr.mxu0 0.0
    %2783 = vmatpush1.msra.mxu0 %v153
    %2784 = vmatprep.subr.mxu0 0.0
    %2785 = vmatpush1.msra.mxu0 %v152
    %2786 = vmatprep.subr.mxu0 0.0
    %2787 = vmatpush1.msra.mxu0 %v151
    %2788 = vmatprep.subr.mxu0 0.0
    %2789 = vmatpush1.msra.mxu0 %v150
    %2790 = vmatprep.subr.mxu0 0.0
    %2791 = vmatpush1.msra.mxu0 %v149
    %2792 = vmatprep.subr.mxu0 0.0
    %2793 = vmatpush1.msra.mxu0 %v148
    %2794 = vmatprep.subr.mxu0 0.0
    %2795 = vmatpush2.msra.mxu0 0.0
    %2796 = vmatprep.subr.mxu0 0.0
    %2797 = vmatpush2.msra.mxu0 0.0
    %2798 = vmatprep.subr.mxu0 0.0
    %2799 = vmatpush2.msra.mxu0 0.0
    %2800 = vmatprep.subr.mxu0 0.0
    %2801 = vmatpush2.msra.mxu0 0.0
    %2802 = vmatprep.subr.mxu0 0.0
    %2803 = vmatpush2.msra.mxu0 0.0
    %2804 = vmatprep.subr.mxu0 0.0
    %2805 = vmatpush2.msra.mxu0 0.0
    %2806 = vmatprep.subr.mxu0 0.0
    %2807 = vmatpush2.msra.mxu0 0.0
    %2808 = vmatprep.subr.mxu0 0.0
    %2809 = vmatpush2.msra.mxu0 0.0
    %2810 = vmatprep.subr.mxu0 0.0
    %2811 = vmatpush2.msra.mxu0 0.0
    %2812 = vmatprep.subr.mxu0 0.0
    %2813 = vmatpush2.msra.mxu0 0.0
    %2814 = vmatprep.subr.mxu0 0.0
    %2815 = vmatpush2.msra.mxu0 0.0
    %2816 = vmatprep.subr.mxu0 0.0
    %2817 = vmatpush2.msra.mxu0 0.0
    %2818 = vmatprep.subr.mxu0 0.0
    %2819 = vmatpush2.msra.mxu0 0.0
    %2820 = vmatprep.subr.mxu0 0.0
    %2821 = vmatpush2.msra.mxu0 0.0
    %2822 = vmatprep.subr.mxu0 0.0
    %2823 = vmatpush2.msra.mxu0 0.0
    %2824 = vmatprep.subr.mxu0 0.0
    %2825 = vmatpush2.msra.mxu0 0.0
    %2826 = vmatprep.mubr.f32.mxu0 0.0
    %2827 = vmatmul.mubr.f32.gmra.mxu0 %v2760
    %v2828 = vpop.f32.mrf.mxu0
    %v2829 = vadd.f32 0.0, %v2828
    %v2830 = vpop.f32.mrf.mxu0
    %2831 = vdwg.mxu0
    %2832 = vmatprep.subr.mxu0 0.0
    %2833 = vmatpush1.msra.mxu0 0.0
    %2834 = vmatprep.subr.mxu0 0.0
    %2835 = vmatpush1.msra.mxu0 0.0
    %2836 = vmatprep.subr.mxu0 0.0
    %2837 = vmatpush1.msra.mxu0 0.0
    %2838 = vmatprep.subr.mxu0 0.0
    %2839 = vmatpush1.msra.mxu0 0.0
    %2840 = vmatprep.subr.mxu0 0.0
    %2841 = vmatpush1.msra.mxu0 0.0
    %2842 = vmatprep.subr.mxu0 0.0
    %2843 = vmatpush1.msra.mxu0 0.0
    %2844 = vmatprep.subr.mxu0 0.0
    %2845 = vmatpush1.msra.mxu0 0.0
    %2846 = vmatprep.subr.mxu0 0.0
    %2847 = vmatpush1.msra.mxu0 0.0
    %2848 = vmatprep.subr.mxu0 0.0
    %2849 = vmatpush1.msra.mxu0 0.0
    %2850 = vmatprep.subr.mxu0 0.0
    %2851 = vmatpush1.msra.mxu0 0.0
    %2852 = vmatprep.subr.mxu0 0.0
    %2853 = vmatpush1.msra.mxu0 0.0
    %2854 = vmatprep.subr.mxu0 0.0
    %2855 = vmatpush1.msra.mxu0 0.0
    %2856 = vmatprep.subr.mxu0 0.0
    %2857 = vmatpush1.msra.mxu0 %v240
    %2858 = vmatprep.subr.mxu0 0.0
    %2859 = vmatpush1.msra.mxu0 %v239
    %2860 = vmatprep.subr.mxu0 0.0
    %2861 = vmatpush1.msra.mxu0 %v238
    %2862 = vmatprep.subr.mxu0 0.0
    %2863 = vmatpush1.msra.mxu0 %v237
    %2864 = vmatprep.subr.mxu0 0.0
    %2865 = vmatpush2.msra.mxu0 0.0
    %2866 = vmatprep.subr.mxu0 0.0
    %2867 = vmatpush2.msra.mxu0 0.0
    %2868 = vmatprep.subr.mxu0 0.0
    %2869 = vmatpush2.msra.mxu0 0.0
    %2870 = vmatprep.subr.mxu0 0.0
    %2871 = vmatpush2.msra.mxu0 0.0
    %2872 = vmatprep.subr.mxu0 0.0
    %2873 = vmatpush2.msra.mxu0 0.0
    %2874 = vmatprep.subr.mxu0 0.0
    %2875 = vmatpush2.msra.mxu0 0.0
    %2876 = vmatprep.subr.mxu0 0.0
    %2877 = vmatpush2.msra.mxu0 0.0
    %2878 = vmatprep.subr.mxu0 0.0
    %2879 = vmatpush2.msra.mxu0 0.0
    %2880 = vmatprep.subr.mxu0 0.0
    %2881 = vmatpush2.msra.mxu0 0.0
    %2882 = vmatprep.subr.mxu0 0.0
    %2883 = vmatpush2.msra.mxu0 0.0
    %2884 = vmatprep.subr.mxu0 0.0
    %2885 = vmatpush2.msra.mxu0 0.0
    %2886 = vmatprep.subr.mxu0 0.0
    %2887 = vmatpush2.msra.mxu0 0.0
    %2888 = vmatprep.subr.mxu0 0.0
    %2889 = vmatpush2.msra.mxu0 0.0
    %2890 = vmatprep.subr.mxu0 0.0
    %2891 = vmatpush2.msra.mxu0 0.0
    %2892 = vmatprep.subr.mxu0 0.0
    %2893 = vmatpush2.msra.mxu0 0.0
    %2894 = vmatprep.subr.mxu0 0.0
    %2895 = vmatpush2.msra.mxu0 0.0
    %2896 = vmatprep.mubr.f32.mxu0 0.0
    %2897 = vmatmul.mubr.f32.gmra.mxu0 %v2231
    %v2898 = vpop.f32.mrf.mxu0
    %v2899 = vadd.f32 0.0, %v2898
    %v2900 = vpop.f32.mrf.mxu0
    %2901 = vdwg.mxu0
    %v2903 = vsel %vm241, %v2829, 0
    %2905 = vmatprep.subr.mxu0 0.0
    %2906 = vmatpush1.msra.mxu0 0.0
    %2907 = vmatprep.subr.mxu0 0.0
    %2908 = vmatpush1.msra.mxu0 0.0
    %2909 = vmatprep.subr.mxu0 0.0
    %2910 = vmatpush1.msra.mxu0 0.0
    %2911 = vmatprep.subr.mxu0 0.0
    %2912 = vmatpush1.msra.mxu0 0.0
    %2913 = vmatprep.subr.mxu0 0.0
    %2914 = vmatpush1.msra.mxu0 0.0
    %2915 = vmatprep.subr.mxu0 0.0
    %2916 = vmatpush1.msra.mxu0 0.0
    %2917 = vmatprep.subr.mxu0 0.0
    %2918 = vmatpush1.msra.mxu0 0.0
    %2919 = vmatprep.subr.mxu0 0.0
    %2920 = vmatpush1.msra.mxu0 0.0
    %2921 = vmatprep.subr.mxu0 0.0
    %2922 = vmatpush1.msra.mxu0 0.0
    %2923 = vmatprep.subr.mxu0 0.0
    %2924 = vmatpush1.msra.mxu0 0.0
    %2925 = vmatprep.subr.mxu0 0.0
    %2926 = vmatpush1.msra.mxu0 0.0
    %2927 = vmatprep.subr.mxu0 0.0
    %2928 = vmatpush1.msra.mxu0 0.0
    %2929 = vmatprep.subr.mxu0 0.0
    %2930 = vmatpush1.msra.mxu0 %v236
    %2931 = vmatprep.subr.mxu0 0.0
    %2932 = vmatpush1.msra.mxu0 %v235
    %2933 = vmatprep.subr.mxu0 0.0
    %2934 = vmatpush1.msra.mxu0 %v234
    %2935 = vmatprep.subr.mxu0 0.0
    %2936 = vmatpush1.msra.mxu0 %v233
    %2937 = vmatprep.subr.mxu0 0.0
    %2938 = vmatpush2.msra.mxu0 0.0
    %2939 = vmatprep.subr.mxu0 0.0
    %2940 = vmatpush2.msra.mxu0 0.0
    %2941 = vmatprep.subr.mxu0 0.0
    %2942 = vmatpush2.msra.mxu0 0.0
    %2943 = vmatprep.subr.mxu0 0.0
    %2944 = vmatpush2.msra.mxu0 0.0
    %2945 = vmatprep.subr.mxu0 0.0
    %2946 = vmatpush2.msra.mxu0 0.0
    %2947 = vmatprep.subr.mxu0 0.0
    %2948 = vmatpush2.msra.mxu0 0.0
    %2949 = vmatprep.subr.mxu0 0.0
    %2950 = vmatpush2.msra.mxu0 0.0
    %2951 = vmatprep.subr.mxu0 0.0
    %2952 = vmatpush2.msra.mxu0 0.0
    %2953 = vmatprep.subr.mxu0 0.0
    %2954 = vmatpush2.msra.mxu0 0.0
    %2955 = vmatprep.subr.mxu0 0.0
    %2956 = vmatpush2.msra.mxu0 0.0
    %2957 = vmatprep.subr.mxu0 0.0
    %2958 = vmatpush2.msra.mxu0 0.0
    %2959 = vmatprep.subr.mxu0 0.0
    %2960 = vmatpush2.msra.mxu0 0.0
    %2961 = vmatprep.subr.mxu0 0.0
    %2962 = vmatpush2.msra.mxu0 0.0
    %2963 = vmatprep.subr.mxu0 0.0
    %2964 = vmatpush2.msra.mxu0 0.0
    %2965 = vmatprep.subr.mxu0 0.0
    %2966 = vmatpush2.msra.mxu0 0.0
    %2967 = vmatprep.subr.mxu0 0.0
    %2968 = vmatpush2.msra.mxu0 0.0
    %2969 = vmatprep.mubr.f32.mxu0 0.0
    %2970 = vmatmul.mubr.f32.gmra.mxu0 %v2903
    %v2971 = vpop.f32.mrf.mxu0
    %v2972 = vadd.f32 %v2899, %v2971
    %v2973 = vpop.f32.mrf.mxu0
    %2974 = vdwg.mxu0
    %v2975 = vadd.f32 %v2972, %v393
    %v2976 = vxor.u32 %v2975, 2147483648
    %v2977 = vmul.f32 %v2976, 1.442695
    %v2978 = vpow.pop %v2977
    %v2979 = vadd.f32 %v2978, 1.0
    %v2980 = vrcp.pop %v2979
    %v2981 = vmul.f32 1.0, %v2980
    %2983 = vrot.lane.b32.xlu0 %v2975, 32
    %v2984 = vpop.permute.xlu0 %2983
    %v2986 = vmul.f32 %v2981, %v2984
    %2988 = vrot.lane.b32.xlu0 %v2986, 64
    %v2989 = vpop.permute.xlu0 %2988
    %v2991 = vadd.f32 %v2975, %v2989
    %v2992 = vtanh.pop %v2991
    %v2993 = vsub.f32 1.0, %v2981
    %2995 = vrot.lane.b32.xlu0 %v2992, 96
    %v2996 = vpop.permute.xlu0 %2995
    %v2998 = vmul.f32 %v2993, %v2996
    %v2999 = vmul.f32 %v2981, %v2152
    %v3000 = vadd.f32 %v2998, %v2999
    %3002 = vrot.lane.b32.xlu0 %v2328, 96
    %v3003 = vpop.permute.xlu0 %3002
    %v3004 = vsel %vm241, %v3003, 0
    %3006 = vmatprep.subr.mxu0 0.0
    %3007 = vmatpush1.msra.mxu0 0.0
    %3008 = vmatprep.subr.mxu0 0.0
    %3009 = vmatpush1.msra.mxu0 0.0
    %3010 = vmatprep.subr.mxu0 0.0
    %3011 = vmatpush1.msra.mxu0 0.0
    %3012 = vmatprep.subr.mxu0 0.0
    %3013 = vmatpush1.msra.mxu0 0.0
    %3014 = vmatprep.subr.mxu0 0.0
    %3015 = vmatpush1.msra.mxu0 0.0
    %3016 = vmatprep.subr.mxu0 0.0
    %3017 = vmatpush1.msra.mxu0 0.0
    %3018 = vmatprep.subr.mxu0 0.0
    %3019 = vmatpush1.msra.mxu0 0.0
    %3020 = vmatprep.subr.mxu0 0.0
    %3021 = vmatpush1.msra.mxu0 0.0
    %3022 = vmatprep.subr.mxu0 0.0
    %3023 = vmatpush1.msra.mxu0 0.0
    %3024 = vmatprep.subr.mxu0 0.0
    %3025 = vmatpush1.msra.mxu0 0.0
    %3026 = vmatprep.subr.mxu0 0.0
    %3027 = vmatpush1.msra.mxu0 0.0
    %3028 = vmatprep.subr.mxu0 0.0
    %3029 = vmatpush1.msra.mxu0 0.0
    %3030 = vmatprep.subr.mxu0 0.0
    %3031 = vmatpush1.msra.mxu0 %v428
    %3032 = vmatprep.subr.mxu0 0.0
    %3033 = vmatpush1.msra.mxu0 %v427
    %3034 = vmatprep.subr.mxu0 0.0
    %3035 = vmatpush1.msra.mxu0 %v426
    %3036 = vmatprep.subr.mxu0 0.0
    %3037 = vmatpush1.msra.mxu0 %v425
    %3038 = vmatprep.subr.mxu0 0.0
    %3039 = vmatpush2.msra.mxu0 0.0
    %3040 = vmatprep.subr.mxu0 0.0
    %3041 = vmatpush2.msra.mxu0 0.0
    %3042 = vmatprep.subr.mxu0 0.0
    %3043 = vmatpush2.msra.mxu0 0.0
    %3044 = vmatprep.subr.mxu0 0.0
    %3045 = vmatpush2.msra.mxu0 0.0
    %3046 = vmatprep.subr.mxu0 0.0
    %3047 = vmatpush2.msra.mxu0 0.0
    %3048 = vmatprep.subr.mxu0 0.0
    %3049 = vmatpush2.msra.mxu0 0.0
    %3050 = vmatprep.subr.mxu0 0.0
    %3051 = vmatpush2.msra.mxu0 0.0
    %3052 = vmatprep.subr.mxu0 0.0
    %3053 = vmatpush2.msra.mxu0 0.0
    %3054 = vmatprep.subr.mxu0 0.0
    %3055 = vmatpush2.msra.mxu0 0.0
    %3056 = vmatprep.subr.mxu0 0.0
    %3057 = vmatpush2.msra.mxu0 0.0
    %3058 = vmatprep.subr.mxu0 0.0
    %3059 = vmatpush2.msra.mxu0 0.0
    %3060 = vmatprep.subr.mxu0 0.0
    %3061 = vmatpush2.msra.mxu0 0.0
    %3062 = vmatprep.subr.mxu0 0.0
    %3063 = vmatpush2.msra.mxu0 0.0
    %3064 = vmatprep.subr.mxu0 0.0
    %3065 = vmatpush2.msra.mxu0 0.0
    %3066 = vmatprep.subr.mxu0 0.0
    %3067 = vmatpush2.msra.mxu0 0.0
    %3068 = vmatprep.subr.mxu0 0.0
    %3069 = vmatpush2.msra.mxu0 0.0
    %3070 = vmatprep.mubr.f32.mxu0 0.0
    %3071 = vmatmul.mubr.f32.gmra.mxu0 %v3004
    %v3072 = vpop.f32.mrf.mxu0
    %v3073 = vadd.f32 0.0, %v3072
    %v3074 = vpop.f32.mrf.mxu0
    %3075 = vdwg.mxu0
    %3077 = vrot.lane.b32.xlu0 %v3000, 96
    %v3078 = vpop.permute.xlu0 %3077
    %v3079 = vsel %vm241, %v3078, 0
    %3081 = vmatprep.subr.mxu0 0.0
    %3082 = vmatpush1.msra.mxu0 0.0
    %3083 = vmatprep.subr.mxu0 0.0
    %3084 = vmatpush1.msra.mxu0 0.0
    %3085 = vmatprep.subr.mxu0 0.0
    %3086 = vmatpush1.msra.mxu0 0.0
    %3087 = vmatprep.subr.mxu0 0.0
    %3088 = vmatpush1.msra.mxu0 0.0
    %3089 = vmatprep.subr.mxu0 0.0
    %3090 = vmatpush1.msra.mxu0 0.0
    %3091 = vmatprep.subr.mxu0 0.0
    %3092 = vmatpush1.msra.mxu0 0.0
    %3093 = vmatprep.subr.mxu0 0.0
    %3094 = vmatpush1.msra.mxu0 0.0
    %3095 = vmatprep.subr.mxu0 0.0
    %3096 = vmatpush1.msra.mxu0 0.0
    %3097 = vmatprep.subr.mxu0 0.0
    %3098 = vmatpush1.msra.mxu0 0.0
    %3099 = vmatprep.subr.mxu0 0.0
    %3100 = vmatpush1.msra.mxu0 0.0
    %3101 = vmatprep.subr.mxu0 0.0
    %3102 = vmatpush1.msra.mxu0 0.0
    %3103 = vmatprep.subr.mxu0 0.0
    %3104 = vmatpush1.msra.mxu0 0.0
    %3105 = vmatprep.subr.mxu0 0.0
    %3106 = vmatpush1.msra.mxu0 %v424
    %3107 = vmatprep.subr.mxu0 0.0
    %3108 = vmatpush1.msra.mxu0 %v423
    %3109 = vmatprep.subr.mxu0 0.0
    %3110 = vmatpush1.msra.mxu0 %v422
    %3111 = vmatprep.subr.mxu0 0.0
    %3112 = vmatpush1.msra.mxu0 %v421
    %3113 = vmatprep.subr.mxu0 0.0
    %3114 = vmatpush2.msra.mxu0 0.0
    %3115 = vmatprep.subr.mxu0 0.0
    %3116 = vmatpush2.msra.mxu0 0.0
    %3117 = vmatprep.subr.mxu0 0.0
    %3118 = vmatpush2.msra.mxu0 0.0
    %3119 = vmatprep.subr.mxu0 0.0
    %3120 = vmatpush2.msra.mxu0 0.0
    %3121 = vmatprep.subr.mxu0 0.0
    %3122 = vmatpush2.msra.mxu0 0.0
    %3123 = vmatprep.subr.mxu0 0.0
    %3124 = vmatpush2.msra.mxu0 0.0
    %3125 = vmatprep.subr.mxu0 0.0
    %3126 = vmatpush2.msra.mxu0 0.0
    %3127 = vmatprep.subr.mxu0 0.0
    %3128 = vmatpush2.msra.mxu0 0.0
    %3129 = vmatprep.subr.mxu0 0.0
    %3130 = vmatpush2.msra.mxu0 0.0
    %3131 = vmatprep.subr.mxu0 0.0
    %3132 = vmatpush2.msra.mxu0 0.0
    %3133 = vmatprep.subr.mxu0 0.0
    %3134 = vmatpush2.msra.mxu0 0.0
    %3135 = vmatprep.subr.mxu0 0.0
    %3136 = vmatpush2.msra.mxu0 0.0
    %3137 = vmatprep.subr.mxu0 0.0
    %3138 = vmatpush2.msra.mxu0 0.0
    %3139 = vmatprep.subr.mxu0 0.0
    %3140 = vmatpush2.msra.mxu0 0.0
    %3141 = vmatprep.subr.mxu0 0.0
    %3142 = vmatpush2.msra.mxu0 0.0
    %3143 = vmatprep.subr.mxu0 0.0
    %3144 = vmatpush2.msra.mxu0 0.0
    %3145 = vmatprep.mubr.f32.mxu0 0.0
    %3146 = vmatmul.mubr.f32.gmra.mxu0 %v3079
    %v3147 = vpop.f32.mrf.mxu0
    %v3148 = vadd.f32 %v3073, %v3147
    %v3149 = vpop.f32.mrf.mxu0
    %3150 = vdwg.mxu0
    %v3151 = vadd.f32 %v3148, %v579
    %v3152 = vxor.u32 %v3151, 2147483648
    %v3153 = vmul.f32 %v3152, 1.442695
    %v3154 = vpow.pop %v3153
    %v3155 = vadd.f32 %v3154, 1.0
    %v3156 = vrcp.pop %v3155
    %v3157 = vmul.f32 1.0, %v3156
    %3159 = vrot.lane.b32.xlu0 %v3151, 32
    %v3160 = vpop.permute.xlu0 %3159
    %v3162 = vmul.f32 %v3157, %v3160
    %3164 = vrot.lane.b32.xlu0 %v3162, 64
    %v3165 = vpop.permute.xlu0 %3164
    %v3167 = vadd.f32 %v3151, %v3165
    %v3168 = vtanh.pop %v3167
    %v3169 = vsub.f32 1.0, %v3157
    %3171 = vrot.lane.b32.xlu0 %v3168, 96
    %v3172 = vpop.permute.xlu0 %3171
    %v3174 = vmul.f32 %v3169, %v3172
    %v3175 = vmul.f32 %v3157, %v2328
    %v3176 = vadd.f32 %v3174, %v3175
    %3177 = vset.pattern.permute.xlu0 3
    %3178 = vperm.xlu0 %3177, %v607
    %v3179 = vpop.permute.xlu0 %3178
    %vm3180 = vcmp.eq.s32.totalorder %v3179, %v140
    %v3181 = vsel %vm3180, 1, 0
    %v3182 = vcvt.s32.f32 %v3181
    %v3184 = vsel %vm155, %v3182, 0
    %3186 = vmatprep.subr.mxu0 0.0
    %3187 = vmatpush1.msra.mxu0 0.0
    %3188 = vmatprep.subr.mxu0 0.0
    %3189 = vmatpush1.msra.mxu0 0.0
    %3190 = vmatprep.subr.mxu0 0.0
    %3191 = vmatpush1.msra.mxu0 0.0
    %3192 = vmatprep.subr.mxu0 0.0
    %3193 = vmatpush1.msra.mxu0 0.0
    %3194 = vmatprep.subr.mxu0 0.0
    %3195 = vmatpush1.msra.mxu0 0.0
    %3196 = vmatprep.subr.mxu0 0.0
    %3197 = vmatpush1.msra.mxu0 0.0
    %3198 = vmatprep.subr.mxu0 0.0
    %3199 = vmatpush1.msra.mxu0 0.0
    %3200 = vmatprep.subr.mxu0 0.0
    %3201 = vmatpush1.msra.mxu0 0.0
    %3202 = vmatprep.subr.mxu0 0.0
    %3203 = vmatpush1.msra.mxu0 0.0
    %3204 = vmatprep.subr.mxu0 0.0
    %3205 = vmatpush1.msra.mxu0 %v161
    %3206 = vmatprep.subr.mxu0 0.0
    %3207 = vmatpush1.msra.mxu0 %v153
    %3208 = vmatprep.subr.mxu0 0.0
    %3209 = vmatpush1.msra.mxu0 %v152
    %3210 = vmatprep.subr.mxu0 0.0
    %3211 = vmatpush1.msra.mxu0 %v151
    %3212 = vmatprep.subr.mxu0 0.0
    %3213 = vmatpush1.msra.mxu0 %v150
    %3214 = vmatprep.subr.mxu0 0.0
    %3215 = vmatpush1.msra.mxu0 %v149
    %3216 = vmatprep.subr.mxu0 0.0
    %3217 = vmatpush1.msra.mxu0 %v148
    %3218 = vmatprep.subr.mxu0 0.0
    %3219 = vmatpush2.msra.mxu0 0.0
    %3220 = vmatprep.subr.mxu0 0.0
    %3221 = vmatpush2.msra.mxu0 0.0
    %3222 = vmatprep.subr.mxu0 0.0
    %3223 = vmatpush2.msra.mxu0 0.0
    %3224 = vmatprep.subr.mxu0 0.0
    %3225 = vmatpush2.msra.mxu0 0.0
    %3226 = vmatprep.subr.mxu0 0.0
    %3227 = vmatpush2.msra.mxu0 0.0
    %3228 = vmatprep.subr.mxu0 0.0
    %3229 = vmatpush2.msra.mxu0 0.0
    %3230 = vmatprep.subr.mxu0 0.0
    %3231 = vmatpush2.msra.mxu0 0.0
    %3232 = vmatprep.subr.mxu0 0.0
    %3233 = vmatpush2.msra.mxu0 0.0
    %3234 = vmatprep.subr.mxu0 0.0
    %3235 = vmatpush2.msra.mxu0 0.0
    %3236 = vmatprep.subr.mxu0 0.0
    %3237 = vmatpush2.msra.mxu0 0.0
    %3238 = vmatprep.subr.mxu0 0.0
    %3239 = vmatpush2.msra.mxu0 0.0
    %3240 = vmatprep.subr.mxu0 0.0
    %3241 = vmatpush2.msra.mxu0 0.0
    %3242 = vmatprep.subr.mxu0 0.0
    %3243 = vmatpush2.msra.mxu0 0.0
    %3244 = vmatprep.subr.mxu0 0.0
    %3245 = vmatpush2.msra.mxu0 0.0
    %3246 = vmatprep.subr.mxu0 0.0
    %3247 = vmatpush2.msra.mxu0 0.0
    %3248 = vmatprep.subr.mxu0 0.0
    %3249 = vmatpush2.msra.mxu0 0.0
    %3250 = vmatprep.mubr.f32.mxu0 0.0
    %3251 = vmatmul.mubr.f32.gmra.mxu0 %v3184
    %v3252 = vpop.f32.mrf.mxu0
    %v3253 = vadd.f32 0.0, %v3252
    %v3254 = vpop.f32.mrf.mxu0
    %3255 = vdwg.mxu0
    %3256 = vmatprep.subr.mxu0 0.0
    %3257 = vmatpush1.msra.mxu0 0.0
    %3258 = vmatprep.subr.mxu0 0.0
    %3259 = vmatpush1.msra.mxu0 0.0
    %3260 = vmatprep.subr.mxu0 0.0
    %3261 = vmatpush1.msra.mxu0 0.0
    %3262 = vmatprep.subr.mxu0 0.0
    %3263 = vmatpush1.msra.mxu0 0.0
    %3264 = vmatprep.subr.mxu0 0.0
    %3265 = vmatpush1.msra.mxu0 0.0
    %3266 = vmatprep.subr.mxu0 0.0
    %3267 = vmatpush1.msra.mxu0 0.0
    %3268 = vmatprep.subr.mxu0 0.0
    %3269 = vmatpush1.msra.mxu0 0.0
    %3270 = vmatprep.subr.mxu0 0.0
    %3271 = vmatpush1.msra.mxu0 0.0
    %3272 = vmatprep.subr.mxu0 0.0
    %3273 = vmatpush1.msra.mxu0 0.0
    %3274 = vmatprep.subr.mxu0 0.0
    %3275 = vmatpush1.msra.mxu0 0.0
    %3276 = vmatprep.subr.mxu0 0.0
    %3277 = vmatpush1.msra.mxu0 0.0
    %3278 = vmatprep.subr.mxu0 0.0
    %3279 = vmatpush1.msra.mxu0 0.0
    %3280 = vmatprep.subr.mxu0 0.0
    %3281 = vmatpush1.msra.mxu0 %v694
    %3282 = vmatprep.subr.mxu0 0.0
    %3283 = vmatpush1.msra.mxu0 %v693
    %3284 = vmatprep.subr.mxu0 0.0
    %3285 = vmatpush1.msra.mxu0 %v692
    %3286 = vmatprep.subr.mxu0 0.0
    %3287 = vmatpush1.msra.mxu0 %v691
    %3288 = vmatprep.subr.mxu0 0.0
    %3289 = vmatpush2.msra.mxu0 0.0
    %3290 = vmatprep.subr.mxu0 0.0
    %3291 = vmatpush2.msra.mxu0 0.0
    %3292 = vmatprep.subr.mxu0 0.0
    %3293 = vmatpush2.msra.mxu0 0.0
    %3294 = vmatprep.subr.mxu0 0.0
    %3295 = vmatpush2.msra.mxu0 0.0
    %3296 = vmatprep.subr.mxu0 0.0
    %3297 = vmatpush2.msra.mxu0 0.0
    %3298 = vmatprep.subr.mxu0 0.0
    %3299 = vmatpush2.msra.mxu0 0.0
    %3300 = vmatprep.subr.mxu0 0.0
    %3301 = vmatpush2.msra.mxu0 0.0
    %3302 = vmatprep.subr.mxu0 0.0
    %3303 = vmatpush2.msra.mxu0 0.0
    %3304 = vmatprep.subr.mxu0 0.0
    %3305 = vmatpush2.msra.mxu0 0.0
    %3306 = vmatprep.subr.mxu0 0.0
    %3307 = vmatpush2.msra.mxu0 0.0
    %3308 = vmatprep.subr.mxu0 0.0
    %3309 = vmatpush2.msra.mxu0 0.0
    %3310 = vmatprep.subr.mxu0 0.0
    %3311 = vmatpush2.msra.mxu0 0.0
    %3312 = vmatprep.subr.mxu0 0.0
    %3313 = vmatpush2.msra.mxu0 0.0
    %3314 = vmatprep.subr.mxu0 0.0
    %3315 = vmatpush2.msra.mxu0 0.0
    %3316 = vmatprep.subr.mxu0 0.0
    %3317 = vmatpush2.msra.mxu0 0.0
    %3318 = vmatprep.subr.mxu0 0.0
    %3319 = vmatpush2.msra.mxu0 0.0
    %3320 = vmatprep.mubr.f32.mxu0 0.0
    %3321 = vmatmul.mubr.f32.gmra.mxu0 %v2655
    %v3322 = vpop.f32.mrf.mxu0
    %v3323 = vadd.f32 0.0, %v3322
    %v3324 = vpop.f32.mrf.mxu0
    %3325 = vdwg.mxu0
    %v3327 = vsel %vm241, %v3253, 0
    %3329 = vmatprep.subr.mxu0 0.0
    %3330 = vmatpush1.msra.mxu0 0.0
    %3331 = vmatprep.subr.mxu0 0.0
    %3332 = vmatpush1.msra.mxu0 0.0
    %3333 = vmatprep.subr.mxu0 0.0
    %3334 = vmatpush1.msra.mxu0 0.0
    %3335 = vmatprep.subr.mxu0 0.0
    %3336 = vmatpush1.msra.mxu0 0.0
    %3337 = vmatprep.subr.mxu0 0.0
    %3338 = vmatpush1.msra.mxu0 0.0
    %3339 = vmatprep.subr.mxu0 0.0
    %3340 = vmatpush1.msra.mxu0 0.0
    %3341 = vmatprep.subr.mxu0 0.0
    %3342 = vmatpush1.msra.mxu0 0.0
    %3343 = vmatprep.subr.mxu0 0.0
    %3344 = vmatpush1.msra.mxu0 0.0
    %3345 = vmatprep.subr.mxu0 0.0
    %3346 = vmatpush1.msra.mxu0 0.0
    %3347 = vmatprep.subr.mxu0 0.0
    %3348 = vmatpush1.msra.mxu0 0.0
    %3349 = vmatprep.subr.mxu0 0.0
    %3350 = vmatpush1.msra.mxu0 0.0
    %3351 = vmatprep.subr.mxu0 0.0
    %3352 = vmatpush1.msra.mxu0 0.0
    %3353 = vmatprep.subr.mxu0 0.0
    %3354 = vmatpush1.msra.mxu0 %v690
    %3355 = vmatprep.subr.mxu0 0.0
    %3356 = vmatpush1.msra.mxu0 %v689
    %3357 = vmatprep.subr.mxu0 0.0
    %3358 = vmatpush1.msra.mxu0 %v688
    %3359 = vmatprep.subr.mxu0 0.0
    %3360 = vmatpush1.msra.mxu0 %v687
    %3361 = vmatprep.subr.mxu0 0.0
    %3362 = vmatpush2.msra.mxu0 0.0
    %3363 = vmatprep.subr.mxu0 0.0
    %3364 = vmatpush2.msra.mxu0 0.0
    %3365 = vmatprep.subr.mxu0 0.0
    %3366 = vmatpush2.msra.mxu0 0.0
    %3367 = vmatprep.subr.mxu0 0.0
    %3368 = vmatpush2.msra.mxu0 0.0
    %3369 = vmatprep.subr.mxu0 0.0
    %3370 = vmatpush2.msra.mxu0 0.0
    %3371 = vmatprep.subr.mxu0 0.0
    %3372 = vmatpush2.msra.mxu0 0.0
    %3373 = vmatprep.subr.mxu0 0.0
    %3374 = vmatpush2.msra.mxu0 0.0
    %3375 = vmatprep.subr.mxu0 0.0
    %3376 = vmatpush2.msra.mxu0 0.0
    %3377 = vmatprep.subr.mxu0 0.0
    %3378 = vmatpush2.msra.mxu0 0.0
    %3379 = vmatprep.subr.mxu0 0.0
    %3380 = vmatpush2.msra.mxu0 0.0
    %3381 = vmatprep.subr.mxu0 0.0
    %3382 = vmatpush2.msra.mxu0 0.0
    %3383 = vmatprep.subr.mxu0 0.0
    %3384 = vmatpush2.msra.mxu0 0.0
    %3385 = vmatprep.subr.mxu0 0.0
    %3386 = vmatpush2.msra.mxu0 0.0
    %3387 = vmatprep.subr.mxu0 0.0
    %3388 = vmatpush2.msra.mxu0 0.0
    %3389 = vmatprep.subr.mxu0 0.0
    %3390 = vmatpush2.msra.mxu0 0.0
    %3391 = vmatprep.subr.mxu0 0.0
    %3392 = vmatpush2.msra.mxu0 0.0
    %3393 = vmatprep.mubr.f32.mxu0 0.0
    %3394 = vmatmul.mubr.f32.gmra.mxu0 %v3327
    %v3395 = vpop.f32.mrf.mxu0
    %v3396 = vadd.f32 %v3323, %v3395
    %v3397 = vpop.f32.mrf.mxu0
    %3398 = vdwg.mxu0
    %v3399 = vadd.f32 %v3396, %v843
    %v3400 = vxor.u32 %v3399, 2147483648
    %v3401 = vmul.f32 %v3400, 1.442695
    %v3402 = vpow.pop %v3401
    %v3403 = vadd.f32 %v3402, 1.0
    %v3404 = vrcp.pop %v3403
    %v3405 = vmul.f32 1.0, %v3404
    %3407 = vrot.lane.b32.xlu0 %v3399, 32
    %v3408 = vpop.permute.xlu0 %3407
    %v3410 = vmul.f32 %v3405, %v3408
    %3412 = vrot.lane.b32.xlu0 %v3410, 64
    %v3413 = vpop.permute.xlu0 %3412
    %v3415 = vadd.f32 %v3399, %v3413
    %v3416 = vtanh.pop %v3415
    %v3417 = vsub.f32 1.0, %v3405
    %3419 = vrot.lane.b32.xlu0 %v3416, 96
    %v3420 = vpop.permute.xlu0 %3419
    %v3422 = vmul.f32 %v3417, %v3420
    %v3423 = vmul.f32 %v3405, %v2576
    %v3424 = vadd.f32 %v3422, %v3423
    %3426 = vrot.lane.b32.xlu0 %v2752, 96
    %v3427 = vpop.permute.xlu0 %3426
    %v3428 = vsel %vm241, %v3427, 0
    %3430 = vmatprep.subr.mxu0 0.0
    %3431 = vmatpush1.msra.mxu0 0.0
    %3432 = vmatprep.subr.mxu0 0.0
    %3433 = vmatpush1.msra.mxu0 0.0
    %3434 = vmatprep.subr.mxu0 0.0
    %3435 = vmatpush1.msra.mxu0 0.0
    %3436 = vmatprep.subr.mxu0 0.0
    %3437 = vmatpush1.msra.mxu0 0.0
    %3438 = vmatprep.subr.mxu0 0.0
    %3439 = vmatpush1.msra.mxu0 0.0
    %3440 = vmatprep.subr.mxu0 0.0
    %3441 = vmatpush1.msra.mxu0 0.0
    %3442 = vmatprep.subr.mxu0 0.0
    %3443 = vmatpush1.msra.mxu0 0.0
    %3444 = vmatprep.subr.mxu0 0.0
    %3445 = vmatpush1.msra.mxu0 0.0
    %3446 = vmatprep.subr.mxu0 0.0
    %3447 = vmatpush1.msra.mxu0 0.0
    %3448 = vmatprep.subr.mxu0 0.0
    %3449 = vmatpush1.msra.mxu0 0.0
    %3450 = vmatprep.subr.mxu0 0.0
    %3451 = vmatpush1.msra.mxu0 0.0
    %3452 = vmatprep.subr.mxu0 0.0
    %3453 = vmatpush1.msra.mxu0 0.0
    %3454 = vmatprep.subr.mxu0 0.0
    %3455 = vmatpush1.msra.mxu0 %v878
    %3456 = vmatprep.subr.mxu0 0.0
    %3457 = vmatpush1.msra.mxu0 %v877
    %3458 = vmatprep.subr.mxu0 0.0
    %3459 = vmatpush1.msra.mxu0 %v876
    %3460 = vmatprep.subr.mxu0 0.0
    %3461 = vmatpush1.msra.mxu0 %v875
    %3462 = vmatprep.subr.mxu0 0.0
    %3463 = vmatpush2.msra.mxu0 0.0
    %3464 = vmatprep.subr.mxu0 0.0
    %3465 = vmatpush2.msra.mxu0 0.0
    %3466 = vmatprep.subr.mxu0 0.0
    %3467 = vmatpush2.msra.mxu0 0.0
    %3468 = vmatprep.subr.mxu0 0.0
    %3469 = vmatpush2.msra.mxu0 0.0
    %3470 = vmatprep.subr.mxu0 0.0
    %3471 = vmatpush2.msra.mxu0 0.0
    %3472 = vmatprep.subr.mxu0 0.0
    %3473 = vmatpush2.msra.mxu0 0.0
    %3474 = vmatprep.subr.mxu0 0.0
    %3475 = vmatpush2.msra.mxu0 0.0
    %3476 = vmatprep.subr.mxu0 0.0
    %3477 = vmatpush2.msra.mxu0 0.0
    %3478 = vmatprep.subr.mxu0 0.0
    %3479 = vmatpush2.msra.mxu0 0.0
    %3480 = vmatprep.subr.mxu0 0.0
    %3481 = vmatpush2.msra.mxu0 0.0
    %3482 = vmatprep.subr.mxu0 0.0
    %3483 = vmatpush2.msra.mxu0 0.0
    %3484 = vmatprep.subr.mxu0 0.0
    %3485 = vmatpush2.msra.mxu0 0.0
    %3486 = vmatprep.subr.mxu0 0.0
    %3487 = vmatpush2.msra.mxu0 0.0
    %3488 = vmatprep.subr.mxu0 0.0
    %3489 = vmatpush2.msra.mxu0 0.0
    %3490 = vmatprep.subr.mxu0 0.0
    %3491 = vmatpush2.msra.mxu0 0.0
    %3492 = vmatprep.subr.mxu0 0.0
    %3493 = vmatpush2.msra.mxu0 0.0
    %3494 = vmatprep.mubr.f32.mxu0 0.0
    %3495 = vmatmul.mubr.f32.gmra.mxu0 %v3428
    %v3496 = vpop.f32.mrf.mxu0
    %v3497 = vadd.f32 0.0, %v3496
    %v3498 = vpop.f32.mrf.mxu0
    %3499 = vdwg.mxu0
    %3501 = vrot.lane.b32.xlu0 %v3424, 96
    %v3502 = vpop.permute.xlu0 %3501
    %v3503 = vsel %vm241, %v3502, 0
    %3505 = vmatprep.subr.mxu0 0.0
    %3506 = vmatpush1.msra.mxu0 0.0
    %3507 = vmatprep.subr.mxu0 0.0
    %3508 = vmatpush1.msra.mxu0 0.0
    %3509 = vmatprep.subr.mxu0 0.0
    %3510 = vmatpush1.msra.mxu0 0.0
    %3511 = vmatprep.subr.mxu0 0.0
    %3512 = vmatpush1.msra.mxu0 0.0
    %3513 = vmatprep.subr.mxu0 0.0
    %3514 = vmatpush1.msra.mxu0 0.0
    %3515 = vmatprep.subr.mxu0 0.0
    %3516 = vmatpush1.msra.mxu0 0.0
    %3517 = vmatprep.subr.mxu0 0.0
    %3518 = vmatpush1.msra.mxu0 0.0
    %3519 = vmatprep.subr.mxu0 0.0
    %3520 = vmatpush1.msra.mxu0 0.0
    %3521 = vmatprep.subr.mxu0 0.0
    %3522 = vmatpush1.msra.mxu0 0.0
    %3523 = vmatprep.subr.mxu0 0.0
    %3524 = vmatpush1.msra.mxu0 0.0
    %3525 = vmatprep.subr.mxu0 0.0
    %3526 = vmatpush1.msra.mxu0 0.0
    %3527 = vmatprep.subr.mxu0 0.0
    %3528 = vmatpush1.msra.mxu0 0.0
    %3529 = vmatprep.subr.mxu0 0.0
    %3530 = vmatpush1.msra.mxu0 %v874
    %3531 = vmatprep.subr.mxu0 0.0
    %3532 = vmatpush1.msra.mxu0 %v873
    %3533 = vmatprep.subr.mxu0 0.0
    %3534 = vmatpush1.msra.mxu0 %v872
    %3535 = vmatprep.subr.mxu0 0.0
    %3536 = vmatpush1.msra.mxu0 %v871
    %3537 = vmatprep.subr.mxu0 0.0
    %3538 = vmatpush2.msra.mxu0 0.0
    %3539 = vmatprep.subr.mxu0 0.0
    %3540 = vmatpush2.msra.mxu0 0.0
    %3541 = vmatprep.subr.mxu0 0.0
    %3542 = vmatpush2.msra.mxu0 0.0
    %3543 = vmatprep.subr.mxu0 0.0
    %3544 = vmatpush2.msra.mxu0 0.0
    %3545 = vmatprep.subr.mxu0 0.0
    %3546 = vmatpush2.msra.mxu0 0.0
    %3547 = vmatprep.subr.mxu0 0.0
    %3548 = vmatpush2.msra.mxu0 0.0
    %3549 = vmatprep.subr.mxu0 0.0
    %3550 = vmatpush2.msra.mxu0 0.0
    %3551 = vmatprep.subr.mxu0 0.0
    %3552 = vmatpush2.msra.mxu0 0.0
    %3553 = vmatprep.subr.mxu0 0.0
    %3554 = vmatpush2.msra.mxu0 0.0
    %3555 = vmatprep.subr.mxu0 0.0
    %3556 = vmatpush2.msra.mxu0 0.0
    %3557 = vmatprep.subr.mxu0 0.0
    %3558 = vmatpush2.msra.mxu0 0.0
    %3559 = vmatprep.subr.mxu0 0.0
    %3560 = vmatpush2.msra.mxu0 0.0
    %3561 = vmatprep.subr.mxu0 0.0
    %3562 = vmatpush2.msra.mxu0 0.0
    %3563 = vmatprep.subr.mxu0 0.0
    %3564 = vmatpush2.msra.mxu0 0.0
    %3565 = vmatprep.subr.mxu0 0.0
    %3566 = vmatpush2.msra.mxu0 0.0
    %3567 = vmatprep.subr.mxu0 0.0
    %3568 = vmatpush2.msra.mxu0 0.0
    %3569 = vmatprep.mubr.f32.mxu0 0.0
    %3570 = vmatmul.mubr.f32.gmra.mxu0 %v3503
    %v3571 = vpop.f32.mrf.mxu0
    %v3572 = vadd.f32 %v3497, %v3571
    %v3573 = vpop.f32.mrf.mxu0
    %3574 = vdwg.mxu0
    %v3575 = vadd.f32 %v3572, %v1029
    %v3576 = vxor.u32 %v3575, 2147483648
    %v3577 = vmul.f32 %v3576, 1.442695
    %v3578 = vpow.pop %v3577
    %v3579 = vadd.f32 %v3578, 1.0
    %v3580 = vrcp.pop %v3579
    %v3581 = vmul.f32 1.0, %v3580
    %3583 = vrot.lane.b32.xlu0 %v3575, 32
    %v3584 = vpop.permute.xlu0 %3583
    %v3586 = vmul.f32 %v3581, %v3584
    %3588 = vrot.lane.b32.xlu0 %v3586, 64
    %v3589 = vpop.permute.xlu0 %3588
    %v3591 = vadd.f32 %v3575, %v3589
    %v3592 = vtanh.pop %v3591
    %v3593 = vsub.f32 1.0, %v3581
    %3595 = vrot.lane.b32.xlu0 %v3592, 96
    %v3596 = vpop.permute.xlu0 %3595
    %v3598 = vmul.f32 %v3593, %v3596
    %v3599 = vmul.f32 %v3581, %v2752
    %v3600 = vadd.f32 %v3598, %v3599
    %3601 = vset.pattern.permute.xlu0 4
    %3602 = vperm.xlu0 %3601, %v141
    %v3603 = vpop.permute.xlu0 %3602
    %vm3604 = vcmp.eq.s32.totalorder %v3603, %v140
    %v3605 = vsel %vm3604, 1, 0
    %v3606 = vcvt.s32.f32 %v3605
    %v3608 = vsel %vm155, %v3606, 0
    %3610 = vmatprep.subr.mxu0 0.0
    %3611 = vmatpush1.msra.mxu0 0.0
    %3612 = vmatprep.subr.mxu0 0.0
    %3613 = vmatpush1.msra.mxu0 0.0
    %3614 = vmatprep.subr.mxu0 0.0
    %3615 = vmatpush1.msra.mxu0 0.0
    %3616 = vmatprep.subr.mxu0 0.0
    %3617 = vmatpush1.msra.mxu0 0.0
    %3618 = vmatprep.subr.mxu0 0.0
    %3619 = vmatpush1.msra.mxu0 0.0
    %3620 = vmatprep.subr.mxu0 0.0
    %3621 = vmatpush1.msra.mxu0 0.0
    %3622 = vmatprep.subr.mxu0 0.0
    %3623 = vmatpush1.msra.mxu0 0.0
    %3624 = vmatprep.subr.mxu0 0.0
    %3625 = vmatpush1.msra.mxu0 0.0
    %3626 = vmatprep.subr.mxu0 0.0
    %3627 = vmatpush1.msra.mxu0 0.0
    %3628 = vmatprep.subr.mxu0 0.0
    %3629 = vmatpush1.msra.mxu0 %v161
    %3630 = vmatprep.subr.mxu0 0.0
    %3631 = vmatpush1.msra.mxu0 %v153
    %3632 = vmatprep.subr.mxu0 0.0
    %3633 = vmatpush1.msra.mxu0 %v152
    %3634 = vmatprep.subr.mxu0 0.0
    %3635 = vmatpush1.msra.mxu0 %v151
    %3636 = vmatprep.subr.mxu0 0.0
    %3637 = vmatpush1.msra.mxu0 %v150
    %3638 = vmatprep.subr.mxu0 0.0
    %3639 = vmatpush1.msra.mxu0 %v149
    %3640 = vmatprep.subr.mxu0 0.0
    %3641 = vmatpush1.msra.mxu0 %v148
    %3642 = vmatprep.subr.mxu0 0.0
    %3643 = vmatpush2.msra.mxu0 0.0
    %3644 = vmatprep.subr.mxu0 0.0
    %3645 = vmatpush2.msra.mxu0 0.0
    %3646 = vmatprep.subr.mxu0 0.0
    %3647 = vmatpush2.msra.mxu0 0.0
    %3648 = vmatprep.subr.mxu0 0.0
    %3649 = vmatpush2.msra.mxu0 0.0
    %3650 = vmatprep.subr.mxu0 0.0
    %3651 = vmatpush2.msra.mxu0 0.0
    %3652 = vmatprep.subr.mxu0 0.0
    %3653 = vmatpush2.msra.mxu0 0.0
    %3654 = vmatprep.subr.mxu0 0.0
    %3655 = vmatpush2.msra.mxu0 0.0
    %3656 = vmatprep.subr.mxu0 0.0
    %3657 = vmatpush2.msra.mxu0 0.0
    %3658 = vmatprep.subr.mxu0 0.0
    %3659 = vmatpush2.msra.mxu0 0.0
    %3660 = vmatprep.subr.mxu0 0.0
    %3661 = vmatpush2.msra.mxu0 0.0
    %3662 = vmatprep.subr.mxu0 0.0
    %3663 = vmatpush2.msra.mxu0 0.0
    %3664 = vmatprep.subr.mxu0 0.0
    %3665 = vmatpush2.msra.mxu0 0.0
    %3666 = vmatprep.subr.mxu0 0.0
    %3667 = vmatpush2.msra.mxu0 0.0
    %3668 = vmatprep.subr.mxu0 0.0
    %3669 = vmatpush2.msra.mxu0 0.0
    %3670 = vmatprep.subr.mxu0 0.0
    %3671 = vmatpush2.msra.mxu0 0.0
    %3672 = vmatprep.subr.mxu0 0.0
    %3673 = vmatpush2.msra.mxu0 0.0
    %3674 = vmatprep.mubr.f32.mxu0 0.0
    %3675 = vmatmul.mubr.f32.gmra.mxu0 %v3608
    %v3676 = vpop.f32.mrf.mxu0
    %v3677 = vadd.f32 0.0, %v3676
    %v3678 = vpop.f32.mrf.mxu0
    %3679 = vdwg.mxu0
    %3680 = vmatprep.subr.mxu0 0.0
    %3681 = vmatpush1.msra.mxu0 0.0
    %3682 = vmatprep.subr.mxu0 0.0
    %3683 = vmatpush1.msra.mxu0 0.0
    %3684 = vmatprep.subr.mxu0 0.0
    %3685 = vmatpush1.msra.mxu0 0.0
    %3686 = vmatprep.subr.mxu0 0.0
    %3687 = vmatpush1.msra.mxu0 0.0
    %3688 = vmatprep.subr.mxu0 0.0
    %3689 = vmatpush1.msra.mxu0 0.0
    %3690 = vmatprep.subr.mxu0 0.0
    %3691 = vmatpush1.msra.mxu0 0.0
    %3692 = vmatprep.subr.mxu0 0.0
    %3693 = vmatpush1.msra.mxu0 0.0
    %3694 = vmatprep.subr.mxu0 0.0
    %3695 = vmatpush1.msra.mxu0 0.0
    %3696 = vmatprep.subr.mxu0 0.0
    %3697 = vmatpush1.msra.mxu0 0.0
    %3698 = vmatprep.subr.mxu0 0.0
    %3699 = vmatpush1.msra.mxu0 0.0
    %3700 = vmatprep.subr.mxu0 0.0
    %3701 = vmatpush1.msra.mxu0 0.0
    %3702 = vmatprep.subr.mxu0 0.0
    %3703 = vmatpush1.msra.mxu0 0.0
    %3704 = vmatprep.subr.mxu0 0.0
    %3705 = vmatpush1.msra.mxu0 %v240
    %3706 = vmatprep.subr.mxu0 0.0
    %3707 = vmatpush1.msra.mxu0 %v239
    %3708 = vmatprep.subr.mxu0 0.0
    %3709 = vmatpush1.msra.mxu0 %v238
    %3710 = vmatprep.subr.mxu0 0.0
    %3711 = vmatpush1.msra.mxu0 %v237
    %3712 = vmatprep.subr.mxu0 0.0
    %3713 = vmatpush2.msra.mxu0 0.0
    %3714 = vmatprep.subr.mxu0 0.0
    %3715 = vmatpush2.msra.mxu0 0.0
    %3716 = vmatprep.subr.mxu0 0.0
    %3717 = vmatpush2.msra.mxu0 0.0
    %3718 = vmatprep.subr.mxu0 0.0
    %3719 = vmatpush2.msra.mxu0 0.0
    %3720 = vmatprep.subr.mxu0 0.0
    %3721 = vmatpush2.msra.mxu0 0.0
    %3722 = vmatprep.subr.mxu0 0.0
    %3723 = vmatpush2.msra.mxu0 0.0
    %3724 = vmatprep.subr.mxu0 0.0
    %3725 = vmatpush2.msra.mxu0 0.0
    %3726 = vmatprep.subr.mxu0 0.0
    %3727 = vmatpush2.msra.mxu0 0.0
    %3728 = vmatprep.subr.mxu0 0.0
    %3729 = vmatpush2.msra.mxu0 0.0
    %3730 = vmatprep.subr.mxu0 0.0
    %3731 = vmatpush2.msra.mxu0 0.0
    %3732 = vmatprep.subr.mxu0 0.0
    %3733 = vmatpush2.msra.mxu0 0.0
    %3734 = vmatprep.subr.mxu0 0.0
    %3735 = vmatpush2.msra.mxu0 0.0
    %3736 = vmatprep.subr.mxu0 0.0
    %3737 = vmatpush2.msra.mxu0 0.0
    %3738 = vmatprep.subr.mxu0 0.0
    %3739 = vmatpush2.msra.mxu0 0.0
    %3740 = vmatprep.subr.mxu0 0.0
    %3741 = vmatpush2.msra.mxu0 0.0
    %3742 = vmatprep.subr.mxu0 0.0
    %3743 = vmatpush2.msra.mxu0 0.0
    %3744 = vmatprep.mubr.f32.mxu0 0.0
    %3745 = vmatmul.mubr.f32.gmra.mxu0 %v3079
    %v3746 = vpop.f32.mrf.mxu0
    %v3747 = vadd.f32 0.0, %v3746
    %v3748 = vpop.f32.mrf.mxu0
    %3749 = vdwg.mxu0
    %v3751 = vsel %vm241, %v3677, 0
    %3753 = vmatprep.subr.mxu0 0.0
    %3754 = vmatpush1.msra.mxu0 0.0
    %3755 = vmatprep.subr.mxu0 0.0
    %3756 = vmatpush1.msra.mxu0 0.0
    %3757 = vmatprep.subr.mxu0 0.0
    %3758 = vmatpush1.msra.mxu0 0.0
    %3759 = vmatprep.subr.mxu0 0.0
    %3760 = vmatpush1.msra.mxu0 0.0
    %3761 = vmatprep.subr.mxu0 0.0
    %3762 = vmatpush1.msra.mxu0 0.0
    %3763 = vmatprep.subr.mxu0 0.0
    %3764 = vmatpush1.msra.mxu0 0.0
    %3765 = vmatprep.subr.mxu0 0.0
    %3766 = vmatpush1.msra.mxu0 0.0
    %3767 = vmatprep.subr.mxu0 0.0
    %3768 = vmatpush1.msra.mxu0 0.0
    %3769 = vmatprep.subr.mxu0 0.0
    %3770 = vmatpush1.msra.mxu0 0.0
    %3771 = vmatprep.subr.mxu0 0.0
    %3772 = vmatpush1.msra.mxu0 0.0
    %3773 = vmatprep.subr.mxu0 0.0
    %3774 = vmatpush1.msra.mxu0 0.0
    %3775 = vmatprep.subr.mxu0 0.0
    %3776 = vmatpush1.msra.mxu0 0.0
    %3777 = vmatprep.subr.mxu0 0.0
    %3778 = vmatpush1.msra.mxu0 %v236
    %3779 = vmatprep.subr.mxu0 0.0
    %3780 = vmatpush1.msra.mxu0 %v235
    %3781 = vmatprep.subr.mxu0 0.0
    %3782 = vmatpush1.msra.mxu0 %v234
    %3783 = vmatprep.subr.mxu0 0.0
    %3784 = vmatpush1.msra.mxu0 %v233
    %3785 = vmatprep.subr.mxu0 0.0
    %3786 = vmatpush2.msra.mxu0 0.0
    %3787 = vmatprep.subr.mxu0 0.0
    %3788 = vmatpush2.msra.mxu0 0.0
    %3789 = vmatprep.subr.mxu0 0.0
    %3790 = vmatpush2.msra.mxu0 0.0
    %3791 = vmatprep.subr.mxu0 0.0
    %3792 = vmatpush2.msra.mxu0 0.0
    %3793 = vmatprep.subr.mxu0 0.0
    %3794 = vmatpush2.msra.mxu0 0.0
    %3795 = vmatprep.subr.mxu0 0.0
    %3796 = vmatpush2.msra.mxu0 0.0
    %3797 = vmatprep.subr.mxu0 0.0
    %3798 = vmatpush2.msra.mxu0 0.0
    %3799 = vmatprep.subr.mxu0 0.0
    %3800 = vmatpush2.msra.mxu0 0.0
    %3801 = vmatprep.subr.mxu0 0.0
    %3802 = vmatpush2.msra.mxu0 0.0
    %3803 = vmatprep.subr.mxu0 0.0
    %3804 = vmatpush2.msra.mxu0 0.0
    %3805 = vmatprep.subr.mxu0 0.0
    %3806 = vmatpush2.msra.mxu0 0.0
    %3807 = vmatprep.subr.mxu0 0.0
    %3808 = vmatpush2.msra.mxu0 0.0
    %3809 = vmatprep.subr.mxu0 0.0
    %3810 = vmatpush2.msra.mxu0 0.0
    %3811 = vmatprep.subr.mxu0 0.0
    %3812 = vmatpush2.msra.mxu0 0.0
    %3813 = vmatprep.subr.mxu0 0.0
    %3814 = vmatpush2.msra.mxu0 0.0
    %3815 = vmatprep.subr.mxu0 0.0
    %3816 = vmatpush2.msra.mxu0 0.0
    %3817 = vmatprep.mubr.f32.mxu0 0.0
    %3818 = vmatmul.mubr.f32.gmra.mxu0 %v3751
    %v3819 = vpop.f32.mrf.mxu0
    %v3820 = vadd.f32 %v3747, %v3819
    %v3821 = vpop.f32.mrf.mxu0
    %3822 = vdwg.mxu0
    %v3823 = vadd.f32 %v3820, %v393
    %v3824 = vxor.u32 %v3823, 2147483648
    %v3825 = vmul.f32 %v3824, 1.442695
    %v3826 = vpow.pop %v3825
    %v3827 = vadd.f32 %v3826, 1.0
    %v3828 = vrcp.pop %v3827
    %v3829 = vmul.f32 1.0, %v3828
    %3831 = vrot.lane.b32.xlu0 %v3823, 32
    %v3832 = vpop.permute.xlu0 %3831
    %v3834 = vmul.f32 %v3829, %v3832
    %3836 = vrot.lane.b32.xlu0 %v3834, 64
    %v3837 = vpop.permute.xlu0 %3836
    %v3839 = vadd.f32 %v3823, %v3837
    %v3840 = vtanh.pop %v3839
    %v3841 = vsub.f32 1.0, %v3829
    %3843 = vrot.lane.b32.xlu0 %v3840, 96
    %v3844 = vpop.permute.xlu0 %3843
    %v3846 = vmul.f32 %v3841, %v3844
    %v3847 = vmul.f32 %v3829, %v3000
    %v3848 = vadd.f32 %v3846, %v3847
    %3850 = vrot.lane.b32.xlu0 %v3176, 96
    %v3851 = vpop.permute.xlu0 %3850
    %v3852 = vsel %vm241, %v3851, 0
    %3854 = vmatprep.subr.mxu0 0.0
    %3855 = vmatpush1.msra.mxu0 0.0
    %3856 = vmatprep.subr.mxu0 0.0
    %3857 = vmatpush1.msra.mxu0 0.0
    %3858 = vmatprep.subr.mxu0 0.0
    %3859 = vmatpush1.msra.mxu0 0.0
    %3860 = vmatprep.subr.mxu0 0.0
    %3861 = vmatpush1.msra.mxu0 0.0
    %3862 = vmatprep.subr.mxu0 0.0
    %3863 = vmatpush1.msra.mxu0 0.0
    %3864 = vmatprep.subr.mxu0 0.0
    %3865 = vmatpush1.msra.mxu0 0.0
    %3866 = vmatprep.subr.mxu0 0.0
    %3867 = vmatpush1.msra.mxu0 0.0
    %3868 = vmatprep.subr.mxu0 0.0
    %3869 = vmatpush1.msra.mxu0 0.0
    %3870 = vmatprep.subr.mxu0 0.0
    %3871 = vmatpush1.msra.mxu0 0.0
    %3872 = vmatprep.subr.mxu0 0.0
    %3873 = vmatpush1.msra.mxu0 0.0
    %3874 = vmatprep.subr.mxu0 0.0
    %3875 = vmatpush1.msra.mxu0 0.0
    %3876 = vmatprep.subr.mxu0 0.0
    %3877 = vmatpush1.msra.mxu0 0.0
    %3878 = vmatprep.subr.mxu0 0.0
    %3879 = vmatpush1.msra.mxu0 %v428
    %3880 = vmatprep.subr.mxu0 0.0
    %3881 = vmatpush1.msra.mxu0 %v427
    %3882 = vmatprep.subr.mxu0 0.0
    %3883 = vmatpush1.msra.mxu0 %v426
    %3884 = vmatprep.subr.mxu0 0.0
    %3885 = vmatpush1.msra.mxu0 %v425
    %3886 = vmatprep.subr.mxu0 0.0
    %3887 = vmatpush2.msra.mxu0 0.0
    %3888 = vmatprep.subr.mxu0 0.0
    %3889 = vmatpush2.msra.mxu0 0.0
    %3890 = vmatprep.subr.mxu0 0.0
    %3891 = vmatpush2.msra.mxu0 0.0
    %3892 = vmatprep.subr.mxu0 0.0
    %3893 = vmatpush2.msra.mxu0 0.0
    %3894 = vmatprep.subr.mxu0 0.0
    %3895 = vmatpush2.msra.mxu0 0.0
    %3896 = vmatprep.subr.mxu0 0.0
    %3897 = vmatpush2.msra.mxu0 0.0
    %3898 = vmatprep.subr.mxu0 0.0
    %3899 = vmatpush2.msra.mxu0 0.0
    %3900 = vmatprep.subr.mxu0 0.0
    %3901 = vmatpush2.msra.mxu0 0.0
    %3902 = vmatprep.subr.mxu0 0.0
    %3903 = vmatpush2.msra.mxu0 0.0
    %3904 = vmatprep.subr.mxu0 0.0
    %3905 = vmatpush2.msra.mxu0 0.0
    %3906 = vmatprep.subr.mxu0 0.0
    %3907 = vmatpush2.msra.mxu0 0.0
    %3908 = vmatprep.subr.mxu0 0.0
    %3909 = vmatpush2.msra.mxu0 0.0
    %3910 = vmatprep.subr.mxu0 0.0
    %3911 = vmatpush2.msra.mxu0 0.0
    %3912 = vmatprep.subr.mxu0 0.0
    %3913 = vmatpush2.msra.mxu0 0.0
    %3914 = vmatprep.subr.mxu0 0.0
    %3915 = vmatpush2.msra.mxu0 0.0
    %3916 = vmatprep.subr.mxu0 0.0
    %3917 = vmatpush2.msra.mxu0 0.0
    %3918 = vmatprep.mubr.f32.mxu0 0.0
    %3919 = vmatmul.mubr.f32.gmra.mxu0 %v3852
    %v3920 = vpop.f32.mrf.mxu0
    %v3921 = vadd.f32 0.0, %v3920
    %v3922 = vpop.f32.mrf.mxu0
    %3923 = vdwg.mxu0
    %3925 = vrot.lane.b32.xlu0 %v3848, 96
    %v3926 = vpop.permute.xlu0 %3925
    %v3927 = vsel %vm241, %v3926, 0
    %3929 = vmatprep.subr.mxu0 0.0
    %3930 = vmatpush1.msra.mxu0 0.0
    %3931 = vmatprep.subr.mxu0 0.0
    %3932 = vmatpush1.msra.mxu0 0.0
    %3933 = vmatprep.subr.mxu0 0.0
    %3934 = vmatpush1.msra.mxu0 0.0
    %3935 = vmatprep.subr.mxu0 0.0
    %3936 = vmatpush1.msra.mxu0 0.0
    %3937 = vmatprep.subr.mxu0 0.0
    %3938 = vmatpush1.msra.mxu0 0.0
    %3939 = vmatprep.subr.mxu0 0.0
    %3940 = vmatpush1.msra.mxu0 0.0
    %3941 = vmatprep.subr.mxu0 0.0
    %3942 = vmatpush1.msra.mxu0 0.0
    %3943 = vmatprep.subr.mxu0 0.0
    %3944 = vmatpush1.msra.mxu0 0.0
    %3945 = vmatprep.subr.mxu0 0.0
    %3946 = vmatpush1.msra.mxu0 0.0
    %3947 = vmatprep.subr.mxu0 0.0
    %3948 = vmatpush1.msra.mxu0 0.0
    %3949 = vmatprep.subr.mxu0 0.0
    %3950 = vmatpush1.msra.mxu0 0.0
    %3951 = vmatprep.subr.mxu0 0.0
    %3952 = vmatpush1.msra.mxu0 0.0
    %3953 = vmatprep.subr.mxu0 0.0
    %3954 = vmatpush1.msra.mxu0 %v424
    %3955 = vmatprep.subr.mxu0 0.0
    %3956 = vmatpush1.msra.mxu0 %v423
    %3957 = vmatprep.subr.mxu0 0.0
    %3958 = vmatpush1.msra.mxu0 %v422
    %3959 = vmatprep.subr.mxu0 0.0
    %3960 = vmatpush1.msra.mxu0 %v421
    %3961 = vmatprep.subr.mxu0 0.0
    %3962 = vmatpush2.msra.mxu0 0.0
    %3963 = vmatprep.subr.mxu0 0.0
    %3964 = vmatpush2.msra.mxu0 0.0
    %3965 = vmatprep.subr.mxu0 0.0
    %3966 = vmatpush2.msra.mxu0 0.0
    %3967 = vmatprep.subr.mxu0 0.0
    %3968 = vmatpush2.msra.mxu0 0.0
    %3969 = vmatprep.subr.mxu0 0.0
    %3970 = vmatpush2.msra.mxu0 0.0
    %3971 = vmatprep.subr.mxu0 0.0
    %3972 = vmatpush2.msra.mxu0 0.0
    %3973 = vmatprep.subr.mxu0 0.0
    %3974 = vmatpush2.msra.mxu0 0.0
    %3975 = vmatprep.subr.mxu0 0.0
    %3976 = vmatpush2.msra.mxu0 0.0
    %3977 = vmatprep.subr.mxu0 0.0
    %3978 = vmatpush2.msra.mxu0 0.0
    %3979 = vmatprep.subr.mxu0 0.0
    %3980 = vmatpush2.msra.mxu0 0.0
    %3981 = vmatprep.subr.mxu0 0.0
    %3982 = vmatpush2.msra.mxu0 0.0
    %3983 = vmatprep.subr.mxu0 0.0
    %3984 = vmatpush2.msra.mxu0 0.0
    %3985 = vmatprep.subr.mxu0 0.0
    %3986 = vmatpush2.msra.mxu0 0.0
    %3987 = vmatprep.subr.mxu0 0.0
    %3988 = vmatpush2.msra.mxu0 0.0
    %3989 = vmatprep.subr.mxu0 0.0
    %3990 = vmatpush2.msra.mxu0 0.0
    %3991 = vmatprep.subr.mxu0 0.0
    %3992 = vmatpush2.msra.mxu0 0.0
    %3993 = vmatprep.mubr.f32.mxu0 0.0
    %3994 = vmatmul.mubr.f32.gmra.mxu0 %v3927
    %v3995 = vpop.f32.mrf.mxu0
    %v3996 = vadd.f32 %v3921, %v3995
    %v3997 = vpop.f32.mrf.mxu0
    %3998 = vdwg.mxu0
    %v3999 = vadd.f32 %v3996, %v579
    %v4000 = vxor.u32 %v3999, 2147483648
    %v4001 = vmul.f32 %v4000, 1.442695
    %v4002 = vpow.pop %v4001
    %v4003 = vadd.f32 %v4002, 1.0
    %v4004 = vrcp.pop %v4003
    %v4005 = vmul.f32 1.0, %v4004
    %4007 = vrot.lane.b32.xlu0 %v3999, 32
    %v4008 = vpop.permute.xlu0 %4007
    %v4010 = vmul.f32 %v4005, %v4008
    %4012 = vrot.lane.b32.xlu0 %v4010, 64
    %v4013 = vpop.permute.xlu0 %4012
    %v4015 = vadd.f32 %v3999, %v4013
    %v4016 = vtanh.pop %v4015
    %v4017 = vsub.f32 1.0, %v4005
    %4019 = vrot.lane.b32.xlu0 %v4016, 96
    %v4020 = vpop.permute.xlu0 %4019
    %v4022 = vmul.f32 %v4017, %v4020
    %v4023 = vmul.f32 %v4005, %v3176
    %v4024 = vadd.f32 %v4022, %v4023
    %4025 = vset.pattern.permute.xlu0 4
    %4026 = vperm.xlu0 %4025, %v607
    %v4027 = vpop.permute.xlu0 %4026
    %vm4028 = vcmp.eq.s32.totalorder %v4027, %v140
    %v4029 = vsel %vm4028, 1, 0
    %v4030 = vcvt.s32.f32 %v4029
    %v4032 = vsel %vm155, %v4030, 0
    %4034 = vmatprep.subr.mxu0 0.0
    %4035 = vmatpush1.msra.mxu0 0.0
    %4036 = vmatprep.subr.mxu0 0.0
    %4037 = vmatpush1.msra.mxu0 0.0
    %4038 = vmatprep.subr.mxu0 0.0
    %4039 = vmatpush1.msra.mxu0 0.0
    %4040 = vmatprep.subr.mxu0 0.0
    %4041 = vmatpush1.msra.mxu0 0.0
    %4042 = vmatprep.subr.mxu0 0.0
    %4043 = vmatpush1.msra.mxu0 0.0
    %4044 = vmatprep.subr.mxu0 0.0
    %4045 = vmatpush1.msra.mxu0 0.0
    %4046 = vmatprep.subr.mxu0 0.0
    %4047 = vmatpush1.msra.mxu0 0.0
    %4048 = vmatprep.subr.mxu0 0.0
    %4049 = vmatpush1.msra.mxu0 0.0
    %4050 = vmatprep.subr.mxu0 0.0
    %4051 = vmatpush1.msra.mxu0 0.0
    %4052 = vmatprep.subr.mxu0 0.0
    %4053 = vmatpush1.msra.mxu0 %v161
    %4054 = vmatprep.subr.mxu0 0.0
    %4055 = vmatpush1.msra.mxu0 %v153
    %4056 = vmatprep.subr.mxu0 0.0
    %4057 = vmatpush1.msra.mxu0 %v152
    %4058 = vmatprep.subr.mxu0 0.0
    %4059 = vmatpush1.msra.mxu0 %v151
    %4060 = vmatprep.subr.mxu0 0.0
    %4061 = vmatpush1.msra.mxu0 %v150
    %4062 = vmatprep.subr.mxu0 0.0
    %4063 = vmatpush1.msra.mxu0 %v149
    %4064 = vmatprep.subr.mxu0 0.0
    %4065 = vmatpush1.msra.mxu0 %v148
    %4066 = vmatprep.subr.mxu0 0.0
    %4067 = vmatpush2.msra.mxu0 0.0
    %4068 = vmatprep.subr.mxu0 0.0
    %4069 = vmatpush2.msra.mxu0 0.0
    %4070 = vmatprep.subr.mxu0 0.0
    %4071 = vmatpush2.msra.mxu0 0.0
    %4072 = vmatprep.subr.mxu0 0.0
    %4073 = vmatpush2.msra.mxu0 0.0
    %4074 = vmatprep.subr.mxu0 0.0
    %4075 = vmatpush2.msra.mxu0 0.0
    %4076 = vmatprep.subr.mxu0 0.0
    %4077 = vmatpush2.msra.mxu0 0.0
    %4078 = vmatprep.subr.mxu0 0.0
    %4079 = vmatpush2.msra.mxu0 0.0
    %4080 = vmatprep.subr.mxu0 0.0
    %4081 = vmatpush2.msra.mxu0 0.0
    %4082 = vmatprep.subr.mxu0 0.0
    %4083 = vmatpush2.msra.mxu0 0.0
    %4084 = vmatprep.subr.mxu0 0.0
    %4085 = vmatpush2.msra.mxu0 0.0
    %4086 = vmatprep.subr.mxu0 0.0
    %4087 = vmatpush2.msra.mxu0 0.0
    %4088 = vmatprep.subr.mxu0 0.0
    %4089 = vmatpush2.msra.mxu0 0.0
    %4090 = vmatprep.subr.mxu0 0.0
    %4091 = vmatpush2.msra.mxu0 0.0
    %4092 = vmatprep.subr.mxu0 0.0
    %4093 = vmatpush2.msra.mxu0 0.0
    %4094 = vmatprep.subr.mxu0 0.0
    %4095 = vmatpush2.msra.mxu0 0.0
    %4096 = vmatprep.subr.mxu0 0.0
    %4097 = vmatpush2.msra.mxu0 0.0
    %4098 = vmatprep.mubr.f32.mxu0 0.0
    %4099 = vmatmul.mubr.f32.gmra.mxu0 %v4032
    %v4100 = vpop.f32.mrf.mxu0
    %v4101 = vadd.f32 0.0, %v4100
    %v4102 = vpop.f32.mrf.mxu0
    %4103 = vdwg.mxu0
    %4104 = vmatprep.subr.mxu0 0.0
    %4105 = vmatpush1.msra.mxu0 0.0
    %4106 = vmatprep.subr.mxu0 0.0
    %4107 = vmatpush1.msra.mxu0 0.0
    %4108 = vmatprep.subr.mxu0 0.0
    %4109 = vmatpush1.msra.mxu0 0.0
    %4110 = vmatprep.subr.mxu0 0.0
    %4111 = vmatpush1.msra.mxu0 0.0
    %4112 = vmatprep.subr.mxu0 0.0
    %4113 = vmatpush1.msra.mxu0 0.0
    %4114 = vmatprep.subr.mxu0 0.0
    %4115 = vmatpush1.msra.mxu0 0.0
    %4116 = vmatprep.subr.mxu0 0.0
    %4117 = vmatpush1.msra.mxu0 0.0
    %4118 = vmatprep.subr.mxu0 0.0
    %4119 = vmatpush1.msra.mxu0 0.0
    %4120 = vmatprep.subr.mxu0 0.0
    %4121 = vmatpush1.msra.mxu0 0.0
    %4122 = vmatprep.subr.mxu0 0.0
    %4123 = vmatpush1.msra.mxu0 0.0
    %4124 = vmatprep.subr.mxu0 0.0
    %4125 = vmatpush1.msra.mxu0 0.0
    %4126 = vmatprep.subr.mxu0 0.0
    %4127 = vmatpush1.msra.mxu0 0.0
    %4128 = vmatprep.subr.mxu0 0.0
    %4129 = vmatpush1.msra.mxu0 %v694
    %4130 = vmatprep.subr.mxu0 0.0
    %4131 = vmatpush1.msra.mxu0 %v693
    %4132 = vmatprep.subr.mxu0 0.0
    %4133 = vmatpush1.msra.mxu0 %v692
    %4134 = vmatprep.subr.mxu0 0.0
    %4135 = vmatpush1.msra.mxu0 %v691
    %4136 = vmatprep.subr.mxu0 0.0
    %4137 = vmatpush2.msra.mxu0 0.0
    %4138 = vmatprep.subr.mxu0 0.0
    %4139 = vmatpush2.msra.mxu0 0.0
    %4140 = vmatprep.subr.mxu0 0.0
    %4141 = vmatpush2.msra.mxu0 0.0
    %4142 = vmatprep.subr.mxu0 0.0
    %4143 = vmatpush2.msra.mxu0 0.0
    %4144 = vmatprep.subr.mxu0 0.0
    %4145 = vmatpush2.msra.mxu0 0.0
    %4146 = vmatprep.subr.mxu0 0.0
    %4147 = vmatpush2.msra.mxu0 0.0
    %4148 = vmatprep.subr.mxu0 0.0
    %4149 = vmatpush2.msra.mxu0 0.0
    %4150 = vmatprep.subr.mxu0 0.0
    %4151 = vmatpush2.msra.mxu0 0.0
    %4152 = vmatprep.subr.mxu0 0.0
    %4153 = vmatpush2.msra.mxu0 0.0
    %4154 = vmatprep.subr.mxu0 0.0
    %4155 = vmatpush2.msra.mxu0 0.0
    %4156 = vmatprep.subr.mxu0 0.0
    %4157 = vmatpush2.msra.mxu0 0.0
    %4158 = vmatprep.subr.mxu0 0.0
    %4159 = vmatpush2.msra.mxu0 0.0
    %4160 = vmatprep.subr.mxu0 0.0
    %4161 = vmatpush2.msra.mxu0 0.0
    %4162 = vmatprep.subr.mxu0 0.0
    %4163 = vmatpush2.msra.mxu0 0.0
    %4164 = vmatprep.subr.mxu0 0.0
    %4165 = vmatpush2.msra.mxu0 0.0
    %4166 = vmatprep.subr.mxu0 0.0
    %4167 = vmatpush2.msra.mxu0 0.0
    %4168 = vmatprep.mubr.f32.mxu0 0.0
    %4169 = vmatmul.mubr.f32.gmra.mxu0 %v3503
    %v4170 = vpop.f32.mrf.mxu0
    %v4171 = vadd.f32 0.0, %v4170
    %v4172 = vpop.f32.mrf.mxu0
    %4173 = vdwg.mxu0
    %v4175 = vsel %vm241, %v4101, 0
    %4177 = vmatprep.subr.mxu0 0.0
    %4178 = vmatpush1.msra.mxu0 0.0
    %4179 = vmatprep.subr.mxu0 0.0
    %4180 = vmatpush1.msra.mxu0 0.0
    %4181 = vmatprep.subr.mxu0 0.0
    %4182 = vmatpush1.msra.mxu0 0.0
    %4183 = vmatprep.subr.mxu0 0.0
    %4184 = vmatpush1.msra.mxu0 0.0
    %4185 = vmatprep.subr.mxu0 0.0
    %4186 = vmatpush1.msra.mxu0 0.0
    %4187 = vmatprep.subr.mxu0 0.0
    %4188 = vmatpush1.msra.mxu0 0.0
    %4189 = vmatprep.subr.mxu0 0.0
    %4190 = vmatpush1.msra.mxu0 0.0
    %4191 = vmatprep.subr.mxu0 0.0
    %4192 = vmatpush1.msra.mxu0 0.0
    %4193 = vmatprep.subr.mxu0 0.0
    %4194 = vmatpush1.msra.mxu0 0.0
    %4195 = vmatprep.subr.mxu0 0.0
    %4196 = vmatpush1.msra.mxu0 0.0
    %4197 = vmatprep.subr.mxu0 0.0
    %4198 = vmatpush1.msra.mxu0 0.0
    %4199 = vmatprep.subr.mxu0 0.0
    %4200 = vmatpush1.msra.mxu0 0.0
    %4201 = vmatprep.subr.mxu0 0.0
    %4202 = vmatpush1.msra.mxu0 %v690
    %4203 = vmatprep.subr.mxu0 0.0
    %4204 = vmatpush1.msra.mxu0 %v689
    %4205 = vmatprep.subr.mxu0 0.0
    %4206 = vmatpush1.msra.mxu0 %v688
    %4207 = vmatprep.subr.mxu0 0.0
    %4208 = vmatpush1.msra.mxu0 %v687
    %4209 = vmatprep.subr.mxu0 0.0
    %4210 = vmatpush2.msra.mxu0 0.0
    %4211 = vmatprep.subr.mxu0 0.0
    %4212 = vmatpush2.msra.mxu0 0.0
    %4213 = vmatprep.subr.mxu0 0.0
    %4214 = vmatpush2.msra.mxu0 0.0
    %4215 = vmatprep.subr.mxu0 0.0
    %4216 = vmatpush2.msra.mxu0 0.0
    %4217 = vmatprep.subr.mxu0 0.0
    %4218 = vmatpush2.msra.mxu0 0.0
    %4219 = vmatprep.subr.mxu0 0.0
    %4220 = vmatpush2.msra.mxu0 0.0
    %4221 = vmatprep.subr.mxu0 0.0
    %4222 = vmatpush2.msra.mxu0 0.0
    %4223 = vmatprep.subr.mxu0 0.0
    %4224 = vmatpush2.msra.mxu0 0.0
    %4225 = vmatprep.subr.mxu0 0.0
    %4226 = vmatpush2.msra.mxu0 0.0
    %4227 = vmatprep.subr.mxu0 0.0
    %4228 = vmatpush2.msra.mxu0 0.0
    %4229 = vmatprep.subr.mxu0 0.0
    %4230 = vmatpush2.msra.mxu0 0.0
    %4231 = vmatprep.subr.mxu0 0.0
    %4232 = vmatpush2.msra.mxu0 0.0
    %4233 = vmatprep.subr.mxu0 0.0
    %4234 = vmatpush2.msra.mxu0 0.0
    %4235 = vmatprep.subr.mxu0 0.0
    %4236 = vmatpush2.msra.mxu0 0.0
    %4237 = vmatprep.subr.mxu0 0.0
    %4238 = vmatpush2.msra.mxu0 0.0
    %4239 = vmatprep.subr.mxu0 0.0
    %4240 = vmatpush2.msra.mxu0 0.0
    %4241 = vmatprep.mubr.f32.mxu0 0.0
    %4242 = vmatmul.mubr.f32.gmra.mxu0 %v4175
    %v4243 = vpop.f32.mrf.mxu0
    %v4244 = vadd.f32 %v4171, %v4243
    %v4245 = vpop.f32.mrf.mxu0
    %4246 = vdwg.mxu0
    %v4247 = vadd.f32 %v4244, %v843
    %v4248 = vxor.u32 %v4247, 2147483648
    %v4249 = vmul.f32 %v4248, 1.442695
    %v4250 = vpow.pop %v4249
    %v4251 = vadd.f32 %v4250, 1.0
    %v4252 = vrcp.pop %v4251
    %v4253 = vmul.f32 1.0, %v4252
    %4255 = vrot.lane.b32.xlu0 %v4247, 32
    %v4256 = vpop.permute.xlu0 %4255
    %v4258 = vmul.f32 %v4253, %v4256
    %4260 = vrot.lane.b32.xlu0 %v4258, 64
    %v4261 = vpop.permute.xlu0 %4260
    %v4263 = vadd.f32 %v4247, %v4261
    %v4264 = vtanh.pop %v4263
    %v4265 = vsub.f32 1.0, %v4253
    %4267 = vrot.lane.b32.xlu0 %v4264, 96
    %v4268 = vpop.permute.xlu0 %4267
    %v4270 = vmul.f32 %v4265, %v4268
    %v4271 = vmul.f32 %v4253, %v3424
    %v4272 = vadd.f32 %v4270, %v4271
    %4274 = vrot.lane.b32.xlu0 %v3600, 96
    %v4275 = vpop.permute.xlu0 %4274
    %v4276 = vsel %vm241, %v4275, 0
    %4278 = vmatprep.subr.mxu0 0.0
    %4279 = vmatpush1.msra.mxu0 0.0
    %4280 = vmatprep.subr.mxu0 0.0
    %4281 = vmatpush1.msra.mxu0 0.0
    %4282 = vmatprep.subr.mxu0 0.0
    %4283 = vmatpush1.msra.mxu0 0.0
    %4284 = vmatprep.subr.mxu0 0.0
    %4285 = vmatpush1.msra.mxu0 0.0
    %4286 = vmatprep.subr.mxu0 0.0
    %4287 = vmatpush1.msra.mxu0 0.0
    %4288 = vmatprep.subr.mxu0 0.0
    %4289 = vmatpush1.msra.mxu0 0.0
    %4290 = vmatprep.subr.mxu0 0.0
    %4291 = vmatpush1.msra.mxu0 0.0
    %4292 = vmatprep.subr.mxu0 0.0
    %4293 = vmatpush1.msra.mxu0 0.0
    %4294 = vmatprep.subr.mxu0 0.0
    %4295 = vmatpush1.msra.mxu0 0.0
    %4296 = vmatprep.subr.mxu0 0.0
    %4297 = vmatpush1.msra.mxu0 0.0
    %4298 = vmatprep.subr.mxu0 0.0
    %4299 = vmatpush1.msra.mxu0 0.0
    %4300 = vmatprep.subr.mxu0 0.0
    %4301 = vmatpush1.msra.mxu0 0.0
    %4302 = vmatprep.subr.mxu0 0.0
    %4303 = vmatpush1.msra.mxu0 %v878
    %4304 = vmatprep.subr.mxu0 0.0
    %4305 = vmatpush1.msra.mxu0 %v877
    %4306 = vmatprep.subr.mxu0 0.0
    %4307 = vmatpush1.msra.mxu0 %v876
    %4308 = vmatprep.subr.mxu0 0.0
    %4309 = vmatpush1.msra.mxu0 %v875
    %4310 = vmatprep.subr.mxu0 0.0
    %4311 = vmatpush2.msra.mxu0 0.0
    %4312 = vmatprep.subr.mxu0 0.0
    %4313 = vmatpush2.msra.mxu0 0.0
    %4314 = vmatprep.subr.mxu0 0.0
    %4315 = vmatpush2.msra.mxu0 0.0
    %4316 = vmatprep.subr.mxu0 0.0
    %4317 = vmatpush2.msra.mxu0 0.0
    %4318 = vmatprep.subr.mxu0 0.0
    %4319 = vmatpush2.msra.mxu0 0.0
    %4320 = vmatprep.subr.mxu0 0.0
    %4321 = vmatpush2.msra.mxu0 0.0
    %4322 = vmatprep.subr.mxu0 0.0
    %4323 = vmatpush2.msra.mxu0 0.0
    %4324 = vmatprep.subr.mxu0 0.0
    %4325 = vmatpush2.msra.mxu0 0.0
    %4326 = vmatprep.subr.mxu0 0.0
    %4327 = vmatpush2.msra.mxu0 0.0
    %4328 = vmatprep.subr.mxu0 0.0
    %4329 = vmatpush2.msra.mxu0 0.0
    %4330 = vmatprep.subr.mxu0 0.0
    %4331 = vmatpush2.msra.mxu0 0.0
    %4332 = vmatprep.subr.mxu0 0.0
    %4333 = vmatpush2.msra.mxu0 0.0
    %4334 = vmatprep.subr.mxu0 0.0
    %4335 = vmatpush2.msra.mxu0 0.0
    %4336 = vmatprep.subr.mxu0 0.0
    %4337 = vmatpush2.msra.mxu0 0.0
    %4338 = vmatprep.subr.mxu0 0.0
    %4339 = vmatpush2.msra.mxu0 0.0
    %4340 = vmatprep.subr.mxu0 0.0
    %4341 = vmatpush2.msra.mxu0 0.0
    %4342 = vmatprep.mubr.f32.mxu0 0.0
    %4343 = vmatmul.mubr.f32.gmra.mxu0 %v4276
    %v4344 = vpop.f32.mrf.mxu0
    %v4345 = vadd.f32 0.0, %v4344
    %v4346 = vpop.f32.mrf.mxu0
    %4347 = vdwg.mxu0
    %4349 = vrot.lane.b32.xlu0 %v4272, 96
    %v4350 = vpop.permute.xlu0 %4349
    %v4351 = vsel %vm241, %v4350, 0
    %4353 = vmatprep.subr.mxu0 0.0
    %4354 = vmatpush1.msra.mxu0 0.0
    %4355 = vmatprep.subr.mxu0 0.0
    %4356 = vmatpush1.msra.mxu0 0.0
    %4357 = vmatprep.subr.mxu0 0.0
    %4358 = vmatpush1.msra.mxu0 0.0
    %4359 = vmatprep.subr.mxu0 0.0
    %4360 = vmatpush1.msra.mxu0 0.0
    %4361 = vmatprep.subr.mxu0 0.0
    %4362 = vmatpush1.msra.mxu0 0.0
    %4363 = vmatprep.subr.mxu0 0.0
    %4364 = vmatpush1.msra.mxu0 0.0
    %4365 = vmatprep.subr.mxu0 0.0
    %4366 = vmatpush1.msra.mxu0 0.0
    %4367 = vmatprep.subr.mxu0 0.0
    %4368 = vmatpush1.msra.mxu0 0.0
    %4369 = vmatprep.subr.mxu0 0.0
    %4370 = vmatpush1.msra.mxu0 0.0
    %4371 = vmatprep.subr.mxu0 0.0
    %4372 = vmatpush1.msra.mxu0 0.0
    %4373 = vmatprep.subr.mxu0 0.0
    %4374 = vmatpush1.msra.mxu0 0.0
    %4375 = vmatprep.subr.mxu0 0.0
    %4376 = vmatpush1.msra.mxu0 0.0
    %4377 = vmatprep.subr.mxu0 0.0
    %4378 = vmatpush1.msra.mxu0 %v874
    %4379 = vmatprep.subr.mxu0 0.0
    %4380 = vmatpush1.msra.mxu0 %v873
    %4381 = vmatprep.subr.mxu0 0.0
    %4382 = vmatpush1.msra.mxu0 %v872
    %4383 = vmatprep.subr.mxu0 0.0
    %4384 = vmatpush1.msra.mxu0 %v871
    %4385 = vmatprep.subr.mxu0 0.0
    %4386 = vmatpush2.msra.mxu0 0.0
    %4387 = vmatprep.subr.mxu0 0.0
    %4388 = vmatpush2.msra.mxu0 0.0
    %4389 = vmatprep.subr.mxu0 0.0
    %4390 = vmatpush2.msra.mxu0 0.0
    %4391 = vmatprep.subr.mxu0 0.0
    %4392 = vmatpush2.msra.mxu0 0.0
    %4393 = vmatprep.subr.mxu0 0.0
    %4394 = vmatpush2.msra.mxu0 0.0
    %4395 = vmatprep.subr.mxu0 0.0
    %4396 = vmatpush2.msra.mxu0 0.0
    %4397 = vmatprep.subr.mxu0 0.0
    %4398 = vmatpush2.msra.mxu0 0.0
    %4399 = vmatprep.subr.mxu0 0.0
    %4400 = vmatpush2.msra.mxu0 0.0
    %4401 = vmatprep.subr.mxu0 0.0
    %4402 = vmatpush2.msra.mxu0 0.0
    %4403 = vmatprep.subr.mxu0 0.0
    %4404 = vmatpush2.msra.mxu0 0.0
    %4405 = vmatprep.subr.mxu0 0.0
    %4406 = vmatpush2.msra.mxu0 0.0
    %4407 = vmatprep.subr.mxu0 0.0
    %4408 = vmatpush2.msra.mxu0 0.0
    %4409 = vmatprep.subr.mxu0 0.0
    %4410 = vmatpush2.msra.mxu0 0.0
    %4411 = vmatprep.subr.mxu0 0.0
    %4412 = vmatpush2.msra.mxu0 0.0
    %4413 = vmatprep.subr.mxu0 0.0
    %4414 = vmatpush2.msra.mxu0 0.0
    %4415 = vmatprep.subr.mxu0 0.0
    %4416 = vmatpush2.msra.mxu0 0.0
    %4417 = vmatprep.mubr.f32.mxu0 0.0
    %4418 = vmatmul.mubr.f32.gmra.mxu0 %v4351
    %v4419 = vpop.f32.mrf.mxu0
    %v4420 = vadd.f32 %v4345, %v4419
    %v4421 = vpop.f32.mrf.mxu0
    %4422 = vdwg.mxu0
    %v4423 = vadd.f32 %v4420, %v1029
    %v4424 = vxor.u32 %v4423, 2147483648
    %v4425 = vmul.f32 %v4424, 1.442695
    %v4426 = vpow.pop %v4425
    %v4427 = vadd.f32 %v4426, 1.0
    %v4428 = vrcp.pop %v4427
    %v4429 = vmul.f32 1.0, %v4428
    %4431 = vrot.lane.b32.xlu0 %v4423, 32
    %v4432 = vpop.permute.xlu0 %4431
    %v4434 = vmul.f32 %v4429, %v4432
    %4436 = vrot.lane.b32.xlu0 %v4434, 64
    %v4437 = vpop.permute.xlu0 %4436
    %v4439 = vadd.f32 %v4423, %v4437
    %v4440 = vtanh.pop %v4439
    %v4441 = vsub.f32 1.0, %v4429
    %4443 = vrot.lane.b32.xlu0 %v4440, 96
    %v4444 = vpop.permute.xlu0 %4443
    %v4446 = vmul.f32 %v4441, %v4444
    %v4447 = vmul.f32 %v4429, %v3600
    %v4448 = vadd.f32 %v4446, %v4447
    %4449 = vset.pattern.permute.xlu0 5
    %4450 = vperm.xlu0 %4449, %v141
    %v4451 = vpop.permute.xlu0 %4450
    %vm4452 = vcmp.eq.s32.totalorder %v4451, %v140
    %v4453 = vsel %vm4452, 1, 0
    %v4454 = vcvt.s32.f32 %v4453
    %v4456 = vsel %vm155, %v4454, 0
    %4458 = vmatprep.subr.mxu0 0.0
    %4459 = vmatpush1.msra.mxu0 0.0
    %4460 = vmatprep.subr.mxu0 0.0
    %4461 = vmatpush1.msra.mxu0 0.0
    %4462 = vmatprep.subr.mxu0 0.0
    %4463 = vmatpush1.msra.mxu0 0.0
    %4464 = vmatprep.subr.mxu0 0.0
    %4465 = vmatpush1.msra.mxu0 0.0
    %4466 = vmatprep.subr.mxu0 0.0
    %4467 = vmatpush1.msra.mxu0 0.0
    %4468 = vmatprep.subr.mxu0 0.0
    %4469 = vmatpush1.msra.mxu0 0.0
    %4470 = vmatprep.subr.mxu0 0.0
    %4471 = vmatpush1.msra.mxu0 0.0
    %4472 = vmatprep.subr.mxu0 0.0
    %4473 = vmatpush1.msra.mxu0 0.0
    %4474 = vmatprep.subr.mxu0 0.0
    %4475 = vmatpush1.msra.mxu0 0.0
    %4476 = vmatprep.subr.mxu0 0.0
    %4477 = vmatpush1.msra.mxu0 %v161
    %4478 = vmatprep.subr.mxu0 0.0
    %4479 = vmatpush1.msra.mxu0 %v153
    %4480 = vmatprep.subr.mxu0 0.0
    %4481 = vmatpush1.msra.mxu0 %v152
    %4482 = vmatprep.subr.mxu0 0.0
    %4483 = vmatpush1.msra.mxu0 %v151
    %4484 = vmatprep.subr.mxu0 0.0
    %4485 = vmatpush1.msra.mxu0 %v150
    %4486 = vmatprep.subr.mxu0 0.0
    %4487 = vmatpush1.msra.mxu0 %v149
    %4488 = vmatprep.subr.mxu0 0.0
    %4489 = vmatpush1.msra.mxu0 %v148
    %4490 = vmatprep.subr.mxu0 0.0
    %4491 = vmatpush2.msra.mxu0 0.0
    %4492 = vmatprep.subr.mxu0 0.0
    %4493 = vmatpush2.msra.mxu0 0.0
    %4494 = vmatprep.subr.mxu0 0.0
    %4495 = vmatpush2.msra.mxu0 0.0
    %4496 = vmatprep.subr.mxu0 0.0
    %4497 = vmatpush2.msra.mxu0 0.0
    %4498 = vmatprep.subr.mxu0 0.0
    %4499 = vmatpush2.msra.mxu0 0.0
    %4500 = vmatprep.subr.mxu0 0.0
    %4501 = vmatpush2.msra.mxu0 0.0
    %4502 = vmatprep.subr.mxu0 0.0
    %4503 = vmatpush2.msra.mxu0 0.0
    %4504 = vmatprep.subr.mxu0 0.0
    %4505 = vmatpush2.msra.mxu0 0.0
    %4506 = vmatprep.subr.mxu0 0.0
    %4507 = vmatpush2.msra.mxu0 0.0
    %4508 = vmatprep.subr.mxu0 0.0
    %4509 = vmatpush2.msra.mxu0 0.0
    %4510 = vmatprep.subr.mxu0 0.0
    %4511 = vmatpush2.msra.mxu0 0.0
    %4512 = vmatprep.subr.mxu0 0.0
    %4513 = vmatpush2.msra.mxu0 0.0
    %4514 = vmatprep.subr.mxu0 0.0
    %4515 = vmatpush2.msra.mxu0 0.0
    %4516 = vmatprep.subr.mxu0 0.0
    %4517 = vmatpush2.msra.mxu0 0.0
    %4518 = vmatprep.subr.mxu0 0.0
    %4519 = vmatpush2.msra.mxu0 0.0
    %4520 = vmatprep.subr.mxu0 0.0
    %4521 = vmatpush2.msra.mxu0 0.0
    %4522 = vmatprep.mubr.f32.mxu0 0.0
    %4523 = vmatmul.mubr.f32.gmra.mxu0 %v4456
    %v4524 = vpop.f32.mrf.mxu0
    %v4525 = vadd.f32 0.0, %v4524
    %v4526 = vpop.f32.mrf.mxu0
    %4527 = vdwg.mxu0
    %4528 = vmatprep.subr.mxu0 0.0
    %4529 = vmatpush1.msra.mxu0 0.0
    %4530 = vmatprep.subr.mxu0 0.0
    %4531 = vmatpush1.msra.mxu0 0.0
    %4532 = vmatprep.subr.mxu0 0.0
    %4533 = vmatpush1.msra.mxu0 0.0
    %4534 = vmatprep.subr.mxu0 0.0
    %4535 = vmatpush1.msra.mxu0 0.0
    %4536 = vmatprep.subr.mxu0 0.0
    %4537 = vmatpush1.msra.mxu0 0.0
    %4538 = vmatprep.subr.mxu0 0.0
    %4539 = vmatpush1.msra.mxu0 0.0
    %4540 = vmatprep.subr.mxu0 0.0
    %4541 = vmatpush1.msra.mxu0 0.0
    %4542 = vmatprep.subr.mxu0 0.0
    %4543 = vmatpush1.msra.mxu0 0.0
    %4544 = vmatprep.subr.mxu0 0.0
    %4545 = vmatpush1.msra.mxu0 0.0
    %4546 = vmatprep.subr.mxu0 0.0
    %4547 = vmatpush1.msra.mxu0 0.0
    %4548 = vmatprep.subr.mxu0 0.0
    %4549 = vmatpush1.msra.mxu0 0.0
    %4550 = vmatprep.subr.mxu0 0.0
    %4551 = vmatpush1.msra.mxu0 0.0
    %4552 = vmatprep.subr.mxu0 0.0
    %4553 = vmatpush1.msra.mxu0 %v240
    %4554 = vmatprep.subr.mxu0 0.0
    %4555 = vmatpush1.msra.mxu0 %v239
    %4556 = vmatprep.subr.mxu0 0.0
    %4557 = vmatpush1.msra.mxu0 %v238
    %4558 = vmatprep.subr.mxu0 0.0
    %4559 = vmatpush1.msra.mxu0 %v237
    %4560 = vmatprep.subr.mxu0 0.0
    %4561 = vmatpush2.msra.mxu0 0.0
    %4562 = vmatprep.subr.mxu0 0.0
    %4563 = vmatpush2.msra.mxu0 0.0
    %4564 = vmatprep.subr.mxu0 0.0
    %4565 = vmatpush2.msra.mxu0 0.0
    %4566 = vmatprep.subr.mxu0 0.0
    %4567 = vmatpush2.msra.mxu0 0.0
    %4568 = vmatprep.subr.mxu0 0.0
    %4569 = vmatpush2.msra.mxu0 0.0
    %4570 = vmatprep.subr.mxu0 0.0
    %4571 = vmatpush2.msra.mxu0 0.0
    %4572 = vmatprep.subr.mxu0 0.0
    %4573 = vmatpush2.msra.mxu0 0.0
    %4574 = vmatprep.subr.mxu0 0.0
    %4575 = vmatpush2.msra.mxu0 0.0
    %4576 = vmatprep.subr.mxu0 0.0
    %4577 = vmatpush2.msra.mxu0 0.0
    %4578 = vmatprep.subr.mxu0 0.0
    %4579 = vmatpush2.msra.mxu0 0.0
    %4580 = vmatprep.subr.mxu0 0.0
    %4581 = vmatpush2.msra.mxu0 0.0
    %4582 = vmatprep.subr.mxu0 0.0
    %4583 = vmatpush2.msra.mxu0 0.0
    %4584 = vmatprep.subr.mxu0 0.0
    %4585 = vmatpush2.msra.mxu0 0.0
    %4586 = vmatprep.subr.mxu0 0.0
    %4587 = vmatpush2.msra.mxu0 0.0
    %4588 = vmatprep.subr.mxu0 0.0
    %4589 = vmatpush2.msra.mxu0 0.0
    %4590 = vmatprep.subr.mxu0 0.0
    %4591 = vmatpush2.msra.mxu0 0.0
    %4592 = vmatprep.mubr.f32.mxu0 0.0
    %4593 = vmatmul.mubr.f32.gmra.mxu0 %v3927
    %v4594 = vpop.f32.mrf.mxu0
    %v4595 = vadd.f32 0.0, %v4594
    %v4596 = vpop.f32.mrf.mxu0
    %4597 = vdwg.mxu0
    %v4599 = vsel %vm241, %v4525, 0
    %4601 = vmatprep.subr.mxu0 0.0
    %4602 = vmatpush1.msra.mxu0 0.0
    %4603 = vmatprep.subr.mxu0 0.0
    %4604 = vmatpush1.msra.mxu0 0.0
    %4605 = vmatprep.subr.mxu0 0.0
    %4606 = vmatpush1.msra.mxu0 0.0
    %4607 = vmatprep.subr.mxu0 0.0
    %4608 = vmatpush1.msra.mxu0 0.0
    %4609 = vmatprep.subr.mxu0 0.0
    %4610 = vmatpush1.msra.mxu0 0.0
    %4611 = vmatprep.subr.mxu0 0.0
    %4612 = vmatpush1.msra.mxu0 0.0
    %4613 = vmatprep.subr.mxu0 0.0
    %4614 = vmatpush1.msra.mxu0 0.0
    %4615 = vmatprep.subr.mxu0 0.0
    %4616 = vmatpush1.msra.mxu0 0.0
    %4617 = vmatprep.subr.mxu0 0.0
    %4618 = vmatpush1.msra.mxu0 0.0
    %4619 = vmatprep.subr.mxu0 0.0
    %4620 = vmatpush1.msra.mxu0 0.0
    %4621 = vmatprep.subr.mxu0 0.0
    %4622 = vmatpush1.msra.mxu0 0.0
    %4623 = vmatprep.subr.mxu0 0.0
    %4624 = vmatpush1.msra.mxu0 0.0
    %4625 = vmatprep.subr.mxu0 0.0
    %4626 = vmatpush1.msra.mxu0 %v236
    %4627 = vmatprep.subr.mxu0 0.0
    %4628 = vmatpush1.msra.mxu0 %v235
    %4629 = vmatprep.subr.mxu0 0.0
    %4630 = vmatpush1.msra.mxu0 %v234
    %4631 = vmatprep.subr.mxu0 0.0
    %4632 = vmatpush1.msra.mxu0 %v233
    %4633 = vmatprep.subr.mxu0 0.0
    %4634 = vmatpush2.msra.mxu0 0.0
    %4635 = vmatprep.subr.mxu0 0.0
    %4636 = vmatpush2.msra.mxu0 0.0
    %4637 = vmatprep.subr.mxu0 0.0
    %4638 = vmatpush2.msra.mxu0 0.0
    %4639 = vmatprep.subr.mxu0 0.0
    %4640 = vmatpush2.msra.mxu0 0.0
    %4641 = vmatprep.subr.mxu0 0.0
    %4642 = vmatpush2.msra.mxu0 0.0
    %4643 = vmatprep.subr.mxu0 0.0
    %4644 = vmatpush2.msra.mxu0 0.0
    %4645 = vmatprep.subr.mxu0 0.0
    %4646 = vmatpush2.msra.mxu0 0.0
    %4647 = vmatprep.subr.mxu0 0.0
    %4648 = vmatpush2.msra.mxu0 0.0
    %4649 = vmatprep.subr.mxu0 0.0
    %4650 = vmatpush2.msra.mxu0 0.0
    %4651 = vmatprep.subr.mxu0 0.0
    %4652 = vmatpush2.msra.mxu0 0.0
    %4653 = vmatprep.subr.mxu0 0.0
    %4654 = vmatpush2.msra.mxu0 0.0
    %4655 = vmatprep.subr.mxu0 0.0
    %4656 = vmatpush2.msra.mxu0 0.0
    %4657 = vmatprep.subr.mxu0 0.0
    %4658 = vmatpush2.msra.mxu0 0.0
    %4659 = vmatprep.subr.mxu0 0.0
    %4660 = vmatpush2.msra.mxu0 0.0
    %4661 = vmatprep.subr.mxu0 0.0
    %4662 = vmatpush2.msra.mxu0 0.0
    %4663 = vmatprep.subr.mxu0 0.0
    %4664 = vmatpush2.msra.mxu0 0.0
    %4665 = vmatprep.mubr.f32.mxu0 0.0
    %4666 = vmatmul.mubr.f32.gmra.mxu0 %v4599
    %v4667 = vpop.f32.mrf.mxu0
    %v4668 = vadd.f32 %v4595, %v4667
    %v4669 = vpop.f32.mrf.mxu0
    %4670 = vdwg.mxu0
    %v4671 = vadd.f32 %v4668, %v393
    %v4672 = vxor.u32 %v4671, 2147483648
    %v4673 = vmul.f32 %v4672, 1.442695
    %v4674 = vpow.pop %v4673
    %v4675 = vadd.f32 %v4674, 1.0
    %v4676 = vrcp.pop %v4675
    %v4677 = vmul.f32 1.0, %v4676
    %4679 = vrot.lane.b32.xlu0 %v4671, 32
    %v4680 = vpop.permute.xlu0 %4679
    %v4682 = vmul.f32 %v4677, %v4680
    %4684 = vrot.lane.b32.xlu0 %v4682, 64
    %v4685 = vpop.permute.xlu0 %4684
    %v4687 = vadd.f32 %v4671, %v4685
    %v4688 = vtanh.pop %v4687
    %v4689 = vsub.f32 1.0, %v4677
    %4691 = vrot.lane.b32.xlu0 %v4688, 96
    %v4692 = vpop.permute.xlu0 %4691
    %v4694 = vmul.f32 %v4689, %v4692
    %v4695 = vmul.f32 %v4677, %v3848
    %v4696 = vadd.f32 %v4694, %v4695
    %4698 = vrot.lane.b32.xlu0 %v4024, 96
    %v4699 = vpop.permute.xlu0 %4698
    %v4700 = vsel %vm241, %v4699, 0
    %4702 = vmatprep.subr.mxu0 0.0
    %4703 = vmatpush1.msra.mxu0 0.0
    %4704 = vmatprep.subr.mxu0 0.0
    %4705 = vmatpush1.msra.mxu0 0.0
    %4706 = vmatprep.subr.mxu0 0.0
    %4707 = vmatpush1.msra.mxu0 0.0
    %4708 = vmatprep.subr.mxu0 0.0
    %4709 = vmatpush1.msra.mxu0 0.0
    %4710 = vmatprep.subr.mxu0 0.0
    %4711 = vmatpush1.msra.mxu0 0.0
    %4712 = vmatprep.subr.mxu0 0.0
    %4713 = vmatpush1.msra.mxu0 0.0
    %4714 = vmatprep.subr.mxu0 0.0
    %4715 = vmatpush1.msra.mxu0 0.0
    %4716 = vmatprep.subr.mxu0 0.0
    %4717 = vmatpush1.msra.mxu0 0.0
    %4718 = vmatprep.subr.mxu0 0.0
    %4719 = vmatpush1.msra.mxu0 0.0
    %4720 = vmatprep.subr.mxu0 0.0
    %4721 = vmatpush1.msra.mxu0 0.0
    %4722 = vmatprep.subr.mxu0 0.0
    %4723 = vmatpush1.msra.mxu0 0.0
    %4724 = vmatprep.subr.mxu0 0.0
    %4725 = vmatpush1.msra.mxu0 0.0
    %4726 = vmatprep.subr.mxu0 0.0
    %4727 = vmatpush1.msra.mxu0 %v428
    %4728 = vmatprep.subr.mxu0 0.0
    %4729 = vmatpush1.msra.mxu0 %v427
    %4730 = vmatprep.subr.mxu0 0.0
    %4731 = vmatpush1.msra.mxu0 %v426
    %4732 = vmatprep.subr.mxu0 0.0
    %4733 = vmatpush1.msra.mxu0 %v425
    %4734 = vmatprep.subr.mxu0 0.0
    %4735 = vmatpush2.msra.mxu0 0.0
    %4736 = vmatprep.subr.mxu0 0.0
    %4737 = vmatpush2.msra.mxu0 0.0
    %4738 = vmatprep.subr.mxu0 0.0
    %4739 = vmatpush2.msra.mxu0 0.0
    %4740 = vmatprep.subr.mxu0 0.0
    %4741 = vmatpush2.msra.mxu0 0.0
    %4742 = vmatprep.subr.mxu0 0.0
    %4743 = vmatpush2.msra.mxu0 0.0
    %4744 = vmatprep.subr.mxu0 0.0
    %4745 = vmatpush2.msra.mxu0 0.0
    %4746 = vmatprep.subr.mxu0 0.0
    %4747 = vmatpush2.msra.mxu0 0.0
    %4748 = vmatprep.subr.mxu0 0.0
    %4749 = vmatpush2.msra.mxu0 0.0
    %4750 = vmatprep.subr.mxu0 0.0
    %4751 = vmatpush2.msra.mxu0 0.0
    %4752 = vmatprep.subr.mxu0 0.0
    %4753 = vmatpush2.msra.mxu0 0.0
    %4754 = vmatprep.subr.mxu0 0.0
    %4755 = vmatpush2.msra.mxu0 0.0
    %4756 = vmatprep.subr.mxu0 0.0
    %4757 = vmatpush2.msra.mxu0 0.0
    %4758 = vmatprep.subr.mxu0 0.0
    %4759 = vmatpush2.msra.mxu0 0.0
    %4760 = vmatprep.subr.mxu0 0.0
    %4761 = vmatpush2.msra.mxu0 0.0
    %4762 = vmatprep.subr.mxu0 0.0
    %4763 = vmatpush2.msra.mxu0 0.0
    %4764 = vmatprep.subr.mxu0 0.0
    %4765 = vmatpush2.msra.mxu0 0.0
    %4766 = vmatprep.mubr.f32.mxu0 0.0
    %4767 = vmatmul.mubr.f32.gmra.mxu0 %v4700
    %v4768 = vpop.f32.mrf.mxu0
    %v4769 = vadd.f32 0.0, %v4768
    %v4770 = vpop.f32.mrf.mxu0
    %4771 = vdwg.mxu0
    %4773 = vrot.lane.b32.xlu0 %v4696, 96
    %v4774 = vpop.permute.xlu0 %4773
    %v4775 = vsel %vm241, %v4774, 0
    %4777 = vmatprep.subr.mxu0 0.0
    %4778 = vmatpush1.msra.mxu0 0.0
    %4779 = vmatprep.subr.mxu0 0.0
    %4780 = vmatpush1.msra.mxu0 0.0
    %4781 = vmatprep.subr.mxu0 0.0
    %4782 = vmatpush1.msra.mxu0 0.0
    %4783 = vmatprep.subr.mxu0 0.0
    %4784 = vmatpush1.msra.mxu0 0.0
    %4785 = vmatprep.subr.mxu0 0.0
    %4786 = vmatpush1.msra.mxu0 0.0
    %4787 = vmatprep.subr.mxu0 0.0
    %4788 = vmatpush1.msra.mxu0 0.0
    %4789 = vmatprep.subr.mxu0 0.0
    %4790 = vmatpush1.msra.mxu0 0.0
    %4791 = vmatprep.subr.mxu0 0.0
    %4792 = vmatpush1.msra.mxu0 0.0
    %4793 = vmatprep.subr.mxu0 0.0
    %4794 = vmatpush1.msra.mxu0 0.0
    %4795 = vmatprep.subr.mxu0 0.0
    %4796 = vmatpush1.msra.mxu0 0.0
    %4797 = vmatprep.subr.mxu0 0.0
    %4798 = vmatpush1.msra.mxu0 0.0
    %4799 = vmatprep.subr.mxu0 0.0
    %4800 = vmatpush1.msra.mxu0 0.0
    %4801 = vmatprep.subr.mxu0 0.0
    %4802 = vmatpush1.msra.mxu0 %v424
    %4803 = vmatprep.subr.mxu0 0.0
    %4804 = vmatpush1.msra.mxu0 %v423
    %4805 = vmatprep.subr.mxu0 0.0
    %4806 = vmatpush1.msra.mxu0 %v422
    %4807 = vmatprep.subr.mxu0 0.0
    %4808 = vmatpush1.msra.mxu0 %v421
    %4809 = vmatprep.subr.mxu0 0.0
    %4810 = vmatpush2.msra.mxu0 0.0
    %4811 = vmatprep.subr.mxu0 0.0
    %4812 = vmatpush2.msra.mxu0 0.0
    %4813 = vmatprep.subr.mxu0 0.0
    %4814 = vmatpush2.msra.mxu0 0.0
    %4815 = vmatprep.subr.mxu0 0.0
    %4816 = vmatpush2.msra.mxu0 0.0
    %4817 = vmatprep.subr.mxu0 0.0
    %4818 = vmatpush2.msra.mxu0 0.0
    %4819 = vmatprep.subr.mxu0 0.0
    %4820 = vmatpush2.msra.mxu0 0.0
    %4821 = vmatprep.subr.mxu0 0.0
    %4822 = vmatpush2.msra.mxu0 0.0
    %4823 = vmatprep.subr.mxu0 0.0
    %4824 = vmatpush2.msra.mxu0 0.0
    %4825 = vmatprep.subr.mxu0 0.0
    %4826 = vmatpush2.msra.mxu0 0.0
    %4827 = vmatprep.subr.mxu0 0.0
    %4828 = vmatpush2.msra.mxu0 0.0
    %4829 = vmatprep.subr.mxu0 0.0
    %4830 = vmatpush2.msra.mxu0 0.0
    %4831 = vmatprep.subr.mxu0 0.0
    %4832 = vmatpush2.msra.mxu0 0.0
    %4833 = vmatprep.subr.mxu0 0.0
    %4834 = vmatpush2.msra.mxu0 0.0
    %4835 = vmatprep.subr.mxu0 0.0
    %4836 = vmatpush2.msra.mxu0 0.0
    %4837 = vmatprep.subr.mxu0 0.0
    %4838 = vmatpush2.msra.mxu0 0.0
    %4839 = vmatprep.subr.mxu0 0.0
    %4840 = vmatpush2.msra.mxu0 0.0
    %4841 = vmatprep.mubr.f32.mxu0 0.0
    %4842 = vmatmul.mubr.f32.gmra.mxu0 %v4775
    %v4843 = vpop.f32.mrf.mxu0
    %v4844 = vadd.f32 %v4769, %v4843
    %v4845 = vpop.f32.mrf.mxu0
    %4846 = vdwg.mxu0
    %v4847 = vadd.f32 %v4844, %v579
    %v4848 = vxor.u32 %v4847, 2147483648
    %v4849 = vmul.f32 %v4848, 1.442695
    %v4850 = vpow.pop %v4849
    %v4851 = vadd.f32 %v4850, 1.0
    %v4852 = vrcp.pop %v4851
    %v4853 = vmul.f32 1.0, %v4852
    %4855 = vrot.lane.b32.xlu0 %v4847, 32
    %v4856 = vpop.permute.xlu0 %4855
    %v4858 = vmul.f32 %v4853, %v4856
    %4860 = vrot.lane.b32.xlu0 %v4858, 64
    %v4861 = vpop.permute.xlu0 %4860
    %v4863 = vadd.f32 %v4847, %v4861
    %v4864 = vtanh.pop %v4863
    %v4865 = vsub.f32 1.0, %v4853
    %4867 = vrot.lane.b32.xlu0 %v4864, 96
    %v4868 = vpop.permute.xlu0 %4867
    %v4870 = vmul.f32 %v4865, %v4868
    %v4871 = vmul.f32 %v4853, %v4024
    %v4872 = vadd.f32 %v4870, %v4871
    %4873 = vset.pattern.permute.xlu0 5
    %4874 = vperm.xlu0 %4873, %v607
    %v4875 = vpop.permute.xlu0 %4874
    %vm4876 = vcmp.eq.s32.totalorder %v4875, %v140
    %v4877 = vsel %vm4876, 1, 0
    %v4878 = vcvt.s32.f32 %v4877
    %v4880 = vsel %vm155, %v4878, 0
    %4882 = vmatprep.subr.mxu0 0.0
    %4883 = vmatpush1.msra.mxu0 0.0
    %4884 = vmatprep.subr.mxu0 0.0
    %4885 = vmatpush1.msra.mxu0 0.0
    %4886 = vmatprep.subr.mxu0 0.0
    %4887 = vmatpush1.msra.mxu0 0.0
    %4888 = vmatprep.subr.mxu0 0.0
    %4889 = vmatpush1.msra.mxu0 0.0
    %4890 = vmatprep.subr.mxu0 0.0
    %4891 = vmatpush1.msra.mxu0 0.0
    %4892 = vmatprep.subr.mxu0 0.0
    %4893 = vmatpush1.msra.mxu0 0.0
    %4894 = vmatprep.subr.mxu0 0.0
    %4895 = vmatpush1.msra.mxu0 0.0
    %4896 = vmatprep.subr.mxu0 0.0
    %4897 = vmatpush1.msra.mxu0 0.0
    %4898 = vmatprep.subr.mxu0 0.0
    %4899 = vmatpush1.msra.mxu0 0.0
    %4900 = vmatprep.subr.mxu0 0.0
    %4901 = vmatpush1.msra.mxu0 %v161
    %4902 = vmatprep.subr.mxu0 0.0
    %4903 = vmatpush1.msra.mxu0 %v153
    %4904 = vmatprep.subr.mxu0 0.0
    %4905 = vmatpush1.msra.mxu0 %v152
    %4906 = vmatprep.subr.mxu0 0.0
    %4907 = vmatpush1.msra.mxu0 %v151
    %4908 = vmatprep.subr.mxu0 0.0
    %4909 = vmatpush1.msra.mxu0 %v150
    %4910 = vmatprep.subr.mxu0 0.0
    %4911 = vmatpush1.msra.mxu0 %v149
    %4912 = vmatprep.subr.mxu0 0.0
    %4913 = vmatpush1.msra.mxu0 %v148
    %4914 = vmatprep.subr.mxu0 0.0
    %4915 = vmatpush2.msra.mxu0 0.0
    %4916 = vmatprep.subr.mxu0 0.0
    %4917 = vmatpush2.msra.mxu0 0.0
    %4918 = vmatprep.subr.mxu0 0.0
    %4919 = vmatpush2.msra.mxu0 0.0
    %4920 = vmatprep.subr.mxu0 0.0
    %4921 = vmatpush2.msra.mxu0 0.0
    %4922 = vmatprep.subr.mxu0 0.0
    %4923 = vmatpush2.msra.mxu0 0.0
    %4924 = vmatprep.subr.mxu0 0.0
    %4925 = vmatpush2.msra.mxu0 0.0
    %4926 = vmatprep.subr.mxu0 0.0
    %4927 = vmatpush2.msra.mxu0 0.0
    %4928 = vmatprep.subr.mxu0 0.0
    %4929 = vmatpush2.msra.mxu0 0.0
    %4930 = vmatprep.subr.mxu0 0.0
    %4931 = vmatpush2.msra.mxu0 0.0
    %4932 = vmatprep.subr.mxu0 0.0
    %4933 = vmatpush2.msra.mxu0 0.0
    %4934 = vmatprep.subr.mxu0 0.0
    %4935 = vmatpush2.msra.mxu0 0.0
    %4936 = vmatprep.subr.mxu0 0.0
    %4937 = vmatpush2.msra.mxu0 0.0
    %4938 = vmatprep.subr.mxu0 0.0
    %4939 = vmatpush2.msra.mxu0 0.0
    %4940 = vmatprep.subr.mxu0 0.0
    %4941 = vmatpush2.msra.mxu0 0.0
    %4942 = vmatprep.subr.mxu0 0.0
    %4943 = vmatpush2.msra.mxu0 0.0
    %4944 = vmatprep.subr.mxu0 0.0
    %4945 = vmatpush2.msra.mxu0 0.0
    %4946 = vmatprep.mubr.f32.mxu0 0.0
    %4947 = vmatmul.mubr.f32.gmra.mxu0 %v4880
    %v4948 = vpop.f32.mrf.mxu0
    %v4949 = vadd.f32 0.0, %v4948
    %v4950 = vpop.f32.mrf.mxu0
    %4951 = vdwg.mxu0
    %4952 = vmatprep.subr.mxu0 0.0
    %4953 = vmatpush1.msra.mxu0 0.0
    %4954 = vmatprep.subr.mxu0 0.0
    %4955 = vmatpush1.msra.mxu0 0.0
    %4956 = vmatprep.subr.mxu0 0.0
    %4957 = vmatpush1.msra.mxu0 0.0
    %4958 = vmatprep.subr.mxu0 0.0
    %4959 = vmatpush1.msra.mxu0 0.0
    %4960 = vmatprep.subr.mxu0 0.0
    %4961 = vmatpush1.msra.mxu0 0.0
    %4962 = vmatprep.subr.mxu0 0.0
    %4963 = vmatpush1.msra.mxu0 0.0
    %4964 = vmatprep.subr.mxu0 0.0
    %4965 = vmatpush1.msra.mxu0 0.0
    %4966 = vmatprep.subr.mxu0 0.0
    %4967 = vmatpush1.msra.mxu0 0.0
    %4968 = vmatprep.subr.mxu0 0.0
    %4969 = vmatpush1.msra.mxu0 0.0
    %4970 = vmatprep.subr.mxu0 0.0
    %4971 = vmatpush1.msra.mxu0 0.0
    %4972 = vmatprep.subr.mxu0 0.0
    %4973 = vmatpush1.msra.mxu0 0.0
    %4974 = vmatprep.subr.mxu0 0.0
    %4975 = vmatpush1.msra.mxu0 0.0
    %4976 = vmatprep.subr.mxu0 0.0
    %4977 = vmatpush1.msra.mxu0 %v694
    %4978 = vmatprep.subr.mxu0 0.0
    %4979 = vmatpush1.msra.mxu0 %v693
    %4980 = vmatprep.subr.mxu0 0.0
    %4981 = vmatpush1.msra.mxu0 %v692
    %4982 = vmatprep.subr.mxu0 0.0
    %4983 = vmatpush1.msra.mxu0 %v691
    %4984 = vmatprep.subr.mxu0 0.0
    %4985 = vmatpush2.msra.mxu0 0.0
    %4986 = vmatprep.subr.mxu0 0.0
    %4987 = vmatpush2.msra.mxu0 0.0
    %4988 = vmatprep.subr.mxu0 0.0
    %4989 = vmatpush2.msra.mxu0 0.0
    %4990 = vmatprep.subr.mxu0 0.0
    %4991 = vmatpush2.msra.mxu0 0.0
    %4992 = vmatprep.subr.mxu0 0.0
    %4993 = vmatpush2.msra.mxu0 0.0
    %4994 = vmatprep.subr.mxu0 0.0
    %4995 = vmatpush2.msra.mxu0 0.0
    %4996 = vmatprep.subr.mxu0 0.0
    %4997 = vmatpush2.msra.mxu0 0.0
    %4998 = vmatprep.subr.mxu0 0.0
    %4999 = vmatpush2.msra.mxu0 0.0
    %5000 = vmatprep.subr.mxu0 0.0
    %5001 = vmatpush2.msra.mxu0 0.0
    %5002 = vmatprep.subr.mxu0 0.0
    %5003 = vmatpush2.msra.mxu0 0.0
    %5004 = vmatprep.subr.mxu0 0.0
    %5005 = vmatpush2.msra.mxu0 0.0
    %5006 = vmatprep.subr.mxu0 0.0
    %5007 = vmatpush2.msra.mxu0 0.0
    %5008 = vmatprep.subr.mxu0 0.0
    %5009 = vmatpush2.msra.mxu0 0.0
    %5010 = vmatprep.subr.mxu0 0.0
    %5011 = vmatpush2.msra.mxu0 0.0
    %5012 = vmatprep.subr.mxu0 0.0
    %5013 = vmatpush2.msra.mxu0 0.0
    %5014 = vmatprep.subr.mxu0 0.0
    %5015 = vmatpush2.msra.mxu0 0.0
    %5016 = vmatprep.mubr.f32.mxu0 0.0
    %5017 = vmatmul.mubr.f32.gmra.mxu0 %v4351
    %v5018 = vpop.f32.mrf.mxu0
    %v5019 = vadd.f32 0.0, %v5018
    %v5020 = vpop.f32.mrf.mxu0
    %5021 = vdwg.mxu0
    %v5023 = vsel %vm241, %v4949, 0
    %5025 = vmatprep.subr.mxu0 0.0
    %5026 = vmatpush1.msra.mxu0 0.0
    %5027 = vmatprep.subr.mxu0 0.0
    %5028 = vmatpush1.msra.mxu0 0.0
    %5029 = vmatprep.subr.mxu0 0.0
    %5030 = vmatpush1.msra.mxu0 0.0
    %5031 = vmatprep.subr.mxu0 0.0
    %5032 = vmatpush1.msra.mxu0 0.0
    %5033 = vmatprep.subr.mxu0 0.0
    %5034 = vmatpush1.msra.mxu0 0.0
    %5035 = vmatprep.subr.mxu0 0.0
    %5036 = vmatpush1.msra.mxu0 0.0
    %5037 = vmatprep.subr.mxu0 0.0
    %5038 = vmatpush1.msra.mxu0 0.0
    %5039 = vmatprep.subr.mxu0 0.0
    %5040 = vmatpush1.msra.mxu0 0.0
    %5041 = vmatprep.subr.mxu0 0.0
    %5042 = vmatpush1.msra.mxu0 0.0
    %5043 = vmatprep.subr.mxu0 0.0
    %5044 = vmatpush1.msra.mxu0 0.0
    %5045 = vmatprep.subr.mxu0 0.0
    %5046 = vmatpush1.msra.mxu0 0.0
    %5047 = vmatprep.subr.mxu0 0.0
    %5048 = vmatpush1.msra.mxu0 0.0
    %5049 = vmatprep.subr.mxu0 0.0
    %5050 = vmatpush1.msra.mxu0 %v690
    %5051 = vmatprep.subr.mxu0 0.0
    %5052 = vmatpush1.msra.mxu0 %v689
    %5053 = vmatprep.subr.mxu0 0.0
    %5054 = vmatpush1.msra.mxu0 %v688
    %5055 = vmatprep.subr.mxu0 0.0
    %5056 = vmatpush1.msra.mxu0 %v687
    %5057 = vmatprep.subr.mxu0 0.0
    %5058 = vmatpush2.msra.mxu0 0.0
    %5059 = vmatprep.subr.mxu0 0.0
    %5060 = vmatpush2.msra.mxu0 0.0
    %5061 = vmatprep.subr.mxu0 0.0
    %5062 = vmatpush2.msra.mxu0 0.0
    %5063 = vmatprep.subr.mxu0 0.0
    %5064 = vmatpush2.msra.mxu0 0.0
    %5065 = vmatprep.subr.mxu0 0.0
    %5066 = vmatpush2.msra.mxu0 0.0
    %5067 = vmatprep.subr.mxu0 0.0
    %5068 = vmatpush2.msra.mxu0 0.0
    %5069 = vmatprep.subr.mxu0 0.0
    %5070 = vmatpush2.msra.mxu0 0.0
    %5071 = vmatprep.subr.mxu0 0.0
    %5072 = vmatpush2.msra.mxu0 0.0
    %5073 = vmatprep.subr.mxu0 0.0
    %5074 = vmatpush2.msra.mxu0 0.0
    %5075 = vmatprep.subr.mxu0 0.0
    %5076 = vmatpush2.msra.mxu0 0.0
    %5077 = vmatprep.subr.mxu0 0.0
    %5078 = vmatpush2.msra.mxu0 0.0
    %5079 = vmatprep.subr.mxu0 0.0
    %5080 = vmatpush2.msra.mxu0 0.0
    %5081 = vmatprep.subr.mxu0 0.0
    %5082 = vmatpush2.msra.mxu0 0.0
    %5083 = vmatprep.subr.mxu0 0.0
    %5084 = vmatpush2.msra.mxu0 0.0
    %5085 = vmatprep.subr.mxu0 0.0
    %5086 = vmatpush2.msra.mxu0 0.0
    %5087 = vmatprep.subr.mxu0 0.0
    %5088 = vmatpush2.msra.mxu0 0.0
    %5089 = vmatprep.mubr.f32.mxu0 0.0
    %5090 = vmatmul.mubr.f32.gmra.mxu0 %v5023
    %v5091 = vpop.f32.mrf.mxu0
    %v5092 = vadd.f32 %v5019, %v5091
    %v5093 = vpop.f32.mrf.mxu0
    %5094 = vdwg.mxu0
    %v5095 = vadd.f32 %v5092, %v843
    %v5096 = vxor.u32 %v5095, 2147483648
    %v5097 = vmul.f32 %v5096, 1.442695
    %v5098 = vpow.pop %v5097
    %v5099 = vadd.f32 %v5098, 1.0
    %v5100 = vrcp.pop %v5099
    %v5101 = vmul.f32 1.0, %v5100
    %5103 = vrot.lane.b32.xlu0 %v5095, 32
    %v5104 = vpop.permute.xlu0 %5103
    %v5106 = vmul.f32 %v5101, %v5104
    %5108 = vrot.lane.b32.xlu0 %v5106, 64
    %v5109 = vpop.permute.xlu0 %5108
    %v5111 = vadd.f32 %v5095, %v5109
    %v5112 = vtanh.pop %v5111
    %v5113 = vsub.f32 1.0, %v5101
    %5115 = vrot.lane.b32.xlu0 %v5112, 96
    %v5116 = vpop.permute.xlu0 %5115
    %v5118 = vmul.f32 %v5113, %v5116
    %v5119 = vmul.f32 %v5101, %v4272
    %v5120 = vadd.f32 %v5118, %v5119
    %5122 = vrot.lane.b32.xlu0 %v4448, 96
    %v5123 = vpop.permute.xlu0 %5122
    %v5124 = vsel %vm241, %v5123, 0
    %5126 = vmatprep.subr.mxu0 0.0
    %5127 = vmatpush1.msra.mxu0 0.0
    %5128 = vmatprep.subr.mxu0 0.0
    %5129 = vmatpush1.msra.mxu0 0.0
    %5130 = vmatprep.subr.mxu0 0.0
    %5131 = vmatpush1.msra.mxu0 0.0
    %5132 = vmatprep.subr.mxu0 0.0
    %5133 = vmatpush1.msra.mxu0 0.0
    %5134 = vmatprep.subr.mxu0 0.0
    %5135 = vmatpush1.msra.mxu0 0.0
    %5136 = vmatprep.subr.mxu0 0.0
    %5137 = vmatpush1.msra.mxu0 0.0
    %5138 = vmatprep.subr.mxu0 0.0
    %5139 = vmatpush1.msra.mxu0 0.0
    %5140 = vmatprep.subr.mxu0 0.0
    %5141 = vmatpush1.msra.mxu0 0.0
    %5142 = vmatprep.subr.mxu0 0.0
    %5143 = vmatpush1.msra.mxu0 0.0
    %5144 = vmatprep.subr.mxu0 0.0
    %5145 = vmatpush1.msra.mxu0 0.0
    %5146 = vmatprep.subr.mxu0 0.0
    %5147 = vmatpush1.msra.mxu0 0.0
    %5148 = vmatprep.subr.mxu0 0.0
    %5149 = vmatpush1.msra.mxu0 0.0
    %5150 = vmatprep.subr.mxu0 0.0
    %5151 = vmatpush1.msra.mxu0 %v878
    %5152 = vmatprep.subr.mxu0 0.0
    %5153 = vmatpush1.msra.mxu0 %v877
    %5154 = vmatprep.subr.mxu0 0.0
    %5155 = vmatpush1.msra.mxu0 %v876
    %5156 = vmatprep.subr.mxu0 0.0
    %5157 = vmatpush1.msra.mxu0 %v875
    %5158 = vmatprep.subr.mxu0 0.0
    %5159 = vmatpush2.msra.mxu0 0.0
    %5160 = vmatprep.subr.mxu0 0.0
    %5161 = vmatpush2.msra.mxu0 0.0
    %5162 = vmatprep.subr.mxu0 0.0
    %5163 = vmatpush2.msra.mxu0 0.0
    %5164 = vmatprep.subr.mxu0 0.0
    %5165 = vmatpush2.msra.mxu0 0.0
    %5166 = vmatprep.subr.mxu0 0.0
    %5167 = vmatpush2.msra.mxu0 0.0
    %5168 = vmatprep.subr.mxu0 0.0
    %5169 = vmatpush2.msra.mxu0 0.0
    %5170 = vmatprep.subr.mxu0 0.0
    %5171 = vmatpush2.msra.mxu0 0.0
    %5172 = vmatprep.subr.mxu0 0.0
    %5173 = vmatpush2.msra.mxu0 0.0
    %5174 = vmatprep.subr.mxu0 0.0
    %5175 = vmatpush2.msra.mxu0 0.0
    %5176 = vmatprep.subr.mxu0 0.0
    %5177 = vmatpush2.msra.mxu0 0.0
    %5178 = vmatprep.subr.mxu0 0.0
    %5179 = vmatpush2.msra.mxu0 0.0
    %5180 = vmatprep.subr.mxu0 0.0
    %5181 = vmatpush2.msra.mxu0 0.0
    %5182 = vmatprep.subr.mxu0 0.0
    %5183 = vmatpush2.msra.mxu0 0.0
    %5184 = vmatprep.subr.mxu0 0.0
    %5185 = vmatpush2.msra.mxu0 0.0
    %5186 = vmatprep.subr.mxu0 0.0
    %5187 = vmatpush2.msra.mxu0 0.0
    %5188 = vmatprep.subr.mxu0 0.0
    %5189 = vmatpush2.msra.mxu0 0.0
    %5190 = vmatprep.mubr.f32.mxu0 0.0
    %5191 = vmatmul.mubr.f32.gmra.mxu0 %v5124
    %v5192 = vpop.f32.mrf.mxu0
    %v5193 = vadd.f32 0.0, %v5192
    %v5194 = vpop.f32.mrf.mxu0
    %5195 = vdwg.mxu0
    %5197 = vrot.lane.b32.xlu0 %v5120, 96
    %v5198 = vpop.permute.xlu0 %5197
    %v5199 = vsel %vm241, %v5198, 0
    %5201 = vmatprep.subr.mxu0 0.0
    %5202 = vmatpush1.msra.mxu0 0.0
    %5203 = vmatprep.subr.mxu0 0.0
    %5204 = vmatpush1.msra.mxu0 0.0
    %5205 = vmatprep.subr.mxu0 0.0
    %5206 = vmatpush1.msra.mxu0 0.0
    %5207 = vmatprep.subr.mxu0 0.0
    %5208 = vmatpush1.msra.mxu0 0.0
    %5209 = vmatprep.subr.mxu0 0.0
    %5210 = vmatpush1.msra.mxu0 0.0
    %5211 = vmatprep.subr.mxu0 0.0
    %5212 = vmatpush1.msra.mxu0 0.0
    %5213 = vmatprep.subr.mxu0 0.0
    %5214 = vmatpush1.msra.mxu0 0.0
    %5215 = vmatprep.subr.mxu0 0.0
    %5216 = vmatpush1.msra.mxu0 0.0
    %5217 = vmatprep.subr.mxu0 0.0
    %5218 = vmatpush1.msra.mxu0 0.0
    %5219 = vmatprep.subr.mxu0 0.0
    %5220 = vmatpush1.msra.mxu0 0.0
    %5221 = vmatprep.subr.mxu0 0.0
    %5222 = vmatpush1.msra.mxu0 0.0
    %5223 = vmatprep.subr.mxu0 0.0
    %5224 = vmatpush1.msra.mxu0 0.0
    %5225 = vmatprep.subr.mxu0 0.0
    %5226 = vmatpush1.msra.mxu0 %v874
    %5227 = vmatprep.subr.mxu0 0.0
    %5228 = vmatpush1.msra.mxu0 %v873
    %5229 = vmatprep.subr.mxu0 0.0
    %5230 = vmatpush1.msra.mxu0 %v872
    %5231 = vmatprep.subr.mxu0 0.0
    %5232 = vmatpush1.msra.mxu0 %v871
    %5233 = vmatprep.subr.mxu0 0.0
    %5234 = vmatpush2.msra.mxu0 0.0
    %5235 = vmatprep.subr.mxu0 0.0
    %5236 = vmatpush2.msra.mxu0 0.0
    %5237 = vmatprep.subr.mxu0 0.0
    %5238 = vmatpush2.msra.mxu0 0.0
    %5239 = vmatprep.subr.mxu0 0.0
    %5240 = vmatpush2.msra.mxu0 0.0
    %5241 = vmatprep.subr.mxu0 0.0
    %5242 = vmatpush2.msra.mxu0 0.0
    %5243 = vmatprep.subr.mxu0 0.0
    %5244 = vmatpush2.msra.mxu0 0.0
    %5245 = vmatprep.subr.mxu0 0.0
    %5246 = vmatpush2.msra.mxu0 0.0
    %5247 = vmatprep.subr.mxu0 0.0
    %5248 = vmatpush2.msra.mxu0 0.0
    %5249 = vmatprep.subr.mxu0 0.0
    %5250 = vmatpush2.msra.mxu0 0.0
    %5251 = vmatprep.subr.mxu0 0.0
    %5252 = vmatpush2.msra.mxu0 0.0
    %5253 = vmatprep.subr.mxu0 0.0
    %5254 = vmatpush2.msra.mxu0 0.0
    %5255 = vmatprep.subr.mxu0 0.0
    %5256 = vmatpush2.msra.mxu0 0.0
    %5257 = vmatprep.subr.mxu0 0.0
    %5258 = vmatpush2.msra.mxu0 0.0
    %5259 = vmatprep.subr.mxu0 0.0
    %5260 = vmatpush2.msra.mxu0 0.0
    %5261 = vmatprep.subr.mxu0 0.0
    %5262 = vmatpush2.msra.mxu0 0.0
    %5263 = vmatprep.subr.mxu0 0.0
    %5264 = vmatpush2.msra.mxu0 0.0
    %5265 = vmatprep.mubr.f32.mxu0 0.0
    %5266 = vmatmul.mubr.f32.gmra.mxu0 %v5199
    %v5267 = vpop.f32.mrf.mxu0
    %v5268 = vadd.f32 %v5193, %v5267
    %v5269 = vpop.f32.mrf.mxu0
    %5270 = vdwg.mxu0
    %v5271 = vadd.f32 %v5268, %v1029
    %v5272 = vxor.u32 %v5271, 2147483648
    %v5273 = vmul.f32 %v5272, 1.442695
    %v5274 = vpow.pop %v5273
    %v5275 = vadd.f32 %v5274, 1.0
    %v5276 = vrcp.pop %v5275
    %v5277 = vmul.f32 1.0, %v5276
    %5279 = vrot.lane.b32.xlu0 %v5271, 32
    %v5280 = vpop.permute.xlu0 %5279
    %v5282 = vmul.f32 %v5277, %v5280
    %5284 = vrot.lane.b32.xlu0 %v5282, 64
    %v5285 = vpop.permute.xlu0 %5284
    %v5287 = vadd.f32 %v5271, %v5285
    %v5288 = vtanh.pop %v5287
    %v5289 = vsub.f32 1.0, %v5277
    %5291 = vrot.lane.b32.xlu0 %v5288, 96
    %v5292 = vpop.permute.xlu0 %5291
    %v5294 = vmul.f32 %v5289, %v5292
    %v5295 = vmul.f32 %v5277, %v4448
    %v5296 = vadd.f32 %v5294, %v5295
    %5297 = vset.pattern.permute.xlu0 6
    %5298 = vperm.xlu0 %5297, %v141
    %v5299 = vpop.permute.xlu0 %5298
    %vm5300 = vcmp.eq.s32.totalorder %v5299, %v140
    %v5301 = vsel %vm5300, 1, 0
    %v5302 = vcvt.s32.f32 %v5301
    %v5304 = vsel %vm155, %v5302, 0
    %5306 = vmatprep.subr.mxu0 0.0
    %5307 = vmatpush1.msra.mxu0 0.0
    %5308 = vmatprep.subr.mxu0 0.0
    %5309 = vmatpush1.msra.mxu0 0.0
    %5310 = vmatprep.subr.mxu0 0.0
    %5311 = vmatpush1.msra.mxu0 0.0
    %5312 = vmatprep.subr.mxu0 0.0
    %5313 = vmatpush1.msra.mxu0 0.0
    %5314 = vmatprep.subr.mxu0 0.0
    %5315 = vmatpush1.msra.mxu0 0.0
    %5316 = vmatprep.subr.mxu0 0.0
    %5317 = vmatpush1.msra.mxu0 0.0
    %5318 = vmatprep.subr.mxu0 0.0
    %5319 = vmatpush1.msra.mxu0 0.0
    %5320 = vmatprep.subr.mxu0 0.0
    %5321 = vmatpush1.msra.mxu0 0.0
    %5322 = vmatprep.subr.mxu0 0.0
    %5323 = vmatpush1.msra.mxu0 0.0
    %5324 = vmatprep.subr.mxu0 0.0
    %5325 = vmatpush1.msra.mxu0 %v161
    %5326 = vmatprep.subr.mxu0 0.0
    %5327 = vmatpush1.msra.mxu0 %v153
    %5328 = vmatprep.subr.mxu0 0.0
    %5329 = vmatpush1.msra.mxu0 %v152
    %5330 = vmatprep.subr.mxu0 0.0
    %5331 = vmatpush1.msra.mxu0 %v151
    %5332 = vmatprep.subr.mxu0 0.0
    %5333 = vmatpush1.msra.mxu0 %v150
    %5334 = vmatprep.subr.mxu0 0.0
    %5335 = vmatpush1.msra.mxu0 %v149
    %5336 = vmatprep.subr.mxu0 0.0
    %5337 = vmatpush1.msra.mxu0 %v148
    %5338 = vmatprep.subr.mxu0 0.0
    %5339 = vmatpush2.msra.mxu0 0.0
    %5340 = vmatprep.subr.mxu0 0.0
    %5341 = vmatpush2.msra.mxu0 0.0
    %5342 = vmatprep.subr.mxu0 0.0
    %5343 = vmatpush2.msra.mxu0 0.0
    %5344 = vmatprep.subr.mxu0 0.0
    %5345 = vmatpush2.msra.mxu0 0.0
    %5346 = vmatprep.subr.mxu0 0.0
    %5347 = vmatpush2.msra.mxu0 0.0
    %5348 = vmatprep.subr.mxu0 0.0
    %5349 = vmatpush2.msra.mxu0 0.0
    %5350 = vmatprep.subr.mxu0 0.0
    %5351 = vmatpush2.msra.mxu0 0.0
    %5352 = vmatprep.subr.mxu0 0.0
    %5353 = vmatpush2.msra.mxu0 0.0
    %5354 = vmatprep.subr.mxu0 0.0
    %5355 = vmatpush2.msra.mxu0 0.0
    %5356 = vmatprep.subr.mxu0 0.0
    %5357 = vmatpush2.msra.mxu0 0.0
    %5358 = vmatprep.subr.mxu0 0.0
    %5359 = vmatpush2.msra.mxu0 0.0
    %5360 = vmatprep.subr.mxu0 0.0
    %5361 = vmatpush2.msra.mxu0 0.0
    %5362 = vmatprep.subr.mxu0 0.0
    %5363 = vmatpush2.msra.mxu0 0.0
    %5364 = vmatprep.subr.mxu0 0.0
    %5365 = vmatpush2.msra.mxu0 0.0
    %5366 = vmatprep.subr.mxu0 0.0
    %5367 = vmatpush2.msra.mxu0 0.0
    %5368 = vmatprep.subr.mxu0 0.0
    %5369 = vmatpush2.msra.mxu0 0.0
    %5370 = vmatprep.mubr.f32.mxu0 0.0
    %5371 = vmatmul.mubr.f32.gmra.mxu0 %v5304
    %v5372 = vpop.f32.mrf.mxu0
    %v5373 = vadd.f32 0.0, %v5372
    %v5374 = vpop.f32.mrf.mxu0
    %5375 = vdwg.mxu0
    %5376 = vmatprep.subr.mxu0 0.0
    %5377 = vmatpush1.msra.mxu0 0.0
    %5378 = vmatprep.subr.mxu0 0.0
    %5379 = vmatpush1.msra.mxu0 0.0
    %5380 = vmatprep.subr.mxu0 0.0
    %5381 = vmatpush1.msra.mxu0 0.0
    %5382 = vmatprep.subr.mxu0 0.0
    %5383 = vmatpush1.msra.mxu0 0.0
    %5384 = vmatprep.subr.mxu0 0.0
    %5385 = vmatpush1.msra.mxu0 0.0
    %5386 = vmatprep.subr.mxu0 0.0
    %5387 = vmatpush1.msra.mxu0 0.0
    %5388 = vmatprep.subr.mxu0 0.0
    %5389 = vmatpush1.msra.mxu0 0.0
    %5390 = vmatprep.subr.mxu0 0.0
    %5391 = vmatpush1.msra.mxu0 0.0
    %5392 = vmatprep.subr.mxu0 0.0
    %5393 = vmatpush1.msra.mxu0 0.0
    %5394 = vmatprep.subr.mxu0 0.0
    %5395 = vmatpush1.msra.mxu0 0.0
    %5396 = vmatprep.subr.mxu0 0.0
    %5397 = vmatpush1.msra.mxu0 0.0
    %5398 = vmatprep.subr.mxu0 0.0
    %5399 = vmatpush1.msra.mxu0 0.0
    %5400 = vmatprep.subr.mxu0 0.0
    %5401 = vmatpush1.msra.mxu0 %v240
    %5402 = vmatprep.subr.mxu0 0.0
    %5403 = vmatpush1.msra.mxu0 %v239
    %5404 = vmatprep.subr.mxu0 0.0
    %5405 = vmatpush1.msra.mxu0 %v238
    %5406 = vmatprep.subr.mxu0 0.0
    %5407 = vmatpush1.msra.mxu0 %v237
    %5408 = vmatprep.subr.mxu0 0.0
    %5409 = vmatpush2.msra.mxu0 0.0
    %5410 = vmatprep.subr.mxu0 0.0
    %5411 = vmatpush2.msra.mxu0 0.0
    %5412 = vmatprep.subr.mxu0 0.0
    %5413 = vmatpush2.msra.mxu0 0.0
    %5414 = vmatprep.subr.mxu0 0.0
    %5415 = vmatpush2.msra.mxu0 0.0
    %5416 = vmatprep.subr.mxu0 0.0
    %5417 = vmatpush2.msra.mxu0 0.0
    %5418 = vmatprep.subr.mxu0 0.0
    %5419 = vmatpush2.msra.mxu0 0.0
    %5420 = vmatprep.subr.mxu0 0.0
    %5421 = vmatpush2.msra.mxu0 0.0
    %5422 = vmatprep.subr.mxu0 0.0
    %5423 = vmatpush2.msra.mxu0 0.0
    %5424 = vmatprep.subr.mxu0 0.0
    %5425 = vmatpush2.msra.mxu0 0.0
    %5426 = vmatprep.subr.mxu0 0.0
    %5427 = vmatpush2.msra.mxu0 0.0
    %5428 = vmatprep.subr.mxu0 0.0
    %5429 = vmatpush2.msra.mxu0 0.0
    %5430 = vmatprep.subr.mxu0 0.0
    %5431 = vmatpush2.msra.mxu0 0.0
    %5432 = vmatprep.subr.mxu0 0.0
    %5433 = vmatpush2.msra.mxu0 0.0
    %5434 = vmatprep.subr.mxu0 0.0
    %5435 = vmatpush2.msra.mxu0 0.0
    %5436 = vmatprep.subr.mxu0 0.0
    %5437 = vmatpush2.msra.mxu0 0.0
    %5438 = vmatprep.subr.mxu0 0.0
    %5439 = vmatpush2.msra.mxu0 0.0
    %5440 = vmatprep.mubr.f32.mxu0 0.0
    %5441 = vmatmul.mubr.f32.gmra.mxu0 %v4775
    %v5442 = vpop.f32.mrf.mxu0
    %v5443 = vadd.f32 0.0, %v5442
    %v5444 = vpop.f32.mrf.mxu0
    %5445 = vdwg.mxu0
    %v5447 = vsel %vm241, %v5373, 0
    %5449 = vmatprep.subr.mxu0 0.0
    %5450 = vmatpush1.msra.mxu0 0.0
    %5451 = vmatprep.subr.mxu0 0.0
    %5452 = vmatpush1.msra.mxu0 0.0
    %5453 = vmatprep.subr.mxu0 0.0
    %5454 = vmatpush1.msra.mxu0 0.0
    %5455 = vmatprep.subr.mxu0 0.0
    %5456 = vmatpush1.msra.mxu0 0.0
    %5457 = vmatprep.subr.mxu0 0.0
    %5458 = vmatpush1.msra.mxu0 0.0
    %5459 = vmatprep.subr.mxu0 0.0
    %5460 = vmatpush1.msra.mxu0 0.0
    %5461 = vmatprep.subr.mxu0 0.0
    %5462 = vmatpush1.msra.mxu0 0.0
    %5463 = vmatprep.subr.mxu0 0.0
    %5464 = vmatpush1.msra.mxu0 0.0
    %5465 = vmatprep.subr.mxu0 0.0
    %5466 = vmatpush1.msra.mxu0 0.0
    %5467 = vmatprep.subr.mxu0 0.0
    %5468 = vmatpush1.msra.mxu0 0.0
    %5469 = vmatprep.subr.mxu0 0.0
    %5470 = vmatpush1.msra.mxu0 0.0
    %5471 = vmatprep.subr.mxu0 0.0
    %5472 = vmatpush1.msra.mxu0 0.0
    %5473 = vmatprep.subr.mxu0 0.0
    %5474 = vmatpush1.msra.mxu0 %v236
    %5475 = vmatprep.subr.mxu0 0.0
    %5476 = vmatpush1.msra.mxu0 %v235
    %5477 = vmatprep.subr.mxu0 0.0
    %5478 = vmatpush1.msra.mxu0 %v234
    %5479 = vmatprep.subr.mxu0 0.0
    %5480 = vmatpush1.msra.mxu0 %v233
    %5481 = vmatprep.subr.mxu0 0.0
    %5482 = vmatpush2.msra.mxu0 0.0
    %5483 = vmatprep.subr.mxu0 0.0
    %5484 = vmatpush2.msra.mxu0 0.0
    %5485 = vmatprep.subr.mxu0 0.0
    %5486 = vmatpush2.msra.mxu0 0.0
    %5487 = vmatprep.subr.mxu0 0.0
    %5488 = vmatpush2.msra.mxu0 0.0
    %5489 = vmatprep.subr.mxu0 0.0
    %5490 = vmatpush2.msra.mxu0 0.0
    %5491 = vmatprep.subr.mxu0 0.0
    %5492 = vmatpush2.msra.mxu0 0.0
    %5493 = vmatprep.subr.mxu0 0.0
    %5494 = vmatpush2.msra.mxu0 0.0
    %5495 = vmatprep.subr.mxu0 0.0
    %5496 = vmatpush2.msra.mxu0 0.0
    %5497 = vmatprep.subr.mxu0 0.0
    %5498 = vmatpush2.msra.mxu0 0.0
    %5499 = vmatprep.subr.mxu0 0.0
    %5500 = vmatpush2.msra.mxu0 0.0
    %5501 = vmatprep.subr.mxu0 0.0
    %5502 = vmatpush2.msra.mxu0 0.0
    %5503 = vmatprep.subr.mxu0 0.0
    %5504 = vmatpush2.msra.mxu0 0.0
    %5505 = vmatprep.subr.mxu0 0.0
    %5506 = vmatpush2.msra.mxu0 0.0
    %5507 = vmatprep.subr.mxu0 0.0
    %5508 = vmatpush2.msra.mxu0 0.0
    %5509 = vmatprep.subr.mxu0 0.0
    %5510 = vmatpush2.msra.mxu0 0.0
    %5511 = vmatprep.subr.mxu0 0.0
    %5512 = vmatpush2.msra.mxu0 0.0
    %5513 = vmatprep.mubr.f32.mxu0 0.0
    %5514 = vmatmul.mubr.f32.gmra.mxu0 %v5447
    %v5515 = vpop.f32.mrf.mxu0
    %v5516 = vadd.f32 %v5443, %v5515
    %v5517 = vpop.f32.mrf.mxu0
    %5518 = vdwg.mxu0
    %v5519 = vadd.f32 %v5516, %v393
    %v5520 = vxor.u32 %v5519, 2147483648
    %v5521 = vmul.f32 %v5520, 1.442695
    %v5522 = vpow.pop %v5521
    %v5523 = vadd.f32 %v5522, 1.0
    %v5524 = vrcp.pop %v5523
    %v5525 = vmul.f32 1.0, %v5524
    %5527 = vrot.lane.b32.xlu0 %v5519, 32
    %v5528 = vpop.permute.xlu0 %5527
    %v5530 = vmul.f32 %v5525, %v5528
    %5532 = vrot.lane.b32.xlu0 %v5530, 64
    %v5533 = vpop.permute.xlu0 %5532
    %v5535 = vadd.f32 %v5519, %v5533
    %v5536 = vtanh.pop %v5535
    %v5537 = vsub.f32 1.0, %v5525
    %5539 = vrot.lane.b32.xlu0 %v5536, 96
    %v5540 = vpop.permute.xlu0 %5539
    %v5542 = vmul.f32 %v5537, %v5540
    %v5543 = vmul.f32 %v5525, %v4696
    %v5544 = vadd.f32 %v5542, %v5543
    %5546 = vrot.lane.b32.xlu0 %v4872, 96
    %v5547 = vpop.permute.xlu0 %5546
    %v5548 = vsel %vm241, %v5547, 0
    %5550 = vmatprep.subr.mxu0 0.0
    %5551 = vmatpush1.msra.mxu0 0.0
    %5552 = vmatprep.subr.mxu0 0.0
    %5553 = vmatpush1.msra.mxu0 0.0
    %5554 = vmatprep.subr.mxu0 0.0
    %5555 = vmatpush1.msra.mxu0 0.0
    %5556 = vmatprep.subr.mxu0 0.0
    %5557 = vmatpush1.msra.mxu0 0.0
    %5558 = vmatprep.subr.mxu0 0.0
    %5559 = vmatpush1.msra.mxu0 0.0
    %5560 = vmatprep.subr.mxu0 0.0
    %5561 = vmatpush1.msra.mxu0 0.0
    %5562 = vmatprep.subr.mxu0 0.0
    %5563 = vmatpush1.msra.mxu0 0.0
    %5564 = vmatprep.subr.mxu0 0.0
    %5565 = vmatpush1.msra.mxu0 0.0
    %5566 = vmatprep.subr.mxu0 0.0
    %5567 = vmatpush1.msra.mxu0 0.0
    %5568 = vmatprep.subr.mxu0 0.0
    %5569 = vmatpush1.msra.mxu0 0.0
    %5570 = vmatprep.subr.mxu0 0.0
    %5571 = vmatpush1.msra.mxu0 0.0
    %5572 = vmatprep.subr.mxu0 0.0
    %5573 = vmatpush1.msra.mxu0 0.0
    %5574 = vmatprep.subr.mxu0 0.0
    %5575 = vmatpush1.msra.mxu0 %v428
    %5576 = vmatprep.subr.mxu0 0.0
    %5577 = vmatpush1.msra.mxu0 %v427
    %5578 = vmatprep.subr.mxu0 0.0
    %5579 = vmatpush1.msra.mxu0 %v426
    %5580 = vmatprep.subr.mxu0 0.0
    %5581 = vmatpush1.msra.mxu0 %v425
    %5582 = vmatprep.subr.mxu0 0.0
    %5583 = vmatpush2.msra.mxu0 0.0
    %5584 = vmatprep.subr.mxu0 0.0
    %5585 = vmatpush2.msra.mxu0 0.0
    %5586 = vmatprep.subr.mxu0 0.0
    %5587 = vmatpush2.msra.mxu0 0.0
    %5588 = vmatprep.subr.mxu0 0.0
    %5589 = vmatpush2.msra.mxu0 0.0
    %5590 = vmatprep.subr.mxu0 0.0
    %5591 = vmatpush2.msra.mxu0 0.0
    %5592 = vmatprep.subr.mxu0 0.0
    %5593 = vmatpush2.msra.mxu0 0.0
    %5594 = vmatprep.subr.mxu0 0.0
    %5595 = vmatpush2.msra.mxu0 0.0
    %5596 = vmatprep.subr.mxu0 0.0
    %5597 = vmatpush2.msra.mxu0 0.0
    %5598 = vmatprep.subr.mxu0 0.0
    %5599 = vmatpush2.msra.mxu0 0.0
    %5600 = vmatprep.subr.mxu0 0.0
    %5601 = vmatpush2.msra.mxu0 0.0
    %5602 = vmatprep.subr.mxu0 0.0
    %5603 = vmatpush2.msra.mxu0 0.0
    %5604 = vmatprep.subr.mxu0 0.0
    %5605 = vmatpush2.msra.mxu0 0.0
    %5606 = vmatprep.subr.mxu0 0.0
    %5607 = vmatpush2.msra.mxu0 0.0
    %5608 = vmatprep.subr.mxu0 0.0
    %5609 = vmatpush2.msra.mxu0 0.0
    %5610 = vmatprep.subr.mxu0 0.0
    %5611 = vmatpush2.msra.mxu0 0.0
    %5612 = vmatprep.subr.mxu0 0.0
    %5613 = vmatpush2.msra.mxu0 0.0
    %5614 = vmatprep.mubr.f32.mxu0 0.0
    %5615 = vmatmul.mubr.f32.gmra.mxu0 %v5548
    %v5616 = vpop.f32.mrf.mxu0
    %v5617 = vadd.f32 0.0, %v5616
    %v5618 = vpop.f32.mrf.mxu0
    %5619 = vdwg.mxu0
    %5621 = vrot.lane.b32.xlu0 %v5544, 96
    %v5622 = vpop.permute.xlu0 %5621
    %v5623 = vsel %vm241, %v5622, 0
    %5625 = vmatprep.subr.mxu0 0.0
    %5626 = vmatpush1.msra.mxu0 0.0
    %5627 = vmatprep.subr.mxu0 0.0
    %5628 = vmatpush1.msra.mxu0 0.0
    %5629 = vmatprep.subr.mxu0 0.0
    %5630 = vmatpush1.msra.mxu0 0.0
    %5631 = vmatprep.subr.mxu0 0.0
    %5632 = vmatpush1.msra.mxu0 0.0
    %5633 = vmatprep.subr.mxu0 0.0
    %5634 = vmatpush1.msra.mxu0 0.0
    %5635 = vmatprep.subr.mxu0 0.0
    %5636 = vmatpush1.msra.mxu0 0.0
    %5637 = vmatprep.subr.mxu0 0.0
    %5638 = vmatpush1.msra.mxu0 0.0
    %5639 = vmatprep.subr.mxu0 0.0
    %5640 = vmatpush1.msra.mxu0 0.0
    %5641 = vmatprep.subr.mxu0 0.0
    %5642 = vmatpush1.msra.mxu0 0.0
    %5643 = vmatprep.subr.mxu0 0.0
    %5644 = vmatpush1.msra.mxu0 0.0
    %5645 = vmatprep.subr.mxu0 0.0
    %5646 = vmatpush1.msra.mxu0 0.0
    %5647 = vmatprep.subr.mxu0 0.0
    %5648 = vmatpush1.msra.mxu0 0.0
    %5649 = vmatprep.subr.mxu0 0.0
    %5650 = vmatpush1.msra.mxu0 %v424
    %5651 = vmatprep.subr.mxu0 0.0
    %5652 = vmatpush1.msra.mxu0 %v423
    %5653 = vmatprep.subr.mxu0 0.0
    %5654 = vmatpush1.msra.mxu0 %v422
    %5655 = vmatprep.subr.mxu0 0.0
    %5656 = vmatpush1.msra.mxu0 %v421
    %5657 = vmatprep.subr.mxu0 0.0
    %5658 = vmatpush2.msra.mxu0 0.0
    %5659 = vmatprep.subr.mxu0 0.0
    %5660 = vmatpush2.msra.mxu0 0.0
    %5661 = vmatprep.subr.mxu0 0.0
    %5662 = vmatpush2.msra.mxu0 0.0
    %5663 = vmatprep.subr.mxu0 0.0
    %5664 = vmatpush2.msra.mxu0 0.0
    %5665 = vmatprep.subr.mxu0 0.0
    %5666 = vmatpush2.msra.mxu0 0.0
    %5667 = vmatprep.subr.mxu0 0.0
    %5668 = vmatpush2.msra.mxu0 0.0
    %5669 = vmatprep.subr.mxu0 0.0
    %5670 = vmatpush2.msra.mxu0 0.0
    %5671 = vmatprep.subr.mxu0 0.0
    %5672 = vmatpush2.msra.mxu0 0.0
    %5673 = vmatprep.subr.mxu0 0.0
    %5674 = vmatpush2.msra.mxu0 0.0
    %5675 = vmatprep.subr.mxu0 0.0
    %5676 = vmatpush2.msra.mxu0 0.0
    %5677 = vmatprep.subr.mxu0 0.0
    %5678 = vmatpush2.msra.mxu0 0.0
    %5679 = vmatprep.subr.mxu0 0.0
    %5680 = vmatpush2.msra.mxu0 0.0
    %5681 = vmatprep.subr.mxu0 0.0
    %5682 = vmatpush2.msra.mxu0 0.0
    %5683 = vmatprep.subr.mxu0 0.0
    %5684 = vmatpush2.msra.mxu0 0.0
    %5685 = vmatprep.subr.mxu0 0.0
    %5686 = vmatpush2.msra.mxu0 0.0
    %5687 = vmatprep.subr.mxu0 0.0
    %5688 = vmatpush2.msra.mxu0 0.0
    %5689 = vmatprep.mubr.f32.mxu0 0.0
    %5690 = vmatmul.mubr.f32.gmra.mxu0 %v5623
    %v5691 = vpop.f32.mrf.mxu0
    %v5692 = vadd.f32 %v5617, %v5691
    %v5693 = vpop.f32.mrf.mxu0
    %5694 = vdwg.mxu0
    %v5695 = vadd.f32 %v5692, %v579
    %v5696 = vxor.u32 %v5695, 2147483648
    %v5697 = vmul.f32 %v5696, 1.442695
    %v5698 = vpow.pop %v5697
    %v5699 = vadd.f32 %v5698, 1.0
    %v5700 = vrcp.pop %v5699
    %v5701 = vmul.f32 1.0, %v5700
    %5703 = vrot.lane.b32.xlu0 %v5695, 32
    %v5704 = vpop.permute.xlu0 %5703
    %v5706 = vmul.f32 %v5701, %v5704
    %5708 = vrot.lane.b32.xlu0 %v5706, 64
    %v5709 = vpop.permute.xlu0 %5708
    %v5711 = vadd.f32 %v5695, %v5709
    %v5712 = vtanh.pop %v5711
    %v5713 = vsub.f32 1.0, %v5701
    %5715 = vrot.lane.b32.xlu0 %v5712, 96
    %v5716 = vpop.permute.xlu0 %5715
    %v5718 = vmul.f32 %v5713, %v5716
    %v5719 = vmul.f32 %v5701, %v4872
    %v5720 = vadd.f32 %v5718, %v5719
    %5721 = vset.pattern.permute.xlu0 6
    %5722 = vperm.xlu0 %5721, %v607
    %v5723 = vpop.permute.xlu0 %5722
    %vm5724 = vcmp.eq.s32.totalorder %v5723, %v140
    %v5725 = vsel %vm5724, 1, 0
    %v5726 = vcvt.s32.f32 %v5725
    %v5728 = vsel %vm155, %v5726, 0
    %5730 = vmatprep.subr.mxu0 0.0
    %5731 = vmatpush1.msra.mxu0 0.0
    %5732 = vmatprep.subr.mxu0 0.0
    %5733 = vmatpush1.msra.mxu0 0.0
    %5734 = vmatprep.subr.mxu0 0.0
    %5735 = vmatpush1.msra.mxu0 0.0
    %5736 = vmatprep.subr.mxu0 0.0
    %5737 = vmatpush1.msra.mxu0 0.0
    %5738 = vmatprep.subr.mxu0 0.0
    %5739 = vmatpush1.msra.mxu0 0.0
    %5740 = vmatprep.subr.mxu0 0.0
    %5741 = vmatpush1.msra.mxu0 0.0
    %5742 = vmatprep.subr.mxu0 0.0
    %5743 = vmatpush1.msra.mxu0 0.0
    %5744 = vmatprep.subr.mxu0 0.0
    %5745 = vmatpush1.msra.mxu0 0.0
    %5746 = vmatprep.subr.mxu0 0.0
    %5747 = vmatpush1.msra.mxu0 0.0
    %5748 = vmatprep.subr.mxu0 0.0
    %5749 = vmatpush1.msra.mxu0 %v161
    %5750 = vmatprep.subr.mxu0 0.0
    %5751 = vmatpush1.msra.mxu0 %v153
    %5752 = vmatprep.subr.mxu0 0.0
    %5753 = vmatpush1.msra.mxu0 %v152
    %5754 = vmatprep.subr.mxu0 0.0
    %5755 = vmatpush1.msra.mxu0 %v151
    %5756 = vmatprep.subr.mxu0 0.0
    %5757 = vmatpush1.msra.mxu0 %v150
    %5758 = vmatprep.subr.mxu0 0.0
    %5759 = vmatpush1.msra.mxu0 %v149
    %5760 = vmatprep.subr.mxu0 0.0
    %5761 = vmatpush1.msra.mxu0 %v148
    %5762 = vmatprep.subr.mxu0 0.0
    %5763 = vmatpush2.msra.mxu0 0.0
    %5764 = vmatprep.subr.mxu0 0.0
    %5765 = vmatpush2.msra.mxu0 0.0
    %5766 = vmatprep.subr.mxu0 0.0
    %5767 = vmatpush2.msra.mxu0 0.0
    %5768 = vmatprep.subr.mxu0 0.0
    %5769 = vmatpush2.msra.mxu0 0.0
    %5770 = vmatprep.subr.mxu0 0.0
    %5771 = vmatpush2.msra.mxu0 0.0
    %5772 = vmatprep.subr.mxu0 0.0
    %5773 = vmatpush2.msra.mxu0 0.0
    %5774 = vmatprep.subr.mxu0 0.0
    %5775 = vmatpush2.msra.mxu0 0.0
    %5776 = vmatprep.subr.mxu0 0.0
    %5777 = vmatpush2.msra.mxu0 0.0
    %5778 = vmatprep.subr.mxu0 0.0
    %5779 = vmatpush2.msra.mxu0 0.0
    %5780 = vmatprep.subr.mxu0 0.0
    %5781 = vmatpush2.msra.mxu0 0.0
    %5782 = vmatprep.subr.mxu0 0.0
    %5783 = vmatpush2.msra.mxu0 0.0
    %5784 = vmatprep.subr.mxu0 0.0
    %5785 = vmatpush2.msra.mxu0 0.0
    %5786 = vmatprep.subr.mxu0 0.0
    %5787 = vmatpush2.msra.mxu0 0.0
    %5788 = vmatprep.subr.mxu0 0.0
    %5789 = vmatpush2.msra.mxu0 0.0
    %5790 = vmatprep.subr.mxu0 0.0
    %5791 = vmatpush2.msra.mxu0 0.0
    %5792 = vmatprep.subr.mxu0 0.0
    %5793 = vmatpush2.msra.mxu0 0.0
    %5794 = vmatprep.mubr.f32.mxu0 0.0
    %5795 = vmatmul.mubr.f32.gmra.mxu0 %v5728
    %v5796 = vpop.f32.mrf.mxu0
    %v5797 = vadd.f32 0.0, %v5796
    %v5798 = vpop.f32.mrf.mxu0
    %5799 = vdwg.mxu0
    %5800 = vmatprep.subr.mxu0 0.0
    %5801 = vmatpush1.msra.mxu0 0.0
    %5802 = vmatprep.subr.mxu0 0.0
    %5803 = vmatpush1.msra.mxu0 0.0
    %5804 = vmatprep.subr.mxu0 0.0
    %5805 = vmatpush1.msra.mxu0 0.0
    %5806 = vmatprep.subr.mxu0 0.0
    %5807 = vmatpush1.msra.mxu0 0.0
    %5808 = vmatprep.subr.mxu0 0.0
    %5809 = vmatpush1.msra.mxu0 0.0
    %5810 = vmatprep.subr.mxu0 0.0
    %5811 = vmatpush1.msra.mxu0 0.0
    %5812 = vmatprep.subr.mxu0 0.0
    %5813 = vmatpush1.msra.mxu0 0.0
    %5814 = vmatprep.subr.mxu0 0.0
    %5815 = vmatpush1.msra.mxu0 0.0
    %5816 = vmatprep.subr.mxu0 0.0
    %5817 = vmatpush1.msra.mxu0 0.0
    %5818 = vmatprep.subr.mxu0 0.0
    %5819 = vmatpush1.msra.mxu0 0.0
    %5820 = vmatprep.subr.mxu0 0.0
    %5821 = vmatpush1.msra.mxu0 0.0
    %5822 = vmatprep.subr.mxu0 0.0
    %5823 = vmatpush1.msra.mxu0 0.0
    %5824 = vmatprep.subr.mxu0 0.0
    %5825 = vmatpush1.msra.mxu0 %v694
    %5826 = vmatprep.subr.mxu0 0.0
    %5827 = vmatpush1.msra.mxu0 %v693
    %5828 = vmatprep.subr.mxu0 0.0
    %5829 = vmatpush1.msra.mxu0 %v692
    %5830 = vmatprep.subr.mxu0 0.0
    %5831 = vmatpush1.msra.mxu0 %v691
    %5832 = vmatprep.subr.mxu0 0.0
    %5833 = vmatpush2.msra.mxu0 0.0
    %5834 = vmatprep.subr.mxu0 0.0
    %5835 = vmatpush2.msra.mxu0 0.0
    %5836 = vmatprep.subr.mxu0 0.0
    %5837 = vmatpush2.msra.mxu0 0.0
    %5838 = vmatprep.subr.mxu0 0.0
    %5839 = vmatpush2.msra.mxu0 0.0
    %5840 = vmatprep.subr.mxu0 0.0
    %5841 = vmatpush2.msra.mxu0 0.0
    %5842 = vmatprep.subr.mxu0 0.0
    %5843 = vmatpush2.msra.mxu0 0.0
    %5844 = vmatprep.subr.mxu0 0.0
    %5845 = vmatpush2.msra.mxu0 0.0
    %5846 = vmatprep.subr.mxu0 0.0
    %5847 = vmatpush2.msra.mxu0 0.0
    %5848 = vmatprep.subr.mxu0 0.0
    %5849 = vmatpush2.msra.mxu0 0.0
    %5850 = vmatprep.subr.mxu0 0.0
    %5851 = vmatpush2.msra.mxu0 0.0
    %5852 = vmatprep.subr.mxu0 0.0
    %5853 = vmatpush2.msra.mxu0 0.0
    %5854 = vmatprep.subr.mxu0 0.0
    %5855 = vmatpush2.msra.mxu0 0.0
    %5856 = vmatprep.subr.mxu0 0.0
    %5857 = vmatpush2.msra.mxu0 0.0
    %5858 = vmatprep.subr.mxu0 0.0
    %5859 = vmatpush2.msra.mxu0 0.0
    %5860 = vmatprep.subr.mxu0 0.0
    %5861 = vmatpush2.msra.mxu0 0.0
    %5862 = vmatprep.subr.mxu0 0.0
    %5863 = vmatpush2.msra.mxu0 0.0
    %5864 = vmatprep.mubr.f32.mxu0 0.0
    %5865 = vmatmul.mubr.f32.gmra.mxu0 %v5199
    %v5866 = vpop.f32.mrf.mxu0
    %v5867 = vadd.f32 0.0, %v5866
    %v5868 = vpop.f32.mrf.mxu0
    %5869 = vdwg.mxu0
    %v5871 = vsel %vm241, %v5797, 0
    %5873 = vmatprep.subr.mxu0 0.0
    %5874 = vmatpush1.msra.mxu0 0.0
    %5875 = vmatprep.subr.mxu0 0.0
    %5876 = vmatpush1.msra.mxu0 0.0
    %5877 = vmatprep.subr.mxu0 0.0
    %5878 = vmatpush1.msra.mxu0 0.0
    %5879 = vmatprep.subr.mxu0 0.0
    %5880 = vmatpush1.msra.mxu0 0.0
    %5881 = vmatprep.subr.mxu0 0.0
    %5882 = vmatpush1.msra.mxu0 0.0
    %5883 = vmatprep.subr.mxu0 0.0
    %5884 = vmatpush1.msra.mxu0 0.0
    %5885 = vmatprep.subr.mxu0 0.0
    %5886 = vmatpush1.msra.mxu0 0.0
    %5887 = vmatprep.subr.mxu0 0.0
    %5888 = vmatpush1.msra.mxu0 0.0
    %5889 = vmatprep.subr.mxu0 0.0
    %5890 = vmatpush1.msra.mxu0 0.0
    %5891 = vmatprep.subr.mxu0 0.0
    %5892 = vmatpush1.msra.mxu0 0.0
    %5893 = vmatprep.subr.mxu0 0.0
    %5894 = vmatpush1.msra.mxu0 0.0
    %5895 = vmatprep.subr.mxu0 0.0
    %5896 = vmatpush1.msra.mxu0 0.0
    %5897 = vmatprep.subr.mxu0 0.0
    %5898 = vmatpush1.msra.mxu0 %v690
    %5899 = vmatprep.subr.mxu0 0.0
    %5900 = vmatpush1.msra.mxu0 %v689
    %5901 = vmatprep.subr.mxu0 0.0
    %5902 = vmatpush1.msra.mxu0 %v688
    %5903 = vmatprep.subr.mxu0 0.0
    %5904 = vmatpush1.msra.mxu0 %v687
    %5905 = vmatprep.subr.mxu0 0.0
    %5906 = vmatpush2.msra.mxu0 0.0
    %5907 = vmatprep.subr.mxu0 0.0
    %5908 = vmatpush2.msra.mxu0 0.0
    %5909 = vmatprep.subr.mxu0 0.0
    %5910 = vmatpush2.msra.mxu0 0.0
    %5911 = vmatprep.subr.mxu0 0.0
    %5912 = vmatpush2.msra.mxu0 0.0
    %5913 = vmatprep.subr.mxu0 0.0
    %5914 = vmatpush2.msra.mxu0 0.0
    %5915 = vmatprep.subr.mxu0 0.0
    %5916 = vmatpush2.msra.mxu0 0.0
    %5917 = vmatprep.subr.mxu0 0.0
    %5918 = vmatpush2.msra.mxu0 0.0
    %5919 = vmatprep.subr.mxu0 0.0
    %5920 = vmatpush2.msra.mxu0 0.0
    %5921 = vmatprep.subr.mxu0 0.0
    %5922 = vmatpush2.msra.mxu0 0.0
    %5923 = vmatprep.subr.mxu0 0.0
    %5924 = vmatpush2.msra.mxu0 0.0
    %5925 = vmatprep.subr.mxu0 0.0
    %5926 = vmatpush2.msra.mxu0 0.0
    %5927 = vmatprep.subr.mxu0 0.0
    %5928 = vmatpush2.msra.mxu0 0.0
    %5929 = vmatprep.subr.mxu0 0.0
    %5930 = vmatpush2.msra.mxu0 0.0
    %5931 = vmatprep.subr.mxu0 0.0
    %5932 = vmatpush2.msra.mxu0 0.0
    %5933 = vmatprep.subr.mxu0 0.0
    %5934 = vmatpush2.msra.mxu0 0.0
    %5935 = vmatprep.subr.mxu0 0.0
    %5936 = vmatpush2.msra.mxu0 0.0
    %5937 = vmatprep.mubr.f32.mxu0 0.0
    %5938 = vmatmul.mubr.f32.gmra.mxu0 %v5871
    %v5939 = vpop.f32.mrf.mxu0
    %v5940 = vadd.f32 %v5867, %v5939
    %v5941 = vpop.f32.mrf.mxu0
    %5942 = vdwg.mxu0
    %v5943 = vadd.f32 %v5940, %v843
    %v5944 = vxor.u32 %v5943, 2147483648
    %v5945 = vmul.f32 %v5944, 1.442695
    %v5946 = vpow.pop %v5945
    %v5947 = vadd.f32 %v5946, 1.0
    %v5948 = vrcp.pop %v5947
    %v5949 = vmul.f32 1.0, %v5948
    %5951 = vrot.lane.b32.xlu0 %v5943, 32
    %v5952 = vpop.permute.xlu0 %5951
    %v5954 = vmul.f32 %v5949, %v5952
    %5956 = vrot.lane.b32.xlu0 %v5954, 64
    %v5957 = vpop.permute.xlu0 %5956
    %v5959 = vadd.f32 %v5943, %v5957
    %v5960 = vtanh.pop %v5959
    %v5961 = vsub.f32 1.0, %v5949
    %5963 = vrot.lane.b32.xlu0 %v5960, 96
    %v5964 = vpop.permute.xlu0 %5963
    %v5966 = vmul.f32 %v5961, %v5964
    %v5967 = vmul.f32 %v5949, %v5120
    %v5968 = vadd.f32 %v5966, %v5967
    %5970 = vrot.lane.b32.xlu0 %v5296, 96
    %v5971 = vpop.permute.xlu0 %5970
    %v5972 = vsel %vm241, %v5971, 0
    %5974 = vmatprep.subr.mxu0 0.0
    %5975 = vmatpush1.msra.mxu0 0.0
    %5976 = vmatprep.subr.mxu0 0.0
    %5977 = vmatpush1.msra.mxu0 0.0
    %5978 = vmatprep.subr.mxu0 0.0
    %5979 = vmatpush1.msra.mxu0 0.0
    %5980 = vmatprep.subr.mxu0 0.0
    %5981 = vmatpush1.msra.mxu0 0.0
    %5982 = vmatprep.subr.mxu0 0.0
    %5983 = vmatpush1.msra.mxu0 0.0
    %5984 = vmatprep.subr.mxu0 0.0
    %5985 = vmatpush1.msra.mxu0 0.0
    %5986 = vmatprep.subr.mxu0 0.0
    %5987 = vmatpush1.msra.mxu0 0.0
    %5988 = vmatprep.subr.mxu0 0.0
    %5989 = vmatpush1.msra.mxu0 0.0
    %5990 = vmatprep.subr.mxu0 0.0
    %5991 = vmatpush1.msra.mxu0 0.0
    %5992 = vmatprep.subr.mxu0 0.0
    %5993 = vmatpush1.msra.mxu0 0.0
    %5994 = vmatprep.subr.mxu0 0.0
    %5995 = vmatpush1.msra.mxu0 0.0
    %5996 = vmatprep.subr.mxu0 0.0
    %5997 = vmatpush1.msra.mxu0 0.0
    %5998 = vmatprep.subr.mxu0 0.0
    %5999 = vmatpush1.msra.mxu0 %v878
    %6000 = vmatprep.subr.mxu0 0.0
    %6001 = vmatpush1.msra.mxu0 %v877
    %6002 = vmatprep.subr.mxu0 0.0
    %6003 = vmatpush1.msra.mxu0 %v876
    %6004 = vmatprep.subr.mxu0 0.0
    %6005 = vmatpush1.msra.mxu0 %v875
    %6006 = vmatprep.subr.mxu0 0.0
    %6007 = vmatpush2.msra.mxu0 0.0
    %6008 = vmatprep.subr.mxu0 0.0
    %6009 = vmatpush2.msra.mxu0 0.0
    %6010 = vmatprep.subr.mxu0 0.0
    %6011 = vmatpush2.msra.mxu0 0.0
    %6012 = vmatprep.subr.mxu0 0.0
    %6013 = vmatpush2.msra.mxu0 0.0
    %6014 = vmatprep.subr.mxu0 0.0
    %6015 = vmatpush2.msra.mxu0 0.0
    %6016 = vmatprep.subr.mxu0 0.0
    %6017 = vmatpush2.msra.mxu0 0.0
    %6018 = vmatprep.subr.mxu0 0.0
    %6019 = vmatpush2.msra.mxu0 0.0
    %6020 = vmatprep.subr.mxu0 0.0
    %6021 = vmatpush2.msra.mxu0 0.0
    %6022 = vmatprep.subr.mxu0 0.0
    %6023 = vmatpush2.msra.mxu0 0.0
    %6024 = vmatprep.subr.mxu0 0.0
    %6025 = vmatpush2.msra.mxu0 0.0
    %6026 = vmatprep.subr.mxu0 0.0
    %6027 = vmatpush2.msra.mxu0 0.0
    %6028 = vmatprep.subr.mxu0 0.0
    %6029 = vmatpush2.msra.mxu0 0.0
    %6030 = vmatprep.subr.mxu0 0.0
    %6031 = vmatpush2.msra.mxu0 0.0
    %6032 = vmatprep.subr.mxu0 0.0
    %6033 = vmatpush2.msra.mxu0 0.0
    %6034 = vmatprep.subr.mxu0 0.0
    %6035 = vmatpush2.msra.mxu0 0.0
    %6036 = vmatprep.subr.mxu0 0.0
    %6037 = vmatpush2.msra.mxu0 0.0
    %6038 = vmatprep.mubr.f32.mxu0 0.0
    %6039 = vmatmul.mubr.f32.gmra.mxu0 %v5972
    %v6040 = vpop.f32.mrf.mxu0
    %v6041 = vadd.f32 0.0, %v6040
    %v6042 = vpop.f32.mrf.mxu0
    %6043 = vdwg.mxu0
    %6045 = vrot.lane.b32.xlu0 %v5968, 96
    %v6046 = vpop.permute.xlu0 %6045
    %v6047 = vsel %vm241, %v6046, 0
    %6049 = vmatprep.subr.mxu0 0.0
    %6050 = vmatpush1.msra.mxu0 0.0
    %6051 = vmatprep.subr.mxu0 0.0
    %6052 = vmatpush1.msra.mxu0 0.0
    %6053 = vmatprep.subr.mxu0 0.0
    %6054 = vmatpush1.msra.mxu0 0.0
    %6055 = vmatprep.subr.mxu0 0.0
    %6056 = vmatpush1.msra.mxu0 0.0
    %6057 = vmatprep.subr.mxu0 0.0
    %6058 = vmatpush1.msra.mxu0 0.0
    %6059 = vmatprep.subr.mxu0 0.0
    %6060 = vmatpush1.msra.mxu0 0.0
    %6061 = vmatprep.subr.mxu0 0.0
    %6062 = vmatpush1.msra.mxu0 0.0
    %6063 = vmatprep.subr.mxu0 0.0
    %6064 = vmatpush1.msra.mxu0 0.0
    %6065 = vmatprep.subr.mxu0 0.0
    %6066 = vmatpush1.msra.mxu0 0.0
    %6067 = vmatprep.subr.mxu0 0.0
    %6068 = vmatpush1.msra.mxu0 0.0
    %6069 = vmatprep.subr.mxu0 0.0
    %6070 = vmatpush1.msra.mxu0 0.0
    %6071 = vmatprep.subr.mxu0 0.0
    %6072 = vmatpush1.msra.mxu0 0.0
    %6073 = vmatprep.subr.mxu0 0.0
    %6074 = vmatpush1.msra.mxu0 %v874
    %6075 = vmatprep.subr.mxu0 0.0
    %6076 = vmatpush1.msra.mxu0 %v873
    %6077 = vmatprep.subr.mxu0 0.0
    %6078 = vmatpush1.msra.mxu0 %v872
    %6079 = vmatprep.subr.mxu0 0.0
    %6080 = vmatpush1.msra.mxu0 %v871
    %6081 = vmatprep.subr.mxu0 0.0
    %6082 = vmatpush2.msra.mxu0 0.0
    %6083 = vmatprep.subr.mxu0 0.0
    %6084 = vmatpush2.msra.mxu0 0.0
    %6085 = vmatprep.subr.mxu0 0.0
    %6086 = vmatpush2.msra.mxu0 0.0
    %6087 = vmatprep.subr.mxu0 0.0
    %6088 = vmatpush2.msra.mxu0 0.0
    %6089 = vmatprep.subr.mxu0 0.0
    %6090 = vmatpush2.msra.mxu0 0.0
    %6091 = vmatprep.subr.mxu0 0.0
    %6092 = vmatpush2.msra.mxu0 0.0
    %6093 = vmatprep.subr.mxu0 0.0
    %6094 = vmatpush2.msra.mxu0 0.0
    %6095 = vmatprep.subr.mxu0 0.0
    %6096 = vmatpush2.msra.mxu0 0.0
    %6097 = vmatprep.subr.mxu0 0.0
    %6098 = vmatpush2.msra.mxu0 0.0
    %6099 = vmatprep.subr.mxu0 0.0
    %6100 = vmatpush2.msra.mxu0 0.0
    %6101 = vmatprep.subr.mxu0 0.0
    %6102 = vmatpush2.msra.mxu0 0.0
    %6103 = vmatprep.subr.mxu0 0.0
    %6104 = vmatpush2.msra.mxu0 0.0
    %6105 = vmatprep.subr.mxu0 0.0
    %6106 = vmatpush2.msra.mxu0 0.0
    %6107 = vmatprep.subr.mxu0 0.0
    %6108 = vmatpush2.msra.mxu0 0.0
    %6109 = vmatprep.subr.mxu0 0.0
    %6110 = vmatpush2.msra.mxu0 0.0
    %6111 = vmatprep.subr.mxu0 0.0
    %6112 = vmatpush2.msra.mxu0 0.0
    %6113 = vmatprep.mubr.f32.mxu0 0.0
    %6114 = vmatmul.mubr.f32.gmra.mxu0 %v6047
    %v6115 = vpop.f32.mrf.mxu0
    %v6116 = vadd.f32 %v6041, %v6115
    %v6117 = vpop.f32.mrf.mxu0
    %6118 = vdwg.mxu0
    %v6119 = vadd.f32 %v6116, %v1029
    %v6120 = vxor.u32 %v6119, 2147483648
    %v6121 = vmul.f32 %v6120, 1.442695
    %v6122 = vpow.pop %v6121
    %v6123 = vadd.f32 %v6122, 1.0
    %v6124 = vrcp.pop %v6123
    %v6125 = vmul.f32 1.0, %v6124
    %6127 = vrot.lane.b32.xlu0 %v6119, 32
    %v6128 = vpop.permute.xlu0 %6127
    %v6130 = vmul.f32 %v6125, %v6128
    %6132 = vrot.lane.b32.xlu0 %v6130, 64
    %v6133 = vpop.permute.xlu0 %6132
    %v6135 = vadd.f32 %v6119, %v6133
    %v6136 = vtanh.pop %v6135
    %v6137 = vsub.f32 1.0, %v6125
    %6139 = vrot.lane.b32.xlu0 %v6136, 96
    %v6140 = vpop.permute.xlu0 %6139
    %v6142 = vmul.f32 %v6137, %v6140
    %v6143 = vmul.f32 %v6125, %v5296
    %v6144 = vadd.f32 %v6142, %v6143
    %6145 = vset.pattern.permute.xlu0 7
    %6146 = vperm.xlu0 %6145, %v141
    %v6147 = vpop.permute.xlu0 %6146
    %vm6148 = vcmp.eq.s32.totalorder %v6147, %v140
    %v6149 = vsel %vm6148, 1, 0
    %v6150 = vcvt.s32.f32 %v6149
    %v6152 = vsel %vm155, %v6150, 0
    %6154 = vmatprep.subr.mxu0 0.0
    %6155 = vmatpush1.msra.mxu0 0.0
    %6156 = vmatprep.subr.mxu0 0.0
    %6157 = vmatpush1.msra.mxu0 0.0
    %6158 = vmatprep.subr.mxu0 0.0
    %6159 = vmatpush1.msra.mxu0 0.0
    %6160 = vmatprep.subr.mxu0 0.0
    %6161 = vmatpush1.msra.mxu0 0.0
    %6162 = vmatprep.subr.mxu0 0.0
    %6163 = vmatpush1.msra.mxu0 0.0
    %6164 = vmatprep.subr.mxu0 0.0
    %6165 = vmatpush1.msra.mxu0 0.0
    %6166 = vmatprep.subr.mxu0 0.0
    %6167 = vmatpush1.msra.mxu0 0.0
    %6168 = vmatprep.subr.mxu0 0.0
    %6169 = vmatpush1.msra.mxu0 0.0
    %6170 = vmatprep.subr.mxu0 0.0
    %6171 = vmatpush1.msra.mxu0 0.0
    %6172 = vmatprep.subr.mxu0 0.0
    %6173 = vmatpush1.msra.mxu0 %v161
    %6174 = vmatprep.subr.mxu0 0.0
    %6175 = vmatpush1.msra.mxu0 %v153
    %6176 = vmatprep.subr.mxu0 0.0
    %6177 = vmatpush1.msra.mxu0 %v152
    %6178 = vmatprep.subr.mxu0 0.0
    %6179 = vmatpush1.msra.mxu0 %v151
    %6180 = vmatprep.subr.mxu0 0.0
    %6181 = vmatpush1.msra.mxu0 %v150
    %6182 = vmatprep.subr.mxu0 0.0
    %6183 = vmatpush1.msra.mxu0 %v149
    %6184 = vmatprep.subr.mxu0 0.0
    %6185 = vmatpush1.msra.mxu0 %v148
    %6186 = vmatprep.subr.mxu0 0.0
    %6187 = vmatpush2.msra.mxu0 0.0
    %6188 = vmatprep.subr.mxu0 0.0
    %6189 = vmatpush2.msra.mxu0 0.0
    %6190 = vmatprep.subr.mxu0 0.0
    %6191 = vmatpush2.msra.mxu0 0.0
    %6192 = vmatprep.subr.mxu0 0.0
    %6193 = vmatpush2.msra.mxu0 0.0
    %6194 = vmatprep.subr.mxu0 0.0
    %6195 = vmatpush2.msra.mxu0 0.0
    %6196 = vmatprep.subr.mxu0 0.0
    %6197 = vmatpush2.msra.mxu0 0.0
    %6198 = vmatprep.subr.mxu0 0.0
    %6199 = vmatpush2.msra.mxu0 0.0
    %6200 = vmatprep.subr.mxu0 0.0
    %6201 = vmatpush2.msra.mxu0 0.0
    %6202 = vmatprep.subr.mxu0 0.0
    %6203 = vmatpush2.msra.mxu0 0.0
    %6204 = vmatprep.subr.mxu0 0.0
    %6205 = vmatpush2.msra.mxu0 0.0
    %6206 = vmatprep.subr.mxu0 0.0
    %6207 = vmatpush2.msra.mxu0 0.0
    %6208 = vmatprep.subr.mxu0 0.0
    %6209 = vmatpush2.msra.mxu0 0.0
    %6210 = vmatprep.subr.mxu0 0.0
    %6211 = vmatpush2.msra.mxu0 0.0
    %6212 = vmatprep.subr.mxu0 0.0
    %6213 = vmatpush2.msra.mxu0 0.0
    %6214 = vmatprep.subr.mxu0 0.0
    %6215 = vmatpush2.msra.mxu0 0.0
    %6216 = vmatprep.subr.mxu0 0.0
    %6217 = vmatpush2.msra.mxu0 0.0
    %6218 = vmatprep.mubr.f32.mxu0 0.0
    %6219 = vmatmul.mubr.f32.gmra.mxu0 %v6152
    %v6220 = vpop.f32.mrf.mxu0
    %v6221 = vadd.f32 0.0, %v6220
    %v6222 = vpop.f32.mrf.mxu0
    %6223 = vdwg.mxu0
    %6224 = vmatprep.subr.mxu0 0.0
    %6225 = vmatpush1.msra.mxu0 0.0
    %6226 = vmatprep.subr.mxu0 0.0
    %6227 = vmatpush1.msra.mxu0 0.0
    %6228 = vmatprep.subr.mxu0 0.0
    %6229 = vmatpush1.msra.mxu0 0.0
    %6230 = vmatprep.subr.mxu0 0.0
    %6231 = vmatpush1.msra.mxu0 0.0
    %6232 = vmatprep.subr.mxu0 0.0
    %6233 = vmatpush1.msra.mxu0 0.0
    %6234 = vmatprep.subr.mxu0 0.0
    %6235 = vmatpush1.msra.mxu0 0.0
    %6236 = vmatprep.subr.mxu0 0.0
    %6237 = vmatpush1.msra.mxu0 0.0
    %6238 = vmatprep.subr.mxu0 0.0
    %6239 = vmatpush1.msra.mxu0 0.0
    %6240 = vmatprep.subr.mxu0 0.0
    %6241 = vmatpush1.msra.mxu0 0.0
    %6242 = vmatprep.subr.mxu0 0.0
    %6243 = vmatpush1.msra.mxu0 0.0
    %6244 = vmatprep.subr.mxu0 0.0
    %6245 = vmatpush1.msra.mxu0 0.0
    %6246 = vmatprep.subr.mxu0 0.0
    %6247 = vmatpush1.msra.mxu0 0.0
    %6248 = vmatprep.subr.mxu0 0.0
    %6249 = vmatpush1.msra.mxu0 %v240
    %6250 = vmatprep.subr.mxu0 0.0
    %6251 = vmatpush1.msra.mxu0 %v239
    %6252 = vmatprep.subr.mxu0 0.0
    %6253 = vmatpush1.msra.mxu0 %v238
    %6254 = vmatprep.subr.mxu0 0.0
    %6255 = vmatpush1.msra.mxu0 %v237
    %6256 = vmatprep.subr.mxu0 0.0
    %6257 = vmatpush2.msra.mxu0 0.0
    %6258 = vmatprep.subr.mxu0 0.0
    %6259 = vmatpush2.msra.mxu0 0.0
    %6260 = vmatprep.subr.mxu0 0.0
    %6261 = vmatpush2.msra.mxu0 0.0
    %6262 = vmatprep.subr.mxu0 0.0
    %6263 = vmatpush2.msra.mxu0 0.0
    %6264 = vmatprep.subr.mxu0 0.0
    %6265 = vmatpush2.msra.mxu0 0.0
    %6266 = vmatprep.subr.mxu0 0.0
    %6267 = vmatpush2.msra.mxu0 0.0
    %6268 = vmatprep.subr.mxu0 0.0
    %6269 = vmatpush2.msra.mxu0 0.0
    %6270 = vmatprep.subr.mxu0 0.0
    %6271 = vmatpush2.msra.mxu0 0.0
    %6272 = vmatprep.subr.mxu0 0.0
    %6273 = vmatpush2.msra.mxu0 0.0
    %6274 = vmatprep.subr.mxu0 0.0
    %6275 = vmatpush2.msra.mxu0 0.0
    %6276 = vmatprep.subr.mxu0 0.0
    %6277 = vmatpush2.msra.mxu0 0.0
    %6278 = vmatprep.subr.mxu0 0.0
    %6279 = vmatpush2.msra.mxu0 0.0
    %6280 = vmatprep.subr.mxu0 0.0
    %6281 = vmatpush2.msra.mxu0 0.0
    %6282 = vmatprep.subr.mxu0 0.0
    %6283 = vmatpush2.msra.mxu0 0.0
    %6284 = vmatprep.subr.mxu0 0.0
    %6285 = vmatpush2.msra.mxu0 0.0
    %6286 = vmatprep.subr.mxu0 0.0
    %6287 = vmatpush2.msra.mxu0 0.0
    %6288 = vmatprep.mubr.f32.mxu0 0.0
    %6289 = vmatmul.mubr.f32.gmra.mxu0 %v5623
    %v6290 = vpop.f32.mrf.mxu0
    %v6291 = vadd.f32 0.0, %v6290
    %v6292 = vpop.f32.mrf.mxu0
    %6293 = vdwg.mxu0
    %v6295 = vsel %vm241, %v6221, 0
    %6297 = vmatprep.subr.mxu0 0.0
    %6298 = vmatpush1.msra.mxu0 0.0
    %6299 = vmatprep.subr.mxu0 0.0
    %6300 = vmatpush1.msra.mxu0 0.0
    %6301 = vmatprep.subr.mxu0 0.0
    %6302 = vmatpush1.msra.mxu0 0.0
    %6303 = vmatprep.subr.mxu0 0.0
    %6304 = vmatpush1.msra.mxu0 0.0
    %6305 = vmatprep.subr.mxu0 0.0
    %6306 = vmatpush1.msra.mxu0 0.0
    %6307 = vmatprep.subr.mxu0 0.0
    %6308 = vmatpush1.msra.mxu0 0.0
    %6309 = vmatprep.subr.mxu0 0.0
    %6310 = vmatpush1.msra.mxu0 0.0
    %6311 = vmatprep.subr.mxu0 0.0
    %6312 = vmatpush1.msra.mxu0 0.0
    %6313 = vmatprep.subr.mxu0 0.0
    %6314 = vmatpush1.msra.mxu0 0.0
    %6315 = vmatprep.subr.mxu0 0.0
    %6316 = vmatpush1.msra.mxu0 0.0
    %6317 = vmatprep.subr.mxu0 0.0
    %6318 = vmatpush1.msra.mxu0 0.0
    %6319 = vmatprep.subr.mxu0 0.0
    %6320 = vmatpush1.msra.mxu0 0.0
    %6321 = vmatprep.subr.mxu0 0.0
    %6322 = vmatpush1.msra.mxu0 %v236
    %6323 = vmatprep.subr.mxu0 0.0
    %6324 = vmatpush1.msra.mxu0 %v235
    %6325 = vmatprep.subr.mxu0 0.0
    %6326 = vmatpush1.msra.mxu0 %v234
    %6327 = vmatprep.subr.mxu0 0.0
    %6328 = vmatpush1.msra.mxu0 %v233
    %6329 = vmatprep.subr.mxu0 0.0
    %6330 = vmatpush2.msra.mxu0 0.0
    %6331 = vmatprep.subr.mxu0 0.0
    %6332 = vmatpush2.msra.mxu0 0.0
    %6333 = vmatprep.subr.mxu0 0.0
    %6334 = vmatpush2.msra.mxu0 0.0
    %6335 = vmatprep.subr.mxu0 0.0
    %6336 = vmatpush2.msra.mxu0 0.0
    %6337 = vmatprep.subr.mxu0 0.0
    %6338 = vmatpush2.msra.mxu0 0.0
    %6339 = vmatprep.subr.mxu0 0.0
    %6340 = vmatpush2.msra.mxu0 0.0
    %6341 = vmatprep.subr.mxu0 0.0
    %6342 = vmatpush2.msra.mxu0 0.0
    %6343 = vmatprep.subr.mxu0 0.0
    %6344 = vmatpush2.msra.mxu0 0.0
    %6345 = vmatprep.subr.mxu0 0.0
    %6346 = vmatpush2.msra.mxu0 0.0
    %6347 = vmatprep.subr.mxu0 0.0
    %6348 = vmatpush2.msra.mxu0 0.0
    %6349 = vmatprep.subr.mxu0 0.0
    %6350 = vmatpush2.msra.mxu0 0.0
    %6351 = vmatprep.subr.mxu0 0.0
    %6352 = vmatpush2.msra.mxu0 0.0
    %6353 = vmatprep.subr.mxu0 0.0
    %6354 = vmatpush2.msra.mxu0 0.0
    %6355 = vmatprep.subr.mxu0 0.0
    %6356 = vmatpush2.msra.mxu0 0.0
    %6357 = vmatprep.subr.mxu0 0.0
    %6358 = vmatpush2.msra.mxu0 0.0
    %6359 = vmatprep.subr.mxu0 0.0
    %6360 = vmatpush2.msra.mxu0 0.0
    %6361 = vmatprep.mubr.f32.mxu0 0.0
    %6362 = vmatmul.mubr.f32.gmra.mxu0 %v6295
    %v6363 = vpop.f32.mrf.mxu0
    %v6364 = vadd.f32 %v6291, %v6363
    %v6365 = vpop.f32.mrf.mxu0
    %6366 = vdwg.mxu0
    %v6367 = vadd.f32 %v6364, %v393
    %v6368 = vxor.u32 %v6367, 2147483648
    %v6369 = vmul.f32 %v6368, 1.442695
    %v6370 = vpow.pop %v6369
    %v6371 = vadd.f32 %v6370, 1.0
    %v6372 = vrcp.pop %v6371
    %v6373 = vmul.f32 1.0, %v6372
    %6375 = vrot.lane.b32.xlu0 %v6367, 32
    %v6376 = vpop.permute.xlu0 %6375
    %v6378 = vmul.f32 %v6373, %v6376
    %6380 = vrot.lane.b32.xlu0 %v6378, 64
    %v6381 = vpop.permute.xlu0 %6380
    %v6383 = vadd.f32 %v6367, %v6381
    %v6384 = vtanh.pop %v6383
    %v6385 = vsub.f32 1.0, %v6373
    %6387 = vrot.lane.b32.xlu0 %v6384, 96
    %v6388 = vpop.permute.xlu0 %6387
    %v6390 = vmul.f32 %v6385, %v6388
    %v6391 = vmul.f32 %v6373, %v5544
    %v6392 = vadd.f32 %v6390, %v6391
    %6394 = vrot.lane.b32.xlu0 %v5720, 96
    %v6395 = vpop.permute.xlu0 %6394
    %v6396 = vsel %vm241, %v6395, 0
    %6398 = vmatprep.subr.mxu0 0.0
    %6399 = vmatpush1.msra.mxu0 0.0
    %6400 = vmatprep.subr.mxu0 0.0
    %6401 = vmatpush1.msra.mxu0 0.0
    %6402 = vmatprep.subr.mxu0 0.0
    %6403 = vmatpush1.msra.mxu0 0.0
    %6404 = vmatprep.subr.mxu0 0.0
    %6405 = vmatpush1.msra.mxu0 0.0
    %6406 = vmatprep.subr.mxu0 0.0
    %6407 = vmatpush1.msra.mxu0 0.0
    %6408 = vmatprep.subr.mxu0 0.0
    %6409 = vmatpush1.msra.mxu0 0.0
    %6410 = vmatprep.subr.mxu0 0.0
    %6411 = vmatpush1.msra.mxu0 0.0
    %6412 = vmatprep.subr.mxu0 0.0
    %6413 = vmatpush1.msra.mxu0 0.0
    %6414 = vmatprep.subr.mxu0 0.0
    %6415 = vmatpush1.msra.mxu0 0.0
    %6416 = vmatprep.subr.mxu0 0.0
    %6417 = vmatpush1.msra.mxu0 0.0
    %6418 = vmatprep.subr.mxu0 0.0
    %6419 = vmatpush1.msra.mxu0 0.0
    %6420 = vmatprep.subr.mxu0 0.0
    %6421 = vmatpush1.msra.mxu0 0.0
    %6422 = vmatprep.subr.mxu0 0.0
    %6423 = vmatpush1.msra.mxu0 %v428
    %6424 = vmatprep.subr.mxu0 0.0
    %6425 = vmatpush1.msra.mxu0 %v427
    %6426 = vmatprep.subr.mxu0 0.0
    %6427 = vmatpush1.msra.mxu0 %v426
    %6428 = vmatprep.subr.mxu0 0.0
    %6429 = vmatpush1.msra.mxu0 %v425
    %6430 = vmatprep.subr.mxu0 0.0
    %6431 = vmatpush2.msra.mxu0 0.0
    %6432 = vmatprep.subr.mxu0 0.0
    %6433 = vmatpush2.msra.mxu0 0.0
    %6434 = vmatprep.subr.mxu0 0.0
    %6435 = vmatpush2.msra.mxu0 0.0
    %6436 = vmatprep.subr.mxu0 0.0
    %6437 = vmatpush2.msra.mxu0 0.0
    %6438 = vmatprep.subr.mxu0 0.0
    %6439 = vmatpush2.msra.mxu0 0.0
    %6440 = vmatprep.subr.mxu0 0.0
    %6441 = vmatpush2.msra.mxu0 0.0
    %6442 = vmatprep.subr.mxu0 0.0
    %6443 = vmatpush2.msra.mxu0 0.0
    %6444 = vmatprep.subr.mxu0 0.0
    %6445 = vmatpush2.msra.mxu0 0.0
    %6446 = vmatprep.subr.mxu0 0.0
    %6447 = vmatpush2.msra.mxu0 0.0
    %6448 = vmatprep.subr.mxu0 0.0
    %6449 = vmatpush2.msra.mxu0 0.0
    %6450 = vmatprep.subr.mxu0 0.0
    %6451 = vmatpush2.msra.mxu0 0.0
    %6452 = vmatprep.subr.mxu0 0.0
    %6453 = vmatpush2.msra.mxu0 0.0
    %6454 = vmatprep.subr.mxu0 0.0
    %6455 = vmatpush2.msra.mxu0 0.0
    %6456 = vmatprep.subr.mxu0 0.0
    %6457 = vmatpush2.msra.mxu0 0.0
    %6458 = vmatprep.subr.mxu0 0.0
    %6459 = vmatpush2.msra.mxu0 0.0
    %6460 = vmatprep.subr.mxu0 0.0
    %6461 = vmatpush2.msra.mxu0 0.0
    %6462 = vmatprep.mubr.f32.mxu0 0.0
    %6463 = vmatmul.mubr.f32.gmra.mxu0 %v6396
    %v6464 = vpop.f32.mrf.mxu0
    %v6465 = vadd.f32 0.0, %v6464
    %v6466 = vpop.f32.mrf.mxu0
    %6467 = vdwg.mxu0
    %6469 = vrot.lane.b32.xlu0 %v6392, 96
    %v6470 = vpop.permute.xlu0 %6469
    %v6471 = vsel %vm241, %v6470, 0
    %6473 = vmatprep.subr.mxu0 0.0
    %6474 = vmatpush1.msra.mxu0 0.0
    %6475 = vmatprep.subr.mxu0 0.0
    %6476 = vmatpush1.msra.mxu0 0.0
    %6477 = vmatprep.subr.mxu0 0.0
    %6478 = vmatpush1.msra.mxu0 0.0
    %6479 = vmatprep.subr.mxu0 0.0
    %6480 = vmatpush1.msra.mxu0 0.0
    %6481 = vmatprep.subr.mxu0 0.0
    %6482 = vmatpush1.msra.mxu0 0.0
    %6483 = vmatprep.subr.mxu0 0.0
    %6484 = vmatpush1.msra.mxu0 0.0
    %6485 = vmatprep.subr.mxu0 0.0
    %6486 = vmatpush1.msra.mxu0 0.0
    %6487 = vmatprep.subr.mxu0 0.0
    %6488 = vmatpush1.msra.mxu0 0.0
    %6489 = vmatprep.subr.mxu0 0.0
    %6490 = vmatpush1.msra.mxu0 0.0
    %6491 = vmatprep.subr.mxu0 0.0
    %6492 = vmatpush1.msra.mxu0 0.0
    %6493 = vmatprep.subr.mxu0 0.0
    %6494 = vmatpush1.msra.mxu0 0.0
    %6495 = vmatprep.subr.mxu0 0.0
    %6496 = vmatpush1.msra.mxu0 0.0
    %6497 = vmatprep.subr.mxu0 0.0
    %6498 = vmatpush1.msra.mxu0 %v424
    %6499 = vmatprep.subr.mxu0 0.0
    %6500 = vmatpush1.msra.mxu0 %v423
    %6501 = vmatprep.subr.mxu0 0.0
    %6502 = vmatpush1.msra.mxu0 %v422
    %6503 = vmatprep.subr.mxu0 0.0
    %6504 = vmatpush1.msra.mxu0 %v421
    %6505 = vmatprep.subr.mxu0 0.0
    %6506 = vmatpush2.msra.mxu0 0.0
    %6507 = vmatprep.subr.mxu0 0.0
    %6508 = vmatpush2.msra.mxu0 0.0
    %6509 = vmatprep.subr.mxu0 0.0
    %6510 = vmatpush2.msra.mxu0 0.0
    %6511 = vmatprep.subr.mxu0 0.0
    %6512 = vmatpush2.msra.mxu0 0.0
    %6513 = vmatprep.subr.mxu0 0.0
    %6514 = vmatpush2.msra.mxu0 0.0
    %6515 = vmatprep.subr.mxu0 0.0
    %6516 = vmatpush2.msra.mxu0 0.0
    %6517 = vmatprep.subr.mxu0 0.0
    %6518 = vmatpush2.msra.mxu0 0.0
    %6519 = vmatprep.subr.mxu0 0.0
    %6520 = vmatpush2.msra.mxu0 0.0
    %6521 = vmatprep.subr.mxu0 0.0
    %6522 = vmatpush2.msra.mxu0 0.0
    %6523 = vmatprep.subr.mxu0 0.0
    %6524 = vmatpush2.msra.mxu0 0.0
    %6525 = vmatprep.subr.mxu0 0.0
    %6526 = vmatpush2.msra.mxu0 0.0
    %6527 = vmatprep.subr.mxu0 0.0
    %6528 = vmatpush2.msra.mxu0 0.0
    %6529 = vmatprep.subr.mxu0 0.0
    %6530 = vmatpush2.msra.mxu0 0.0
    %6531 = vmatprep.subr.mxu0 0.0
    %6532 = vmatpush2.msra.mxu0 0.0
    %6533 = vmatprep.subr.mxu0 0.0
    %6534 = vmatpush2.msra.mxu0 0.0
    %6535 = vmatprep.subr.mxu0 0.0
    %6536 = vmatpush2.msra.mxu0 0.0
    %6537 = vmatprep.mubr.f32.mxu0 0.0
    %6538 = vmatmul.mubr.f32.gmra.mxu0 %v6471
    %v6539 = vpop.f32.mrf.mxu0
    %v6540 = vadd.f32 %v6465, %v6539
    %v6541 = vpop.f32.mrf.mxu0
    %6542 = vdwg.mxu0
    %v6543 = vadd.f32 %v6540, %v579
    %v6544 = vxor.u32 %v6543, 2147483648
    %v6545 = vmul.f32 %v6544, 1.442695
    %v6546 = vpow.pop %v6545
    %v6547 = vadd.f32 %v6546, 1.0
    %v6548 = vrcp.pop %v6547
    %v6549 = vmul.f32 1.0, %v6548
    %6551 = vrot.lane.b32.xlu0 %v6543, 32
    %v6552 = vpop.permute.xlu0 %6551
    %v6554 = vmul.f32 %v6549, %v6552
    %6556 = vrot.lane.b32.xlu0 %v6554, 64
    %v6557 = vpop.permute.xlu0 %6556
    %v6559 = vadd.f32 %v6543, %v6557
    %v6560 = vtanh.pop %v6559
    %v6561 = vsub.f32 1.0, %v6549
    %6563 = vrot.lane.b32.xlu0 %v6560, 96
    %v6564 = vpop.permute.xlu0 %6563
    %v6566 = vmul.f32 %v6561, %v6564
    %v6567 = vmul.f32 %v6549, %v5720
    %v6568 = vadd.f32 %v6566, %v6567
    %6569 = vset.pattern.permute.xlu0 7
    %6570 = vperm.xlu0 %6569, %v607
    %v6571 = vpop.permute.xlu0 %6570
    %vm6572 = vcmp.eq.s32.totalorder %v6571, %v140
    %v6573 = vsel %vm6572, 1, 0
    %v6574 = vcvt.s32.f32 %v6573
    %v6576 = vsel %vm155, %v6574, 0
    %6578 = vmatprep.subr.mxu0 0.0
    %6579 = vmatpush1.msra.mxu0 0.0
    %6580 = vmatprep.subr.mxu0 0.0
    %6581 = vmatpush1.msra.mxu0 0.0
    %6582 = vmatprep.subr.mxu0 0.0
    %6583 = vmatpush1.msra.mxu0 0.0
    %6584 = vmatprep.subr.mxu0 0.0
    %6585 = vmatpush1.msra.mxu0 0.0
    %6586 = vmatprep.subr.mxu0 0.0
    %6587 = vmatpush1.msra.mxu0 0.0
    %6588 = vmatprep.subr.mxu0 0.0
    %6589 = vmatpush1.msra.mxu0 0.0
    %6590 = vmatprep.subr.mxu0 0.0
    %6591 = vmatpush1.msra.mxu0 0.0
    %6592 = vmatprep.subr.mxu0 0.0
    %6593 = vmatpush1.msra.mxu0 0.0
    %6594 = vmatprep.subr.mxu0 0.0
    %6595 = vmatpush1.msra.mxu0 0.0
    %6596 = vmatprep.subr.mxu0 0.0
    %6597 = vmatpush1.msra.mxu0 %v161
    %6598 = vmatprep.subr.mxu0 0.0
    %6599 = vmatpush1.msra.mxu0 %v153
    %6600 = vmatprep.subr.mxu0 0.0
    %6601 = vmatpush1.msra.mxu0 %v152
    %6602 = vmatprep.subr.mxu0 0.0
    %6603 = vmatpush1.msra.mxu0 %v151
    %6604 = vmatprep.subr.mxu0 0.0
    %6605 = vmatpush1.msra.mxu0 %v150
    %6606 = vmatprep.subr.mxu0 0.0
    %6607 = vmatpush1.msra.mxu0 %v149
    %6608 = vmatprep.subr.mxu0 0.0
    %6609 = vmatpush1.msra.mxu0 %v148
    %6610 = vmatprep.subr.mxu0 0.0
    %6611 = vmatpush2.msra.mxu0 0.0
    %6612 = vmatprep.subr.mxu0 0.0
    %6613 = vmatpush2.msra.mxu0 0.0
    %6614 = vmatprep.subr.mxu0 0.0
    %6615 = vmatpush2.msra.mxu0 0.0
    %6616 = vmatprep.subr.mxu0 0.0
    %6617 = vmatpush2.msra.mxu0 0.0
    %6618 = vmatprep.subr.mxu0 0.0
    %6619 = vmatpush2.msra.mxu0 0.0
    %6620 = vmatprep.subr.mxu0 0.0
    %6621 = vmatpush2.msra.mxu0 0.0
    %6622 = vmatprep.subr.mxu0 0.0
    %6623 = vmatpush2.msra.mxu0 0.0
    %6624 = vmatprep.subr.mxu0 0.0
    %6625 = vmatpush2.msra.mxu0 0.0
    %6626 = vmatprep.subr.mxu0 0.0
    %6627 = vmatpush2.msra.mxu0 0.0
    %6628 = vmatprep.subr.mxu0 0.0
    %6629 = vmatpush2.msra.mxu0 0.0
    %6630 = vmatprep.subr.mxu0 0.0
    %6631 = vmatpush2.msra.mxu0 0.0
    %6632 = vmatprep.subr.mxu0 0.0
    %6633 = vmatpush2.msra.mxu0 0.0
    %6634 = vmatprep.subr.mxu0 0.0
    %6635 = vmatpush2.msra.mxu0 0.0
    %6636 = vmatprep.subr.mxu0 0.0
    %6637 = vmatpush2.msra.mxu0 0.0
    %6638 = vmatprep.subr.mxu0 0.0
    %6639 = vmatpush2.msra.mxu0 0.0
    %6640 = vmatprep.subr.mxu0 0.0
    %6641 = vmatpush2.msra.mxu0 0.0
    %6642 = vmatprep.mubr.f32.mxu0 0.0
    %6643 = vmatmul.mubr.f32.gmra.mxu0 %v6576
    %v6644 = vpop.f32.mrf.mxu0
    %v6645 = vadd.f32 0.0, %v6644
    %v6646 = vpop.f32.mrf.mxu0
    %6647 = vdwg.mxu0
    %6648 = vmatprep.subr.mxu0 0.0
    %6649 = vmatpush1.msra.mxu0 0.0
    %6650 = vmatprep.subr.mxu0 0.0
    %6651 = vmatpush1.msra.mxu0 0.0
    %6652 = vmatprep.subr.mxu0 0.0
    %6653 = vmatpush1.msra.mxu0 0.0
    %6654 = vmatprep.subr.mxu0 0.0
    %6655 = vmatpush1.msra.mxu0 0.0
    %6656 = vmatprep.subr.mxu0 0.0
    %6657 = vmatpush1.msra.mxu0 0.0
    %6658 = vmatprep.subr.mxu0 0.0
    %6659 = vmatpush1.msra.mxu0 0.0
    %6660 = vmatprep.subr.mxu0 0.0
    %6661 = vmatpush1.msra.mxu0 0.0
    %6662 = vmatprep.subr.mxu0 0.0
    %6663 = vmatpush1.msra.mxu0 0.0
    %6664 = vmatprep.subr.mxu0 0.0
    %6665 = vmatpush1.msra.mxu0 0.0
    %6666 = vmatprep.subr.mxu0 0.0
    %6667 = vmatpush1.msra.mxu0 0.0
    %6668 = vmatprep.subr.mxu0 0.0
    %6669 = vmatpush1.msra.mxu0 0.0
    %6670 = vmatprep.subr.mxu0 0.0
    %6671 = vmatpush1.msra.mxu0 0.0
    %6672 = vmatprep.subr.mxu0 0.0
    %6673 = vmatpush1.msra.mxu0 %v694
    %6674 = vmatprep.subr.mxu0 0.0
    %6675 = vmatpush1.msra.mxu0 %v693
    %6676 = vmatprep.subr.mxu0 0.0
    %6677 = vmatpush1.msra.mxu0 %v692
    %6678 = vmatprep.subr.mxu0 0.0
    %6679 = vmatpush1.msra.mxu0 %v691
    %6680 = vmatprep.subr.mxu0 0.0
    %6681 = vmatpush2.msra.mxu0 0.0
    %6682 = vmatprep.subr.mxu0 0.0
    %6683 = vmatpush2.msra.mxu0 0.0
    %6684 = vmatprep.subr.mxu0 0.0
    %6685 = vmatpush2.msra.mxu0 0.0
    %6686 = vmatprep.subr.mxu0 0.0
    %6687 = vmatpush2.msra.mxu0 0.0
    %6688 = vmatprep.subr.mxu0 0.0
    %6689 = vmatpush2.msra.mxu0 0.0
    %6690 = vmatprep.subr.mxu0 0.0
    %6691 = vmatpush2.msra.mxu0 0.0
    %6692 = vmatprep.subr.mxu0 0.0
    %6693 = vmatpush2.msra.mxu0 0.0
    %6694 = vmatprep.subr.mxu0 0.0
    %6695 = vmatpush2.msra.mxu0 0.0
    %6696 = vmatprep.subr.mxu0 0.0
    %6697 = vmatpush2.msra.mxu0 0.0
    %6698 = vmatprep.subr.mxu0 0.0
    %6699 = vmatpush2.msra.mxu0 0.0
    %6700 = vmatprep.subr.mxu0 0.0
    %6701 = vmatpush2.msra.mxu0 0.0
    %6702 = vmatprep.subr.mxu0 0.0
    %6703 = vmatpush2.msra.mxu0 0.0
    %6704 = vmatprep.subr.mxu0 0.0
    %6705 = vmatpush2.msra.mxu0 0.0
    %6706 = vmatprep.subr.mxu0 0.0
    %6707 = vmatpush2.msra.mxu0 0.0
    %6708 = vmatprep.subr.mxu0 0.0
    %6709 = vmatpush2.msra.mxu0 0.0
    %6710 = vmatprep.subr.mxu0 0.0
    %6711 = vmatpush2.msra.mxu0 0.0
    %6712 = vmatprep.mubr.f32.mxu0 0.0
    %6713 = vmatmul.mubr.f32.gmra.mxu0 %v6047
    %v6714 = vpop.f32.mrf.mxu0
    %v6715 = vadd.f32 0.0, %v6714
    %v6716 = vpop.f32.mrf.mxu0
    %6717 = vdwg.mxu0
    %v6719 = vsel %vm241, %v6645, 0
    %6721 = vmatprep.subr.mxu0 0.0
    %6722 = vmatpush1.msra.mxu0 0.0
    %6723 = vmatprep.subr.mxu0 0.0
    %6724 = vmatpush1.msra.mxu0 0.0
    %6725 = vmatprep.subr.mxu0 0.0
    %6726 = vmatpush1.msra.mxu0 0.0
    %6727 = vmatprep.subr.mxu0 0.0
    %6728 = vmatpush1.msra.mxu0 0.0
    %6729 = vmatprep.subr.mxu0 0.0
    %6730 = vmatpush1.msra.mxu0 0.0
    %6731 = vmatprep.subr.mxu0 0.0
    %6732 = vmatpush1.msra.mxu0 0.0
    %6733 = vmatprep.subr.mxu0 0.0
    %6734 = vmatpush1.msra.mxu0 0.0
    %6735 = vmatprep.subr.mxu0 0.0
    %6736 = vmatpush1.msra.mxu0 0.0
    %6737 = vmatprep.subr.mxu0 0.0
    %6738 = vmatpush1.msra.mxu0 0.0
    %6739 = vmatprep.subr.mxu0 0.0
    %6740 = vmatpush1.msra.mxu0 0.0
    %6741 = vmatprep.subr.mxu0 0.0
    %6742 = vmatpush1.msra.mxu0 0.0
    %6743 = vmatprep.subr.mxu0 0.0
    %6744 = vmatpush1.msra.mxu0 0.0
    %6745 = vmatprep.subr.mxu0 0.0
    %6746 = vmatpush1.msra.mxu0 %v690
    %6747 = vmatprep.subr.mxu0 0.0
    %6748 = vmatpush1.msra.mxu0 %v689
    %6749 = vmatprep.subr.mxu0 0.0
    %6750 = vmatpush1.msra.mxu0 %v688
    %6751 = vmatprep.subr.mxu0 0.0
    %6752 = vmatpush1.msra.mxu0 %v687
    %6753 = vmatprep.subr.mxu0 0.0
    %6754 = vmatpush2.msra.mxu0 0.0
    %6755 = vmatprep.subr.mxu0 0.0
    %6756 = vmatpush2.msra.mxu0 0.0
    %6757 = vmatprep.subr.mxu0 0.0
    %6758 = vmatpush2.msra.mxu0 0.0
    %6759 = vmatprep.subr.mxu0 0.0
    %6760 = vmatpush2.msra.mxu0 0.0
    %6761 = vmatprep.subr.mxu0 0.0
    %6762 = vmatpush2.msra.mxu0 0.0
    %6763 = vmatprep.subr.mxu0 0.0
    %6764 = vmatpush2.msra.mxu0 0.0
    %6765 = vmatprep.subr.mxu0 0.0
    %6766 = vmatpush2.msra.mxu0 0.0
    %6767 = vmatprep.subr.mxu0 0.0
    %6768 = vmatpush2.msra.mxu0 0.0
    %6769 = vmatprep.subr.mxu0 0.0
    %6770 = vmatpush2.msra.mxu0 0.0
    %6771 = vmatprep.subr.mxu0 0.0
    %6772 = vmatpush2.msra.mxu0 0.0
    %6773 = vmatprep.subr.mxu0 0.0
    %6774 = vmatpush2.msra.mxu0 0.0
    %6775 = vmatprep.subr.mxu0 0.0
    %6776 = vmatpush2.msra.mxu0 0.0
    %6777 = vmatprep.subr.mxu0 0.0
    %6778 = vmatpush2.msra.mxu0 0.0
    %6779 = vmatprep.subr.mxu0 0.0
    %6780 = vmatpush2.msra.mxu0 0.0
    %6781 = vmatprep.subr.mxu0 0.0
    %6782 = vmatpush2.msra.mxu0 0.0
    %6783 = vmatprep.subr.mxu0 0.0
    %6784 = vmatpush2.msra.mxu0 0.0
    %6785 = vmatprep.mubr.f32.mxu0 0.0
    %6786 = vmatmul.mubr.f32.gmra.mxu0 %v6719
    %v6787 = vpop.f32.mrf.mxu0
    %v6788 = vadd.f32 %v6715, %v6787
    %v6789 = vpop.f32.mrf.mxu0
    %6790 = vdwg.mxu0
    %v6791 = vadd.f32 %v6788, %v843
    %v6792 = vxor.u32 %v6791, 2147483648
    %v6793 = vmul.f32 %v6792, 1.442695
    %v6794 = vpow.pop %v6793
    %v6795 = vadd.f32 %v6794, 1.0
    %v6796 = vrcp.pop %v6795
    %v6797 = vmul.f32 1.0, %v6796
    %6799 = vrot.lane.b32.xlu0 %v6791, 32
    %v6800 = vpop.permute.xlu0 %6799
    %v6802 = vmul.f32 %v6797, %v6800
    %6804 = vrot.lane.b32.xlu0 %v6802, 64
    %v6805 = vpop.permute.xlu0 %6804
    %v6807 = vadd.f32 %v6791, %v6805
    %v6808 = vtanh.pop %v6807
    %v6809 = vsub.f32 1.0, %v6797
    %6811 = vrot.lane.b32.xlu0 %v6808, 96
    %v6812 = vpop.permute.xlu0 %6811
    %v6814 = vmul.f32 %v6809, %v6812
    %v6815 = vmul.f32 %v6797, %v5968
    %v6816 = vadd.f32 %v6814, %v6815
    %6818 = vrot.lane.b32.xlu0 %v6144, 96
    %v6819 = vpop.permute.xlu0 %6818
    %v6820 = vsel %vm241, %v6819, 0
    %6822 = vmatprep.subr.mxu0 0.0
    %6823 = vmatpush1.msra.mxu0 0.0
    %6824 = vmatprep.subr.mxu0 0.0
    %6825 = vmatpush1.msra.mxu0 0.0
    %6826 = vmatprep.subr.mxu0 0.0
    %6827 = vmatpush1.msra.mxu0 0.0
    %6828 = vmatprep.subr.mxu0 0.0
    %6829 = vmatpush1.msra.mxu0 0.0
    %6830 = vmatprep.subr.mxu0 0.0
    %6831 = vmatpush1.msra.mxu0 0.0
    %6832 = vmatprep.subr.mxu0 0.0
    %6833 = vmatpush1.msra.mxu0 0.0
    %6834 = vmatprep.subr.mxu0 0.0
    %6835 = vmatpush1.msra.mxu0 0.0
    %6836 = vmatprep.subr.mxu0 0.0
    %6837 = vmatpush1.msra.mxu0 0.0
    %6838 = vmatprep.subr.mxu0 0.0
    %6839 = vmatpush1.msra.mxu0 0.0
    %6840 = vmatprep.subr.mxu0 0.0
    %6841 = vmatpush1.msra.mxu0 0.0
    %6842 = vmatprep.subr.mxu0 0.0
    %6843 = vmatpush1.msra.mxu0 0.0
    %6844 = vmatprep.subr.mxu0 0.0
    %6845 = vmatpush1.msra.mxu0 0.0
    %6846 = vmatprep.subr.mxu0 0.0
    %6847 = vmatpush1.msra.mxu0 %v878
    %6848 = vmatprep.subr.mxu0 0.0
    %6849 = vmatpush1.msra.mxu0 %v877
    %6850 = vmatprep.subr.mxu0 0.0
    %6851 = vmatpush1.msra.mxu0 %v876
    %6852 = vmatprep.subr.mxu0 0.0
    %6853 = vmatpush1.msra.mxu0 %v875
    %6854 = vmatprep.subr.mxu0 0.0
    %6855 = vmatpush2.msra.mxu0 0.0
    %6856 = vmatprep.subr.mxu0 0.0
    %6857 = vmatpush2.msra.mxu0 0.0
    %6858 = vmatprep.subr.mxu0 0.0
    %6859 = vmatpush2.msra.mxu0 0.0
    %6860 = vmatprep.subr.mxu0 0.0
    %6861 = vmatpush2.msra.mxu0 0.0
    %6862 = vmatprep.subr.mxu0 0.0
    %6863 = vmatpush2.msra.mxu0 0.0
    %6864 = vmatprep.subr.mxu0 0.0
    %6865 = vmatpush2.msra.mxu0 0.0
    %6866 = vmatprep.subr.mxu0 0.0
    %6867 = vmatpush2.msra.mxu0 0.0
    %6868 = vmatprep.subr.mxu0 0.0
    %6869 = vmatpush2.msra.mxu0 0.0
    %6870 = vmatprep.subr.mxu0 0.0
    %6871 = vmatpush2.msra.mxu0 0.0
    %6872 = vmatprep.subr.mxu0 0.0
    %6873 = vmatpush2.msra.mxu0 0.0
    %6874 = vmatprep.subr.mxu0 0.0
    %6875 = vmatpush2.msra.mxu0 0.0
    %6876 = vmatprep.subr.mxu0 0.0
    %6877 = vmatpush2.msra.mxu0 0.0
    %6878 = vmatprep.subr.mxu0 0.0
    %6879 = vmatpush2.msra.mxu0 0.0
    %6880 = vmatprep.subr.mxu0 0.0
    %6881 = vmatpush2.msra.mxu0 0.0
    %6882 = vmatprep.subr.mxu0 0.0
    %6883 = vmatpush2.msra.mxu0 0.0
    %6884 = vmatprep.subr.mxu0 0.0
    %6885 = vmatpush2.msra.mxu0 0.0
    %6886 = vmatprep.mubr.f32.mxu0 0.0
    %6887 = vmatmul.mubr.f32.gmra.mxu0 %v6820
    %v6888 = vpop.f32.mrf.mxu0
    %v6889 = vadd.f32 0.0, %v6888
    %v6890 = vpop.f32.mrf.mxu0
    %6891 = vdwg.mxu0
    %6893 = vrot.lane.b32.xlu0 %v6816, 96
    %v6894 = vpop.permute.xlu0 %6893
    %v6895 = vsel %vm241, %v6894, 0
    %6897 = vmatprep.subr.mxu0 0.0
    %6898 = vmatpush1.msra.mxu0 0.0
    %6899 = vmatprep.subr.mxu0 0.0
    %6900 = vmatpush1.msra.mxu0 0.0
    %6901 = vmatprep.subr.mxu0 0.0
    %6902 = vmatpush1.msra.mxu0 0.0
    %6903 = vmatprep.subr.mxu0 0.0
    %6904 = vmatpush1.msra.mxu0 0.0
    %6905 = vmatprep.subr.mxu0 0.0
    %6906 = vmatpush1.msra.mxu0 0.0
    %6907 = vmatprep.subr.mxu0 0.0
    %6908 = vmatpush1.msra.mxu0 0.0
    %6909 = vmatprep.subr.mxu0 0.0
    %6910 = vmatpush1.msra.mxu0 0.0
    %6911 = vmatprep.subr.mxu0 0.0
    %6912 = vmatpush1.msra.mxu0 0.0
    %6913 = vmatprep.subr.mxu0 0.0
    %6914 = vmatpush1.msra.mxu0 0.0
    %6915 = vmatprep.subr.mxu0 0.0
    %6916 = vmatpush1.msra.mxu0 0.0
    %6917 = vmatprep.subr.mxu0 0.0
    %6918 = vmatpush1.msra.mxu0 0.0
    %6919 = vmatprep.subr.mxu0 0.0
    %6920 = vmatpush1.msra.mxu0 0.0
    %6921 = vmatprep.subr.mxu0 0.0
    %6922 = vmatpush1.msra.mxu0 %v874
    %6923 = vmatprep.subr.mxu0 0.0
    %6924 = vmatpush1.msra.mxu0 %v873
    %6925 = vmatprep.subr.mxu0 0.0
    %6926 = vmatpush1.msra.mxu0 %v872
    %6927 = vmatprep.subr.mxu0 0.0
    %6928 = vmatpush1.msra.mxu0 %v871
    %6929 = vmatprep.subr.mxu0 0.0
    %6930 = vmatpush2.msra.mxu0 0.0
    %6931 = vmatprep.subr.mxu0 0.0
    %6932 = vmatpush2.msra.mxu0 0.0
    %6933 = vmatprep.subr.mxu0 0.0
    %6934 = vmatpush2.msra.mxu0 0.0
    %6935 = vmatprep.subr.mxu0 0.0
    %6936 = vmatpush2.msra.mxu0 0.0
    %6937 = vmatprep.subr.mxu0 0.0
    %6938 = vmatpush2.msra.mxu0 0.0
    %6939 = vmatprep.subr.mxu0 0.0
    %6940 = vmatpush2.msra.mxu0 0.0
    %6941 = vmatprep.subr.mxu0 0.0
    %6942 = vmatpush2.msra.mxu0 0.0
    %6943 = vmatprep.subr.mxu0 0.0
    %6944 = vmatpush2.msra.mxu0 0.0
    %6945 = vmatprep.subr.mxu0 0.0
    %6946 = vmatpush2.msra.mxu0 0.0
    %6947 = vmatprep.subr.mxu0 0.0
    %6948 = vmatpush2.msra.mxu0 0.0
    %6949 = vmatprep.subr.mxu0 0.0
    %6950 = vmatpush2.msra.mxu0 0.0
    %6951 = vmatprep.subr.mxu0 0.0
    %6952 = vmatpush2.msra.mxu0 0.0
    %6953 = vmatprep.subr.mxu0 0.0
    %6954 = vmatpush2.msra.mxu0 0.0
    %6955 = vmatprep.subr.mxu0 0.0
    %6956 = vmatpush2.msra.mxu0 0.0
    %6957 = vmatprep.subr.mxu0 0.0
    %6958 = vmatpush2.msra.mxu0 0.0
    %6959 = vmatprep.subr.mxu0 0.0
    %6960 = vmatpush2.msra.mxu0 0.0
    %6961 = vmatprep.mubr.f32.mxu0 0.0
    %6962 = vmatmul.mubr.f32.gmra.mxu0 %v6895
    %v6963 = vpop.f32.mrf.mxu0
    %v6964 = vadd.f32 %v6889, %v6963
    %v6965 = vpop.f32.mrf.mxu0
    %6966 = vdwg.mxu0
    %v6967 = vadd.f32 %v6964, %v1029
    %v6968 = vxor.u32 %v6967, 2147483648
    %v6969 = vmul.f32 %v6968, 1.442695
    %v6970 = vpow.pop %v6969
    %v6971 = vadd.f32 %v6970, 1.0
    %v6972 = vrcp.pop %v6971
    %v6973 = vmul.f32 1.0, %v6972
    %6975 = vrot.lane.b32.xlu0 %v6967, 32
    %v6976 = vpop.permute.xlu0 %6975
    %v6978 = vmul.f32 %v6973, %v6976
    %6980 = vrot.lane.b32.xlu0 %v6978, 64
    %v6981 = vpop.permute.xlu0 %6980
    %v6983 = vadd.f32 %v6967, %v6981
    %v6984 = vtanh.pop %v6983
    %v6985 = vsub.f32 1.0, %v6973
    %6987 = vrot.lane.b32.xlu0 %v6984, 96
    %v6988 = vpop.permute.xlu0 %6987
    %v6990 = vmul.f32 %v6985, %v6988
    %v6991 = vmul.f32 %v6973, %v6144
    %v6992 = vadd.f32 %v6990, %v6991
    %6993 = vset.pattern.permute.xlu0 8
    %6994 = vperm.xlu0 %6993, %v607
    %v6995 = vpop.permute.xlu0 %6994
    %vm6996 = vcmp.eq.s32.totalorder %v6995, %v140
    %v6997 = vsel %vm6996, 1, 0
    %v6998 = vcvt.s32.f32 %v6997
    %v7000 = vsel %vm155, %v6998, 0
    %7002 = vmatprep.subr.mxu0 0.0
    %7003 = vmatpush1.msra.mxu0 0.0
    %7004 = vmatprep.subr.mxu0 0.0
    %7005 = vmatpush1.msra.mxu0 0.0
    %7006 = vmatprep.subr.mxu0 0.0
    %7007 = vmatpush1.msra.mxu0 0.0
    %7008 = vmatprep.subr.mxu0 0.0
    %7009 = vmatpush1.msra.mxu0 0.0
    %7010 = vmatprep.subr.mxu0 0.0
    %7011 = vmatpush1.msra.mxu0 0.0
    %7012 = vmatprep.subr.mxu0 0.0
    %7013 = vmatpush1.msra.mxu0 0.0
    %7014 = vmatprep.subr.mxu0 0.0
    %7015 = vmatpush1.msra.mxu0 0.0
    %7016 = vmatprep.subr.mxu0 0.0
    %7017 = vmatpush1.msra.mxu0 0.0
    %7018 = vmatprep.subr.mxu0 0.0
    %7019 = vmatpush1.msra.mxu0 0.0
    %7020 = vmatprep.subr.mxu0 0.0
    %7021 = vmatpush1.msra.mxu0 %v161
    %7022 = vmatprep.subr.mxu0 0.0
    %7023 = vmatpush1.msra.mxu0 %v153
    %7024 = vmatprep.subr.mxu0 0.0
    %7025 = vmatpush1.msra.mxu0 %v152
    %7026 = vmatprep.subr.mxu0 0.0
    %7027 = vmatpush1.msra.mxu0 %v151
    %7028 = vmatprep.subr.mxu0 0.0
    %7029 = vmatpush1.msra.mxu0 %v150
    %7030 = vmatprep.subr.mxu0 0.0
    %7031 = vmatpush1.msra.mxu0 %v149
    %7032 = vmatprep.subr.mxu0 0.0
    %7033 = vmatpush1.msra.mxu0 %v148
    %7034 = vmatprep.subr.mxu0 0.0
    %7035 = vmatpush2.msra.mxu0 0.0
    %7036 = vmatprep.subr.mxu0 0.0
    %7037 = vmatpush2.msra.mxu0 0.0
    %7038 = vmatprep.subr.mxu0 0.0
    %7039 = vmatpush2.msra.mxu0 0.0
    %7040 = vmatprep.subr.mxu0 0.0
    %7041 = vmatpush2.msra.mxu0 0.0
    %7042 = vmatprep.subr.mxu0 0.0
    %7043 = vmatpush2.msra.mxu0 0.0
    %7044 = vmatprep.subr.mxu0 0.0
    %7045 = vmatpush2.msra.mxu0 0.0
    %7046 = vmatprep.subr.mxu0 0.0
    %7047 = vmatpush2.msra.mxu0 0.0
    %7048 = vmatprep.subr.mxu0 0.0
    %7049 = vmatpush2.msra.mxu0 0.0
    %7050 = vmatprep.subr.mxu0 0.0
    %7051 = vmatpush2.msra.mxu0 0.0
    %7052 = vmatprep.subr.mxu0 0.0
    %7053 = vmatpush2.msra.mxu0 0.0
    %7054 = vmatprep.subr.mxu0 0.0
    %7055 = vmatpush2.msra.mxu0 0.0
    %7056 = vmatprep.subr.mxu0 0.0
    %7057 = vmatpush2.msra.mxu0 0.0
    %7058 = vmatprep.subr.mxu0 0.0
    %7059 = vmatpush2.msra.mxu0 0.0
    %7060 = vmatprep.subr.mxu0 0.0
    %7061 = vmatpush2.msra.mxu0 0.0
    %7062 = vmatprep.subr.mxu0 0.0
    %7063 = vmatpush2.msra.mxu0 0.0
    %7064 = vmatprep.subr.mxu0 0.0
    %7065 = vmatpush2.msra.mxu0 0.0
    %7066 = vmatprep.mubr.f32.mxu0 0.0
    %7067 = vmatmul.mubr.f32.gmra.mxu0 %v7000
    %v7068 = vpop.f32.mrf.mxu0
    %v7069 = vadd.f32 0.0, %v7068
    %v7070 = vpop.f32.mrf.mxu0
    %7071 = vdwg.mxu0
    %7072 = vmatprep.subr.mxu0 0.0
    %7073 = vmatpush1.msra.mxu0 0.0
    %7074 = vmatprep.subr.mxu0 0.0
    %7075 = vmatpush1.msra.mxu0 0.0
    %7076 = vmatprep.subr.mxu0 0.0
    %7077 = vmatpush1.msra.mxu0 0.0
    %7078 = vmatprep.subr.mxu0 0.0
    %7079 = vmatpush1.msra.mxu0 0.0
    %7080 = vmatprep.subr.mxu0 0.0
    %7081 = vmatpush1.msra.mxu0 0.0
    %7082 = vmatprep.subr.mxu0 0.0
    %7083 = vmatpush1.msra.mxu0 0.0
    %7084 = vmatprep.subr.mxu0 0.0
    %7085 = vmatpush1.msra.mxu0 0.0
    %7086 = vmatprep.subr.mxu0 0.0
    %7087 = vmatpush1.msra.mxu0 0.0
    %7088 = vmatprep.subr.mxu0 0.0
    %7089 = vmatpush1.msra.mxu0 0.0
    %7090 = vmatprep.subr.mxu0 0.0
    %7091 = vmatpush1.msra.mxu0 0.0
    %7092 = vmatprep.subr.mxu0 0.0
    %7093 = vmatpush1.msra.mxu0 0.0
    %7094 = vmatprep.subr.mxu0 0.0
    %7095 = vmatpush1.msra.mxu0 0.0
    %7096 = vmatprep.subr.mxu0 0.0
    %7097 = vmatpush1.msra.mxu0 %v694
    %7098 = vmatprep.subr.mxu0 0.0
    %7099 = vmatpush1.msra.mxu0 %v693
    %7100 = vmatprep.subr.mxu0 0.0
    %7101 = vmatpush1.msra.mxu0 %v692
    %7102 = vmatprep.subr.mxu0 0.0
    %7103 = vmatpush1.msra.mxu0 %v691
    %7104 = vmatprep.subr.mxu0 0.0
    %7105 = vmatpush2.msra.mxu0 0.0
    %7106 = vmatprep.subr.mxu0 0.0
    %7107 = vmatpush2.msra.mxu0 0.0
    %7108 = vmatprep.subr.mxu0 0.0
    %7109 = vmatpush2.msra.mxu0 0.0
    %7110 = vmatprep.subr.mxu0 0.0
    %7111 = vmatpush2.msra.mxu0 0.0
    %7112 = vmatprep.subr.mxu0 0.0
    %7113 = vmatpush2.msra.mxu0 0.0
    %7114 = vmatprep.subr.mxu0 0.0
    %7115 = vmatpush2.msra.mxu0 0.0
    %7116 = vmatprep.subr.mxu0 0.0
    %7117 = vmatpush2.msra.mxu0 0.0
    %7118 = vmatprep.subr.mxu0 0.0
    %7119 = vmatpush2.msra.mxu0 0.0
    %7120 = vmatprep.subr.mxu0 0.0
    %7121 = vmatpush2.msra.mxu0 0.0
    %7122 = vmatprep.subr.mxu0 0.0
    %7123 = vmatpush2.msra.mxu0 0.0
    %7124 = vmatprep.subr.mxu0 0.0
    %7125 = vmatpush2.msra.mxu0 0.0
    %7126 = vmatprep.subr.mxu0 0.0
    %7127 = vmatpush2.msra.mxu0 0.0
    %7128 = vmatprep.subr.mxu0 0.0
    %7129 = vmatpush2.msra.mxu0 0.0
    %7130 = vmatprep.subr.mxu0 0.0
    %7131 = vmatpush2.msra.mxu0 0.0
    %7132 = vmatprep.subr.mxu0 0.0
    %7133 = vmatpush2.msra.mxu0 0.0
    %7134 = vmatprep.subr.mxu0 0.0
    %7135 = vmatpush2.msra.mxu0 0.0
    %7136 = vmatprep.mubr.f32.mxu0 0.0
    %7137 = vmatmul.mubr.f32.gmra.mxu0 %v6895
    %v7138 = vpop.f32.mrf.mxu0
    %v7139 = vadd.f32 0.0, %v7138
    %v7140 = vpop.f32.mrf.mxu0
    %7141 = vdwg.mxu0
    %v7143 = vsel %vm241, %v7069, 0
    %7145 = vmatprep.subr.mxu0 0.0
    %7146 = vmatpush1.msra.mxu0 0.0
    %7147 = vmatprep.subr.mxu0 0.0
    %7148 = vmatpush1.msra.mxu0 0.0
    %7149 = vmatprep.subr.mxu0 0.0
    %7150 = vmatpush1.msra.mxu0 0.0
    %7151 = vmatprep.subr.mxu0 0.0
    %7152 = vmatpush1.msra.mxu0 0.0
    %7153 = vmatprep.subr.mxu0 0.0
    %7154 = vmatpush1.msra.mxu0 0.0
    %7155 = vmatprep.subr.mxu0 0.0
    %7156 = vmatpush1.msra.mxu0 0.0
    %7157 = vmatprep.subr.mxu0 0.0
    %7158 = vmatpush1.msra.mxu0 0.0
    %7159 = vmatprep.subr.mxu0 0.0
    %7160 = vmatpush1.msra.mxu0 0.0
    %7161 = vmatprep.subr.mxu0 0.0
    %7162 = vmatpush1.msra.mxu0 0.0
    %7163 = vmatprep.subr.mxu0 0.0
    %7164 = vmatpush1.msra.mxu0 0.0
    %7165 = vmatprep.subr.mxu0 0.0
    %7166 = vmatpush1.msra.mxu0 0.0
    %7167 = vmatprep.subr.mxu0 0.0
    %7168 = vmatpush1.msra.mxu0 0.0
    %7169 = vmatprep.subr.mxu0 0.0
    %7170 = vmatpush1.msra.mxu0 %v690
    %7171 = vmatprep.subr.mxu0 0.0
    %7172 = vmatpush1.msra.mxu0 %v689
    %7173 = vmatprep.subr.mxu0 0.0
    %7174 = vmatpush1.msra.mxu0 %v688
    %7175 = vmatprep.subr.mxu0 0.0
    %7176 = vmatpush1.msra.mxu0 %v687
    %7177 = vmatprep.subr.mxu0 0.0
    %7178 = vmatpush2.msra.mxu0 0.0
    %7179 = vmatprep.subr.mxu0 0.0
    %7180 = vmatpush2.msra.mxu0 0.0
    %7181 = vmatprep.subr.mxu0 0.0
    %7182 = vmatpush2.msra.mxu0 0.0
    %7183 = vmatprep.subr.mxu0 0.0
    %7184 = vmatpush2.msra.mxu0 0.0
    %7185 = vmatprep.subr.mxu0 0.0
    %7186 = vmatpush2.msra.mxu0 0.0
    %7187 = vmatprep.subr.mxu0 0.0
    %7188 = vmatpush2.msra.mxu0 0.0
    %7189 = vmatprep.subr.mxu0 0.0
    %7190 = vmatpush2.msra.mxu0 0.0
    %7191 = vmatprep.subr.mxu0 0.0
    %7192 = vmatpush2.msra.mxu0 0.0
    %7193 = vmatprep.subr.mxu0 0.0
    %7194 = vmatpush2.msra.mxu0 0.0
    %7195 = vmatprep.subr.mxu0 0.0
    %7196 = vmatpush2.msra.mxu0 0.0
    %7197 = vmatprep.subr.mxu0 0.0
    %7198 = vmatpush2.msra.mxu0 0.0
    %7199 = vmatprep.subr.mxu0 0.0
    %7200 = vmatpush2.msra.mxu0 0.0
    %7201 = vmatprep.subr.mxu0 0.0
    %7202 = vmatpush2.msra.mxu0 0.0
    %7203 = vmatprep.subr.mxu0 0.0
    %7204 = vmatpush2.msra.mxu0 0.0
    %7205 = vmatprep.subr.mxu0 0.0
    %7206 = vmatpush2.msra.mxu0 0.0
    %7207 = vmatprep.subr.mxu0 0.0
    %7208 = vmatpush2.msra.mxu0 0.0
    %7209 = vmatprep.mubr.f32.mxu0 0.0
    %7210 = vmatmul.mubr.f32.gmra.mxu0 %v7143
    %v7211 = vpop.f32.mrf.mxu0
    %v7212 = vadd.f32 %v7139, %v7211
    %v7213 = vpop.f32.mrf.mxu0
    %7214 = vdwg.mxu0
    %v7215 = vadd.f32 %v7212, %v843
    %v7216 = vxor.u32 %v7215, 2147483648
    %v7217 = vmul.f32 %v7216, 1.442695
    %v7218 = vpow.pop %v7217
    %v7219 = vadd.f32 %v7218, 1.0
    %v7220 = vrcp.pop %v7219
    %v7221 = vmul.f32 1.0, %v7220
    %7223 = vrot.lane.b32.xlu0 %v7215, 32
    %v7224 = vpop.permute.xlu0 %7223
    %v7226 = vmul.f32 %v7221, %v7224
    %7228 = vrot.lane.b32.xlu0 %v7226, 64
    %v7229 = vpop.permute.xlu0 %7228
    %v7231 = vadd.f32 %v7215, %v7229
    %v7232 = vtanh.pop %v7231
    %v7233 = vsub.f32 1.0, %v7221
    %7235 = vrot.lane.b32.xlu0 %v7232, 96
    %v7236 = vpop.permute.xlu0 %7235
    %v7238 = vmul.f32 %v7233, %v7236
    %v7239 = vmul.f32 %v7221, %v6816
    %v7240 = vadd.f32 %v7238, %v7239
    %7242 = vrot.lane.b32.xlu0 %v6992, 96
    %v7243 = vpop.permute.xlu0 %7242
    %v7244 = vsel %vm241, %v7243, 0
    %7246 = vmatprep.subr.mxu0 0.0
    %7247 = vmatpush1.msra.mxu0 0.0
    %7248 = vmatprep.subr.mxu0 0.0
    %7249 = vmatpush1.msra.mxu0 0.0
    %7250 = vmatprep.subr.mxu0 0.0
    %7251 = vmatpush1.msra.mxu0 0.0
    %7252 = vmatprep.subr.mxu0 0.0
    %7253 = vmatpush1.msra.mxu0 0.0
    %7254 = vmatprep.subr.mxu0 0.0
    %7255 = vmatpush1.msra.mxu0 0.0
    %7256 = vmatprep.subr.mxu0 0.0
    %7257 = vmatpush1.msra.mxu0 0.0
    %7258 = vmatprep.subr.mxu0 0.0
    %7259 = vmatpush1.msra.mxu0 0.0
    %7260 = vmatprep.subr.mxu0 0.0
    %7261 = vmatpush1.msra.mxu0 0.0
    %7262 = vmatprep.subr.mxu0 0.0
    %7263 = vmatpush1.msra.mxu0 0.0
    %7264 = vmatprep.subr.mxu0 0.0
    %7265 = vmatpush1.msra.mxu0 0.0
    %7266 = vmatprep.subr.mxu0 0.0
    %7267 = vmatpush1.msra.mxu0 0.0
    %7268 = vmatprep.subr.mxu0 0.0
    %7269 = vmatpush1.msra.mxu0 0.0
    %7270 = vmatprep.subr.mxu0 0.0
    %7271 = vmatpush1.msra.mxu0 %v878
    %7272 = vmatprep.subr.mxu0 0.0
    %7273 = vmatpush1.msra.mxu0 %v877
    %7274 = vmatprep.subr.mxu0 0.0
    %7275 = vmatpush1.msra.mxu0 %v876
    %7276 = vmatprep.subr.mxu0 0.0
    %7277 = vmatpush1.msra.mxu0 %v875
    %7278 = vmatprep.subr.mxu0 0.0
    %7279 = vmatpush2.msra.mxu0 0.0
    %7280 = vmatprep.subr.mxu0 0.0
    %7281 = vmatpush2.msra.mxu0 0.0
    %7282 = vmatprep.subr.mxu0 0.0
    %7283 = vmatpush2.msra.mxu0 0.0
    %7284 = vmatprep.subr.mxu0 0.0
    %7285 = vmatpush2.msra.mxu0 0.0
    %7286 = vmatprep.subr.mxu0 0.0
    %7287 = vmatpush2.msra.mxu0 0.0
    %7288 = vmatprep.subr.mxu0 0.0
    %7289 = vmatpush2.msra.mxu0 0.0
    %7290 = vmatprep.subr.mxu0 0.0
    %7291 = vmatpush2.msra.mxu0 0.0
    %7292 = vmatprep.subr.mxu0 0.0
    %7293 = vmatpush2.msra.mxu0 0.0
    %7294 = vmatprep.subr.mxu0 0.0
    %7295 = vmatpush2.msra.mxu0 0.0
    %7296 = vmatprep.subr.mxu0 0.0
    %7297 = vmatpush2.msra.mxu0 0.0
    %7298 = vmatprep.subr.mxu0 0.0
    %7299 = vmatpush2.msra.mxu0 0.0
    %7300 = vmatprep.subr.mxu0 0.0
    %7301 = vmatpush2.msra.mxu0 0.0
    %7302 = vmatprep.subr.mxu0 0.0
    %7303 = vmatpush2.msra.mxu0 0.0
    %7304 = vmatprep.subr.mxu0 0.0
    %7305 = vmatpush2.msra.mxu0 0.0
    %7306 = vmatprep.subr.mxu0 0.0
    %7307 = vmatpush2.msra.mxu0 0.0
    %7308 = vmatprep.subr.mxu0 0.0
    %7309 = vmatpush2.msra.mxu0 0.0
    %7310 = vmatprep.mubr.f32.mxu0 0.0
    %7311 = vmatmul.mubr.f32.gmra.mxu0 %v7244
    %v7312 = vpop.f32.mrf.mxu0
    %v7313 = vadd.f32 0.0, %v7312
    %v7314 = vpop.f32.mrf.mxu0
    %7315 = vdwg.mxu0
    %7317 = vrot.lane.b32.xlu0 %v7240, 96
    %v7318 = vpop.permute.xlu0 %7317
    %v7319 = vsel %vm241, %v7318, 0
    %7321 = vmatprep.subr.mxu0 0.0
    %7322 = vmatpush1.msra.mxu0 0.0
    %7323 = vmatprep.subr.mxu0 0.0
    %7324 = vmatpush1.msra.mxu0 0.0
    %7325 = vmatprep.subr.mxu0 0.0
    %7326 = vmatpush1.msra.mxu0 0.0
    %7327 = vmatprep.subr.mxu0 0.0
    %7328 = vmatpush1.msra.mxu0 0.0
    %7329 = vmatprep.subr.mxu0 0.0
    %7330 = vmatpush1.msra.mxu0 0.0
    %7331 = vmatprep.subr.mxu0 0.0
    %7332 = vmatpush1.msra.mxu0 0.0
    %7333 = vmatprep.subr.mxu0 0.0
    %7334 = vmatpush1.msra.mxu0 0.0
    %7335 = vmatprep.subr.mxu0 0.0
    %7336 = vmatpush1.msra.mxu0 0.0
    %7337 = vmatprep.subr.mxu0 0.0
    %7338 = vmatpush1.msra.mxu0 0.0
    %7339 = vmatprep.subr.mxu0 0.0
    %7340 = vmatpush1.msra.mxu0 0.0
    %7341 = vmatprep.subr.mxu0 0.0
    %7342 = vmatpush1.msra.mxu0 0.0
    %7343 = vmatprep.subr.mxu0 0.0
    %7344 = vmatpush1.msra.mxu0 0.0
    %7345 = vmatprep.subr.mxu0 0.0
    %7346 = vmatpush1.msra.mxu0 %v874
    %7347 = vmatprep.subr.mxu0 0.0
    %7348 = vmatpush1.msra.mxu0 %v873
    %7349 = vmatprep.subr.mxu0 0.0
    %7350 = vmatpush1.msra.mxu0 %v872
    %7351 = vmatprep.subr.mxu0 0.0
    %7352 = vmatpush1.msra.mxu0 %v871
    %7353 = vmatprep.subr.mxu0 0.0
    %7354 = vmatpush2.msra.mxu0 0.0
    %7355 = vmatprep.subr.mxu0 0.0
    %7356 = vmatpush2.msra.mxu0 0.0
    %7357 = vmatprep.subr.mxu0 0.0
    %7358 = vmatpush2.msra.mxu0 0.0
    %7359 = vmatprep.subr.mxu0 0.0
    %7360 = vmatpush2.msra.mxu0 0.0
    %7361 = vmatprep.subr.mxu0 0.0
    %7362 = vmatpush2.msra.mxu0 0.0
    %7363 = vmatprep.subr.mxu0 0.0
    %7364 = vmatpush2.msra.mxu0 0.0
    %7365 = vmatprep.subr.mxu0 0.0
    %7366 = vmatpush2.msra.mxu0 0.0
    %7367 = vmatprep.subr.mxu0 0.0
    %7368 = vmatpush2.msra.mxu0 0.0
    %7369 = vmatprep.subr.mxu0 0.0
    %7370 = vmatpush2.msra.mxu0 0.0
    %7371 = vmatprep.subr.mxu0 0.0
    %7372 = vmatpush2.msra.mxu0 0.0
    %7373 = vmatprep.subr.mxu0 0.0
    %7374 = vmatpush2.msra.mxu0 0.0
    %7375 = vmatprep.subr.mxu0 0.0
    %7376 = vmatpush2.msra.mxu0 0.0
    %7377 = vmatprep.subr.mxu0 0.0
    %7378 = vmatpush2.msra.mxu0 0.0
    %7379 = vmatprep.subr.mxu0 0.0
    %7380 = vmatpush2.msra.mxu0 0.0
    %7381 = vmatprep.subr.mxu0 0.0
    %7382 = vmatpush2.msra.mxu0 0.0
    %7383 = vmatprep.subr.mxu0 0.0
    %7384 = vmatpush2.msra.mxu0 0.0
    %7385 = vmatprep.mubr.f32.mxu0 0.0
    %7386 = vmatmul.mubr.f32.gmra.mxu0 %v7319
    %v7387 = vpop.f32.mrf.mxu0
    %v7388 = vadd.f32 %v7313, %v7387
    %v7389 = vpop.f32.mrf.mxu0
    %7390 = vdwg.mxu0
    %v7391 = vadd.f32 %v7388, %v1029
    %v7392 = vxor.u32 %v7391, 2147483648
    %v7393 = vmul.f32 %v7392, 1.442695
    %v7394 = vpow.pop %v7393
    %v7395 = vadd.f32 %v7394, 1.0
    %v7396 = vrcp.pop %v7395
    %v7397 = vmul.f32 1.0, %v7396
    %7399 = vrot.lane.b32.xlu0 %v7391, 32
    %v7400 = vpop.permute.xlu0 %7399
    %v7402 = vmul.f32 %v7397, %v7400
    %7404 = vrot.lane.b32.xlu0 %v7402, 64
    %v7405 = vpop.permute.xlu0 %7404
    %v7407 = vadd.f32 %v7391, %v7405
    %v7408 = vtanh.pop %v7407
    %v7409 = vsub.f32 1.0, %v7397
    %7411 = vrot.lane.b32.xlu0 %v7408, 96
    %v7412 = vpop.permute.xlu0 %7411
    %v7414 = vmul.f32 %v7409, %v7412
    %v7415 = vmul.f32 %v7397, %v6992
    %v7416 = vadd.f32 %v7414, %v7415
    %7417 = vset.pattern.permute.xlu0 9
    %7418 = vperm.xlu0 %7417, %v607
    %v7419 = vpop.permute.xlu0 %7418
    %vm7420 = vcmp.eq.s32.totalorder %v7419, %v140
    %v7421 = vsel %vm7420, 1, 0
    %v7422 = vcvt.s32.f32 %v7421
    %v7424 = vsel %vm155, %v7422, 0
    %7426 = vmatprep.subr.mxu0 0.0
    %7427 = vmatpush1.msra.mxu0 0.0
    %7428 = vmatprep.subr.mxu0 0.0
    %7429 = vmatpush1.msra.mxu0 0.0
    %7430 = vmatprep.subr.mxu0 0.0
    %7431 = vmatpush1.msra.mxu0 0.0
    %7432 = vmatprep.subr.mxu0 0.0
    %7433 = vmatpush1.msra.mxu0 0.0
    %7434 = vmatprep.subr.mxu0 0.0
    %7435 = vmatpush1.msra.mxu0 0.0
    %7436 = vmatprep.subr.mxu0 0.0
    %7437 = vmatpush1.msra.mxu0 0.0
    %7438 = vmatprep.subr.mxu0 0.0
    %7439 = vmatpush1.msra.mxu0 0.0
    %7440 = vmatprep.subr.mxu0 0.0
    %7441 = vmatpush1.msra.mxu0 0.0
    %7442 = vmatprep.subr.mxu0 0.0
    %7443 = vmatpush1.msra.mxu0 0.0
    %7444 = vmatprep.subr.mxu0 0.0
    %7445 = vmatpush1.msra.mxu0 %v161
    %7446 = vmatprep.subr.mxu0 0.0
    %7447 = vmatpush1.msra.mxu0 %v153
    %7448 = vmatprep.subr.mxu0 0.0
    %7449 = vmatpush1.msra.mxu0 %v152
    %7450 = vmatprep.subr.mxu0 0.0
    %7451 = vmatpush1.msra.mxu0 %v151
    %7452 = vmatprep.subr.mxu0 0.0
    %7453 = vmatpush1.msra.mxu0 %v150
    %7454 = vmatprep.subr.mxu0 0.0
    %7455 = vmatpush1.msra.mxu0 %v149
    %7456 = vmatprep.subr.mxu0 0.0
    %7457 = vmatpush1.msra.mxu0 %v148
    %7458 = vmatprep.subr.mxu0 0.0
    %7459 = vmatpush2.msra.mxu0 0.0
    %7460 = vmatprep.subr.mxu0 0.0
    %7461 = vmatpush2.msra.mxu0 0.0
    %7462 = vmatprep.subr.mxu0 0.0
    %7463 = vmatpush2.msra.mxu0 0.0
    %7464 = vmatprep.subr.mxu0 0.0
    %7465 = vmatpush2.msra.mxu0 0.0
    %7466 = vmatprep.subr.mxu0 0.0
    %7467 = vmatpush2.msra.mxu0 0.0
    %7468 = vmatprep.subr.mxu0 0.0
    %7469 = vmatpush2.msra.mxu0 0.0
    %7470 = vmatprep.subr.mxu0 0.0
    %7471 = vmatpush2.msra.mxu0 0.0
    %7472 = vmatprep.subr.mxu0 0.0
    %7473 = vmatpush2.msra.mxu0 0.0
    %7474 = vmatprep.subr.mxu0 0.0
    %7475 = vmatpush2.msra.mxu0 0.0
    %7476 = vmatprep.subr.mxu0 0.0
    %7477 = vmatpush2.msra.mxu0 0.0
    %7478 = vmatprep.subr.mxu0 0.0
    %7479 = vmatpush2.msra.mxu0 0.0
    %7480 = vmatprep.subr.mxu0 0.0
    %7481 = vmatpush2.msra.mxu0 0.0
    %7482 = vmatprep.subr.mxu0 0.0
    %7483 = vmatpush2.msra.mxu0 0.0
    %7484 = vmatprep.subr.mxu0 0.0
    %7485 = vmatpush2.msra.mxu0 0.0
    %7486 = vmatprep.subr.mxu0 0.0
    %7487 = vmatpush2.msra.mxu0 0.0
    %7488 = vmatprep.subr.mxu0 0.0
    %7489 = vmatpush2.msra.mxu0 0.0
    %7490 = vmatprep.mubr.f32.mxu0 0.0
    %7491 = vmatmul.mubr.f32.gmra.mxu0 %v7424
    %v7492 = vpop.f32.mrf.mxu0
    %v7493 = vadd.f32 0.0, %v7492
    %v7494 = vpop.f32.mrf.mxu0
    %7495 = vdwg.mxu0
    %7496 = vmatprep.subr.mxu0 0.0
    %7497 = vmatpush1.msra.mxu0 0.0
    %7498 = vmatprep.subr.mxu0 0.0
    %7499 = vmatpush1.msra.mxu0 0.0
    %7500 = vmatprep.subr.mxu0 0.0
    %7501 = vmatpush1.msra.mxu0 0.0
    %7502 = vmatprep.subr.mxu0 0.0
    %7503 = vmatpush1.msra.mxu0 0.0
    %7504 = vmatprep.subr.mxu0 0.0
    %7505 = vmatpush1.msra.mxu0 0.0
    %7506 = vmatprep.subr.mxu0 0.0
    %7507 = vmatpush1.msra.mxu0 0.0
    %7508 = vmatprep.subr.mxu0 0.0
    %7509 = vmatpush1.msra.mxu0 0.0
    %7510 = vmatprep.subr.mxu0 0.0
    %7511 = vmatpush1.msra.mxu0 0.0
    %7512 = vmatprep.subr.mxu0 0.0
    %7513 = vmatpush1.msra.mxu0 0.0
    %7514 = vmatprep.subr.mxu0 0.0
    %7515 = vmatpush1.msra.mxu0 0.0
    %7516 = vmatprep.subr.mxu0 0.0
    %7517 = vmatpush1.msra.mxu0 0.0
    %7518 = vmatprep.subr.mxu0 0.0
    %7519 = vmatpush1.msra.mxu0 0.0
    %7520 = vmatprep.subr.mxu0 0.0
    %7521 = vmatpush1.msra.mxu0 %v694
    %7522 = vmatprep.subr.mxu0 0.0
    %7523 = vmatpush1.msra.mxu0 %v693
    %7524 = vmatprep.subr.mxu0 0.0
    %7525 = vmatpush1.msra.mxu0 %v692
    %7526 = vmatprep.subr.mxu0 0.0
    %7527 = vmatpush1.msra.mxu0 %v691
    %7528 = vmatprep.subr.mxu0 0.0
    %7529 = vmatpush2.msra.mxu0 0.0
    %7530 = vmatprep.subr.mxu0 0.0
    %7531 = vmatpush2.msra.mxu0 0.0
    %7532 = vmatprep.subr.mxu0 0.0
    %7533 = vmatpush2.msra.mxu0 0.0
    %7534 = vmatprep.subr.mxu0 0.0
    %7535 = vmatpush2.msra.mxu0 0.0
    %7536 = vmatprep.subr.mxu0 0.0
    %7537 = vmatpush2.msra.mxu0 0.0
    %7538 = vmatprep.subr.mxu0 0.0
    %7539 = vmatpush2.msra.mxu0 0.0
    %7540 = vmatprep.subr.mxu0 0.0
    %7541 = vmatpush2.msra.mxu0 0.0
    %7542 = vmatprep.subr.mxu0 0.0
    %7543 = vmatpush2.msra.mxu0 0.0
    %7544 = vmatprep.subr.mxu0 0.0
    %7545 = vmatpush2.msra.mxu0 0.0
    %7546 = vmatprep.subr.mxu0 0.0
    %7547 = vmatpush2.msra.mxu0 0.0
    %7548 = vmatprep.subr.mxu0 0.0
    %7549 = vmatpush2.msra.mxu0 0.0
    %7550 = vmatprep.subr.mxu0 0.0
    %7551 = vmatpush2.msra.mxu0 0.0
    %7552 = vmatprep.subr.mxu0 0.0
    %7553 = vmatpush2.msra.mxu0 0.0
    %7554 = vmatprep.subr.mxu0 0.0
    %7555 = vmatpush2.msra.mxu0 0.0
    %7556 = vmatprep.subr.mxu0 0.0
    %7557 = vmatpush2.msra.mxu0 0.0
    %7558 = vmatprep.subr.mxu0 0.0
    %7559 = vmatpush2.msra.mxu0 0.0
    %7560 = vmatprep.mubr.f32.mxu0 0.0
    %7561 = vmatmul.mubr.f32.gmra.mxu0 %v7319
    %v7562 = vpop.f32.mrf.mxu0
    %v7563 = vadd.f32 0.0, %v7562
    %v7564 = vpop.f32.mrf.mxu0
    %7565 = vdwg.mxu0
    %v7567 = vsel %vm241, %v7493, 0
    %7569 = vmatprep.subr.mxu0 0.0
    %7570 = vmatpush1.msra.mxu0 0.0
    %7571 = vmatprep.subr.mxu0 0.0
    %7572 = vmatpush1.msra.mxu0 0.0
    %7573 = vmatprep.subr.mxu0 0.0
    %7574 = vmatpush1.msra.mxu0 0.0
    %7575 = vmatprep.subr.mxu0 0.0
    %7576 = vmatpush1.msra.mxu0 0.0
    %7577 = vmatprep.subr.mxu0 0.0
    %7578 = vmatpush1.msra.mxu0 0.0
    %7579 = vmatprep.subr.mxu0 0.0
    %7580 = vmatpush1.msra.mxu0 0.0
    %7581 = vmatprep.subr.mxu0 0.0
    %7582 = vmatpush1.msra.mxu0 0.0
    %7583 = vmatprep.subr.mxu0 0.0
    %7584 = vmatpush1.msra.mxu0 0.0
    %7585 = vmatprep.subr.mxu0 0.0
    %7586 = vmatpush1.msra.mxu0 0.0
    %7587 = vmatprep.subr.mxu0 0.0
    %7588 = vmatpush1.msra.mxu0 0.0
    %7589 = vmatprep.subr.mxu0 0.0
    %7590 = vmatpush1.msra.mxu0 0.0
    %7591 = vmatprep.subr.mxu0 0.0
    %7592 = vmatpush1.msra.mxu0 0.0
    %7593 = vmatprep.subr.mxu0 0.0
    %7594 = vmatpush1.msra.mxu0 %v690
    %7595 = vmatprep.subr.mxu0 0.0
    %7596 = vmatpush1.msra.mxu0 %v689
    %7597 = vmatprep.subr.mxu0 0.0
    %7598 = vmatpush1.msra.mxu0 %v688
    %7599 = vmatprep.subr.mxu0 0.0
    %7600 = vmatpush1.msra.mxu0 %v687
    %7601 = vmatprep.subr.mxu0 0.0
    %7602 = vmatpush2.msra.mxu0 0.0
    %7603 = vmatprep.subr.mxu0 0.0
    %7604 = vmatpush2.msra.mxu0 0.0
    %7605 = vmatprep.subr.mxu0 0.0
    %7606 = vmatpush2.msra.mxu0 0.0
    %7607 = vmatprep.subr.mxu0 0.0
    %7608 = vmatpush2.msra.mxu0 0.0
    %7609 = vmatprep.subr.mxu0 0.0
    %7610 = vmatpush2.msra.mxu0 0.0
    %7611 = vmatprep.subr.mxu0 0.0
    %7612 = vmatpush2.msra.mxu0 0.0
    %7613 = vmatprep.subr.mxu0 0.0
    %7614 = vmatpush2.msra.mxu0 0.0
    %7615 = vmatprep.subr.mxu0 0.0
    %7616 = vmatpush2.msra.mxu0 0.0
    %7617 = vmatprep.subr.mxu0 0.0
    %7618 = vmatpush2.msra.mxu0 0.0
    %7619 = vmatprep.subr.mxu0 0.0
    %7620 = vmatpush2.msra.mxu0 0.0
    %7621 = vmatprep.subr.mxu0 0.0
    %7622 = vmatpush2.msra.mxu0 0.0
    %7623 = vmatprep.subr.mxu0 0.0
    %7624 = vmatpush2.msra.mxu0 0.0
    %7625 = vmatprep.subr.mxu0 0.0
    %7626 = vmatpush2.msra.mxu0 0.0
    %7627 = vmatprep.subr.mxu0 0.0
    %7628 = vmatpush2.msra.mxu0 0.0
    %7629 = vmatprep.subr.mxu0 0.0
    %7630 = vmatpush2.msra.mxu0 0.0
    %7631 = vmatprep.subr.mxu0 0.0
    %7632 = vmatpush2.msra.mxu0 0.0
    %7633 = vmatprep.mubr.f32.mxu0 0.0
    %7634 = vmatmul.mubr.f32.gmra.mxu0 %v7567
    %v7635 = vpop.f32.mrf.mxu0
    %v7636 = vadd.f32 %v7563, %v7635
    %v7637 = vpop.f32.mrf.mxu0
    %7638 = vdwg.mxu0
    %v7639 = vadd.f32 %v7636, %v843
    %v7640 = vxor.u32 %v7639, 2147483648
    %v7641 = vmul.f32 %v7640, 1.442695
    %v7642 = vpow.pop %v7641
    %v7643 = vadd.f32 %v7642, 1.0
    %v7644 = vrcp.pop %v7643
    %v7645 = vmul.f32 1.0, %v7644
    %7647 = vrot.lane.b32.xlu0 %v7639, 32
    %v7648 = vpop.permute.xlu0 %7647
    %v7650 = vmul.f32 %v7645, %v7648
    %7652 = vrot.lane.b32.xlu0 %v7650, 64
    %v7653 = vpop.permute.xlu0 %7652
    %v7655 = vadd.f32 %v7639, %v7653
    %v7656 = vtanh.pop %v7655
    %v7657 = vsub.f32 1.0, %v7645
    %7659 = vrot.lane.b32.xlu0 %v7656, 96
    %v7660 = vpop.permute.xlu0 %7659
    %v7662 = vmul.f32 %v7657, %v7660
    %v7663 = vmul.f32 %v7645, %v7240
    %v7664 = vadd.f32 %v7662, %v7663
    %7666 = vrot.lane.b32.xlu0 %v7416, 96
    %v7667 = vpop.permute.xlu0 %7666
    %v7668 = vsel %vm241, %v7667, 0
    %7670 = vmatprep.subr.mxu0 0.0
    %7671 = vmatpush1.msra.mxu0 0.0
    %7672 = vmatprep.subr.mxu0 0.0
    %7673 = vmatpush1.msra.mxu0 0.0
    %7674 = vmatprep.subr.mxu0 0.0
    %7675 = vmatpush1.msra.mxu0 0.0
    %7676 = vmatprep.subr.mxu0 0.0
    %7677 = vmatpush1.msra.mxu0 0.0
    %7678 = vmatprep.subr.mxu0 0.0
    %7679 = vmatpush1.msra.mxu0 0.0
    %7680 = vmatprep.subr.mxu0 0.0
    %7681 = vmatpush1.msra.mxu0 0.0
    %7682 = vmatprep.subr.mxu0 0.0
    %7683 = vmatpush1.msra.mxu0 0.0
    %7684 = vmatprep.subr.mxu0 0.0
    %7685 = vmatpush1.msra.mxu0 0.0
    %7686 = vmatprep.subr.mxu0 0.0
    %7687 = vmatpush1.msra.mxu0 0.0
    %7688 = vmatprep.subr.mxu0 0.0
    %7689 = vmatpush1.msra.mxu0 0.0
    %7690 = vmatprep.subr.mxu0 0.0
    %7691 = vmatpush1.msra.mxu0 0.0
    %7692 = vmatprep.subr.mxu0 0.0
    %7693 = vmatpush1.msra.mxu0 0.0
    %7694 = vmatprep.subr.mxu0 0.0
    %7695 = vmatpush1.msra.mxu0 %v878
    %7696 = vmatprep.subr.mxu0 0.0
    %7697 = vmatpush1.msra.mxu0 %v877
    %7698 = vmatprep.subr.mxu0 0.0
    %7699 = vmatpush1.msra.mxu0 %v876
    %7700 = vmatprep.subr.mxu0 0.0
    %7701 = vmatpush1.msra.mxu0 %v875
    %7702 = vmatprep.subr.mxu0 0.0
    %7703 = vmatpush2.msra.mxu0 0.0
    %7704 = vmatprep.subr.mxu0 0.0
    %7705 = vmatpush2.msra.mxu0 0.0
    %7706 = vmatprep.subr.mxu0 0.0
    %7707 = vmatpush2.msra.mxu0 0.0
    %7708 = vmatprep.subr.mxu0 0.0
    %7709 = vmatpush2.msra.mxu0 0.0
    %7710 = vmatprep.subr.mxu0 0.0
    %7711 = vmatpush2.msra.mxu0 0.0
    %7712 = vmatprep.subr.mxu0 0.0
    %7713 = vmatpush2.msra.mxu0 0.0
    %7714 = vmatprep.subr.mxu0 0.0
    %7715 = vmatpush2.msra.mxu0 0.0
    %7716 = vmatprep.subr.mxu0 0.0
    %7717 = vmatpush2.msra.mxu0 0.0
    %7718 = vmatprep.subr.mxu0 0.0
    %7719 = vmatpush2.msra.mxu0 0.0
    %7720 = vmatprep.subr.mxu0 0.0
    %7721 = vmatpush2.msra.mxu0 0.0
    %7722 = vmatprep.subr.mxu0 0.0
    %7723 = vmatpush2.msra.mxu0 0.0
    %7724 = vmatprep.subr.mxu0 0.0
    %7725 = vmatpush2.msra.mxu0 0.0
    %7726 = vmatprep.subr.mxu0 0.0
    %7727 = vmatpush2.msra.mxu0 0.0
    %7728 = vmatprep.subr.mxu0 0.0
    %7729 = vmatpush2.msra.mxu0 0.0
    %7730 = vmatprep.subr.mxu0 0.0
    %7731 = vmatpush2.msra.mxu0 0.0
    %7732 = vmatprep.subr.mxu0 0.0
    %7733 = vmatpush2.msra.mxu0 0.0
    %7734 = vmatprep.mubr.f32.mxu0 0.0
    %7735 = vmatmul.mubr.f32.gmra.mxu0 %v7668
    %v7736 = vpop.f32.mrf.mxu0
    %v7737 = vadd.f32 0.0, %v7736
    %v7738 = vpop.f32.mrf.mxu0
    %7739 = vdwg.mxu0
    %7741 = vrot.lane.b32.xlu0 %v7664, 96
    %v7742 = vpop.permute.xlu0 %7741
    %v7743 = vsel %vm241, %v7742, 0
    %7745 = vmatprep.subr.mxu0 0.0
    %7746 = vmatpush1.msra.mxu0 0.0
    %7747 = vmatprep.subr.mxu0 0.0
    %7748 = vmatpush1.msra.mxu0 0.0
    %7749 = vmatprep.subr.mxu0 0.0
    %7750 = vmatpush1.msra.mxu0 0.0
    %7751 = vmatprep.subr.mxu0 0.0
    %7752 = vmatpush1.msra.mxu0 0.0
    %7753 = vmatprep.subr.mxu0 0.0
    %7754 = vmatpush1.msra.mxu0 0.0
    %7755 = vmatprep.subr.mxu0 0.0
    %7756 = vmatpush1.msra.mxu0 0.0
    %7757 = vmatprep.subr.mxu0 0.0
    %7758 = vmatpush1.msra.mxu0 0.0
    %7759 = vmatprep.subr.mxu0 0.0
    %7760 = vmatpush1.msra.mxu0 0.0
    %7761 = vmatprep.subr.mxu0 0.0
    %7762 = vmatpush1.msra.mxu0 0.0
    %7763 = vmatprep.subr.mxu0 0.0
    %7764 = vmatpush1.msra.mxu0 0.0
    %7765 = vmatprep.subr.mxu0 0.0
    %7766 = vmatpush1.msra.mxu0 0.0
    %7767 = vmatprep.subr.mxu0 0.0
    %7768 = vmatpush1.msra.mxu0 0.0
    %7769 = vmatprep.subr.mxu0 0.0
    %7770 = vmatpush1.msra.mxu0 %v874
    %7771 = vmatprep.subr.mxu0 0.0
    %7772 = vmatpush1.msra.mxu0 %v873
    %7773 = vmatprep.subr.mxu0 0.0
    %7774 = vmatpush1.msra.mxu0 %v872
    %7775 = vmatprep.subr.mxu0 0.0
    %7776 = vmatpush1.msra.mxu0 %v871
    %7777 = vmatprep.subr.mxu0 0.0
    %7778 = vmatpush2.msra.mxu0 0.0
    %7779 = vmatprep.subr.mxu0 0.0
    %7780 = vmatpush2.msra.mxu0 0.0
    %7781 = vmatprep.subr.mxu0 0.0
    %7782 = vmatpush2.msra.mxu0 0.0
    %7783 = vmatprep.subr.mxu0 0.0
    %7784 = vmatpush2.msra.mxu0 0.0
    %7785 = vmatprep.subr.mxu0 0.0
    %7786 = vmatpush2.msra.mxu0 0.0
    %7787 = vmatprep.subr.mxu0 0.0
    %7788 = vmatpush2.msra.mxu0 0.0
    %7789 = vmatprep.subr.mxu0 0.0
    %7790 = vmatpush2.msra.mxu0 0.0
    %7791 = vmatprep.subr.mxu0 0.0
    %7792 = vmatpush2.msra.mxu0 0.0
    %7793 = vmatprep.subr.mxu0 0.0
    %7794 = vmatpush2.msra.mxu0 0.0
    %7795 = vmatprep.subr.mxu0 0.0
    %7796 = vmatpush2.msra.mxu0 0.0
    %7797 = vmatprep.subr.mxu0 0.0
    %7798 = vmatpush2.msra.mxu0 0.0
    %7799 = vmatprep.subr.mxu0 0.0
    %7800 = vmatpush2.msra.mxu0 0.0
    %7801 = vmatprep.subr.mxu0 0.0
    %7802 = vmatpush2.msra.mxu0 0.0
    %7803 = vmatprep.subr.mxu0 0.0
    %7804 = vmatpush2.msra.mxu0 0.0
    %7805 = vmatprep.subr.mxu0 0.0
    %7806 = vmatpush2.msra.mxu0 0.0
    %7807 = vmatprep.subr.mxu0 0.0
    %7808 = vmatpush2.msra.mxu0 0.0
    %7809 = vmatprep.mubr.f32.mxu0 0.0
    %7810 = vmatmul.mubr.f32.gmra.mxu0 %v7743
    %v7811 = vpop.f32.mrf.mxu0
    %v7812 = vadd.f32 %v7737, %v7811
    %v7813 = vpop.f32.mrf.mxu0
    %7814 = vdwg.mxu0
    %v7815 = vadd.f32 %v7812, %v1029
    %v7816 = vxor.u32 %v7815, 2147483648
    %v7817 = vmul.f32 %v7816, 1.442695
    %v7818 = vpow.pop %v7817
    %v7819 = vadd.f32 %v7818, 1.0
    %v7820 = vrcp.pop %v7819
    %v7821 = vmul.f32 1.0, %v7820
    %7823 = vrot.lane.b32.xlu0 %v7815, 32
    %v7824 = vpop.permute.xlu0 %7823
    %v7826 = vmul.f32 %v7821, %v7824
    %7828 = vrot.lane.b32.xlu0 %v7826, 64
    %v7829 = vpop.permute.xlu0 %7828
    %v7831 = vadd.f32 %v7815, %v7829
    %v7832 = vtanh.pop %v7831
    %v7833 = vsub.f32 1.0, %v7821
    %7835 = vrot.lane.b32.xlu0 %v7832, 96
    %v7836 = vpop.permute.xlu0 %7835
    %v7838 = vmul.f32 %v7833, %v7836
    %v7839 = vmul.f32 %v7821, %v7416
    %v7840 = vadd.f32 %v7838, %v7839
    %7841 = vset.pattern.permute.xlu0 10
    %7842 = vperm.xlu0 %7841, %v607
    %v7843 = vpop.permute.xlu0 %7842
    %vm7844 = vcmp.eq.s32.totalorder %v7843, %v140
    %v7845 = vsel %vm7844, 1, 0
    %v7846 = vcvt.s32.f32 %v7845
    %v7848 = vsel %vm155, %v7846, 0
    %7850 = vmatprep.subr.mxu0 0.0
    %7851 = vmatpush1.msra.mxu0 0.0
    %7852 = vmatprep.subr.mxu0 0.0
    %7853 = vmatpush1.msra.mxu0 0.0
    %7854 = vmatprep.subr.mxu0 0.0
    %7855 = vmatpush1.msra.mxu0 0.0
    %7856 = vmatprep.subr.mxu0 0.0
    %7857 = vmatpush1.msra.mxu0 0.0
    %7858 = vmatprep.subr.mxu0 0.0
    %7859 = vmatpush1.msra.mxu0 0.0
    %7860 = vmatprep.subr.mxu0 0.0
    %7861 = vmatpush1.msra.mxu0 0.0
    %7862 = vmatprep.subr.mxu0 0.0
    %7863 = vmatpush1.msra.mxu0 0.0
    %7864 = vmatprep.subr.mxu0 0.0
    %7865 = vmatpush1.msra.mxu0 0.0
    %7866 = vmatprep.subr.mxu0 0.0
    %7867 = vmatpush1.msra.mxu0 0.0
    %7868 = vmatprep.subr.mxu0 0.0
    %7869 = vmatpush1.msra.mxu0 %v161
    %7870 = vmatprep.subr.mxu0 0.0
    %7871 = vmatpush1.msra.mxu0 %v153
    %7872 = vmatprep.subr.mxu0 0.0
    %7873 = vmatpush1.msra.mxu0 %v152
    %7874 = vmatprep.subr.mxu0 0.0
    %7875 = vmatpush1.msra.mxu0 %v151
    %7876 = vmatprep.subr.mxu0 0.0
    %7877 = vmatpush1.msra.mxu0 %v150
    %7878 = vmatprep.subr.mxu0 0.0
    %7879 = vmatpush1.msra.mxu0 %v149
    %7880 = vmatprep.subr.mxu0 0.0
    %7881 = vmatpush1.msra.mxu0 %v148
    %7882 = vmatprep.subr.mxu0 0.0
    %7883 = vmatpush2.msra.mxu0 0.0
    %7884 = vmatprep.subr.mxu0 0.0
    %7885 = vmatpush2.msra.mxu0 0.0
    %7886 = vmatprep.subr.mxu0 0.0
    %7887 = vmatpush2.msra.mxu0 0.0
    %7888 = vmatprep.subr.mxu0 0.0
    %7889 = vmatpush2.msra.mxu0 0.0
    %7890 = vmatprep.subr.mxu0 0.0
    %7891 = vmatpush2.msra.mxu0 0.0
    %7892 = vmatprep.subr.mxu0 0.0
    %7893 = vmatpush2.msra.mxu0 0.0
    %7894 = vmatprep.subr.mxu0 0.0
    %7895 = vmatpush2.msra.mxu0 0.0
    %7896 = vmatprep.subr.mxu0 0.0
    %7897 = vmatpush2.msra.mxu0 0.0
    %7898 = vmatprep.subr.mxu0 0.0
    %7899 = vmatpush2.msra.mxu0 0.0
    %7900 = vmatprep.subr.mxu0 0.0
    %7901 = vmatpush2.msra.mxu0 0.0
    %7902 = vmatprep.subr.mxu0 0.0
    %7903 = vmatpush2.msra.mxu0 0.0
    %7904 = vmatprep.subr.mxu0 0.0
    %7905 = vmatpush2.msra.mxu0 0.0
    %7906 = vmatprep.subr.mxu0 0.0
    %7907 = vmatpush2.msra.mxu0 0.0
    %7908 = vmatprep.subr.mxu0 0.0
    %7909 = vmatpush2.msra.mxu0 0.0
    %7910 = vmatprep.subr.mxu0 0.0
    %7911 = vmatpush2.msra.mxu0 0.0
    %7912 = vmatprep.subr.mxu0 0.0
    %7913 = vmatpush2.msra.mxu0 0.0
    %7914 = vmatprep.mubr.f32.mxu0 0.0
    %7915 = vmatmul.mubr.f32.gmra.mxu0 %v7848
    %v7916 = vpop.f32.mrf.mxu0
    %v7917 = vadd.f32 0.0, %v7916
    %v7918 = vpop.f32.mrf.mxu0
    %7919 = vdwg.mxu0
    %7920 = vmatprep.subr.mxu0 0.0
    %7921 = vmatpush1.msra.mxu0 0.0
    %7922 = vmatprep.subr.mxu0 0.0
    %7923 = vmatpush1.msra.mxu0 0.0
    %7924 = vmatprep.subr.mxu0 0.0
    %7925 = vmatpush1.msra.mxu0 0.0
    %7926 = vmatprep.subr.mxu0 0.0
    %7927 = vmatpush1.msra.mxu0 0.0
    %7928 = vmatprep.subr.mxu0 0.0
    %7929 = vmatpush1.msra.mxu0 0.0
    %7930 = vmatprep.subr.mxu0 0.0
    %7931 = vmatpush1.msra.mxu0 0.0
    %7932 = vmatprep.subr.mxu0 0.0
    %7933 = vmatpush1.msra.mxu0 0.0
    %7934 = vmatprep.subr.mxu0 0.0
    %7935 = vmatpush1.msra.mxu0 0.0
    %7936 = vmatprep.subr.mxu0 0.0
    %7937 = vmatpush1.msra.mxu0 0.0
    %7938 = vmatprep.subr.mxu0 0.0
    %7939 = vmatpush1.msra.mxu0 0.0
    %7940 = vmatprep.subr.mxu0 0.0
    %7941 = vmatpush1.msra.mxu0 0.0
    %7942 = vmatprep.subr.mxu0 0.0
    %7943 = vmatpush1.msra.mxu0 0.0
    %7944 = vmatprep.subr.mxu0 0.0
    %7945 = vmatpush1.msra.mxu0 %v694
    %7946 = vmatprep.subr.mxu0 0.0
    %7947 = vmatpush1.msra.mxu0 %v693
    %7948 = vmatprep.subr.mxu0 0.0
    %7949 = vmatpush1.msra.mxu0 %v692
    %7950 = vmatprep.subr.mxu0 0.0
    %7951 = vmatpush1.msra.mxu0 %v691
    %7952 = vmatprep.subr.mxu0 0.0
    %7953 = vmatpush2.msra.mxu0 0.0
    %7954 = vmatprep.subr.mxu0 0.0
    %7955 = vmatpush2.msra.mxu0 0.0
    %7956 = vmatprep.subr.mxu0 0.0
    %7957 = vmatpush2.msra.mxu0 0.0
    %7958 = vmatprep.subr.mxu0 0.0
    %7959 = vmatpush2.msra.mxu0 0.0
    %7960 = vmatprep.subr.mxu0 0.0
    %7961 = vmatpush2.msra.mxu0 0.0
    %7962 = vmatprep.subr.mxu0 0.0
    %7963 = vmatpush2.msra.mxu0 0.0
    %7964 = vmatprep.subr.mxu0 0.0
    %7965 = vmatpush2.msra.mxu0 0.0
    %7966 = vmatprep.subr.mxu0 0.0
    %7967 = vmatpush2.msra.mxu0 0.0
    %7968 = vmatprep.subr.mxu0 0.0
    %7969 = vmatpush2.msra.mxu0 0.0
    %7970 = vmatprep.subr.mxu0 0.0
    %7971 = vmatpush2.msra.mxu0 0.0
    %7972 = vmatprep.subr.mxu0 0.0
    %7973 = vmatpush2.msra.mxu0 0.0
    %7974 = vmatprep.subr.mxu0 0.0
    %7975 = vmatpush2.msra.mxu0 0.0
    %7976 = vmatprep.subr.mxu0 0.0
    %7977 = vmatpush2.msra.mxu0 0.0
    %7978 = vmatprep.subr.mxu0 0.0
    %7979 = vmatpush2.msra.mxu0 0.0
    %7980 = vmatprep.subr.mxu0 0.0
    %7981 = vmatpush2.msra.mxu0 0.0
    %7982 = vmatprep.subr.mxu0 0.0
    %7983 = vmatpush2.msra.mxu0 0.0
    %7984 = vmatprep.mubr.f32.mxu0 0.0
    %7985 = vmatmul.mubr.f32.gmra.mxu0 %v7743
    %v7986 = vpop.f32.mrf.mxu0
    %v7987 = vadd.f32 0.0, %v7986
    %v7988 = vpop.f32.mrf.mxu0
    %7989 = vdwg.mxu0
    %v7991 = vsel %vm241, %v7917, 0
    %7993 = vmatprep.subr.mxu0 0.0
    %7994 = vmatpush1.msra.mxu0 0.0
    %7995 = vmatprep.subr.mxu0 0.0
    %7996 = vmatpush1.msra.mxu0 0.0
    %7997 = vmatprep.subr.mxu0 0.0
    %7998 = vmatpush1.msra.mxu0 0.0
    %7999 = vmatprep.subr.mxu0 0.0
    %8000 = vmatpush1.msra.mxu0 0.0
    %8001 = vmatprep.subr.mxu0 0.0
    %8002 = vmatpush1.msra.mxu0 0.0
    %8003 = vmatprep.subr.mxu0 0.0
    %8004 = vmatpush1.msra.mxu0 0.0
    %8005 = vmatprep.subr.mxu0 0.0
    %8006 = vmatpush1.msra.mxu0 0.0
    %8007 = vmatprep.subr.mxu0 0.0
    %8008 = vmatpush1.msra.mxu0 0.0
    %8009 = vmatprep.subr.mxu0 0.0
    %8010 = vmatpush1.msra.mxu0 0.0
    %8011 = vmatprep.subr.mxu0 0.0
    %8012 = vmatpush1.msra.mxu0 0.0
    %8013 = vmatprep.subr.mxu0 0.0
    %8014 = vmatpush1.msra.mxu0 0.0
    %8015 = vmatprep.subr.mxu0 0.0
    %8016 = vmatpush1.msra.mxu0 0.0
    %8017 = vmatprep.subr.mxu0 0.0
    %8018 = vmatpush1.msra.mxu0 %v690
    %8019 = vmatprep.subr.mxu0 0.0
    %8020 = vmatpush1.msra.mxu0 %v689
    %8021 = vmatprep.subr.mxu0 0.0
    %8022 = vmatpush1.msra.mxu0 %v688
    %8023 = vmatprep.subr.mxu0 0.0
    %8024 = vmatpush1.msra.mxu0 %v687
    %8025 = vmatprep.subr.mxu0 0.0
    %8026 = vmatpush2.msra.mxu0 0.0
    %8027 = vmatprep.subr.mxu0 0.0
    %8028 = vmatpush2.msra.mxu0 0.0
    %8029 = vmatprep.subr.mxu0 0.0
    %8030 = vmatpush2.msra.mxu0 0.0
    %8031 = vmatprep.subr.mxu0 0.0
    %8032 = vmatpush2.msra.mxu0 0.0
    %8033 = vmatprep.subr.mxu0 0.0
    %8034 = vmatpush2.msra.mxu0 0.0
    %8035 = vmatprep.subr.mxu0 0.0
    %8036 = vmatpush2.msra.mxu0 0.0
    %8037 = vmatprep.subr.mxu0 0.0
    %8038 = vmatpush2.msra.mxu0 0.0
    %8039 = vmatprep.subr.mxu0 0.0
    %8040 = vmatpush2.msra.mxu0 0.0
    %8041 = vmatprep.subr.mxu0 0.0
    %8042 = vmatpush2.msra.mxu0 0.0
    %8043 = vmatprep.subr.mxu0 0.0
    %8044 = vmatpush2.msra.mxu0 0.0
    %8045 = vmatprep.subr.mxu0 0.0
    %8046 = vmatpush2.msra.mxu0 0.0
    %8047 = vmatprep.subr.mxu0 0.0
    %8048 = vmatpush2.msra.mxu0 0.0
    %8049 = vmatprep.subr.mxu0 0.0
    %8050 = vmatpush2.msra.mxu0 0.0
    %8051 = vmatprep.subr.mxu0 0.0
    %8052 = vmatpush2.msra.mxu0 0.0
    %8053 = vmatprep.subr.mxu0 0.0
    %8054 = vmatpush2.msra.mxu0 0.0
    %8055 = vmatprep.subr.mxu0 0.0
    %8056 = vmatpush2.msra.mxu0 0.0
    %8057 = vmatprep.mubr.f32.mxu0 0.0
    %8058 = vmatmul.mubr.f32.gmra.mxu0 %v7991
    %v8059 = vpop.f32.mrf.mxu0
    %v8060 = vadd.f32 %v7987, %v8059
    %v8061 = vpop.f32.mrf.mxu0
    %8062 = vdwg.mxu0
    %v8063 = vadd.f32 %v8060, %v843
    %v8064 = vxor.u32 %v8063, 2147483648
    %v8065 = vmul.f32 %v8064, 1.442695
    %v8066 = vpow.pop %v8065
    %v8067 = vadd.f32 %v8066, 1.0
    %v8068 = vrcp.pop %v8067
    %v8069 = vmul.f32 1.0, %v8068
    %8071 = vrot.lane.b32.xlu0 %v8063, 32
    %v8072 = vpop.permute.xlu0 %8071
    %v8074 = vmul.f32 %v8069, %v8072
    %8076 = vrot.lane.b32.xlu0 %v8074, 64
    %v8077 = vpop.permute.xlu0 %8076
    %v8079 = vadd.f32 %v8063, %v8077
    %v8080 = vtanh.pop %v8079
    %v8081 = vsub.f32 1.0, %v8069
    %8083 = vrot.lane.b32.xlu0 %v8080, 96
    %v8084 = vpop.permute.xlu0 %8083
    %v8086 = vmul.f32 %v8081, %v8084
    %v8087 = vmul.f32 %v8069, %v7664
    %v8088 = vadd.f32 %v8086, %v8087
    %8090 = vrot.lane.b32.xlu0 %v7840, 96
    %v8091 = vpop.permute.xlu0 %8090
    %v8092 = vsel %vm241, %v8091, 0
    %8094 = vmatprep.subr.mxu0 0.0
    %8095 = vmatpush1.msra.mxu0 0.0
    %8096 = vmatprep.subr.mxu0 0.0
    %8097 = vmatpush1.msra.mxu0 0.0
    %8098 = vmatprep.subr.mxu0 0.0
    %8099 = vmatpush1.msra.mxu0 0.0
    %8100 = vmatprep.subr.mxu0 0.0
    %8101 = vmatpush1.msra.mxu0 0.0
    %8102 = vmatprep.subr.mxu0 0.0
    %8103 = vmatpush1.msra.mxu0 0.0
    %8104 = vmatprep.subr.mxu0 0.0
    %8105 = vmatpush1.msra.mxu0 0.0
    %8106 = vmatprep.subr.mxu0 0.0
    %8107 = vmatpush1.msra.mxu0 0.0
    %8108 = vmatprep.subr.mxu0 0.0
    %8109 = vmatpush1.msra.mxu0 0.0
    %8110 = vmatprep.subr.mxu0 0.0
    %8111 = vmatpush1.msra.mxu0 0.0
    %8112 = vmatprep.subr.mxu0 0.0
    %8113 = vmatpush1.msra.mxu0 0.0
    %8114 = vmatprep.subr.mxu0 0.0
    %8115 = vmatpush1.msra.mxu0 0.0
    %8116 = vmatprep.subr.mxu0 0.0
    %8117 = vmatpush1.msra.mxu0 0.0
    %8118 = vmatprep.subr.mxu0 0.0
    %8119 = vmatpush1.msra.mxu0 %v878
    %8120 = vmatprep.subr.mxu0 0.0
    %8121 = vmatpush1.msra.mxu0 %v877
    %8122 = vmatprep.subr.mxu0 0.0
    %8123 = vmatpush1.msra.mxu0 %v876
    %8124 = vmatprep.subr.mxu0 0.0
    %8125 = vmatpush1.msra.mxu0 %v875
    %8126 = vmatprep.subr.mxu0 0.0
    %8127 = vmatpush2.msra.mxu0 0.0
    %8128 = vmatprep.subr.mxu0 0.0
    %8129 = vmatpush2.msra.mxu0 0.0
    %8130 = vmatprep.subr.mxu0 0.0
    %8131 = vmatpush2.msra.mxu0 0.0
    %8132 = vmatprep.subr.mxu0 0.0
    %8133 = vmatpush2.msra.mxu0 0.0
    %8134 = vmatprep.subr.mxu0 0.0
    %8135 = vmatpush2.msra.mxu0 0.0
    %8136 = vmatprep.subr.mxu0 0.0
    %8137 = vmatpush2.msra.mxu0 0.0
    %8138 = vmatprep.subr.mxu0 0.0
    %8139 = vmatpush2.msra.mxu0 0.0
    %8140 = vmatprep.subr.mxu0 0.0
    %8141 = vmatpush2.msra.mxu0 0.0
    %8142 = vmatprep.subr.mxu0 0.0
    %8143 = vmatpush2.msra.mxu0 0.0
    %8144 = vmatprep.subr.mxu0 0.0
    %8145 = vmatpush2.msra.mxu0 0.0
    %8146 = vmatprep.subr.mxu0 0.0
    %8147 = vmatpush2.msra.mxu0 0.0
    %8148 = vmatprep.subr.mxu0 0.0
    %8149 = vmatpush2.msra.mxu0 0.0
    %8150 = vmatprep.subr.mxu0 0.0
    %8151 = vmatpush2.msra.mxu0 0.0
    %8152 = vmatprep.subr.mxu0 0.0
    %8153 = vmatpush2.msra.mxu0 0.0
    %8154 = vmatprep.subr.mxu0 0.0
    %8155 = vmatpush2.msra.mxu0 0.0
    %8156 = vmatprep.subr.mxu0 0.0
    %8157 = vmatpush2.msra.mxu0 0.0
    %8158 = vmatprep.mubr.f32.mxu0 0.0
    %8159 = vmatmul.mubr.f32.gmra.mxu0 %v8092
    %v8160 = vpop.f32.mrf.mxu0
    %v8161 = vadd.f32 0.0, %v8160
    %v8162 = vpop.f32.mrf.mxu0
    %8163 = vdwg.mxu0
    %8165 = vrot.lane.b32.xlu0 %v8088, 96
    %v8166 = vpop.permute.xlu0 %8165
    %v8167 = vsel %vm241, %v8166, 0
    %8169 = vmatprep.subr.mxu0 0.0
    %8170 = vmatpush1.msra.mxu0 0.0
    %8171 = vmatprep.subr.mxu0 0.0
    %8172 = vmatpush1.msra.mxu0 0.0
    %8173 = vmatprep.subr.mxu0 0.0
    %8174 = vmatpush1.msra.mxu0 0.0
    %8175 = vmatprep.subr.mxu0 0.0
    %8176 = vmatpush1.msra.mxu0 0.0
    %8177 = vmatprep.subr.mxu0 0.0
    %8178 = vmatpush1.msra.mxu0 0.0
    %8179 = vmatprep.subr.mxu0 0.0
    %8180 = vmatpush1.msra.mxu0 0.0
    %8181 = vmatprep.subr.mxu0 0.0
    %8182 = vmatpush1.msra.mxu0 0.0
    %8183 = vmatprep.subr.mxu0 0.0
    %8184 = vmatpush1.msra.mxu0 0.0
    %8185 = vmatprep.subr.mxu0 0.0
    %8186 = vmatpush1.msra.mxu0 0.0
    %8187 = vmatprep.subr.mxu0 0.0
    %8188 = vmatpush1.msra.mxu0 0.0
    %8189 = vmatprep.subr.mxu0 0.0
    %8190 = vmatpush1.msra.mxu0 0.0
    %8191 = vmatprep.subr.mxu0 0.0
    %8192 = vmatpush1.msra.mxu0 0.0
    %8193 = vmatprep.subr.mxu0 0.0
    %8194 = vmatpush1.msra.mxu0 %v874
    %8195 = vmatprep.subr.mxu0 0.0
    %8196 = vmatpush1.msra.mxu0 %v873
    %8197 = vmatprep.subr.mxu0 0.0
    %8198 = vmatpush1.msra.mxu0 %v872
    %8199 = vmatprep.subr.mxu0 0.0
    %8200 = vmatpush1.msra.mxu0 %v871
    %8201 = vmatprep.subr.mxu0 0.0
    %8202 = vmatpush2.msra.mxu0 0.0
    %8203 = vmatprep.subr.mxu0 0.0
    %8204 = vmatpush2.msra.mxu0 0.0
    %8205 = vmatprep.subr.mxu0 0.0
    %8206 = vmatpush2.msra.mxu0 0.0
    %8207 = vmatprep.subr.mxu0 0.0
    %8208 = vmatpush2.msra.mxu0 0.0
    %8209 = vmatprep.subr.mxu0 0.0
    %8210 = vmatpush2.msra.mxu0 0.0
    %8211 = vmatprep.subr.mxu0 0.0
    %8212 = vmatpush2.msra.mxu0 0.0
    %8213 = vmatprep.subr.mxu0 0.0
    %8214 = vmatpush2.msra.mxu0 0.0
    %8215 = vmatprep.subr.mxu0 0.0
    %8216 = vmatpush2.msra.mxu0 0.0
    %8217 = vmatprep.subr.mxu0 0.0
    %8218 = vmatpush2.msra.mxu0 0.0
    %8219 = vmatprep.subr.mxu0 0.0
    %8220 = vmatpush2.msra.mxu0 0.0
    %8221 = vmatprep.subr.mxu0 0.0
    %8222 = vmatpush2.msra.mxu0 0.0
    %8223 = vmatprep.subr.mxu0 0.0
    %8224 = vmatpush2.msra.mxu0 0.0
    %8225 = vmatprep.subr.mxu0 0.0
    %8226 = vmatpush2.msra.mxu0 0.0
    %8227 = vmatprep.subr.mxu0 0.0
    %8228 = vmatpush2.msra.mxu0 0.0
    %8229 = vmatprep.subr.mxu0 0.0
    %8230 = vmatpush2.msra.mxu0 0.0
    %8231 = vmatprep.subr.mxu0 0.0
    %8232 = vmatpush2.msra.mxu0 0.0
    %8233 = vmatprep.mubr.f32.mxu0 0.0
    %8234 = vmatmul.mubr.f32.gmra.mxu0 %v8167
    %v8235 = vpop.f32.mrf.mxu0
    %v8236 = vadd.f32 %v8161, %v8235
    %v8237 = vpop.f32.mrf.mxu0
    %8238 = vdwg.mxu0
    %v8239 = vadd.f32 %v8236, %v1029
    %v8240 = vxor.u32 %v8239, 2147483648
    %v8241 = vmul.f32 %v8240, 1.442695
    %v8242 = vpow.pop %v8241
    %v8243 = vadd.f32 %v8242, 1.0
    %v8244 = vrcp.pop %v8243
    %v8245 = vmul.f32 1.0, %v8244
    %8247 = vrot.lane.b32.xlu0 %v8239, 32
    %v8248 = vpop.permute.xlu0 %8247
    %v8250 = vmul.f32 %v8245, %v8248
    %8252 = vrot.lane.b32.xlu0 %v8250, 64
    %v8253 = vpop.permute.xlu0 %8252
    %v8255 = vadd.f32 %v8239, %v8253
    %v8256 = vtanh.pop %v8255
    %v8257 = vsub.f32 1.0, %v8245
    %8259 = vrot.lane.b32.xlu0 %v8256, 96
    %v8260 = vpop.permute.xlu0 %8259
    %v8262 = vmul.f32 %v8257, %v8260
    %v8263 = vmul.f32 %v8245, %v7840
    %v8264 = vadd.f32 %v8262, %v8263
    %8265 = vset.pattern.permute.xlu0 11
    %8266 = vperm.xlu0 %8265, %v607
    %v8267 = vpop.permute.xlu0 %8266
    %vm8268 = vcmp.eq.s32.totalorder %v8267, %v140
    %v8269 = vsel %vm8268, 1, 0
    %v8270 = vcvt.s32.f32 %v8269
    %v8272 = vsel %vm155, %v8270, 0
    %8274 = vmatprep.subr.mxu0 0.0
    %8275 = vmatpush1.msra.mxu0 0.0
    %8276 = vmatprep.subr.mxu0 0.0
    %8277 = vmatpush1.msra.mxu0 0.0
    %8278 = vmatprep.subr.mxu0 0.0
    %8279 = vmatpush1.msra.mxu0 0.0
    %8280 = vmatprep.subr.mxu0 0.0
    %8281 = vmatpush1.msra.mxu0 0.0
    %8282 = vmatprep.subr.mxu0 0.0
    %8283 = vmatpush1.msra.mxu0 0.0
    %8284 = vmatprep.subr.mxu0 0.0
    %8285 = vmatpush1.msra.mxu0 0.0
    %8286 = vmatprep.subr.mxu0 0.0
    %8287 = vmatpush1.msra.mxu0 0.0
    %8288 = vmatprep.subr.mxu0 0.0
    %8289 = vmatpush1.msra.mxu0 0.0
    %8290 = vmatprep.subr.mxu0 0.0
    %8291 = vmatpush1.msra.mxu0 0.0
    %8292 = vmatprep.subr.mxu0 0.0
    %8293 = vmatpush1.msra.mxu0 %v161
    %8294 = vmatprep.subr.mxu0 0.0
    %8295 = vmatpush1.msra.mxu0 %v153
    %8296 = vmatprep.subr.mxu0 0.0
    %8297 = vmatpush1.msra.mxu0 %v152
    %8298 = vmatprep.subr.mxu0 0.0
    %8299 = vmatpush1.msra.mxu0 %v151
    %8300 = vmatprep.subr.mxu0 0.0
    %8301 = vmatpush1.msra.mxu0 %v150
    %8302 = vmatprep.subr.mxu0 0.0
    %8303 = vmatpush1.msra.mxu0 %v149
    %8304 = vmatprep.subr.mxu0 0.0
    %8305 = vmatpush1.msra.mxu0 %v148
    %8306 = vmatprep.subr.mxu0 0.0
    %8307 = vmatpush2.msra.mxu0 0.0
    %8308 = vmatprep.subr.mxu0 0.0
    %8309 = vmatpush2.msra.mxu0 0.0
    %8310 = vmatprep.subr.mxu0 0.0
    %8311 = vmatpush2.msra.mxu0 0.0
    %8312 = vmatprep.subr.mxu0 0.0
    %8313 = vmatpush2.msra.mxu0 0.0
    %8314 = vmatprep.subr.mxu0 0.0
    %8315 = vmatpush2.msra.mxu0 0.0
    %8316 = vmatprep.subr.mxu0 0.0
    %8317 = vmatpush2.msra.mxu0 0.0
    %8318 = vmatprep.subr.mxu0 0.0
    %8319 = vmatpush2.msra.mxu0 0.0
    %8320 = vmatprep.subr.mxu0 0.0
    %8321 = vmatpush2.msra.mxu0 0.0
    %8322 = vmatprep.subr.mxu0 0.0
    %8323 = vmatpush2.msra.mxu0 0.0
    %8324 = vmatprep.subr.mxu0 0.0
    %8325 = vmatpush2.msra.mxu0 0.0
    %8326 = vmatprep.subr.mxu0 0.0
    %8327 = vmatpush2.msra.mxu0 0.0
    %8328 = vmatprep.subr.mxu0 0.0
    %8329 = vmatpush2.msra.mxu0 0.0
    %8330 = vmatprep.subr.mxu0 0.0
    %8331 = vmatpush2.msra.mxu0 0.0
    %8332 = vmatprep.subr.mxu0 0.0
    %8333 = vmatpush2.msra.mxu0 0.0
    %8334 = vmatprep.subr.mxu0 0.0
    %8335 = vmatpush2.msra.mxu0 0.0
    %8336 = vmatprep.subr.mxu0 0.0
    %8337 = vmatpush2.msra.mxu0 0.0
    %8338 = vmatprep.mubr.f32.mxu0 0.0
    %8339 = vmatmul.mubr.f32.gmra.mxu0 %v8272
    %v8340 = vpop.f32.mrf.mxu0
    %v8341 = vadd.f32 0.0, %v8340
    %v8342 = vpop.f32.mrf.mxu0
    %8343 = vdwg.mxu0
    %8344 = vmatprep.subr.mxu0 0.0
    %8345 = vmatpush1.msra.mxu0 0.0
    %8346 = vmatprep.subr.mxu0 0.0
    %8347 = vmatpush1.msra.mxu0 0.0
    %8348 = vmatprep.subr.mxu0 0.0
    %8349 = vmatpush1.msra.mxu0 0.0
    %8350 = vmatprep.subr.mxu0 0.0
    %8351 = vmatpush1.msra.mxu0 0.0
    %8352 = vmatprep.subr.mxu0 0.0
    %8353 = vmatpush1.msra.mxu0 0.0
    %8354 = vmatprep.subr.mxu0 0.0
    %8355 = vmatpush1.msra.mxu0 0.0
    %8356 = vmatprep.subr.mxu0 0.0
    %8357 = vmatpush1.msra.mxu0 0.0
    %8358 = vmatprep.subr.mxu0 0.0
    %8359 = vmatpush1.msra.mxu0 0.0
    %8360 = vmatprep.subr.mxu0 0.0
    %8361 = vmatpush1.msra.mxu0 0.0
    %8362 = vmatprep.subr.mxu0 0.0
    %8363 = vmatpush1.msra.mxu0 0.0
    %8364 = vmatprep.subr.mxu0 0.0
    %8365 = vmatpush1.msra.mxu0 0.0
    %8366 = vmatprep.subr.mxu0 0.0
    %8367 = vmatpush1.msra.mxu0 0.0
    %8368 = vmatprep.subr.mxu0 0.0
    %8369 = vmatpush1.msra.mxu0 %v694
    %8370 = vmatprep.subr.mxu0 0.0
    %8371 = vmatpush1.msra.mxu0 %v693
    %8372 = vmatprep.subr.mxu0 0.0
    %8373 = vmatpush1.msra.mxu0 %v692
    %8374 = vmatprep.subr.mxu0 0.0
    %8375 = vmatpush1.msra.mxu0 %v691
    %8376 = vmatprep.subr.mxu0 0.0
    %8377 = vmatpush2.msra.mxu0 0.0
    %8378 = vmatprep.subr.mxu0 0.0
    %8379 = vmatpush2.msra.mxu0 0.0
    %8380 = vmatprep.subr.mxu0 0.0
    %8381 = vmatpush2.msra.mxu0 0.0
    %8382 = vmatprep.subr.mxu0 0.0
    %8383 = vmatpush2.msra.mxu0 0.0
    %8384 = vmatprep.subr.mxu0 0.0
    %8385 = vmatpush2.msra.mxu0 0.0
    %8386 = vmatprep.subr.mxu0 0.0
    %8387 = vmatpush2.msra.mxu0 0.0
    %8388 = vmatprep.subr.mxu0 0.0
    %8389 = vmatpush2.msra.mxu0 0.0
    %8390 = vmatprep.subr.mxu0 0.0
    %8391 = vmatpush2.msra.mxu0 0.0
    %8392 = vmatprep.subr.mxu0 0.0
    %8393 = vmatpush2.msra.mxu0 0.0
    %8394 = vmatprep.subr.mxu0 0.0
    %8395 = vmatpush2.msra.mxu0 0.0
    %8396 = vmatprep.subr.mxu0 0.0
    %8397 = vmatpush2.msra.mxu0 0.0
    %8398 = vmatprep.subr.mxu0 0.0
    %8399 = vmatpush2.msra.mxu0 0.0
    %8400 = vmatprep.subr.mxu0 0.0
    %8401 = vmatpush2.msra.mxu0 0.0
    %8402 = vmatprep.subr.mxu0 0.0
    %8403 = vmatpush2.msra.mxu0 0.0
    %8404 = vmatprep.subr.mxu0 0.0
    %8405 = vmatpush2.msra.mxu0 0.0
    %8406 = vmatprep.subr.mxu0 0.0
    %8407 = vmatpush2.msra.mxu0 0.0
    %8408 = vmatprep.mubr.f32.mxu0 0.0
    %8409 = vmatmul.mubr.f32.gmra.mxu0 %v8167
    %v8410 = vpop.f32.mrf.mxu0
    %v8411 = vadd.f32 0.0, %v8410
    %v8412 = vpop.f32.mrf.mxu0
    %8413 = vdwg.mxu0
    %v8415 = vsel %vm241, %v8341, 0
    %8417 = vmatprep.subr.mxu0 0.0
    %8418 = vmatpush1.msra.mxu0 0.0
    %8419 = vmatprep.subr.mxu0 0.0
    %8420 = vmatpush1.msra.mxu0 0.0
    %8421 = vmatprep.subr.mxu0 0.0
    %8422 = vmatpush1.msra.mxu0 0.0
    %8423 = vmatprep.subr.mxu0 0.0
    %8424 = vmatpush1.msra.mxu0 0.0
    %8425 = vmatprep.subr.mxu0 0.0
    %8426 = vmatpush1.msra.mxu0 0.0
    %8427 = vmatprep.subr.mxu0 0.0
    %8428 = vmatpush1.msra.mxu0 0.0
    %8429 = vmatprep.subr.mxu0 0.0
    %8430 = vmatpush1.msra.mxu0 0.0
    %8431 = vmatprep.subr.mxu0 0.0
    %8432 = vmatpush1.msra.mxu0 0.0
    %8433 = vmatprep.subr.mxu0 0.0
    %8434 = vmatpush1.msra.mxu0 0.0
    %8435 = vmatprep.subr.mxu0 0.0
    %8436 = vmatpush1.msra.mxu0 0.0
    %8437 = vmatprep.subr.mxu0 0.0
    %8438 = vmatpush1.msra.mxu0 0.0
    %8439 = vmatprep.subr.mxu0 0.0
    %8440 = vmatpush1.msra.mxu0 0.0
    %8441 = vmatprep.subr.mxu0 0.0
    %8442 = vmatpush1.msra.mxu0 %v690
    %8443 = vmatprep.subr.mxu0 0.0
    %8444 = vmatpush1.msra.mxu0 %v689
    %8445 = vmatprep.subr.mxu0 0.0
    %8446 = vmatpush1.msra.mxu0 %v688
    %8447 = vmatprep.subr.mxu0 0.0
    %8448 = vmatpush1.msra.mxu0 %v687
    %8449 = vmatprep.subr.mxu0 0.0
    %8450 = vmatpush2.msra.mxu0 0.0
    %8451 = vmatprep.subr.mxu0 0.0
    %8452 = vmatpush2.msra.mxu0 0.0
    %8453 = vmatprep.subr.mxu0 0.0
    %8454 = vmatpush2.msra.mxu0 0.0
    %8455 = vmatprep.subr.mxu0 0.0
    %8456 = vmatpush2.msra.mxu0 0.0
    %8457 = vmatprep.subr.mxu0 0.0
    %8458 = vmatpush2.msra.mxu0 0.0
    %8459 = vmatprep.subr.mxu0 0.0
    %8460 = vmatpush2.msra.mxu0 0.0
    %8461 = vmatprep.subr.mxu0 0.0
    %8462 = vmatpush2.msra.mxu0 0.0
    %8463 = vmatprep.subr.mxu0 0.0
    %8464 = vmatpush2.msra.mxu0 0.0
    %8465 = vmatprep.subr.mxu0 0.0
    %8466 = vmatpush2.msra.mxu0 0.0
    %8467 = vmatprep.subr.mxu0 0.0
    %8468 = vmatpush2.msra.mxu0 0.0
    %8469 = vmatprep.subr.mxu0 0.0
    %8470 = vmatpush2.msra.mxu0 0.0
    %8471 = vmatprep.subr.mxu0 0.0
    %8472 = vmatpush2.msra.mxu0 0.0
    %8473 = vmatprep.subr.mxu0 0.0
    %8474 = vmatpush2.msra.mxu0 0.0
    %8475 = vmatprep.subr.mxu0 0.0
    %8476 = vmatpush2.msra.mxu0 0.0
    %8477 = vmatprep.subr.mxu0 0.0
    %8478 = vmatpush2.msra.mxu0 0.0
    %8479 = vmatprep.subr.mxu0 0.0
    %8480 = vmatpush2.msra.mxu0 0.0
    %8481 = vmatprep.mubr.f32.mxu0 0.0
    %8482 = vmatmul.mubr.f32.gmra.mxu0 %v8415
    %v8483 = vpop.f32.mrf.mxu0
    %v8484 = vadd.f32 %v8411, %v8483
    %v8485 = vpop.f32.mrf.mxu0
    %8486 = vdwg.mxu0
    %v8487 = vadd.f32 %v8484, %v843
    %v8488 = vxor.u32 %v8487, 2147483648
    %v8489 = vmul.f32 %v8488, 1.442695
    %v8490 = vpow.pop %v8489
    %v8491 = vadd.f32 %v8490, 1.0
    %v8492 = vrcp.pop %v8491
    %v8493 = vmul.f32 1.0, %v8492
    %8495 = vrot.lane.b32.xlu0 %v8487, 32
    %v8496 = vpop.permute.xlu0 %8495
    %v8498 = vmul.f32 %v8493, %v8496
    %8500 = vrot.lane.b32.xlu0 %v8498, 64
    %v8501 = vpop.permute.xlu0 %8500
    %v8503 = vadd.f32 %v8487, %v8501
    %v8504 = vtanh.pop %v8503
    %v8505 = vsub.f32 1.0, %v8493
    %8507 = vrot.lane.b32.xlu0 %v8504, 96
    %v8508 = vpop.permute.xlu0 %8507
    %v8510 = vmul.f32 %v8505, %v8508
    %v8511 = vmul.f32 %v8493, %v8088
    %v8512 = vadd.f32 %v8510, %v8511
    %8514 = vrot.lane.b32.xlu0 %v8264, 96
    %v8515 = vpop.permute.xlu0 %8514
    %v8516 = vsel %vm241, %v8515, 0
    %8518 = vmatprep.subr.mxu0 0.0
    %8519 = vmatpush1.msra.mxu0 0.0
    %8520 = vmatprep.subr.mxu0 0.0
    %8521 = vmatpush1.msra.mxu0 0.0
    %8522 = vmatprep.subr.mxu0 0.0
    %8523 = vmatpush1.msra.mxu0 0.0
    %8524 = vmatprep.subr.mxu0 0.0
    %8525 = vmatpush1.msra.mxu0 0.0
    %8526 = vmatprep.subr.mxu0 0.0
    %8527 = vmatpush1.msra.mxu0 0.0
    %8528 = vmatprep.subr.mxu0 0.0
    %8529 = vmatpush1.msra.mxu0 0.0
    %8530 = vmatprep.subr.mxu0 0.0
    %8531 = vmatpush1.msra.mxu0 0.0
    %8532 = vmatprep.subr.mxu0 0.0
    %8533 = vmatpush1.msra.mxu0 0.0
    %8534 = vmatprep.subr.mxu0 0.0
    %8535 = vmatpush1.msra.mxu0 0.0
    %8536 = vmatprep.subr.mxu0 0.0
    %8537 = vmatpush1.msra.mxu0 0.0
    %8538 = vmatprep.subr.mxu0 0.0
    %8539 = vmatpush1.msra.mxu0 0.0
    %8540 = vmatprep.subr.mxu0 0.0
    %8541 = vmatpush1.msra.mxu0 0.0
    %8542 = vmatprep.subr.mxu0 0.0
    %8543 = vmatpush1.msra.mxu0 %v878
    %8544 = vmatprep.subr.mxu0 0.0
    %8545 = vmatpush1.msra.mxu0 %v877
    %8546 = vmatprep.subr.mxu0 0.0
    %8547 = vmatpush1.msra.mxu0 %v876
    %8548 = vmatprep.subr.mxu0 0.0
    %8549 = vmatpush1.msra.mxu0 %v875
    %8550 = vmatprep.subr.mxu0 0.0
    %8551 = vmatpush2.msra.mxu0 0.0
    %8552 = vmatprep.subr.mxu0 0.0
    %8553 = vmatpush2.msra.mxu0 0.0
    %8554 = vmatprep.subr.mxu0 0.0
    %8555 = vmatpush2.msra.mxu0 0.0
    %8556 = vmatprep.subr.mxu0 0.0
    %8557 = vmatpush2.msra.mxu0 0.0
    %8558 = vmatprep.subr.mxu0 0.0
    %8559 = vmatpush2.msra.mxu0 0.0
    %8560 = vmatprep.subr.mxu0 0.0
    %8561 = vmatpush2.msra.mxu0 0.0
    %8562 = vmatprep.subr.mxu0 0.0
    %8563 = vmatpush2.msra.mxu0 0.0
    %8564 = vmatprep.subr.mxu0 0.0
    %8565 = vmatpush2.msra.mxu0 0.0
    %8566 = vmatprep.subr.mxu0 0.0
    %8567 = vmatpush2.msra.mxu0 0.0
    %8568 = vmatprep.subr.mxu0 0.0
    %8569 = vmatpush2.msra.mxu0 0.0
    %8570 = vmatprep.subr.mxu0 0.0
    %8571 = vmatpush2.msra.mxu0 0.0
    %8572 = vmatprep.subr.mxu0 0.0
    %8573 = vmatpush2.msra.mxu0 0.0
    %8574 = vmatprep.subr.mxu0 0.0
    %8575 = vmatpush2.msra.mxu0 0.0
    %8576 = vmatprep.subr.mxu0 0.0
    %8577 = vmatpush2.msra.mxu0 0.0
    %8578 = vmatprep.subr.mxu0 0.0
    %8579 = vmatpush2.msra.mxu0 0.0
    %8580 = vmatprep.subr.mxu0 0.0
    %8581 = vmatpush2.msra.mxu0 0.0
    %8582 = vmatprep.mubr.f32.mxu0 0.0
    %8583 = vmatmul.mubr.f32.gmra.mxu0 %v8516
    %v8584 = vpop.f32.mrf.mxu0
    %v8585 = vadd.f32 0.0, %v8584
    %v8586 = vpop.f32.mrf.mxu0
    %8587 = vdwg.mxu0
    %8589 = vrot.lane.b32.xlu0 %v8512, 96
    %v8590 = vpop.permute.xlu0 %8589
    %v8591 = vsel %vm241, %v8590, 0
    %8593 = vmatprep.subr.mxu0 0.0
    %8594 = vmatpush1.msra.mxu0 0.0
    %8595 = vmatprep.subr.mxu0 0.0
    %8596 = vmatpush1.msra.mxu0 0.0
    %8597 = vmatprep.subr.mxu0 0.0
    %8598 = vmatpush1.msra.mxu0 0.0
    %8599 = vmatprep.subr.mxu0 0.0
    %8600 = vmatpush1.msra.mxu0 0.0
    %8601 = vmatprep.subr.mxu0 0.0
    %8602 = vmatpush1.msra.mxu0 0.0
    %8603 = vmatprep.subr.mxu0 0.0
    %8604 = vmatpush1.msra.mxu0 0.0
    %8605 = vmatprep.subr.mxu0 0.0
    %8606 = vmatpush1.msra.mxu0 0.0
    %8607 = vmatprep.subr.mxu0 0.0
    %8608 = vmatpush1.msra.mxu0 0.0
    %8609 = vmatprep.subr.mxu0 0.0
    %8610 = vmatpush1.msra.mxu0 0.0
    %8611 = vmatprep.subr.mxu0 0.0
    %8612 = vmatpush1.msra.mxu0 0.0
    %8613 = vmatprep.subr.mxu0 0.0
    %8614 = vmatpush1.msra.mxu0 0.0
    %8615 = vmatprep.subr.mxu0 0.0
    %8616 = vmatpush1.msra.mxu0 0.0
    %8617 = vmatprep.subr.mxu0 0.0
    %8618 = vmatpush1.msra.mxu0 %v874
    %8619 = vmatprep.subr.mxu0 0.0
    %8620 = vmatpush1.msra.mxu0 %v873
    %8621 = vmatprep.subr.mxu0 0.0
    %8622 = vmatpush1.msra.mxu0 %v872
    %8623 = vmatprep.subr.mxu0 0.0
    %8624 = vmatpush1.msra.mxu0 %v871
    %8625 = vmatprep.subr.mxu0 0.0
    %8626 = vmatpush2.msra.mxu0 0.0
    %8627 = vmatprep.subr.mxu0 0.0
    %8628 = vmatpush2.msra.mxu0 0.0
    %8629 = vmatprep.subr.mxu0 0.0
    %8630 = vmatpush2.msra.mxu0 0.0
    %8631 = vmatprep.subr.mxu0 0.0
    %8632 = vmatpush2.msra.mxu0 0.0
    %8633 = vmatprep.subr.mxu0 0.0
    %8634 = vmatpush2.msra.mxu0 0.0
    %8635 = vmatprep.subr.mxu0 0.0
    %8636 = vmatpush2.msra.mxu0 0.0
    %8637 = vmatprep.subr.mxu0 0.0
    %8638 = vmatpush2.msra.mxu0 0.0
    %8639 = vmatprep.subr.mxu0 0.0
    %8640 = vmatpush2.msra.mxu0 0.0
    %8641 = vmatprep.subr.mxu0 0.0
    %8642 = vmatpush2.msra.mxu0 0.0
    %8643 = vmatprep.subr.mxu0 0.0
    %8644 = vmatpush2.msra.mxu0 0.0
    %8645 = vmatprep.subr.mxu0 0.0
    %8646 = vmatpush2.msra.mxu0 0.0
    %8647 = vmatprep.subr.mxu0 0.0
    %8648 = vmatpush2.msra.mxu0 0.0
    %8649 = vmatprep.subr.mxu0 0.0
    %8650 = vmatpush2.msra.mxu0 0.0
    %8651 = vmatprep.subr.mxu0 0.0
    %8652 = vmatpush2.msra.mxu0 0.0
    %8653 = vmatprep.subr.mxu0 0.0
    %8654 = vmatpush2.msra.mxu0 0.0
    %8655 = vmatprep.subr.mxu0 0.0
    %8656 = vmatpush2.msra.mxu0 0.0
    %8657 = vmatprep.mubr.f32.mxu0 0.0
    %8658 = vmatmul.mubr.f32.gmra.mxu0 %v8591
    %v8659 = vpop.f32.mrf.mxu0
    %v8660 = vadd.f32 %v8585, %v8659
    %v8661 = vpop.f32.mrf.mxu0
    %8662 = vdwg.mxu0
    %v8663 = vadd.f32 %v8660, %v1029
    %v8664 = vxor.u32 %v8663, 2147483648
    %v8665 = vmul.f32 %v8664, 1.442695
    %v8666 = vpow.pop %v8665
    %v8667 = vadd.f32 %v8666, 1.0
    %v8668 = vrcp.pop %v8667
    %v8669 = vmul.f32 1.0, %v8668
    %8671 = vrot.lane.b32.xlu0 %v8663, 32
    %v8672 = vpop.permute.xlu0 %8671
    %v8674 = vmul.f32 %v8669, %v8672
    %8676 = vrot.lane.b32.xlu0 %v8674, 64
    %v8677 = vpop.permute.xlu0 %8676
    %v8679 = vadd.f32 %v8663, %v8677
    %v8680 = vtanh.pop %v8679
    %v8681 = vsub.f32 1.0, %v8669
    %8683 = vrot.lane.b32.xlu0 %v8680, 96
    %v8684 = vpop.permute.xlu0 %8683
    %v8686 = vmul.f32 %v8681, %v8684
    %v8687 = vmul.f32 %v8669, %v8264
    %v8688 = vadd.f32 %v8686, %v8687
    %v8689 = vld [vmem:[%s15] sm:$0xff]
    %v8690 = vld [vmem:[%s15 + $0x8] sm:$0xff]
    %v8691 = vld [vmem:[%s15 + $0x10] sm:$0xff]
    %v8692 = vld [vmem:[%s15 + $0x18] sm:$0xff]
    %v8693 = vld [vmem:[%s16] sm:$0xff]
    %v8694 = vld [vmem:[%s16 + $0x8] sm:$0xff]
    %v8695 = vld [vmem:[%s16 + $0x10] sm:$0xff]
    %v8696 = vld [vmem:[%s16 + $0x18] sm:$0xff]
    %8698 = vrot.lane.b32.xlu0 %v8688, 96
    %v8699 = vpop.permute.xlu0 %8698
    %v8700 = vsel %vm241, %v8699, 0
    %8702 = vmatprep.subr.mxu0 0.0
    %8703 = vmatpush1.msra.mxu0 0.0
    %8704 = vmatprep.subr.mxu0 0.0
    %8705 = vmatpush1.msra.mxu0 0.0
    %8706 = vmatprep.subr.mxu0 0.0
    %8707 = vmatpush1.msra.mxu0 0.0
    %8708 = vmatprep.subr.mxu0 0.0
    %8709 = vmatpush1.msra.mxu0 0.0
    %8710 = vmatprep.subr.mxu0 0.0
    %8711 = vmatpush1.msra.mxu0 0.0
    %8712 = vmatprep.subr.mxu0 0.0
    %8713 = vmatpush1.msra.mxu0 0.0
    %8714 = vmatprep.subr.mxu0 0.0
    %8715 = vmatpush1.msra.mxu0 0.0
    %8716 = vmatprep.subr.mxu0 0.0
    %8717 = vmatpush1.msra.mxu0 0.0
    %8718 = vmatprep.subr.mxu0 0.0
    %8719 = vmatpush1.msra.mxu0 0.0
    %8720 = vmatprep.subr.mxu0 0.0
    %8721 = vmatpush1.msra.mxu0 0.0
    %8722 = vmatprep.subr.mxu0 0.0
    %8723 = vmatpush1.msra.mxu0 0.0
    %8724 = vmatprep.subr.mxu0 0.0
    %8725 = vmatpush1.msra.mxu0 0.0
    %8726 = vmatprep.subr.mxu0 0.0
    %8727 = vmatpush1.msra.mxu0 %v8696
    %8728 = vmatprep.subr.mxu0 0.0
    %8729 = vmatpush1.msra.mxu0 %v8695
    %8730 = vmatprep.subr.mxu0 0.0
    %8731 = vmatpush1.msra.mxu0 %v8694
    %8732 = vmatprep.subr.mxu0 0.0
    %8733 = vmatpush1.msra.mxu0 %v8693
    %8734 = vmatprep.subr.mxu0 0.0
    %8735 = vmatpush2.msra.mxu0 0.0
    %8736 = vmatprep.subr.mxu0 0.0
    %8737 = vmatpush2.msra.mxu0 0.0
    %8738 = vmatprep.subr.mxu0 0.0
    %8739 = vmatpush2.msra.mxu0 0.0
    %8740 = vmatprep.subr.mxu0 0.0
    %8741 = vmatpush2.msra.mxu0 0.0
    %8742 = vmatprep.subr.mxu0 0.0
    %8743 = vmatpush2.msra.mxu0 0.0
    %8744 = vmatprep.subr.mxu0 0.0
    %8745 = vmatpush2.msra.mxu0 0.0
    %8746 = vmatprep.subr.mxu0 0.0
    %8747 = vmatpush2.msra.mxu0 0.0
    %8748 = vmatprep.subr.mxu0 0.0
    %8749 = vmatpush2.msra.mxu0 0.0
    %8750 = vmatprep.subr.mxu0 0.0
    %8751 = vmatpush2.msra.mxu0 0.0
    %8752 = vmatprep.subr.mxu0 0.0
    %8753 = vmatpush2.msra.mxu0 0.0
    %8754 = vmatprep.subr.mxu0 0.0
    %8755 = vmatpush2.msra.mxu0 0.0
    %8756 = vmatprep.subr.mxu0 0.0
    %8757 = vmatpush2.msra.mxu0 0.0
    %8758 = vmatprep.subr.mxu0 0.0
    %8759 = vmatpush2.msra.mxu0 0.0
    %8760 = vmatprep.subr.mxu0 0.0
    %8761 = vmatpush2.msra.mxu0 0.0
    %8762 = vmatprep.subr.mxu0 0.0
    %8763 = vmatpush2.msra.mxu0 0.0
    %8764 = vmatprep.subr.mxu0 0.0
    %8765 = vmatpush2.msra.mxu0 0.0
    %8766 = vmatprep.mubr.f32.mxu0 0.0
    %8767 = vmatmul.mubr.f32.gmra.mxu0 %v8700
    %v8768 = vpop.f32.mrf.mxu0
    %v8769 = vadd.f32 0.0, %v8768
    %v8770 = vpop.f32.mrf.mxu0
    %8771 = vdwg.mxu0
    %8773 = vrot.lane.b32.xlu0 %v6568, 96
    %v8774 = vpop.permute.xlu0 %8773
    %v8775 = vsel %vm241, %v8774, 0
    %8777 = vmatprep.subr.mxu0 0.0
    %8778 = vmatpush1.msra.mxu0 0.0
    %8779 = vmatprep.subr.mxu0 0.0
    %8780 = vmatpush1.msra.mxu0 0.0
    %8781 = vmatprep.subr.mxu0 0.0
    %8782 = vmatpush1.msra.mxu0 0.0
    %8783 = vmatprep.subr.mxu0 0.0
    %8784 = vmatpush1.msra.mxu0 0.0
    %8785 = vmatprep.subr.mxu0 0.0
    %8786 = vmatpush1.msra.mxu0 0.0
    %8787 = vmatprep.subr.mxu0 0.0
    %8788 = vmatpush1.msra.mxu0 0.0
    %8789 = vmatprep.subr.mxu0 0.0
    %8790 = vmatpush1.msra.mxu0 0.0
    %8791 = vmatprep.subr.mxu0 0.0
    %8792 = vmatpush1.msra.mxu0 0.0
    %8793 = vmatprep.subr.mxu0 0.0
    %8794 = vmatpush1.msra.mxu0 0.0
    %8795 = vmatprep.subr.mxu0 0.0
    %8796 = vmatpush1.msra.mxu0 0.0
    %8797 = vmatprep.subr.mxu0 0.0
    %8798 = vmatpush1.msra.mxu0 0.0
    %8799 = vmatprep.subr.mxu0 0.0
    %8800 = vmatpush1.msra.mxu0 0.0
    %8801 = vmatprep.subr.mxu0 0.0
    %8802 = vmatpush1.msra.mxu0 %v8692
    %8803 = vmatprep.subr.mxu0 0.0
    %8804 = vmatpush1.msra.mxu0 %v8691
    %8805 = vmatprep.subr.mxu0 0.0
    %8806 = vmatpush1.msra.mxu0 %v8690
    %8807 = vmatprep.subr.mxu0 0.0
    %8808 = vmatpush1.msra.mxu0 %v8689
    %8809 = vmatprep.subr.mxu0 0.0
    %8810 = vmatpush2.msra.mxu0 0.0
    %8811 = vmatprep.subr.mxu0 0.0
    %8812 = vmatpush2.msra.mxu0 0.0
    %8813 = vmatprep.subr.mxu0 0.0
    %8814 = vmatpush2.msra.mxu0 0.0
    %8815 = vmatprep.subr.mxu0 0.0
    %8816 = vmatpush2.msra.mxu0 0.0
    %8817 = vmatprep.subr.mxu0 0.0
    %8818 = vmatpush2.msra.mxu0 0.0
    %8819 = vmatprep.subr.mxu0 0.0
    %8820 = vmatpush2.msra.mxu0 0.0
    %8821 = vmatprep.subr.mxu0 0.0
    %8822 = vmatpush2.msra.mxu0 0.0
    %8823 = vmatprep.subr.mxu0 0.0
    %8824 = vmatpush2.msra.mxu0 0.0
    %8825 = vmatprep.subr.mxu0 0.0
    %8826 = vmatpush2.msra.mxu0 0.0
    %8827 = vmatprep.subr.mxu0 0.0
    %8828 = vmatpush2.msra.mxu0 0.0
    %8829 = vmatprep.subr.mxu0 0.0
    %8830 = vmatpush2.msra.mxu0 0.0
    %8831 = vmatprep.subr.mxu0 0.0
    %8832 = vmatpush2.msra.mxu0 0.0
    %8833 = vmatprep.subr.mxu0 0.0
    %8834 = vmatpush2.msra.mxu0 0.0
    %8835 = vmatprep.subr.mxu0 0.0
    %8836 = vmatpush2.msra.mxu0 0.0
    %8837 = vmatprep.subr.mxu0 0.0
    %8838 = vmatpush2.msra.mxu0 0.0
    %8839 = vmatprep.subr.mxu0 0.0
    %8840 = vmatpush2.msra.mxu0 0.0
    %8841 = vmatprep.mubr.f32.mxu0 0.0
    %8842 = vmatmul.mubr.f32.gmra.mxu0 %v8775
    %v8843 = vpop.f32.mrf.mxu0
    %v8844 = vadd.f32 %v8769, %v8843
    %v8845 = vpop.f32.mrf.mxu0
    %8846 = vdwg.mxu0
    %v8847 = vld [vmem:[#allocation2] sm:$0x1]
    %v8849 = vlaneseq
    %v8850 = vshrl.u32 %v8849, 7
    %v8851 = vsub.s32 0, %v8850
    %v8852 = vrot.slane %v8847, %v8851
    %v8854 = vadd.f32 %v8844, %v8852
    %v8855 = vxor.u32 %v8854, 2147483648
    %v8856 = vmul.f32 %v8855, 1.442695
    %v8857 = vpow.pop %v8856
    %v8858 = vadd.f32 %v8857, 1.0
    %v8859 = vrcp.pop %v8858
    %v8860 = vmul.f32 1.0, %v8859
    %vm8861 = vcmask 1024
    %8862 = vst.msk [vmem:[%s18] sm:$0x3] %vm8861, %v8860
    // Predicated region
    $region98: #{fused_forward.1} parent=1 // pred_check
      _
    $region99: #{fused_forward.1} parent=1 // pred_check_branch
      %8864 = sbr.rel (0) target = $region101
    $region100: #{fused_forward.1} parent=1 // pred_region
      _
    $region101: #{fused_forward.1} parent=1 // pred_fallthru
      _
    // Predicated region
    $region102: #{fused_forward.1} parent=1 // pred_check
      _
    $region103: #{fused_forward.1} parent=1 // pred_check_branch
      %8866 = sbr.rel (0) target = $region105
    $region104: #{fused_forward.1} parent=1 // pred_region
      _
    $region105: #{fused_forward.1} parent=1 // pred_fallthru
      _
    %8867 = vsyncpa [#allocation4], 1
    %8868 = vsyncpa [#allocation6], 1
    %8869 = vsyncpa [#allocation9], 1
    %8870 = vsyncpa [#allocation12], 1

</llo_original>
